<compile_context>
chip_gen: v7x
topology: tpu7x:2x2x1
jax: 0.10.0
libtpu: 0.0.40
codegen_flags: <defaults>
</compile_context>

<pallas_src>
import numpy as np

import jax
import jax.numpy as jnp
from jax import lax
from jax.experimental import pallas as pl
from jax.experimental.pallas import tpu as pltpu

# ------------------------------------------------------------------ constants
ROWS, COLS = 6, 7
HP, WP = ROWS + 2, COLS + 2          # zero-padded board: 8 x 9
CIN = 3                              # real input channels (p1 / p2 / empty)
C1, C2 = 32, 64                      # conv filter counts
FC_H, VAL_H = 128, 64                # policy / value hidden widths
HEAD_IN = FC_H + VAL_H               # 192 fused [policy | value] width
FLAT = C2 * ROWS * COLS              # 2688 (torch flatten order c*42 + y*7 + x)
OUT_LANES = 128                      # single lane-dense output row per board
BN_EPS = 1e-5
KIN1 = 3 * WP * CIN                  # 81  : ky-fused conv1 contraction depth
WPC1 = WP * C1                       # 288 : conv1 output lanes
KIN2 = 3 * WPC1                      # 864 : ky-fused conv2 contraction depth
WPC2 = WP * C2                       # 576 : conv2 output lanes
MAX_TILE_BOARDS = 256                # boards per grid step (VMEM-sized)


def _round_up(n, m):
    return ((n + m - 1) // m) * m


def _cdiv(a, b):
    return -(-a // b)


# --------------------------------------------------------------------- kernel
def _connect4_kernel(x_ref, w1_ref, a1_ref, w2_ref, a2_ref,
                     wcat1_ref, ac1_ref, wcat2_ref, ac2_ref,
                     wh_ref, bh_ref, out_ref, hcat_ref):
    """One batch tile of tb boards; rows are board-row major (row = y*tb + b)."""
    tb = out_ref.shape[0]
    nri = ROWS * tb                       # 6 real board rows per board

    # conv1 + BN1 + ReLU.  The three ky taps are pre-fused along lanes in the
    # wrapper, so conv1 is a single K=81 matmul.  The a1 affine also zeroes the
    # padded x-border columns so conv2 sees exact zero padding.
    acc1 = jnp.dot(x_ref[...], w1_ref[...], preferred_element_type=jnp.float32)
    h1 = jnp.maximum(acc1 * a1_ref[0:1, :] + a1_ref[1:2, :], 0.0)
    h1 = h1.astype(jnp.bfloat16)          # (nri, 288)

    # Assemble conv2's ky-fused operand in VMEM: lane blocks [0:288 | 288:576 |
    # 576:864] hold h1 at board rows (y-1, y, y+1); the zero blocks realize the
    # y zero-padding.  Only sublane-aligned row-shifted slice stores, no
    # zero-concatenate copies / rolls.
    zb = jnp.zeros((tb, WPC1), jnp.bfloat16)
    hcat_ref[0:tb, 0:WPC1] = zb
    hcat_ref[tb:nri, 0:WPC1] = h1[0:nri - tb]
    hcat_ref[:, WPC1:2 * WPC1] = h1
    hcat_ref[0:nri - tb, 2 * WPC1:3 * WPC1] = h1[tb:nri]
    hcat_ref[nri - tb:nri, 2 * WPC1:3 * WPC1] = zb

    # conv2 + BN2 + ReLU: a single K=864 matmul.
    acc2 = jnp.dot(hcat_ref[...], w2_ref[...],
                   preferred_element_type=jnp.float32)
    h2 = jnp.maximum(acc2 * a2_ref[0:1, :] + a2_ref[1:2, :], 0.0)
    h2 = h2.astype(jnp.bfloat16)          # (nri, 576)

    # First FC of both heads fused ([policy 0:128 | value 128:192]).  The torch
    # flatten over the 6 real board rows is a sum of 6 row-block matmuls;
    # padded x positions carry zero weight rows, so no masking is needed.
    z1 = jnp.dot(h2[0:tb], wcat1_ref[0], preferred_element_type=jnp.float32)
    for y in range(1, ROWS):
        z1 = z1 + jnp.dot(h2[y * tb:(y + 1) * tb], wcat1_ref[y],
                          preferred_element_type=jnp.float32)
    hc1 = jnp.maximum(z1 * ac1_ref[0:1, :] + ac1_ref[1:2, :], 0.0)

    # Hidden FC of both heads (block-diagonal 192x192; fc2 bias folded in BN).
    z2 = jnp.dot(hc1.astype(jnp.bfloat16), wcat2_ref[...],
                 preferred_element_type=jnp.float32)
    hc2 = jnp.maximum(z2 * ac2_ref[0:1, :] + ac2_ref[1:2, :], 0.0)

    # Output heads packed into one lane-dense (tb, 128) slab:
    #   cols 0..6 = policy logits, col 7 = pre-tanh value, rest = 0.
    out = jnp.dot(hc2.astype(jnp.bfloat16), wh_ref[...],
                  preferred_element_type=jnp.float32)
    out_ref[...] = out + bh_ref[...]


# -------------------------------------------------------------------- wrapper
def _resident(arr):
    """Whole-array VMEM-resident weight block (single-buffered when supported)."""
    shape = tuple(arr.shape)
    imap = lambda i: (0,) * len(shape)
    try:
        return pl.BlockSpec(shape, imap, pipeline_mode=pl.Buffered(1))
    except Exception:  # older runtimes: fall back to the default pipelining
        return pl.BlockSpec(shape, imap)


@jax.jit
def connect4_forward(board, kp):
    """board: (B, 6, 7) or (6, 7) with values in {-1, 0, 1} -> (logits, value)."""
    squeeze = board.ndim == 2
    if squeeze:
        board = board[None]
    B = board.shape[0]

    # Batch tiling: multiple of 16 (bf16 sublane packing), balanced so that the
    # padding overhead stays small, and >=2 tiles when B > 16 (v7x megacore).
    ntiles = max(1, _cdiv(B, MAX_TILE_BOARDS))
    if B > 16:
        ntiles = max(ntiles, 2)
    tb = min(MAX_TILE_BOARDS, _round_up(_cdiv(B, ntiles), 16))
    ntiles = _cdiv(B, tb)
    Bp = ntiles * tb

    # board -> channels -> zero-padded 8x9 -> ky-fused conv1 operand (K=81).
    b = board.astype(jnp.float32)
    ch = jnp.stack([b == 1, b == -1, b == 0], axis=-1).astype(jnp.bfloat16)
    ch = jnp.pad(ch, ((0, Bp - B), (1, 1), (1, 1), (0, 0)))       # (Bp,8,9,3)
    xb = ch.reshape(Bp, HP, WP * CIN)                             # (Bp,8,27)
    xf = jnp.concatenate([xb[:, 0:ROWS], xb[:, 1:1 + ROWS], xb[:, 2:2 + ROWS]],
                         axis=-1)                                 # (Bp,6,81)
    # Per-tile board-row-major layout: row = tile*6*tb + y*tb + board_in_tile.
    x_enc = (xf.reshape(ntiles, tb, ROWS, KIN1)
               .transpose(0, 2, 1, 3)
               .reshape(ntiles * ROWS * tb, KIN1))

    flops = 2 * Bp * (ROWS * (KIN1 * WPC1 + KIN2 * WPC2 + WPC2 * HEAD_IN)
                      + HEAD_IN * HEAD_IN + HEAD_IN * OUT_LANES)
    weight_bytes = sum(int(v.size) * v.dtype.itemsize for v in kp.values())
    bytes_accessed = int(x_enc.size) * 2 + Bp * OUT_LANES * 4 + weight_bytes

    out = pl.pallas_call(
        _connect4_kernel,
        out_shape=jax.ShapeDtypeStruct((Bp, OUT_LANES), jnp.float32),
        grid=(ntiles,),
        in_specs=[
            pl.BlockSpec((ROWS * tb, KIN1), lambda i: (i, 0)),
            _resident(kp["w1"]), _resident(kp["a1"]),
            _resident(kp["w2"]), _resident(kp["a2"]),
            _resident(kp["wcat1"]), _resident(kp["ac1"]),
            _resident(kp["wcat2"]), _resident(kp["ac2"]),
            _resident(kp["wh"]), _resident(kp["bh"]),
        ],
        out_specs=pl.BlockSpec((tb, OUT_LANES), lambda i: (i, 0)),
        scratch_shapes=[pltpu.VMEM((ROWS * tb, KIN2), jnp.bfloat16)],
        compiler_params=pltpu.CompilerParams(
            dimension_semantics=("parallel",),
            vmem_limit_bytes=64 * 1024 * 1024),
        cost_estimate=pl.CostEstimate(flops=int(flops), transcendentals=0,
                                      bytes_accessed=int(bytes_accessed)),
    )(x_enc, kp["w1"], kp["a1"], kp["w2"], kp["a2"],
      kp["wcat1"], kp["ac1"], kp["wcat2"], kp["ac2"], kp["wh"], kp["bh"])

    logits = out[:B, :COLS]
    value = jnp.tanh(out[:B, COLS])
    if squeeze:
        return logits[0], value[0]
    return logits, value


# --------------------------------------------------------- parameter handling
def init_model_params(key):
    """Synthetic parameters in PyTorch layout (Linear: (out,in); Conv: OIHW)."""
    ks = jax.random.split(key, 17)

    def lin(k, o, i, s):
        return s * jax.random.normal(k, (o, i), jnp.float32)

    def vec(k, n, s):
        return s * jax.random.normal(k, (n,), jnp.float32)

    def bn(k, n):
        k1, k2, k3, k4 = jax.random.split(k, 4)
        return dict(gamma=1.0 + 0.05 * jax.random.normal(k1, (n,), jnp.float32),
                    beta=0.05 * jax.random.normal(k2, (n,), jnp.float32),
                    mean=0.05 * jax.random.normal(k3, (n,), jnp.float32),
                    var=1.0 + 0.1 * jax.random.uniform(k4, (n,), jnp.float32))

    return dict(
        conv1_w=0.20 * jax.random.normal(ks[0], (C1, 3, 3, 3), jnp.float32),
        bn1=bn(ks[1], C1),
        conv2_w=0.06 * jax.random.normal(ks[2], (C2, C1, 3, 3), jnp.float32),
        bn2=bn(ks[3], C2),
        fc1_w=lin(ks[4], FC_H, FLAT, 0.02), bnf1=bn(ks[5], FC_H),
        fc2_w=lin(ks[6], FC_H, FC_H, 0.09), fc2_b=vec(ks[7], FC_H, 0.05),
        bnf2=bn(ks[8], FC_H),
        fc3_w=lin(ks[9], COLS, FC_H, 0.09), fc3_b=vec(ks[10], COLS, 0.05),
        v1_w=lin(ks[11], VAL_H, FLAT, 0.02), bnv1=bn(ks[12], VAL_H),
        v2_w=lin(ks[13], VAL_H, VAL_H, 0.12), bnv2=bn(ks[14], VAL_H),
        v3_w=lin(ks[15], 1, VAL_H, 0.12), v3_b=vec(ks[16], 1, 0.05),
    )


def _bn_affine(s):
    sc = np.asarray(s["gamma"], np.float32) / np.sqrt(
        np.asarray(s["var"], np.float32) + BN_EPS)
    sh = np.asarray(s["beta"], np.float32) - np.asarray(s["mean"], np.float32) * sc
    return sc, sh


def _band_conv_weight(w_oihw, cin, cout):
    """(cout,cin,3,3) torch conv weight -> ky-fused banded (3*WP*cin, WP*cout)."""
    w = np.asarray(w_oihw, np.float32)
    wb = np.zeros((3, WP * cin, WP * cout), np.float32)
    for ky in range(3):
        for xp in range(WP):
            for kx in range(3):
                xin = xp + kx - 1
                if 0 <= xin < WP:
                    wb[ky, xin * cin:(xin + 1) * cin,
                       xp * cout:(xp + 1) * cout] = w[:, :, ky, kx].T
    return wb.reshape(3 * WP * cin, WP * cout)


def _scatter_flat_fc(w, out_dim):
    """(out, 2688) weight (torch flatten c*42+y*7+x) -> (ROWS, WP*C2, out)."""
    w4 = np.asarray(w, np.float32).reshape(out_dim, C2, ROWS, COLS)
    wp = np.zeros((out_dim, C2, ROWS, WP), np.float32)
    wp[:, :, :, 1:1 + COLS] = w4
    return wp.transpose(2, 3, 1, 0).reshape(ROWS, WP * C2, out_dim)


def prepare_kernel_params(p):
    """Fold eval-mode BatchNorms and repack weights into the kernel layout."""
    bf = lambda a: jnp.asarray(a).astype(jnp.bfloat16)
    f32 = lambda a: jnp.asarray(a, jnp.float32)

    # conv1: ky-fused banded weight, fold BN1, zero the padded x-border columns.
    wb1 = _band_conv_weight(p["conv1_w"], CIN, C1)
    s1, t1 = _bn_affine(p["bn1"])
    colmask = np.repeat((np.arange(WP) > 0) & (np.arange(WP) < WP - 1),
                        C1).astype(np.float32)
    a1 = np.stack([np.tile(s1, WP) * colmask, np.tile(t1, WP) * colmask])

    # conv2: ky-fused banded weight, fold BN2.
    wb2 = _band_conv_weight(p["conv2_w"], C1, C2)
    s2, t2 = _bn_affine(p["bn2"])
    a2 = np.stack([np.tile(s2, WP), np.tile(t2, WP)])

    # Fused first FC of both heads, scattered over the 6 real board rows only.
    wcat1 = np.concatenate([_scatter_flat_fc(p["fc1_w"], FC_H),
                            _scatter_flat_fc(p["v1_w"], VAL_H)], axis=2)
    # Invariant: x-border lane blocks stay zero (they absorb the garbage conv2
    # emits at the padded x columns).
    assert not wcat1[:, :C2, :].any() and not wcat1[:, (WP - 1) * C2:, :].any()
    sf1, tf1 = _bn_affine(p["bnf1"])
    sv1, tv1 = _bn_affine(p["bnv1"])
    ac1 = np.stack([np.concatenate([sf1, sv1]), np.concatenate([tf1, tv1])])

    # Fused hidden FC (block diagonal); fc2 bias folded into the BN shift.
    wcat2 = np.zeros((HEAD_IN, HEAD_IN), np.float32)
    wcat2[:FC_H, :FC_H] = np.asarray(p["fc2_w"], np.float32).T
    wcat2[FC_H:, FC_H:] = np.asarray(p["v2_w"], np.float32).T
    sf2, tf2 = _bn_affine(p["bnf2"])
    sv2, tv2 = _bn_affine(p["bnv2"])
    tf2 = np.asarray(p["fc2_b"], np.float32) * sf2 + tf2
    ac2 = np.stack([np.concatenate([sf2, sv2]), np.concatenate([tf2, tv2])])

    # Output heads packed into one lane-dense 128-wide slab.
    wh = np.zeros((HEAD_IN, OUT_LANES), np.float32)
    wh[:FC_H, :COLS] = np.asarray(p["fc3_w"], np.float32).T
    wh[FC_H:, COLS] = np.asarray(p["v3_w"], np.float32)[0]
    bh = np.zeros((1, OUT_LANES), np.float32)
    bh[0, :COLS] = np.asarray(p["fc3_b"], np.float32)
    bh[0, COLS] = np.asarray(p["v3_b"], np.float32)[0]

    return dict(w1=bf(wb1), a1=f32(a1), w2=bf(wb2), a2=f32(a2),
                wcat1=bf(wcat1), ac1=f32(ac1), wcat2=bf(wcat2), ac2=f32(ac2),
                wh=bf(wh), bh=f32(bh))


# ------------------------------------------------------------------ reference
def reference_forward(board, p):
    """Pure-JAX float32 reference of the PyTorch module (eval-mode BatchNorm)."""
    squeeze = board.ndim == 2
    if squeeze:
        board = board[None]
    b = board.astype(jnp.float32)
    x = jnp.stack([(b == 1).astype(jnp.float32),
                   (b == -1).astype(jnp.float32),
                   (b == 0).astype(jnp.float32)], axis=1)        # (B,3,6,7)

    def conv(x, w):
        return lax.conv_general_dilated(
            x, w, window_strides=(1, 1), padding=((1, 1), (1, 1)),
            dimension_numbers=("NCHW", "OIHW", "NCHW"))

    def bn(x, s):
        shape = (1, -1) + (1,) * (x.ndim - 2)
        return ((x - s["mean"].reshape(shape))
                / jnp.sqrt(s["var"].reshape(shape) + BN_EPS)
                * s["gamma"].reshape(shape) + s["beta"].reshape(shape))

    x = jnp.maximum(bn(conv(x, p["conv1_w"]), p["bn1"]), 0.0)
    x = jnp.maximum(bn(conv(x, p["conv2_w"]), p["bn2"]), 0.0)
    feat = x.reshape(x.shape[0], -1)

    h = jnp.maximum(bn(feat @ p["fc1_w"].T, p["bnf1"]), 0.0)
    h = jnp.maximum(bn(h @ p["fc2_w"].T + p["fc2_b"], p["bnf2"]), 0.0)
    logits = h @ p["fc3_w"].T + p["fc3_b"]

    v = jnp.maximum(bn(feat @ p["v1_w"].T, p["bnv1"]), 0.0)
    v = jnp.maximum(bn(v @ p["v2_w"].T, p["bnv2"]), 0.0)
    value = jnp.tanh((v @ p["v3_w"].T + p["v3_b"])[:, 0])

    if squeeze:
        return logits[0], value[0]
    return logits, value


# ----------------------------------------------------------------------- main
if __name__ == "__main__":
    key = jax.random.PRNGKey(0)
    pkey, xkey = jax.random.split(key)
    params = init_model_params(pkey)
    kparams = prepare_kernel_params(params)

    B = 5
    board = jax.random.randint(xkey, (B, ROWS, COLS), -1, 2).astype(jnp.float32)

    logits, value = connect4_forward(board, kparams)
    jax.block_until_ready((logits, value))

    ref_logits, ref_value = reference_forward(board, params)
    assert logits.shape == (B, COLS) and value.shape == (B,)
    assert jnp.allclose(logits, ref_logits, atol=5e-2, rtol=5e-2), (
        float(jnp.max(jnp.abs(logits - ref_logits))))
    assert jnp.allclose(value, ref_value, atol=5e-2, rtol=5e-2), (
        float(jnp.max(jnp.abs(value - ref_value))))

    # Single-board (2-D input) path, as in the PyTorch module.
    l1, v1 = connect4_forward(board[0], kparams)
    jax.block_until_ready((l1, v1))
    rl1, rv1 = reference_forward(board[0], params)
    assert l1.shape == (COLS,) and v1.shape == ()
    assert jnp.allclose(l1, rl1, atol=5e-2, rtol=5e-2)
    assert jnp.allclose(v1, rv1, atol=5e-2, rtol=5e-2)

    print("KERNEL_OK")
</pallas_src>

<mosaic_0001>
module attributes {stable_mosaic.version = 11 : i64} {
  func.func @_connect4_kernel(%arg0: i32, %arg1: memref<96x81xbf16, #tpu.memory_space<vmem>>, %arg2: memref<81x288xbf16, #tpu.memory_space<vmem>>, %arg3: memref<2x288xf32, #tpu.memory_space<vmem>>, %arg4: memref<864x576xbf16, #tpu.memory_space<vmem>>, %arg5: memref<2x576xf32, #tpu.memory_space<vmem>>, %arg6: memref<6x576x192xbf16, #tpu.memory_space<vmem>>, %arg7: memref<2x192xf32, #tpu.memory_space<vmem>>, %arg8: memref<192x192xbf16, #tpu.memory_space<vmem>>, %arg9: memref<2x192xf32, #tpu.memory_space<vmem>>, %arg10: memref<192x128xbf16, #tpu.memory_space<vmem>>, %arg11: memref<1x128xf32, #tpu.memory_space<vmem>>, %arg12: memref<16x128xf32, #tpu.memory_space<vmem>>, %arg13: memref<96x864xbf16, #tpu.memory_space<vmem>>) attributes {dimension_semantics = [#tpu.dimension_semantics<parallel>], iteration_bounds = array<i64: 1>, scalar_prefetch = 0 : i64, scratch_operands = 1 : i64, tpu.core_type = #tpu.core_type<tc>, window_params = [{transform_indices = @transform_0, window_bounds = array<i64: 96, 81>}, {pipeline_mode = #tpu.pipeline_mode<synchronous>, transform_indices = @transform_1, window_bounds = array<i64: 81, 288>}, {pipeline_mode = #tpu.pipeline_mode<synchronous>, transform_indices = @transform_2, window_bounds = array<i64: 2, 288>}, {pipeline_mode = #tpu.pipeline_mode<synchronous>, transform_indices = @transform_3, window_bounds = array<i64: 864, 576>}, {pipeline_mode = #tpu.pipeline_mode<synchronous>, transform_indices = @transform_4, window_bounds = array<i64: 2, 576>}, {pipeline_mode = #tpu.pipeline_mode<synchronous>, transform_indices = @transform_5, window_bounds = array<i64: 6, 576, 192>}, {pipeline_mode = #tpu.pipeline_mode<synchronous>, transform_indices = @transform_6, window_bounds = array<i64: 2, 192>}, {pipeline_mode = #tpu.pipeline_mode<synchronous>, transform_indices = @transform_7, window_bounds = array<i64: 192, 192>}, {pipeline_mode = #tpu.pipeline_mode<synchronous>, transform_indices = @transform_8, window_bounds = array<i64: 2, 192>}, {pipeline_mode = #tpu.pipeline_mode<synchronous>, transform_indices = @transform_9, window_bounds = array<i64: 192, 128>}, {pipeline_mode = #tpu.pipeline_mode<synchronous>, transform_indices = @transform_10, window_bounds = array<i64: 1, 128>}, {transform_indices = @transform_11, window_bounds = array<i64: 16, 128>}]} {
    %c0 = arith.constant 0 : index
    %c0_0 = arith.constant 0 : index
    %0 = vector.load %arg1[%c0, %c0_0] : memref<96x81xbf16, #tpu.memory_space<vmem>>, vector<96x81xbf16>
    %c0_1 = arith.constant 0 : index
    %c0_2 = arith.constant 0 : index
    %1 = vector.load %arg2[%c0_1, %c0_2] : memref<81x288xbf16, #tpu.memory_space<vmem>>, vector<81x288xbf16>
    %cst = arith.constant dense<0.000000e+00> : vector<96x288xf32>
    %2 = tpu.matmul %0, %1, %cst {dimension_numbers = #tpu.dot_dimension_numbers<[1], [0], [0], [1], [0, 0, 1, 1], [], []>} : vector<96x81xbf16>, vector<81x288xbf16>, vector<96x288xf32> -> vector<96x288xf32>
    %c0_3 = arith.constant 0 : index
    %c0_4 = arith.constant 0 : index
    %3 = vector.load %arg3[%c0_3, %c0_4] : memref<2x288xf32, #tpu.memory_space<vmem>>, vector<1x288xf32>
    %4 = vector.broadcast %3 : vector<1x288xf32> to vector<96x288xf32>
    %5 = arith.mulf %2, %4 : vector<96x288xf32>
    %c1 = arith.constant 1 : index
    %c0_5 = arith.constant 0 : index
    %6 = vector.load %arg3[%c1, %c0_5] : memref<2x288xf32, #tpu.memory_space<vmem>>, vector<1x288xf32>
    %7 = vector.broadcast %6 : vector<1x288xf32> to vector<96x288xf32>
    %8 = arith.addf %5, %7 : vector<96x288xf32>
    %cst_6 = arith.constant 0.000000e+00 : f32
    %9 = vector.broadcast %cst_6 : f32 to vector<96x288xf32>
    %10 = arith.maximumf %8, %9 : vector<96x288xf32>
    %11 = arith.truncf %10 : vector<96x288xf32> to vector<96x288xbf16>
    %cst_7 = arith.constant 0.000000e+00 : bf16
    %12 = vector.broadcast %cst_7 : bf16 to vector<16x288xbf16>
    %c0_8 = arith.constant 0 : index
    %c0_9 = arith.constant 0 : index
    %13 = vector.load %arg13[%c0_8, %c0_9] : memref<96x864xbf16, #tpu.memory_space<vmem>>, vector<16x288xbf16>
    tpu.vector_store %arg13[%c0_8, %c0_9], %12 {strides = array<i32>} : memref<96x864xbf16, #tpu.memory_space<vmem>>, vector<16x288xbf16>,
    %14 = vector.extract_strided_slice %11 {offsets = [0, 0], sizes = [80, 288], strides = [1, 1]} : vector<96x288xbf16> to vector<80x288xbf16>
    %c16 = arith.constant 16 : index
    %c0_10 = arith.constant 0 : index
    %15 = vector.load %arg13[%c16, %c0_10] : memref<96x864xbf16, #tpu.memory_space<vmem>>, vector<80x288xbf16>
    tpu.vector_store %arg13[%c16, %c0_10], %14 {strides = array<i32>} : memref<96x864xbf16, #tpu.memory_space<vmem>>, vector<80x288xbf16>,
    %c0_11 = arith.constant 0 : index
    %c288 = arith.constant 288 : index
    %16 = vector.load %arg13[%c0_11, %c288] : memref<96x864xbf16, #tpu.memory_space<vmem>>, vector<96x288xbf16>
    tpu.vector_store %arg13[%c0_11, %c288], %11 {strides = array<i32>} : memref<96x864xbf16, #tpu.memory_space<vmem>>, vector<96x288xbf16>,
    %17 = vector.extract_strided_slice %11 {offsets = [16, 0], sizes = [80, 288], strides = [1, 1]} : vector<96x288xbf16> to vector<80x288xbf16>
    %c0_12 = arith.constant 0 : index
    %c576 = arith.constant 576 : index
    %18 = vector.load %arg13[%c0_12, %c576] : memref<96x864xbf16, #tpu.memory_space<vmem>>, vector<80x288xbf16>
    tpu.vector_store %arg13[%c0_12, %c576], %17 {strides = array<i32>} : memref<96x864xbf16, #tpu.memory_space<vmem>>, vector<80x288xbf16>,
    %c80 = arith.constant 80 : index
    %c576_13 = arith.constant 576 : index
    %19 = vector.load %arg13[%c80, %c576_13] : memref<96x864xbf16, #tpu.memory_space<vmem>>, vector<16x288xbf16>
    tpu.vector_store %arg13[%c80, %c576_13], %12 {strides = array<i32>} : memref<96x864xbf16, #tpu.memory_space<vmem>>, vector<16x288xbf16>,
    %c0_14 = arith.constant 0 : index
    %c0_15 = arith.constant 0 : index
    %20 = vector.load %arg13[%c0_14, %c0_15] : memref<96x864xbf16, #tpu.memory_space<vmem>>, vector<96x864xbf16>
    %c0_16 = arith.constant 0 : index
    %c0_17 = arith.constant 0 : index
    %21 = vector.load %arg4[%c0_16, %c0_17] : memref<864x576xbf16, #tpu.memory_space<vmem>>, vector<864x576xbf16>
    %cst_18 = arith.constant dense<0.000000e+00> : vector<96x576xf32>
    %22 = tpu.matmul %20, %21, %cst_18 {dimension_numbers = #tpu.dot_dimension_numbers<[1], [0], [0], [1], [0, 0, 1, 1], [], []>} : vector<96x864xbf16>, vector<864x576xbf16>, vector<96x576xf32> -> vector<96x576xf32>
    %c0_19 = arith.constant 0 : index
    %c0_20 = arith.constant 0 : index
    %23 = vector.load %arg5[%c0_19, %c0_20] : memref<2x576xf32, #tpu.memory_space<vmem>>, vector<1x576xf32>
    %24 = vector.broadcast %23 : vector<1x576xf32> to vector<96x576xf32>
    %25 = arith.mulf %22, %24 : vector<96x576xf32>
    %c1_21 = arith.constant 1 : index
    %c0_22 = arith.constant 0 : index
    %26 = vector.load %arg5[%c1_21, %c0_22] : memref<2x576xf32, #tpu.memory_space<vmem>>, vector<1x576xf32>
    %27 = vector.broadcast %26 : vector<1x576xf32> to vector<96x576xf32>
    %28 = arith.addf %25, %27 : vector<96x576xf32>
    %cst_23 = arith.constant 0.000000e+00 : f32
    %29 = vector.broadcast %cst_23 : f32 to vector<96x576xf32>
    %30 = arith.maximumf %28, %29 : vector<96x576xf32>
    %31 = arith.truncf %30 : vector<96x576xf32> to vector<96x576xbf16>
    %32 = vector.extract_strided_slice %31 {offsets = [0, 0], sizes = [16, 576], strides = [1, 1]} : vector<96x576xbf16> to vector<16x576xbf16>
    %c0_24 = arith.constant 0 : index
    %c0_25 = arith.constant 0 : index
    %c0_26 = arith.constant 0 : index
    %33 = vector.load %arg6[%c0_24, %c0_25, %c0_26] : memref<6x576x192xbf16, #tpu.memory_space<vmem>>, vector<1x576x192xbf16>
    %34 = vector.shape_cast %33 : vector<1x576x192xbf16> to vector<576x192xbf16>
    %cst_27 = arith.constant dense<0.000000e+00> : vector<16x192xf32>
    %35 = tpu.matmul %32, %34, %cst_27 {dimension_numbers = #tpu.dot_dimension_numbers<[1], [0], [0], [1], [0, 0, 1, 1], [], []>} : vector<16x576xbf16>, vector<576x192xbf16>, vector<16x192xf32> -> vector<16x192xf32>
    %36 = vector.extract_strided_slice %31 {offsets = [16, 0], sizes = [16, 576], strides = [1, 1]} : vector<96x576xbf16> to vector<16x576xbf16>
    %c1_28 = arith.constant 1 : index
    %c0_29 = arith.constant 0 : index
    %c0_30 = arith.constant 0 : index
    %37 = vector.load %arg6[%c1_28, %c0_29, %c0_30] : memref<6x576x192xbf16, #tpu.memory_space<vmem>>, vector<1x576x192xbf16>
    %38 = vector.shape_cast %37 : vector<1x576x192xbf16> to vector<576x192xbf16>
    %cst_31 = arith.constant dense<0.000000e+00> : vector<16x192xf32>
    %39 = tpu.matmul %36, %38, %cst_31 {dimension_numbers = #tpu.dot_dimension_numbers<[1], [0], [0], [1], [0, 0, 1, 1], [], []>} : vector<16x576xbf16>, vector<576x192xbf16>, vector<16x192xf32> -> vector<16x192xf32>
    %40 = arith.addf %35, %39 : vector<16x192xf32>
    %41 = vector.extract_strided_slice %31 {offsets = [32, 0], sizes = [16, 576], strides = [1, 1]} : vector<96x576xbf16> to vector<16x576xbf16>
    %c2 = arith.constant 2 : index
    %c0_32 = arith.constant 0 : index
    %c0_33 = arith.constant 0 : index
    %42 = vector.load %arg6[%c2, %c0_32, %c0_33] : memref<6x576x192xbf16, #tpu.memory_space<vmem>>, vector<1x576x192xbf16>
    %43 = vector.shape_cast %42 : vector<1x576x192xbf16> to vector<576x192xbf16>
    %cst_34 = arith.constant dense<0.000000e+00> : vector<16x192xf32>
    %44 = tpu.matmul %41, %43, %cst_34 {dimension_numbers = #tpu.dot_dimension_numbers<[1], [0], [0], [1], [0, 0, 1, 1], [], []>} : vector<16x576xbf16>, vector<576x192xbf16>, vector<16x192xf32> -> vector<16x192xf32>
    %45 = arith.addf %40, %44 : vector<16x192xf32>
    %46 = vector.extract_strided_slice %31 {offsets = [48, 0], sizes = [16, 576], strides = [1, 1]} : vector<96x576xbf16> to vector<16x576xbf16>
    %c3 = arith.constant 3 : index
    %c0_35 = arith.constant 0 : index
    %c0_36 = arith.constant 0 : index
    %47 = vector.load %arg6[%c3, %c0_35, %c0_36] : memref<6x576x192xbf16, #tpu.memory_space<vmem>>, vector<1x576x192xbf16>
    %48 = vector.shape_cast %47 : vector<1x576x192xbf16> to vector<576x192xbf16>
    %cst_37 = arith.constant dense<0.000000e+00> : vector<16x192xf32>
    %49 = tpu.matmul %46, %48, %cst_37 {dimension_numbers = #tpu.dot_dimension_numbers<[1], [0], [0], [1], [0, 0, 1, 1], [], []>} : vector<16x576xbf16>, vector<576x192xbf16>, vector<16x192xf32> -> vector<16x192xf32>
    %50 = arith.addf %45, %49 : vector<16x192xf32>
    %51 = vector.extract_strided_slice %31 {offsets = [64, 0], sizes = [16, 576], strides = [1, 1]} : vector<96x576xbf16> to vector<16x576xbf16>
    %c4 = arith.constant 4 : index
    %c0_38 = arith.constant 0 : index
    %c0_39 = arith.constant 0 : index
    %52 = vector.load %arg6[%c4, %c0_38, %c0_39] : memref<6x576x192xbf16, #tpu.memory_space<vmem>>, vector<1x576x192xbf16>
    %53 = vector.shape_cast %52 : vector<1x576x192xbf16> to vector<576x192xbf16>
    %cst_40 = arith.constant dense<0.000000e+00> : vector<16x192xf32>
    %54 = tpu.matmul %51, %53, %cst_40 {dimension_numbers = #tpu.dot_dimension_numbers<[1], [0], [0], [1], [0, 0, 1, 1], [], []>} : vector<16x576xbf16>, vector<576x192xbf16>, vector<16x192xf32> -> vector<16x192xf32>
    %55 = arith.addf %50, %54 : vector<16x192xf32>
    %56 = vector.extract_strided_slice %31 {offsets = [80, 0], sizes = [16, 576], strides = [1, 1]} : vector<96x576xbf16> to vector<16x576xbf16>
    %c5 = arith.constant 5 : index
    %c0_41 = arith.constant 0 : index
    %c0_42 = arith.constant 0 : index
    %57 = vector.load %arg6[%c5, %c0_41, %c0_42] : memref<6x576x192xbf16, #tpu.memory_space<vmem>>, vector<1x576x192xbf16>
    %58 = vector.shape_cast %57 : vector<1x576x192xbf16> to vector<576x192xbf16>
    %cst_43 = arith.constant dense<0.000000e+00> : vector<16x192xf32>
    %59 = tpu.matmul %56, %58, %cst_43 {dimension_numbers = #tpu.dot_dimension_numbers<[1], [0], [0], [1], [0, 0, 1, 1], [], []>} : vector<16x576xbf16>, vector<576x192xbf16>, vector<16x192xf32> -> vector<16x192xf32>
    %60 = arith.addf %55, %59 : vector<16x192xf32>
    %c0_44 = arith.constant 0 : index
    %c0_45 = arith.constant 0 : index
    %61 = vector.load %arg7[%c0_44, %c0_45] : memref<2x192xf32, #tpu.memory_space<vmem>>, vector<1x192xf32>
    %62 = vector.broadcast %61 : vector<1x192xf32> to vector<16x192xf32>
    %63 = arith.mulf %60, %62 : vector<16x192xf32>
    %c1_46 = arith.constant 1 : index
    %c0_47 = arith.constant 0 : index
    %64 = vector.load %arg7[%c1_46, %c0_47] : memref<2x192xf32, #tpu.memory_space<vmem>>, vector<1x192xf32>
    %65 = vector.broadcast %64 : vector<1x192xf32> to vector<16x192xf32>
    %66 = arith.addf %63, %65 : vector<16x192xf32>
    %cst_48 = arith.constant 0.000000e+00 : f32
    %67 = vector.broadcast %cst_48 : f32 to vector<16x192xf32>
    %68 = arith.maximumf %66, %67 : vector<16x192xf32>
    %69 = arith.truncf %68 : vector<16x192xf32> to vector<16x192xbf16>
    %c0_49 = arith.constant 0 : index
    %c0_50 = arith.constant 0 : index
    %70 = vector.load %arg8[%c0_49, %c0_50] : memref<192x192xbf16, #tpu.memory_space<vmem>>, vector<192x192xbf16>
    %cst_51 = arith.constant dense<0.000000e+00> : vector<16x192xf32>
    %71 = tpu.matmul %69, %70, %cst_51 {dimension_numbers = #tpu.dot_dimension_numbers<[1], [0], [0], [1], [0, 0, 1, 1], [], []>} : vector<16x192xbf16>, vector<192x192xbf16>, vector<16x192xf32> -> vector<16x192xf32>
    %c0_52 = arith.constant 0 : index
    %c0_53 = arith.constant 0 : index
    %72 = vector.load %arg9[%c0_52, %c0_53] : memref<2x192xf32, #tpu.memory_space<vmem>>, vector<1x192xf32>
    %73 = vector.broadcast %72 : vector<1x192xf32> to vector<16x192xf32>
    %74 = arith.mulf %71, %73 : vector<16x192xf32>
    %c1_54 = arith.constant 1 : index
    %c0_55 = arith.constant 0 : index
    %75 = vector.load %arg9[%c1_54, %c0_55] : memref<2x192xf32, #tpu.memory_space<vmem>>, vector<1x192xf32>
    %76 = vector.broadcast %75 : vector<1x192xf32> to vector<16x192xf32>
    %77 = arith.addf %74, %76 : vector<16x192xf32>
    %cst_56 = arith.constant 0.000000e+00 : f32
    %78 = vector.broadcast %cst_56 : f32 to vector<16x192xf32>
    %79 = arith.maximumf %77, %78 : vector<16x192xf32>
    %80 = arith.truncf %79 : vector<16x192xf32> to vector<16x192xbf16>
    %c0_57 = arith.constant 0 : index
    %c0_58 = arith.constant 0 : index
    %81 = vector.load %arg10[%c0_57, %c0_58] : memref<192x128xbf16, #tpu.memory_space<vmem>>, vector<192x128xbf16>
    %cst_59 = arith.constant dense<0.000000e+00> : vector<16x128xf32>
    %82 = tpu.matmul %80, %81, %cst_59 {dimension_numbers = #tpu.dot_dimension_numbers<[1], [0], [0], [1], [0, 0, 1, 1], [], []>} : vector<16x192xbf16>, vector<192x128xbf16>, vector<16x128xf32> -> vector<16x128xf32>
    %c0_60 = arith.constant 0 : index
    %c0_61 = arith.constant 0 : index
    %83 = vector.load %arg11[%c0_60, %c0_61] : memref<1x128xf32, #tpu.memory_space<vmem>>, vector<1x128xf32>
    %84 = vector.broadcast %83 : vector<1x128xf32> to vector<16x128xf32>
    %85 = arith.addf %82, %84 : vector<16x128xf32>
    %c0_62 = arith.constant 0 : index
    %c0_63 = arith.constant 0 : index
    %86 = vector.load %arg12[%c0_62, %c0_63] : memref<16x128xf32, #tpu.memory_space<vmem>>, vector<16x128xf32>
    tpu.vector_store %arg12[%c0_62, %c0_63], %85 {strides = array<i32>} : memref<16x128xf32, #tpu.memory_space<vmem>>, vector<16x128xf32>,
    return
  }
  func.func @transform_0(%arg0: i32) -> (i32, i32) {
    %c0_i32 = arith.constant 0 : i32
    %c0_i32_0 = arith.constant 0 : i32
    return %arg0, %c0_i32 : i32, i32
  }
  func.func @transform_1(%arg0: i32) -> (i32, i32) {
    %c0_i32 = arith.constant 0 : i32
    %c0_i32_0 = arith.constant 0 : i32
    %c0_i32_1 = arith.constant 0 : i32
    return %c0_i32, %c0_i32_0 : i32, i32
  }
  func.func @transform_2(%arg0: i32) -> (i32, i32) {
    %c0_i32 = arith.constant 0 : i32
    %c0_i32_0 = arith.constant 0 : i32
    %c0_i32_1 = arith.constant 0 : i32
    return %c0_i32, %c0_i32_0 : i32, i32
  }
  func.func @transform_3(%arg0: i32) -> (i32, i32) {
    %c0_i32 = arith.constant 0 : i32
    %c0_i32_0 = arith.constant 0 : i32
    %c0_i32_1 = arith.constant 0 : i32
    return %c0_i32, %c0_i32_0 : i32, i32
  }
  func.func @transform_4(%arg0: i32) -> (i32, i32) {
    %c0_i32 = arith.constant 0 : i32
    %c0_i32_0 = arith.constant 0 : i32
    %c0_i32_1 = arith.constant 0 : i32
    return %c0_i32, %c0_i32_0 : i32, i32
  }
  func.func @transform_5(%arg0: i32) -> (i32, i32, i32) {
    %c0_i32 = arith.constant 0 : i32
    %c0_i32_0 = arith.constant 0 : i32
    %c0_i32_1 = arith.constant 0 : i32
    %c0_i32_2 = arith.constant 0 : i32
    return %c0_i32, %c0_i32_0, %c0_i32_1 : i32, i32, i32
  }
  func.func @transform_6(%arg0: i32) -> (i32, i32) {
    %c0_i32 = arith.constant 0 : i32
    %c0_i32_0 = arith.constant 0 : i32
    %c0_i32_1 = arith.constant 0 : i32
    return %c0_i32, %c0_i32_0 : i32, i32
  }
  func.func @transform_7(%arg0: i32) -> (i32, i32) {
    %c0_i32 = arith.constant 0 : i32
    %c0_i32_0 = arith.constant 0 : i32
    %c0_i32_1 = arith.constant 0 : i32
    return %c0_i32, %c0_i32_0 : i32, i32
  }
  func.func @transform_8(%arg0: i32) -> (i32, i32) {
    %c0_i32 = arith.constant 0 : i32
    %c0_i32_0 = arith.constant 0 : i32
    %c0_i32_1 = arith.constant 0 : i32
    return %c0_i32, %c0_i32_0 : i32, i32
  }
  func.func @transform_9(%arg0: i32) -> (i32, i32) {
    %c0_i32 = arith.constant 0 : i32
    %c0_i32_0 = arith.constant 0 : i32
    %c0_i32_1 = arith.constant 0 : i32
    return %c0_i32, %c0_i32_0 : i32, i32
  }
  func.func @transform_10(%arg0: i32) -> (i32, i32) {
    %c0_i32 = arith.constant 0 : i32
    %c0_i32_0 = arith.constant 0 : i32
    %c0_i32_1 = arith.constant 0 : i32
    return %c0_i32, %c0_i32_0 : i32, i32
  }
  func.func @transform_11(%arg0: i32) -> (i32, i32) {
    %c0_i32 = arith.constant 0 : i32
    %c0_i32_0 = arith.constant 0 : i32
    return %arg0, %c0_i32 : i32, i32
  }
}

</mosaic_0001>

<llo_original>
// kernel: connect4_forward.1
$region0: #{connect4_forward.1}
  #allocation0 [shape = 'u32[]', space=smem, size = 0x4, offset = 0x4, fixed_abs, tag = 'smem constant byte address 0x4 - core index']
  #allocation1 [shape = 'u32[144,128]{1,0:T(1,128)}', space=vmem, size = 0x12000, scoped, tag = 'internal scratch']
  #allocation2 [shape = 'bf16[96,864]{1,0:T(16,128)(2,1)}', space=vmem, size = 0x2a000, scoped, tag = 'scratch operand']
  %s0 = inlined_call_operand.hbm [shape: bf16[96,81], index: 0, kind: input, shape index: {}]
  %s1 = inlined_call_operand.hbm [shape: bf16[81,288], index: 1, kind: input, shape index: {}]
  %s2 = inlined_call_operand.hbm [shape: f32[2,288], index: 2, kind: input, shape index: {}]
  %s3 = inlined_call_operand.hbm [shape: bf16[864,576], index: 3, kind: input, shape index: {}]
  %s4 = inlined_call_operand.hbm [shape: f32[2,576], index: 4, kind: input, shape index: {}]
  %s5 = inlined_call_operand.hbm [shape: bf16[6,576,192], index: 5, kind: input, shape index: {}]
  %s6 = inlined_call_operand.hbm [shape: f32[2,192], index: 6, kind: input, shape index: {}]
  %s7 = inlined_call_operand.hbm [shape: bf16[192,192], index: 7, kind: input, shape index: {}]
  %s8 = inlined_call_operand.hbm [shape: f32[2,192], index: 8, kind: input, shape index: {}]
  %s9 = inlined_call_operand.hbm [shape: bf16[192,128], index: 9, kind: input, shape index: {}]
  %s10 = inlined_call_operand.hbm [shape: f32[1,128], index: 10, kind: input, shape index: {}]
  %s11 = inlined_call_operand.hbm [shape: f32[16,128], index: 11, kind: output, shape index: {}]
  %s12 = sld [smem:[#allocation0]]
  $region98: #{connect4_forward.1} parent=0
    _
  %s14 = ssub.s32 1, %s12
  %s15 = scalar_select 0, %s14, %s12
  $region1: #{connect4_forward.1} parent=0
    #allocation3 [shape = 'u8[24576]{0}', space=vmem, size = 0x6000, scoped, tag = 'input window, operand 0, single buffered']
    #allocation4 [shape = 's32[1]{0}', space=sflag, size = 0x4, scoped, tag = 'scoped memory for connect4_forward.1']
    #allocation5 [shape = 's32[1]{0}', space=sflag, size = 0x4, scoped, tag = 'scoped memory for connect4_forward.1']
    #allocation6 [shape = 'u8[67584]{0}', space=vmem, size = 0x10800, scoped, tag = 'input window, operand 1, single buffered']
    #allocation7 [shape = 's32[1]{0}', space=sflag, size = 0x4, scoped, tag = 'scoped memory for connect4_forward.1']
    #allocation8 [shape = 'u8[3072]{0}', space=vmem, size = 0xc00, scoped, tag = 'input window, operand 2, single buffered']
    #allocation9 [shape = 'u8[1105920]{0}', space=vmem, size = 0x10e000, scoped, tag = 'input window, operand 3, single buffered']
    #allocation10 [shape = 's32[1]{0}', space=sflag, size = 0x4, scoped, tag = 'scoped memory for connect4_forward.1']
    #allocation11 [shape = 'u8[5120]{0}', space=vmem, size = 0x1400, scoped, tag = 'input window, operand 4, single buffered']
    #allocation12 [shape = 'u8[1769472]{0}', space=vmem, size = 0x1b0000, scoped, tag = 'input window, operand 5, single buffered']
    #allocation13 [shape = 's32[1]{0}', space=sflag, size = 0x4, scoped, tag = 'scoped memory for connect4_forward.1']
    #allocation14 [shape = 'u8[2048]{0}', space=vmem, size = 0x800, scoped, tag = 'input window, operand 6, single buffered']
    #allocation15 [shape = 'u8[98304]{0}', space=vmem, size = 0x18000, scoped, tag = 'input window, operand 7, single buffered']
    #allocation16 [shape = 's32[1]{0}', space=sflag, size = 0x4, scoped, tag = 'scoped memory for connect4_forward.1']
    #allocation17 [shape = 'u8[2048]{0}', space=vmem, size = 0x800, scoped, tag = 'input window, operand 8, single buffered']
    #allocation18 [shape = 'u8[49152]{0}', space=vmem, size = 0xc000, scoped, tag = 'input window, operand 9, single buffered']
    #allocation19 [shape = 's32[1]{0}', space=sflag, size = 0x4, scoped, tag = 'scoped memory for connect4_forward.1']
    #allocation20 [shape = 'u8[512]{0}', space=vmem, size = 0x400, scoped, tag = 'input window, operand 10, single buffered']
    #allocation21 [shape = 'u8[8192]{0}', space=vmem, size = 0x2000, scoped, tag = 'output window, operand 0, single buffered']
    %16 = vsyncpa [#allocation4], 0
    %17 = vsyncpa [#allocation7], 0
    %18 = vsyncpa [#allocation10], 0
    %19 = vsyncpa [#allocation13], 0
    %20 = vsyncpa [#allocation16], 0
    %21 = vsyncpa [#allocation19], 0
    %22 = vsyncpa [#allocation5], 0
    // Predicated region
    $region2: #{connect4_forward.1} parent=1 // pred_check
      _
    $region3: #{connect4_forward.1} parent=1 // pred_check_branch
      %24 = sbr.rel (0) target = $region5
    $region4: #{connect4_forward.1} parent=1 // pred_region
      %s26 = ssub.s32 768, 768
      %27 = vsyncadd [#allocation4], %s26
      %s28 = sshll.u32 [#allocation3], 4
      %s29 = int_to_ptr.vmem [resolvable:$true] %s28
      %34 = dma.hbm_to_vmem [thread:$0]  %s0, 768, %s29, [#allocation4], 64, 64, 4
    $region5: #{connect4_forward.1} parent=1 // pred_fallthru
      _
    // Predicated region
    $region6: #{connect4_forward.1} parent=1 // pred_check
      _
    $region7: #{connect4_forward.1} parent=1 // pred_check_branch
      %36 = sbr.rel (0) target = $region9
    $region8: #{connect4_forward.1} parent=1 // pred_region
      %s38 = ssub.s32 2112, 2112
      %39 = vsyncadd [#allocation7], %s38
      %s40 = sshll.u32 [#allocation6], 4
      %s41 = int_to_ptr.vmem [resolvable:$true] %s40
      %46 = dma.hbm_to_vmem [thread:$0]  %s1, 2112, %s41, [#allocation7], 192, 192, 12
    $region9: #{connect4_forward.1} parent=1 // pred_fallthru
      _
    // Predicated region
    $region10: #{connect4_forward.1} parent=1 // pred_check
      _
    $region11: #{connect4_forward.1} parent=1 // pred_check_branch
      %48 = sbr.rel (0) target = $region13
    $region12: #{connect4_forward.1} parent=1 // pred_region
      %s50 = ssub.s32 96, 96
      %51 = vsyncadd [#allocation7], %s50
      %s53 = sshll.u32 [#allocation8], 4
      %s54 = int_to_ptr.vmem [resolvable:$true] %s53
      %56 = dma.hbm_to_vmem [thread:$0]  %s2, 96, %s54, [#allocation7]
    $region13: #{connect4_forward.1} parent=1 // pred_fallthru
      _
    // Predicated region
    $region14: #{connect4_forward.1} parent=1 // pred_check
      _
    $region15: #{connect4_forward.1} parent=1 // pred_check_branch
      %58 = sbr.rel (0) target = $region17
    $region16: #{connect4_forward.1} parent=1 // pred_region
      %s60 = ssub.s32 34560, 34560
      %61 = vsyncadd [#allocation10], %s60
      %s62 = sshll.u32 [#allocation9], 4
      %s63 = int_to_ptr.vmem [resolvable:$true] %s62
      %68 = dma.hbm_to_vmem [thread:$0]  %s3, 34560, %s63, [#allocation10], 320, 320, 20
    $region17: #{connect4_forward.1} parent=1 // pred_fallthru
      _
    // Predicated region
    $region18: #{connect4_forward.1} parent=1 // pred_check
      _
    $region19: #{connect4_forward.1} parent=1 // pred_check_branch
      %70 = sbr.rel (0) target = $region21
    $region20: #{connect4_forward.1} parent=1 // pred_region
      %s72 = ssub.s32 160, 160
      %73 = vsyncadd [#allocation10], %s72
      %s75 = sshll.u32 [#allocation11], 4
      %s76 = int_to_ptr.vmem [resolvable:$true] %s75
      %78 = dma.hbm_to_vmem [thread:$0]  %s4, 160, %s76, [#allocation10]
    $region21: #{connect4_forward.1} parent=1 // pred_fallthru
      _
    // Predicated region
    $region22: #{connect4_forward.1} parent=1 // pred_check
      _
    $region23: #{connect4_forward.1} parent=1 // pred_check_branch
      %80 = sbr.rel (0) target = $region25
    $region24: #{connect4_forward.1} parent=1 // pred_region
      %s82 = ssub.s32 55296, 55296
      %83 = vsyncadd [#allocation13], %s82
      %s84 = sshll.u32 [#allocation12], 4
      %s85 = int_to_ptr.vmem [resolvable:$true] %s84
      %90 = dma.hbm_to_vmem [thread:$0]  %s5, 55296, %s85, [#allocation13], 128, 128, 8
    $region25: #{connect4_forward.1} parent=1 // pred_fallthru
      _
    // Predicated region
    $region26: #{connect4_forward.1} parent=1 // pred_check
      _
    $region27: #{connect4_forward.1} parent=1 // pred_check_branch
      %92 = sbr.rel (0) target = $region29
    $region28: #{connect4_forward.1} parent=1 // pred_region
      %s94 = ssub.s32 64, 64
      %95 = vsyncadd [#allocation13], %s94
      %s97 = sshll.u32 [#allocation14], 4
      %s98 = int_to_ptr.vmem [resolvable:$true] %s97
      %100 = dma.hbm_to_vmem [thread:$0]  %s6, 64, %s98, [#allocation13]
    $region29: #{connect4_forward.1} parent=1 // pred_fallthru
      _
    // Predicated region
    $region30: #{connect4_forward.1} parent=1 // pred_check
      _
    $region31: #{connect4_forward.1} parent=1 // pred_check_branch
      %102 = sbr.rel (0) target = $region33
    $region32: #{connect4_forward.1} parent=1 // pred_region
      %s104 = ssub.s32 3072, 3072
      %105 = vsyncadd [#allocation16], %s104
      %s106 = sshll.u32 [#allocation15], 4
      %s107 = int_to_ptr.vmem [resolvable:$true] %s106
      %112 = dma.hbm_to_vmem [thread:$0]  %s7, 3072, %s107, [#allocation16], 128, 128, 8
    $region33: #{connect4_forward.1} parent=1 // pred_fallthru
      _
    // Predicated region
    $region34: #{connect4_forward.1} parent=1 // pred_check
      _
    $region35: #{connect4_forward.1} parent=1 // pred_check_branch
      %114 = sbr.rel (0) target = $region37
    $region36: #{connect4_forward.1} parent=1 // pred_region
      %s116 = ssub.s32 64, 64
      %117 = vsyncadd [#allocation16], %s116
      %s119 = sshll.u32 [#allocation17], 4
      %s120 = int_to_ptr.vmem [resolvable:$true] %s119
      %122 = dma.hbm_to_vmem [thread:$0]  %s8, 64, %s120, [#allocation16]
    $region37: #{connect4_forward.1} parent=1 // pred_fallthru
      _
    // Predicated region
    $region38: #{connect4_forward.1} parent=1 // pred_check
      _
    $region39: #{connect4_forward.1} parent=1 // pred_check_branch
      %124 = sbr.rel (0) target = $region41
    $region40: #{connect4_forward.1} parent=1 // pred_region
      %s126 = ssub.s32 1536, 1536
      %127 = vsyncadd [#allocation19], %s126
      %s128 = sshll.u32 [#allocation18], 4
      %s129 = int_to_ptr.vmem [resolvable:$true] %s128
      %134 = dma.hbm_to_vmem [thread:$0]  %s9, 1536, %s129, [#allocation19], 64, 64, 4
    $region41: #{connect4_forward.1} parent=1 // pred_fallthru
      _
    // Predicated region
    $region42: #{connect4_forward.1} parent=1 // pred_check
      _
    $region43: #{connect4_forward.1} parent=1 // pred_check_branch
      %136 = sbr.rel (0) target = $region45
    $region44: #{connect4_forward.1} parent=1 // pred_region
      %s138 = ssub.s32 16, 16
      %139 = vsyncadd [#allocation19], %s138
      %s141 = sshll.u32 [#allocation20], 4
      %s142 = int_to_ptr.vmem [resolvable:$true] %s141
      %144 = dma.hbm_to_vmem [thread:$0]  %s10, 16, %s142, [#allocation19]
    $region45: #{connect4_forward.1} parent=1 // pred_fallthru
      _
    // Predicated region
    $region46: #{connect4_forward.1} parent=1 // pred_check
      _
    $region47: #{connect4_forward.1} parent=1 // pred_check_branch
      %146 = sbr.rel (0) target = $region49
    $region48: #{connect4_forward.1} parent=1 // pred_region
      %147 = dma.done [#allocation4], 768
    $region49: #{connect4_forward.1} parent=1 // pred_fallthru
      _
    // Predicated region
    $region50: #{connect4_forward.1} parent=1 // pred_check
      _
    $region51: #{connect4_forward.1} parent=1 // pred_check_branch
      %149 = sbr.rel (0) target = $region53
    $region52: #{connect4_forward.1} parent=1 // pred_region
      %150 = dma.done [#allocation7], 2112
    $region53: #{connect4_forward.1} parent=1 // pred_fallthru
      _
    // Predicated region
    $region54: #{connect4_forward.1} parent=1 // pred_check
      _
    $region55: #{connect4_forward.1} parent=1 // pred_check_branch
      %152 = sbr.rel (0) target = $region57
    $region56: #{connect4_forward.1} parent=1 // pred_region
      %153 = dma.done [#allocation7], 96
    $region57: #{connect4_forward.1} parent=1 // pred_fallthru
      _
    // Predicated region
    $region58: #{connect4_forward.1} parent=1 // pred_check
      _
    $region59: #{connect4_forward.1} parent=1 // pred_check_branch
      %155 = sbr.rel (0) target = $region61
    $region60: #{connect4_forward.1} parent=1 // pred_region
      %156 = dma.done [#allocation10], 34560
    $region61: #{connect4_forward.1} parent=1 // pred_fallthru
      _
    // Predicated region
    $region62: #{connect4_forward.1} parent=1 // pred_check
      _
    $region63: #{connect4_forward.1} parent=1 // pred_check_branch
      %158 = sbr.rel (0) target = $region65
    $region64: #{connect4_forward.1} parent=1 // pred_region
      %159 = dma.done [#allocation10], 160
    $region65: #{connect4_forward.1} parent=1 // pred_fallthru
      _
    // Predicated region
    $region66: #{connect4_forward.1} parent=1 // pred_check
      _
    $region67: #{connect4_forward.1} parent=1 // pred_check_branch
      %161 = sbr.rel (0) target = $region69
    $region68: #{connect4_forward.1} parent=1 // pred_region
      %162 = dma.done [#allocation13], 55296
    $region69: #{connect4_forward.1} parent=1 // pred_fallthru
      _
    // Predicated region
    $region70: #{connect4_forward.1} parent=1 // pred_check
      _
    $region71: #{connect4_forward.1} parent=1 // pred_check_branch
      %164 = sbr.rel (0) target = $region73
    $region72: #{connect4_forward.1} parent=1 // pred_region
      %165 = dma.done [#allocation13], 64
    $region73: #{connect4_forward.1} parent=1 // pred_fallthru
      _
    // Predicated region
    $region74: #{connect4_forward.1} parent=1 // pred_check
      _
    $region75: #{connect4_forward.1} parent=1 // pred_check_branch
      %167 = sbr.rel (0) target = $region77
    $region76: #{connect4_forward.1} parent=1 // pred_region
      %168 = dma.done [#allocation16], 3072
    $region77: #{connect4_forward.1} parent=1 // pred_fallthru
      _
    // Predicated region
    $region78: #{connect4_forward.1} parent=1 // pred_check
      _
    $region79: #{connect4_forward.1} parent=1 // pred_check_branch
      %170 = sbr.rel (0) target = $region81
    $region80: #{connect4_forward.1} parent=1 // pred_region
      %171 = dma.done [#allocation16], 64
    $region81: #{connect4_forward.1} parent=1 // pred_fallthru
      _
    // Predicated region
    $region82: #{connect4_forward.1} parent=1 // pred_check
      _
    $region83: #{connect4_forward.1} parent=1 // pred_check_branch
      %173 = sbr.rel (0) target = $region85
    $region84: #{connect4_forward.1} parent=1 // pred_region
      %174 = dma.done [#allocation19], 1536
    $region85: #{connect4_forward.1} parent=1 // pred_fallthru
      _
    // Predicated region
    $region86: #{connect4_forward.1} parent=1 // pred_check
      _
    $region87: #{connect4_forward.1} parent=1 // pred_check_branch
      %176 = sbr.rel (0) target = $region89
    $region88: #{connect4_forward.1} parent=1 // pred_region
      %177 = dma.done [#allocation19], 16
    $region89: #{connect4_forward.1} parent=1 // pred_fallthru
      _
    %v179 = vld [vmem:[#allocation3] sm:$0xf]
    %v180 = vld [vmem:[#allocation3 + $0x4] sm:$0xf]
    %v181 = vld [vmem:[#allocation3 + $0x8] sm:$0xf]
    %v182 = vld [vmem:[#allocation3 + $0xc] sm:$0xf]
    %v183 = vld [vmem:[#allocation3 + $0x10] sm:$0xf]
    %v184 = vld [vmem:[#allocation3 + $0x14] sm:$0xf]
    %v185 = vld [vmem:[#allocation3 + $0x18] sm:$0xf]
    %v186 = vld [vmem:[#allocation3 + $0x1c] sm:$0xf]
    %v187 = vld [vmem:[#allocation3 + $0x20] sm:$0xf]
    %v188 = vld [vmem:[#allocation3 + $0x24] sm:$0xf]
    %v189 = vld [vmem:[#allocation3 + $0x28] sm:$0xf]
    %v190 = vld [vmem:[#allocation3 + $0x2c] sm:$0xf]
    %v191 = vld [vmem:[#allocation6] sm:$0xff]
    %v192 = vld [vmem:[#allocation6 + $0x8] sm:$0xf]
    %v193 = vld [vmem:[#allocation6 + $0xc] sm:$0xff]
    %v194 = vld [vmem:[#allocation6 + $0x14] sm:$0xf]
    %v195 = vld [vmem:[#allocation6 + $0x18] sm:$0xff]
    %v196 = vld [vmem:[#allocation6 + $0x20] sm:$0xf]
    %v197 = vld [vmem:[#allocation6 + $0x24] sm:$0xff]
    %v198 = vld [vmem:[#allocation6 + $0x2c] sm:$0xf]
    %v199 = vld [vmem:[#allocation6 + $0x30] sm:$0xff]
    %v200 = vld [vmem:[#allocation6 + $0x38] sm:$0xf]
    %v201 = vld [vmem:[#allocation6 + $0x3c] sm:$0xff]
    %v202 = vld [vmem:[#allocation6 + $0x44] sm:$0xf]
    %v203 = vld [vmem:[#allocation6 + $0x48] sm:$0xff]
    %v204 = vld [vmem:[#allocation6 + $0x50] sm:$0xf]
    %v205 = vld [vmem:[#allocation6 + $0x54] sm:$0xff]
    %v206 = vld [vmem:[#allocation6 + $0x5c] sm:$0xf]
    %v207 = vld [vmem:[#allocation6 + $0x60] sm:$0xff]
    %v208 = vld [vmem:[#allocation6 + $0x68] sm:$0xf]
    %v209 = vld [vmem:[#allocation6 + $0x6c] sm:$0xff]
    %v210 = vld [vmem:[#allocation6 + $0x74] sm:$0xf]
    %v211 = vld [vmem:[#allocation6 + $0x78] sm:$0x11]
    %v212 = vld [vmem:[#allocation6 + $0x80] sm:$0x1]
    %v225 = vunpack.c.l.b16 %v179
    %v226 = vunpack.c.l.b16 %v180
    %v227 = vunpack.c.l.b16 %v181
    %v228 = vunpack.c.l.b16 %v182
    %v229 = vunpack.c.l.b16 %v183
    %v230 = vunpack.c.l.b16 %v184
    %v231 = vunpack.c.l.b16 %v185
    %v232 = vunpack.c.l.b16 %v186
    %v233 = vunpack.c.l.b16 %v187
    %v234 = vunpack.c.l.b16 %v188
    %v235 = vunpack.c.l.b16 %v189
    %v236 = vunpack.c.l.b16 %v190
    %v237 = vpack.c.b16 %v226, %v225
    %v238 = vpack.c.b16 %v228, %v227
    %v239 = vpack.c.b16 %v230, %v229
    %v240 = vpack.c.b16 %v232, %v231
    %v241 = vpack.c.b16 %v234, %v233
    %v242 = vpack.c.b16 %v236, %v235
    %v265 = vunpack.c.l.b16 %v191
    %v266 = vunpack.c.h.b16 %v191
    %v267 = vunpack.c.l.b16 %v192
    %v268 = vunpack.c.l.b16 %v193
    %v269 = vunpack.c.h.b16 %v193
    %v270 = vunpack.c.l.b16 %v194
    %v271 = vunpack.c.l.b16 %v195
    %v272 = vunpack.c.h.b16 %v195
    %v273 = vunpack.c.l.b16 %v196
    %v274 = vunpack.c.l.b16 %v197
    %v275 = vunpack.c.h.b16 %v197
    %v276 = vunpack.c.l.b16 %v198
    %v277 = vunpack.c.l.b16 %v199
    %v278 = vunpack.c.h.b16 %v199
    %v279 = vunpack.c.l.b16 %v200
    %v280 = vunpack.c.l.b16 %v201
    %v281 = vunpack.c.h.b16 %v201
    %v282 = vunpack.c.l.b16 %v202
    %v283 = vunpack.c.l.b16 %v203
    %v284 = vunpack.c.h.b16 %v203
    %v285 = vunpack.c.l.b16 %v204
    %v286 = vunpack.c.l.b16 %v205
    %v287 = vunpack.c.h.b16 %v205
    %v288 = vunpack.c.l.b16 %v206
    %v289 = vunpack.c.l.b16 %v207
    %v290 = vunpack.c.h.b16 %v207
    %v291 = vunpack.c.l.b16 %v208
    %v292 = vunpack.c.l.b16 %v209
    %v293 = vunpack.c.h.b16 %v209
    %v294 = vunpack.c.l.b16 %v210
    %v295 = vunpack.c.l.b16 %v211
    %v296 = vunpack.c.h.b16 %v211
    %v297 = vunpack.c.l.b16 %v212
    %v298 = vpack.c.b16 %v268, %v265
    %v299 = vpack.c.b16 %v269, %v266
    %v300 = vpack.c.b16 %v270, %v267
    %v301 = vpack.c.b16 %v274, %v271
    %v302 = vpack.c.b16 %v275, %v272
    %v303 = vpack.c.b16 %v276, %v273
    %v304 = vpack.c.b16 %v280, %v277
    %v305 = vpack.c.b16 %v281, %v278
    %v306 = vpack.c.b16 %v282, %v279
    %v307 = vpack.c.b16 %v286, %v283
    %v308 = vpack.c.b16 %v287, %v284
    %v309 = vpack.c.b16 %v288, %v285
    %v310 = vpack.c.b16 %v292, %v289
    %v311 = vpack.c.b16 %v293, %v290
    %v312 = vpack.c.b16 %v294, %v291
    %v313 = vpack.c.b16 %v295, %v295
    %v314 = vpack.c.b16 %v296, %v296
    %v315 = vpack.c.b16 %v297, %v297
    %vm331 = vcmask 662528
    %v333 = vsel %vm331, %v237, 0
    %v336 = vsel %vm331, %v238, 0
    %v339 = vsel %vm331, %v239, 0
    %v342 = vsel %vm331, %v240, 0
    %v345 = vsel %vm331, %v241, 0
    %v348 = vsel %vm331, %v242, 0
    %vm350 = vcmask 1040384
    %v351 = vsel 0, 4294967295, 65535
    %v352 = vsel %vm350, %v351, 0
    %v354 = vand.u32 %v313, %v352
    %v357 = vand.u32 %v314, %v352
    %v360 = vand.u32 %v315, %v352
    %362 = vmatprep.subr.bf16.mxu0 %v299
    %363 = vmatpush1.bf16.msra.mxu0 %v298
    %364 = vmatprep.subr.bf16.mxu0 %v302
    %365 = vmatpush1.bf16.msra.mxu0 %v301
    %366 = vmatprep.subr.bf16.mxu0 %v305
    %367 = vmatpush1.bf16.msra.mxu0 %v304
    %368 = vmatprep.subr.bf16.mxu0 %v308
    %369 = vmatpush1.bf16.msra.mxu0 %v307
    %370 = vmatprep.subr.bf16.mxu0 %v311
    %371 = vmatpush1.bf16.msra.mxu0 %v310
    %372 = vmatprep.subr.bf16.mxu0 %v357
    %373 = vmatpush1.bf16.msra.mxu0 %v354
    %374 = vmatprep.subr.bf16.mxu0 0
    %375 = vmatpush1.bf16.msra.mxu0 0
    %376 = vmatprep.subr.bf16.mxu0 0
    %377 = vmatpush1.bf16.msra.mxu0 0
    %378 = vmatprep.subr.bf16.mxu0 0
    %379 = vmatpush1.bf16.msra.mxu0 0
    %380 = vmatprep.subr.bf16.mxu0 0
    %381 = vmatpush1.bf16.msra.mxu0 0
    %382 = vmatprep.subr.bf16.mxu0 0
    %383 = vmatpush1.bf16.msra.mxu0 0
    %384 = vmatprep.subr.bf16.mxu0 0
    %385 = vmatpush1.bf16.msra.mxu0 0
    %386 = vmatprep.subr.bf16.mxu0 0
    %387 = vmatpush1.bf16.msra.mxu0 0
    %388 = vmatprep.subr.bf16.mxu0 0
    %389 = vmatpush1.bf16.msra.mxu0 0
    %390 = vmatprep.subr.bf16.mxu0 0
    %391 = vmatpush1.bf16.msra.mxu0 0
    %392 = vmatprep.subr.bf16.mxu0 0
    %393 = vmatpush1.bf16.msra.mxu0 0
    %394 = vmatprep.mubr.bf16.mxu0 0
    %395 = vmatmul.mubr.bf16.gmra.mrb[0].mxu0 %v333
    %v396 = vpop.f32.mrb[0].mxu0
    %v397 = vadd.f32 0.0, %v396
    %v398 = vpop.f32.mrb[0].mxu0
    %v399 = vadd.f32 0.0, %v398
    %v400 = vpop.f32.mrb[0].mxu0
    %v401 = vadd.f32 0.0, %v400
    %v402 = vpop.f32.mrb[0].mxu0
    %v403 = vadd.f32 0.0, %v402
    %404 = vmatprep.mubr.bf16.mxu0 0
    %405 = vmatmul.mubr.bf16.gmra.mrb[0].mxu0 %v336
    %v406 = vpop.f32.mrb[0].mxu0
    %v407 = vadd.f32 0.0, %v406
    %v408 = vpop.f32.mrb[0].mxu0
    %v409 = vadd.f32 0.0, %v408
    %v410 = vpop.f32.mrb[0].mxu0
    %v411 = vadd.f32 0.0, %v410
    %v412 = vpop.f32.mrb[0].mxu0
    %v413 = vadd.f32 0.0, %v412
    %414 = vmatprep.mubr.bf16.mxu0 0
    %415 = vmatmul.mubr.bf16.gmra.mrb[0].mxu0 %v339
    %v416 = vpop.f32.mrb[0].mxu0
    %v417 = vadd.f32 0.0, %v416
    %v418 = vpop.f32.mrb[0].mxu0
    %v419 = vadd.f32 0.0, %v418
    %v420 = vpop.f32.mrb[0].mxu0
    %v421 = vadd.f32 0.0, %v420
    %v422 = vpop.f32.mrb[0].mxu0
    %v423 = vadd.f32 0.0, %v422
    %424 = vmatprep.mubr.bf16.mxu0 0
    %425 = vmatmul.mubr.bf16.gmra.mrb[0].mxu0 %v342
    %v426 = vpop.f32.mrb[0].mxu0
    %v427 = vadd.f32 0.0, %v426
    %v428 = vpop.f32.mrb[0].mxu0
    %v429 = vadd.f32 0.0, %v428
    %v430 = vpop.f32.mrb[0].mxu0
    %v431 = vadd.f32 0.0, %v430
    %v432 = vpop.f32.mrb[0].mxu0
    %v433 = vadd.f32 0.0, %v432
    %434 = vmatprep.mubr.bf16.mxu0 0
    %435 = vmatmul.mubr.bf16.gmra.mrb[0].mxu0 %v345
    %v436 = vpop.f32.mrb[0].mxu0
    %v437 = vadd.f32 0.0, %v436
    %v438 = vpop.f32.mrb[0].mxu0
    %v439 = vadd.f32 0.0, %v438
    %v440 = vpop.f32.mrb[0].mxu0
    %v441 = vadd.f32 0.0, %v440
    %v442 = vpop.f32.mrb[0].mxu0
    %v443 = vadd.f32 0.0, %v442
    %444 = vmatprep.mubr.bf16.mxu0 0
    %445 = vmatmul.mubr.bf16.gmra.mrb[0].mxu0 %v348
    %v446 = vpop.f32.mrb[0].mxu0
    %v447 = vadd.f32 0.0, %v446
    %v448 = vpop.f32.mrb[0].mxu0
    %v449 = vadd.f32 0.0, %v448
    %v450 = vpop.f32.mrb[0].mxu0
    %v451 = vadd.f32 0.0, %v450
    %v452 = vpop.f32.mrb[0].mxu0
    %v453 = vadd.f32 0.0, %v452
    %454 = vdwg.mxu0
    %455 = vmatprep.subr.bf16.mxu0 0
    %456 = vmatpush1.bf16.msra.mxu0 %v300
    %457 = vmatprep.subr.bf16.mxu0 0
    %458 = vmatpush1.bf16.msra.mxu0 %v303
    %459 = vmatprep.subr.bf16.mxu0 0
    %460 = vmatpush1.bf16.msra.mxu0 %v306
    %461 = vmatprep.subr.bf16.mxu0 0
    %462 = vmatpush1.bf16.msra.mxu0 %v309
    %463 = vmatprep.subr.bf16.mxu0 0
    %464 = vmatpush1.bf16.msra.mxu0 %v312
    %465 = vmatprep.subr.bf16.mxu0 0
    %466 = vmatpush1.bf16.msra.mxu0 %v360
    %467 = vmatprep.subr.bf16.mxu0 0
    %468 = vmatpush1.bf16.msra.mxu0 0
    %469 = vmatprep.subr.bf16.mxu0 0
    %470 = vmatpush1.bf16.msra.mxu0 0
    %471 = vmatprep.subr.bf16.mxu0 0
    %472 = vmatpush1.bf16.msra.mxu0 0
    %473 = vmatprep.subr.bf16.mxu0 0
    %474 = vmatpush1.bf16.msra.mxu0 0
    %475 = vmatprep.subr.bf16.mxu0 0
    %476 = vmatpush1.bf16.msra.mxu0 0
    %477 = vmatprep.subr.bf16.mxu0 0
    %478 = vmatpush1.bf16.msra.mxu0 0
    %479 = vmatprep.subr.bf16.mxu0 0
    %480 = vmatpush1.bf16.msra.mxu0 0
    %481 = vmatprep.subr.bf16.mxu0 0
    %482 = vmatpush1.bf16.msra.mxu0 0
    %483 = vmatprep.subr.bf16.mxu0 0
    %484 = vmatpush1.bf16.msra.mxu0 0
    %485 = vmatprep.subr.bf16.mxu0 0
    %486 = vmatpush1.bf16.msra.mxu0 0
    %487 = vmatprep.mubr.bf16.mxu0 0
    %488 = vmatmul.mubr.bf16.gmra.mrb[0].mxu0 %v333
    %v489 = vpop.f32.mrb[0].mxu0
    %v490 = vadd.f32 0.0, %v489
    %v491 = vpop.f32.mrb[0].mxu0
    %v492 = vpop.f32.mrb[0].mxu0
    %v493 = vadd.f32 0.0, %v492
    %v494 = vpop.f32.mrb[0].mxu0
    %495 = vmatprep.mubr.bf16.mxu0 0
    %496 = vmatmul.mubr.bf16.gmra.mrb[0].mxu0 %v336
    %v497 = vpop.f32.mrb[0].mxu0
    %v498 = vadd.f32 0.0, %v497
    %v499 = vpop.f32.mrb[0].mxu0
    %v500 = vpop.f32.mrb[0].mxu0
    %v501 = vadd.f32 0.0, %v500
    %v502 = vpop.f32.mrb[0].mxu0
    %503 = vmatprep.mubr.bf16.mxu0 0
    %504 = vmatmul.mubr.bf16.gmra.mrb[0].mxu0 %v339
    %v505 = vpop.f32.mrb[0].mxu0
    %v506 = vadd.f32 0.0, %v505
    %v507 = vpop.f32.mrb[0].mxu0
    %v508 = vpop.f32.mrb[0].mxu0
    %v509 = vadd.f32 0.0, %v508
    %v510 = vpop.f32.mrb[0].mxu0
    %511 = vmatprep.mubr.bf16.mxu0 0
    %512 = vmatmul.mubr.bf16.gmra.mrb[0].mxu0 %v342
    %v513 = vpop.f32.mrb[0].mxu0
    %v514 = vadd.f32 0.0, %v513
    %v515 = vpop.f32.mrb[0].mxu0
    %v516 = vpop.f32.mrb[0].mxu0
    %v517 = vadd.f32 0.0, %v516
    %v518 = vpop.f32.mrb[0].mxu0
    %519 = vmatprep.mubr.bf16.mxu0 0
    %520 = vmatmul.mubr.bf16.gmra.mrb[0].mxu0 %v345
    %v521 = vpop.f32.mrb[0].mxu0
    %v522 = vadd.f32 0.0, %v521
    %v523 = vpop.f32.mrb[0].mxu0
    %v524 = vpop.f32.mrb[0].mxu0
    %v525 = vadd.f32 0.0, %v524
    %v526 = vpop.f32.mrb[0].mxu0
    %527 = vmatprep.mubr.bf16.mxu0 0
    %528 = vmatmul.mubr.bf16.gmra.mrb[0].mxu0 %v348
    %v529 = vpop.f32.mrb[0].mxu0
    %v530 = vadd.f32 0.0, %v529
    %v531 = vpop.f32.mrb[0].mxu0
    %v532 = vpop.f32.mrb[0].mxu0
    %v533 = vadd.f32 0.0, %v532
    %v534 = vpop.f32.mrb[0].mxu0
    %535 = vdwg.mxu0
    %v536 = vld [vmem:[#allocation8] ss:$2 sm:$0x7]
    %v538 = vlaneseq
    %v539 = vshrl.u32 %v538, 7
    %v540 = vsub.s32 0, %v539
    %v541 = vrot.slane %v536, %v540
    %v542 = vlaneseq
    %v543 = vshrl.u32 %v542, 7
    %v544 = vsub.s32 1, %v543
    %v545 = vrot.slane %v536, %v544
    %v546 = vlaneseq
    %v547 = vshrl.u32 %v546, 7
    %v548 = vsub.s32 2, %v547
    %v549 = vrot.slane %v536, %v548
    %v553 = vmul.f32 %v397, %v541
    %v554 = vmul.f32 %v399, %v545
    %v555 = vmul.f32 %v490, %v549
    %v556 = vmul.f32 %v401, %v541
    %v557 = vmul.f32 %v403, %v545
    %v558 = vmul.f32 %v493, %v549
    %v559 = vmul.f32 %v407, %v541
    %v560 = vmul.f32 %v409, %v545
    %v561 = vmul.f32 %v498, %v549
    %v562 = vmul.f32 %v411, %v541
    %v563 = vmul.f32 %v413, %v545
    %v564 = vmul.f32 %v501, %v549
    %v565 = vmul.f32 %v417, %v541
    %v566 = vmul.f32 %v419, %v545
    %v567 = vmul.f32 %v506, %v549
    %v568 = vmul.f32 %v421, %v541
    %v569 = vmul.f32 %v423, %v545
    %v570 = vmul.f32 %v509, %v549
    %v571 = vmul.f32 %v427, %v541
    %v572 = vmul.f32 %v429, %v545
    %v573 = vmul.f32 %v514, %v549
    %v574 = vmul.f32 %v431, %v541
    %v575 = vmul.f32 %v433, %v545
    %v576 = vmul.f32 %v517, %v549
    %v577 = vmul.f32 %v437, %v541
    %v578 = vmul.f32 %v439, %v545
    %v579 = vmul.f32 %v522, %v549
    %v580 = vmul.f32 %v441, %v541
    %v581 = vmul.f32 %v443, %v545
    %v582 = vmul.f32 %v525, %v549
    %v583 = vmul.f32 %v447, %v541
    %v584 = vmul.f32 %v449, %v545
    %v585 = vmul.f32 %v530, %v549
    %v586 = vmul.f32 %v451, %v541
    %v587 = vmul.f32 %v453, %v545
    %v588 = vmul.f32 %v533, %v549
    %s589 = scalar_lea.vmem [#allocation8], 1
    %v590 = vld [vmem:[%s589] ss:$2 sm:$0x7]
    %v592 = vlaneseq
    %v593 = vshrl.u32 %v592, 7
    %v594 = vsub.s32 0, %v593
    %v595 = vrot.slane %v590, %v594
    %v596 = vlaneseq
    %v597 = vshrl.u32 %v596, 7
    %v598 = vsub.s32 1, %v597
    %v599 = vrot.slane %v590, %v598
    %v600 = vlaneseq
    %v601 = vshrl.u32 %v600, 7
    %v602 = vsub.s32 2, %v601
    %v603 = vrot.slane %v590, %v602
    %v607 = vadd.f32 %v553, %v595
    %v608 = vadd.f32 %v554, %v599
    %v609 = vadd.f32 %v555, %v603
    %v610 = vadd.f32 %v556, %v595
    %v611 = vadd.f32 %v557, %v599
    %v612 = vadd.f32 %v558, %v603
    %v613 = vadd.f32 %v559, %v595
    %v614 = vadd.f32 %v560, %v599
    %v615 = vadd.f32 %v561, %v603
    %v616 = vadd.f32 %v562, %v595
    %v617 = vadd.f32 %v563, %v599
    %v618 = vadd.f32 %v564, %v603
    %v619 = vadd.f32 %v565, %v595
    %v620 = vadd.f32 %v566, %v599
    %v621 = vadd.f32 %v567, %v603
    %v622 = vadd.f32 %v568, %v595
    %v623 = vadd.f32 %v569, %v599
    %v624 = vadd.f32 %v570, %v603
    %v625 = vadd.f32 %v571, %v595
    %v626 = vadd.f32 %v572, %v599
    %v627 = vadd.f32 %v573, %v603
    %v628 = vadd.f32 %v574, %v595
    %v629 = vadd.f32 %v575, %v599
    %v630 = vadd.f32 %v576, %v603
    %v631 = vadd.f32 %v577, %v595
    %v632 = vadd.f32 %v578, %v599
    %v633 = vadd.f32 %v579, %v603
    %v634 = vadd.f32 %v580, %v595
    %v635 = vadd.f32 %v581, %v599
    %v636 = vadd.f32 %v582, %v603
    %v637 = vadd.f32 %v583, %v595
    %v638 = vadd.f32 %v584, %v599
    %v639 = vadd.f32 %v585, %v603
    %v640 = vadd.f32 %v586, %v595
    %v641 = vadd.f32 %v587, %v599
    %v642 = vadd.f32 %v588, %v603
    %v643 = vmax.f32 %v607, 0.0
    %v644 = vmax.f32 %v608, 0.0
    %v645 = vmax.f32 %v609, 0.0
    %v646 = vmax.f32 %v610, 0.0
    %v647 = vmax.f32 %v611, 0.0
    %v648 = vmax.f32 %v612, 0.0
    %v649 = vmax.f32 %v613, 0.0
    %v650 = vmax.f32 %v614, 0.0
    %v651 = vmax.f32 %v615, 0.0
    %v652 = vmax.f32 %v616, 0.0
    %v653 = vmax.f32 %v617, 0.0
    %v654 = vmax.f32 %v618, 0.0
    %v655 = vmax.f32 %v619, 0.0
    %v656 = vmax.f32 %v620, 0.0
    %v657 = vmax.f32 %v621, 0.0
    %v658 = vmax.f32 %v622, 0.0
    %v659 = vmax.f32 %v623, 0.0
    %v660 = vmax.f32 %v624, 0.0
    %v661 = vmax.f32 %v625, 0.0
    %v662 = vmax.f32 %v626, 0.0
    %v663 = vmax.f32 %v627, 0.0
    %v664 = vmax.f32 %v628, 0.0
    %v665 = vmax.f32 %v629, 0.0
    %v666 = vmax.f32 %v630, 0.0
    %v667 = vmax.f32 %v631, 0.0
    %v668 = vmax.f32 %v632, 0.0
    %v669 = vmax.f32 %v633, 0.0
    %v670 = vmax.f32 %v634, 0.0
    %v671 = vmax.f32 %v635, 0.0
    %v672 = vmax.f32 %v636, 0.0
    %v673 = vmax.f32 %v637, 0.0
    %v674 = vmax.f32 %v638, 0.0
    %v675 = vmax.f32 %v639, 0.0
    %v676 = vmax.f32 %v640, 0.0
    %v677 = vmax.f32 %v641, 0.0
    %v678 = vmax.f32 %v642, 0.0
    %v679 = vpack.c.bf16 %v646, %v643
    %v680 = vpack.c.bf16 %v647, %v644
    %v681 = vpack.c.bf16 %v648, %v645
    %v682 = vpack.c.bf16 %v652, %v649
    %v683 = vpack.c.bf16 %v653, %v650
    %v684 = vpack.c.bf16 %v654, %v651
    %v685 = vpack.c.bf16 %v658, %v655
    %v686 = vpack.c.bf16 %v659, %v656
    %v687 = vpack.c.bf16 %v660, %v657
    %v688 = vpack.c.bf16 %v664, %v661
    %v689 = vpack.c.bf16 %v665, %v662
    %v690 = vpack.c.bf16 %v666, %v663
    %v691 = vpack.c.bf16 %v670, %v667
    %v692 = vpack.c.bf16 %v671, %v668
    %v693 = vpack.c.bf16 %v672, %v669
    %v694 = vpack.c.bf16 %v676, %v673
    %v695 = vpack.c.bf16 %v677, %v674
    %v696 = vpack.c.bf16 %v678, %v675
    %697 = vst [vmem:[#allocation2] sm:$0xff] 0
    %698 = vst [vmem:[#allocation2 + $0x8] sm:$0xff] 0
    %vm699 = vcmask 261120
    %700 = vst.msk [vmem:[#allocation2 + $0x10] sm:$0xff] %vm699, 0
    %701 = vst [vmem:[#allocation2 + $0x38] sm:$0xff] %v679
    %702 = vst [vmem:[#allocation2 + $0x40] sm:$0xff] %v680
    %703 = vst.msk [vmem:[#allocation2 + $0x48] sm:$0xff] %vm699, %v681
    %704 = vst [vmem:[#allocation2 + $0x70] sm:$0xff] %v682
    %705 = vst [vmem:[#allocation2 + $0x78] sm:$0xff] %v683
    %706 = vst.msk [vmem:[#allocation2 + $0x80] sm:$0xff] %vm699, %v684
    %707 = vst [vmem:[#allocation2 + $0xa8] sm:$0xff] %v685
    %708 = vst [vmem:[#allocation2 + $0xb0] sm:$0xff] %v686
    %709 = vst.msk [vmem:[#allocation2 + $0xb8] sm:$0xff] %vm699, %v687
    %710 = vst [vmem:[#allocation2 + $0xe0] sm:$0xff] %v688
    %711 = vst [vmem:[#allocation2 + $0xe8] sm:$0xff] %v689
    %712 = vst.msk [vmem:[#allocation2 + $0xf0] sm:$0xff] %vm699, %v690
    %713 = vst [vmem:[#allocation2 + $0x118] sm:$0xff] %v691
    %714 = vst [vmem:[#allocation2 + $0x120] sm:$0xff] %v692
    %715 = vst.msk [vmem:[#allocation2 + $0x128] sm:$0xff] %vm699, %v693
    %734 = vrot.lane.b32.xlu0 %v679, 32
    %v735 = vpop.permute.xlu0 %734
    %736 = vrot.lane.b32.xlu0 %v680, 32
    %v737 = vpop.permute.xlu0 %736
    %738 = vrot.lane.b32.xlu0 %v681, 32
    %v739 = vpop.permute.xlu0 %738
    %740 = vrot.lane.b32.xlu0 %v682, 32
    %v741 = vpop.permute.xlu0 %740
    %742 = vrot.lane.b32.xlu0 %v683, 32
    %v743 = vpop.permute.xlu0 %742
    %744 = vrot.lane.b32.xlu0 %v684, 32
    %v745 = vpop.permute.xlu0 %744
    %746 = vrot.lane.b32.xlu0 %v685, 32
    %v747 = vpop.permute.xlu0 %746
    %748 = vrot.lane.b32.xlu0 %v686, 32
    %v749 = vpop.permute.xlu0 %748
    %750 = vrot.lane.b32.xlu0 %v687, 32
    %v751 = vpop.permute.xlu0 %750
    %752 = vrot.lane.b32.xlu0 %v688, 32
    %v753 = vpop.permute.xlu0 %752
    %754 = vrot.lane.b32.xlu0 %v689, 32
    %v755 = vpop.permute.xlu0 %754
    %756 = vrot.lane.b32.xlu0 %v690, 32
    %v757 = vpop.permute.xlu0 %756
    %758 = vrot.lane.b32.xlu0 %v691, 32
    %v759 = vpop.permute.xlu0 %758
    %760 = vrot.lane.b32.xlu0 %v692, 32
    %v761 = vpop.permute.xlu0 %760
    %762 = vrot.lane.b32.xlu0 %v693, 32
    %v763 = vpop.permute.xlu0 %762
    %764 = vrot.lane.b32.xlu0 %v694, 32
    %v765 = vpop.permute.xlu0 %764
    %766 = vrot.lane.b32.xlu0 %v695, 32
    %v767 = vpop.permute.xlu0 %766
    %768 = vrot.lane.b32.xlu0 %v696, 32
    %v769 = vpop.permute.xlu0 %768
    %vm770 = vcmask 261120
    %v771 = vsel %vm770, %v735, %v737
    %v772 = vsel %vm770, %v737, %v739
    %v773 = vsel %vm770, %v741, %v743
    %v774 = vsel %vm770, %v743, %v745
    %v775 = vsel %vm770, %v747, %v749
    %v776 = vsel %vm770, %v749, %v751
    %v777 = vsel %vm770, %v753, %v755
    %v778 = vsel %vm770, %v755, %v757
    %v779 = vsel %vm770, %v759, %v761
    %v780 = vsel %vm770, %v761, %v763
    %v781 = vsel %vm770, %v765, %v767
    %v782 = vsel %vm770, %v767, %v769
    %vm801 = vcmask 1047808
    %802 = vst.msk [vmem:[#allocation2 + $0x10] sm:$0xff] %vm801, %v735
    %803 = vst [vmem:[#allocation2 + $0x18] sm:$0xff] %v771
    %vm804 = vcmask 523264
    %805 = vst.msk [vmem:[#allocation2 + $0x20] sm:$0xff] %vm804, %v772
    %806 = vst.msk [vmem:[#allocation2 + $0x48] sm:$0xff] %vm801, %v741
    %807 = vst [vmem:[#allocation2 + $0x50] sm:$0xff] %v773
    %808 = vst.msk [vmem:[#allocation2 + $0x58] sm:$0xff] %vm804, %v774
    %809 = vst.msk [vmem:[#allocation2 + $0x80] sm:$0xff] %vm801, %v747
    %810 = vst [vmem:[#allocation2 + $0x88] sm:$0xff] %v775
    %811 = vst.msk [vmem:[#allocation2 + $0x90] sm:$0xff] %vm804, %v776
    %812 = vst.msk [vmem:[#allocation2 + $0xb8] sm:$0xff] %vm801, %v753
    %813 = vst [vmem:[#allocation2 + $0xc0] sm:$0xff] %v777
    %814 = vst.msk [vmem:[#allocation2 + $0xc8] sm:$0xff] %vm804, %v778
    %815 = vst.msk [vmem:[#allocation2 + $0xf0] sm:$0xff] %vm801, %v759
    %816 = vst [vmem:[#allocation2 + $0xf8] sm:$0xff] %v779
    %817 = vst.msk [vmem:[#allocation2 + $0x100] sm:$0xff] %vm804, %v780
    %818 = vst.msk [vmem:[#allocation2 + $0x128] sm:$0xff] %vm801, %v765
    %819 = vst [vmem:[#allocation2 + $0x130] sm:$0xff] %v781
    %820 = vst.msk [vmem:[#allocation2 + $0x138] sm:$0xff] %vm804, %v782
    %821 = vrot.lane.b32.xlu0 %v682, 64
    %v822 = vpop.permute.xlu0 %821
    %823 = vrot.lane.b32.xlu0 %v683, 64
    %v824 = vpop.permute.xlu0 %823
    %825 = vrot.lane.b32.xlu0 %v684, 64
    %v826 = vpop.permute.xlu0 %825
    %827 = vrot.lane.b32.xlu0 %v685, 64
    %v828 = vpop.permute.xlu0 %827
    %829 = vrot.lane.b32.xlu0 %v686, 64
    %v830 = vpop.permute.xlu0 %829
    %831 = vrot.lane.b32.xlu0 %v687, 64
    %v832 = vpop.permute.xlu0 %831
    %833 = vrot.lane.b32.xlu0 %v688, 64
    %v834 = vpop.permute.xlu0 %833
    %835 = vrot.lane.b32.xlu0 %v689, 64
    %v836 = vpop.permute.xlu0 %835
    %837 = vrot.lane.b32.xlu0 %v690, 64
    %v838 = vpop.permute.xlu0 %837
    %839 = vrot.lane.b32.xlu0 %v691, 64
    %v840 = vpop.permute.xlu0 %839
    %841 = vrot.lane.b32.xlu0 %v692, 64
    %v842 = vpop.permute.xlu0 %841
    %843 = vrot.lane.b32.xlu0 %v693, 64
    %v844 = vpop.permute.xlu0 %843
    %845 = vrot.lane.b32.xlu0 %v694, 64
    %v846 = vpop.permute.xlu0 %845
    %847 = vrot.lane.b32.xlu0 %v695, 64
    %v848 = vpop.permute.xlu0 %847
    %849 = vrot.lane.b32.xlu0 %v696, 64
    %v850 = vpop.permute.xlu0 %849
    %vm851 = vcmask 523264
    %v852 = vsel %vm851, %v822, %v824
    %v853 = vsel %vm851, %v824, %v826
    %v854 = vsel %vm851, %v828, %v830
    %v855 = vsel %vm851, %v830, %v832
    %v856 = vsel %vm851, %v834, %v836
    %v857 = vsel %vm851, %v836, %v838
    %v858 = vsel %vm851, %v840, %v842
    %v859 = vsel %vm851, %v842, %v844
    %v860 = vsel %vm851, %v846, %v848
    %v861 = vsel %vm851, %v848, %v850
    %vm877 = vcmask 1048064
    %878 = vst.msk [vmem:[#allocation2 + $0x20] sm:$0xff] %vm877, %v822
    %879 = vst [vmem:[#allocation2 + $0x28] sm:$0xff] %v852
    %vm880 = vcmask 785408
    %881 = vst.msk [vmem:[#allocation2 + $0x30] sm:$0xff] %vm880, %v853
    %882 = vst.msk [vmem:[#allocation2 + $0x58] sm:$0xff] %vm877, %v828
    %883 = vst [vmem:[#allocation2 + $0x60] sm:$0xff] %v854
    %884 = vst.msk [vmem:[#allocation2 + $0x68] sm:$0xff] %vm880, %v855
    %885 = vst.msk [vmem:[#allocation2 + $0x90] sm:$0xff] %vm877, %v834
    %886 = vst [vmem:[#allocation2 + $0x98] sm:$0xff] %v856
    %887 = vst.msk [vmem:[#allocation2 + $0xa0] sm:$0xff] %vm880, %v857
    %888 = vst.msk [vmem:[#allocation2 + $0xc8] sm:$0xff] %vm877, %v840
    %889 = vst [vmem:[#allocation2 + $0xd0] sm:$0xff] %v858
    %890 = vst.msk [vmem:[#allocation2 + $0xd8] sm:$0xff] %vm880, %v859
    %891 = vst.msk [vmem:[#allocation2 + $0x100] sm:$0xff] %vm877, %v846
    %892 = vst [vmem:[#allocation2 + $0x108] sm:$0xff] %v860
    %893 = vst.msk [vmem:[#allocation2 + $0x110] sm:$0xff] %vm880, %v861
    %894 = vst.msk [vmem:[#allocation2 + $0x138] sm:$0xff] %vm877, 0
    %895 = vst [vmem:[#allocation2 + $0x140] sm:$0xff] 0
    %896 = vst.msk [vmem:[#allocation2 + $0x148] sm:$0xff] %vm880, 0
    %v897 = vld [vmem:[#allocation2] sm:$0xff]
    %v898 = vld [vmem:[#allocation2 + $0x8] sm:$0xff]
    %v899 = vld [vmem:[#allocation2 + $0x10] sm:$0xff]
    %v900 = vld [vmem:[#allocation2 + $0x18] sm:$0xff]
    %v901 = vld [vmem:[#allocation2 + $0x20] sm:$0xff]
    %v902 = vld [vmem:[#allocation2 + $0x28] sm:$0xff]
    %v903 = vld [vmem:[#allocation2 + $0x30] sm:$0xff]
    %v904 = vld [vmem:[#allocation2 + $0x38] sm:$0xff]
    %v905 = vld [vmem:[#allocation2 + $0x40] sm:$0xff]
    %v906 = vld [vmem:[#allocation2 + $0x48] sm:$0xff]
    %v907 = vld [vmem:[#allocation2 + $0x50] sm:$0xff]
    %v908 = vld [vmem:[#allocation2 + $0x58] sm:$0xff]
    %v909 = vld [vmem:[#allocation2 + $0x60] sm:$0xff]
    %v910 = vld [vmem:[#allocation2 + $0x68] sm:$0xff]
    %v911 = vld [vmem:[#allocation2 + $0x70] sm:$0xff]
    %v912 = vld [vmem:[#allocation2 + $0x78] sm:$0xff]
    %v913 = vld [vmem:[#allocation2 + $0x80] sm:$0xff]
    %v914 = vld [vmem:[#allocation2 + $0x88] sm:$0xff]
    %v915 = vld [vmem:[#allocation2 + $0x90] sm:$0xff]
    %v916 = vld [vmem:[#allocation2 + $0x98] sm:$0xff]
    %v917 = vld [vmem:[#allocation2 + $0xa0] sm:$0xff]
    %v918 = vld [vmem:[#allocation2 + $0xa8] sm:$0xff]
    %v919 = vld [vmem:[#allocation2 + $0xb0] sm:$0xff]
    %v920 = vld [vmem:[#allocation2 + $0xb8] sm:$0xff]
    %v921 = vld [vmem:[#allocation2 + $0xc0] sm:$0xff]
    %v922 = vld [vmem:[#allocation2 + $0xc8] sm:$0xff]
    %v923 = vld [vmem:[#allocation2 + $0xd0] sm:$0xff]
    %v924 = vld [vmem:[#allocation2 + $0xd8] sm:$0xff]
    %v925 = vld [vmem:[#allocation2 + $0xe0] sm:$0xff]
    %v926 = vld [vmem:[#allocation2 + $0xe8] sm:$0xff]
    %v927 = vld [vmem:[#allocation2 + $0xf0] sm:$0xff]
    %v928 = vld [vmem:[#allocation2 + $0xf8] sm:$0xff]
    %v929 = vld [vmem:[#allocation2 + $0x100] sm:$0xff]
    %v930 = vld [vmem:[#allocation2 + $0x108] sm:$0xff]
    %v931 = vld [vmem:[#allocation2 + $0x110] sm:$0xff]
    %v932 = vld [vmem:[#allocation2 + $0x118] sm:$0xff]
    %v933 = vld [vmem:[#allocation2 + $0x120] sm:$0xff]
    %v934 = vld [vmem:[#allocation2 + $0x128] sm:$0xff]
    %v935 = vld [vmem:[#allocation2 + $0x130] sm:$0xff]
    %v936 = vld [vmem:[#allocation2 + $0x138] sm:$0xff]
    %v937 = vld [vmem:[#allocation2 + $0x140] sm:$0xff]
    %v938 = vld [vmem:[#allocation2 + $0x148] sm:$0xff]
    %v939 = vld [vmem:[#allocation9] sm:$0xff]
    %v940 = vld [vmem:[#allocation9 + $0x8] sm:$0xff]
    %v941 = vld [vmem:[#allocation9 + $0x10] sm:$0xf]
    %v942 = vld [vmem:[#allocation9 + $0x14] sm:$0xff]
    %v943 = vld [vmem:[#allocation9 + $0x1c] sm:$0xff]
    %v944 = vld [vmem:[#allocation9 + $0x24] sm:$0xf]
    %v945 = vld [vmem:[#allocation9 + $0x28] sm:$0xff]
    %v946 = vld [vmem:[#allocation9 + $0x30] sm:$0xff]
    %v947 = vld [vmem:[#allocation9 + $0x38] sm:$0xf]
    %v948 = vld [vmem:[#allocation9 + $0x3c] sm:$0xff]
    %v949 = vld [vmem:[#allocation9 + $0x44] sm:$0xff]
    %v950 = vld [vmem:[#allocation9 + $0x4c] sm:$0xf]
    %v951 = vld [vmem:[#allocation9 + $0x50] sm:$0xff]
    %v952 = vld [vmem:[#allocation9 + $0x58] sm:$0xff]
    %v953 = vld [vmem:[#allocation9 + $0x60] sm:$0xf]
    %v954 = vld [vmem:[#allocation9 + $0x64] sm:$0xff]
    %v955 = vld [vmem:[#allocation9 + $0x6c] sm:$0xff]
    %v956 = vld [vmem:[#allocation9 + $0x74] sm:$0xf]
    %v957 = vld [vmem:[#allocation9 + $0x78] sm:$0xff]
    %v958 = vld [vmem:[#allocation9 + $0x80] sm:$0xff]
    %v959 = vld [vmem:[#allocation9 + $0x88] sm:$0xf]
    %v960 = vld [vmem:[#allocation9 + $0x8c] sm:$0xff]
    %v961 = vld [vmem:[#allocation9 + $0x94] sm:$0xff]
    %v962 = vld [vmem:[#allocation9 + $0x9c] sm:$0xf]
    %v963 = vld [vmem:[#allocation9 + $0xa0] sm:$0xff]
    %v964 = vld [vmem:[#allocation9 + $0xa8] sm:$0xff]
    %v965 = vld [vmem:[#allocation9 + $0xb0] sm:$0xf]
    %v966 = vld [vmem:[#allocation9 + $0xb4] sm:$0xff]
    %v967 = vld [vmem:[#allocation9 + $0xbc] sm:$0xff]
    %v968 = vld [vmem:[#allocation9 + $0xc4] sm:$0xf]
    %v969 = vld [vmem:[#allocation9 + $0xc8] sm:$0xff]
    %v970 = vld [vmem:[#allocation9 + $0xd0] sm:$0xff]
    %v971 = vld [vmem:[#allocation9 + $0xd8] sm:$0xf]
    %v972 = vld [vmem:[#allocation9 + $0xdc] sm:$0xff]
    %v973 = vld [vmem:[#allocation9 + $0xe4] sm:$0xff]
    %v974 = vld [vmem:[#allocation9 + $0xec] sm:$0xf]
    %v975 = vld [vmem:[#allocation9 + $0xf0] sm:$0xff]
    %v976 = vld [vmem:[#allocation9 + $0xf8] sm:$0xff]
    %v977 = vld [vmem:[#allocation9 + $0x100] sm:$0xf]
    %v978 = vld [vmem:[#allocation9 + $0x104] sm:$0xff]
    %v979 = vld [vmem:[#allocation9 + $0x10c] sm:$0xff]
    %v980 = vld [vmem:[#allocation9 + $0x114] sm:$0xf]
    %v981 = vld [vmem:[#allocation9 + $0x118] sm:$0xff]
    %v982 = vld [vmem:[#allocation9 + $0x120] sm:$0xff]
    %v983 = vld [vmem:[#allocation9 + $0x128] sm:$0xf]
    %v984 = vld [vmem:[#allocation9 + $0x12c] sm:$0xff]
    %v985 = vld [vmem:[#allocation9 + $0x134] sm:$0xff]
    %v986 = vld [vmem:[#allocation9 + $0x13c] sm:$0xf]
    %v987 = vld [vmem:[#allocation9 + $0x140] sm:$0xff]
    %v988 = vld [vmem:[#allocation9 + $0x148] sm:$0xff]
    %v989 = vld [vmem:[#allocation9 + $0x150] sm:$0xf]
    %v990 = vld [vmem:[#allocation9 + $0x154] sm:$0xff]
    %v991 = vld [vmem:[#allocation9 + $0x15c] sm:$0xff]
    %v992 = vld [vmem:[#allocation9 + $0x164] sm:$0xf]
    %v993 = vld [vmem:[#allocation9 + $0x168] sm:$0xff]
    %v994 = vld [vmem:[#allocation9 + $0x170] sm:$0xff]
    %v995 = vld [vmem:[#allocation9 + $0x178] sm:$0xf]
    %v996 = vld [vmem:[#allocation9 + $0x17c] sm:$0xff]
    %v997 = vld [vmem:[#allocation9 + $0x184] sm:$0xff]
    %v998 = vld [vmem:[#allocation9 + $0x18c] sm:$0xf]
    %v999 = vld [vmem:[#allocation9 + $0x190] sm:$0xff]
    %v1000 = vld [vmem:[#allocation9 + $0x198] sm:$0xff]
    %v1001 = vld [vmem:[#allocation9 + $0x1a0] sm:$0xf]
    %v1002 = vld [vmem:[#allocation9 + $0x1a4] sm:$0xff]
    %v1003 = vld [vmem:[#allocation9 + $0x1ac] sm:$0xff]
    %v1004 = vld [vmem:[#allocation9 + $0x1b4] sm:$0xf]
    %v1005 = vld [vmem:[#allocation9 + $0x1b8] sm:$0xff]
    %v1006 = vld [vmem:[#allocation9 + $0x1c0] sm:$0xff]
    %v1007 = vld [vmem:[#allocation9 + $0x1c8] sm:$0xf]
    %v1008 = vld [vmem:[#allocation9 + $0x1cc] sm:$0xff]
    %v1009 = vld [vmem:[#allocation9 + $0x1d4] sm:$0xff]
    %v1010 = vld [vmem:[#allocation9 + $0x1dc] sm:$0xf]
    %v1011 = vld [vmem:[#allocation9 + $0x1e0] sm:$0xff]
    %v1012 = vld [vmem:[#allocation9 + $0x1e8] sm:$0xff]
    %v1013 = vld [vmem:[#allocation9 + $0x1f0] sm:$0xf]
    %v1014 = vld [vmem:[#allocation9 + $0x1f4] sm:$0xff]
    %v1015 = vld [vmem:[#allocation9 + $0x1fc] sm:$0xff]
    %v1016 = vld [vmem:[#allocation9 + $0x204] sm:$0xf]
    %v1017 = vld [vmem:[#allocation9 + $0x208] sm:$0xff]
    %v1018 = vld [vmem:[#allocation9 + $0x210] sm:$0xff]
    %v1019 = vld [vmem:[#allocation9 + $0x218] sm:$0xf]
    %v1020 = vld [vmem:[#allocation9 + $0x21c] sm:$0xff]
    %v1021 = vld [vmem:[#allocation9 + $0x224] sm:$0xff]
    %v1022 = vld [vmem:[#allocation9 + $0x22c] sm:$0xf]
    %v1023 = vld [vmem:[#allocation9 + $0x230] sm:$0xff]
    %v1024 = vld [vmem:[#allocation9 + $0x238] sm:$0xff]
    %v1025 = vld [vmem:[#allocation9 + $0x240] sm:$0xf]
    %v1026 = vld [vmem:[#allocation9 + $0x244] sm:$0xff]
    %v1027 = vld [vmem:[#allocation9 + $0x24c] sm:$0xff]
    %v1028 = vld [vmem:[#allocation9 + $0x254] sm:$0xf]
    %v1029 = vld [vmem:[#allocation9 + $0x258] sm:$0xff]
    %v1030 = vld [vmem:[#allocation9 + $0x260] sm:$0xff]
    %v1031 = vld [vmem:[#allocation9 + $0x268] sm:$0xf]
    %v1032 = vld [vmem:[#allocation9 + $0x26c] sm:$0xff]
    %v1033 = vld [vmem:[#allocation9 + $0x274] sm:$0xff]
    %v1034 = vld [vmem:[#allocation9 + $0x27c] sm:$0xf]
    %v1035 = vld [vmem:[#allocation9 + $0x280] sm:$0xff]
    %v1036 = vld [vmem:[#allocation9 + $0x288] sm:$0xff]
    %v1037 = vld [vmem:[#allocation9 + $0x290] sm:$0xf]
    %v1038 = vld [vmem:[#allocation9 + $0x294] sm:$0xff]
    %v1039 = vld [vmem:[#allocation9 + $0x29c] sm:$0xff]
    %v1040 = vld [vmem:[#allocation9 + $0x2a4] sm:$0xf]
    %v1041 = vld [vmem:[#allocation9 + $0x2a8] sm:$0xff]
    %v1042 = vld [vmem:[#allocation9 + $0x2b0] sm:$0xff]
    %v1043 = vld [vmem:[#allocation9 + $0x2b8] sm:$0xf]
    %v1044 = vld [vmem:[#allocation9 + $0x2bc] sm:$0xff]
    %v1045 = vld [vmem:[#allocation9 + $0x2c4] sm:$0xff]
    %v1046 = vld [vmem:[#allocation9 + $0x2cc] sm:$0xf]
    %v1047 = vld [vmem:[#allocation9 + $0x2d0] sm:$0xff]
    %v1048 = vld [vmem:[#allocation9 + $0x2d8] sm:$0xff]
    %v1049 = vld [vmem:[#allocation9 + $0x2e0] sm:$0xf]
    %v1050 = vld [vmem:[#allocation9 + $0x2e4] sm:$0xff]
    %v1051 = vld [vmem:[#allocation9 + $0x2ec] sm:$0xff]
    %v1052 = vld [vmem:[#allocation9 + $0x2f4] sm:$0xf]
    %v1053 = vld [vmem:[#allocation9 + $0x2f8] sm:$0xff]
    %v1054 = vld [vmem:[#allocation9 + $0x300] sm:$0xff]
    %v1055 = vld [vmem:[#allocation9 + $0x308] sm:$0xf]
    %v1056 = vld [vmem:[#allocation9 + $0x30c] sm:$0xff]
    %v1057 = vld [vmem:[#allocation9 + $0x314] sm:$0xff]
    %v1058 = vld [vmem:[#allocation9 + $0x31c] sm:$0xf]
    %v1059 = vld [vmem:[#allocation9 + $0x320] sm:$0xff]
    %v1060 = vld [vmem:[#allocation9 + $0x328] sm:$0xff]
    %v1061 = vld [vmem:[#allocation9 + $0x330] sm:$0xf]
    %v1062 = vld [vmem:[#allocation9 + $0x334] sm:$0xff]
    %v1063 = vld [vmem:[#allocation9 + $0x33c] sm:$0xff]
    %v1064 = vld [vmem:[#allocation9 + $0x344] sm:$0xf]
    %v1065 = vld [vmem:[#allocation9 + $0x348] sm:$0xff]
    %v1066 = vld [vmem:[#allocation9 + $0x350] sm:$0xff]
    %v1067 = vld [vmem:[#allocation9 + $0x358] sm:$0xf]
    %v1068 = vld [vmem:[#allocation9 + $0x35c] sm:$0xff]
    %v1069 = vld [vmem:[#allocation9 + $0x364] sm:$0xff]
    %v1070 = vld [vmem:[#allocation9 + $0x36c] sm:$0xf]
    %v1071 = vld [vmem:[#allocation9 + $0x370] sm:$0xff]
    %v1072 = vld [vmem:[#allocation9 + $0x378] sm:$0xff]
    %v1073 = vld [vmem:[#allocation9 + $0x380] sm:$0xf]
    %v1074 = vld [vmem:[#allocation9 + $0x384] sm:$0xff]
    %v1075 = vld [vmem:[#allocation9 + $0x38c] sm:$0xff]
    %v1076 = vld [vmem:[#allocation9 + $0x394] sm:$0xf]
    %v1077 = vld [vmem:[#allocation9 + $0x398] sm:$0xff]
    %v1078 = vld [vmem:[#allocation9 + $0x3a0] sm:$0xff]
    %v1079 = vld [vmem:[#allocation9 + $0x3a8] sm:$0xf]
    %v1080 = vld [vmem:[#allocation9 + $0x3ac] sm:$0xff]
    %v1081 = vld [vmem:[#allocation9 + $0x3b4] sm:$0xff]
    %v1082 = vld [vmem:[#allocation9 + $0x3bc] sm:$0xf]
    %v1083 = vld [vmem:[#allocation9 + $0x3c0] sm:$0xff]
    %v1084 = vld [vmem:[#allocation9 + $0x3c8] sm:$0xff]
    %v1085 = vld [vmem:[#allocation9 + $0x3d0] sm:$0xf]
    %v1086 = vld [vmem:[#allocation9 + $0x3d4] sm:$0xff]
    %v1087 = vld [vmem:[#allocation9 + $0x3dc] sm:$0xff]
    %v1088 = vld [vmem:[#allocation9 + $0x3e4] sm:$0xf]
    %v1089 = vld [vmem:[#allocation9 + $0x3e8] sm:$0xff]
    %v1090 = vld [vmem:[#allocation9 + $0x3f0] sm:$0xff]
    %v1091 = vld [vmem:[#allocation9 + $0x3f8] sm:$0xf]
    %v1092 = vld [vmem:[#allocation9 + $0x3fc] sm:$0xff]
    %v1093 = vld [vmem:[#allocation9 + $0x404] sm:$0xff]
    %v1094 = vld [vmem:[#allocation9 + $0x40c] sm:$0xf]
    %v1095 = vld [vmem:[#allocation9 + $0x410] sm:$0xff]
    %v1096 = vld [vmem:[#allocation9 + $0x418] sm:$0xff]
    %v1097 = vld [vmem:[#allocation9 + $0x420] sm:$0xf]
    %v1098 = vld [vmem:[#allocation9 + $0x424] sm:$0xff]
    %v1099 = vld [vmem:[#allocation9 + $0x42c] sm:$0xff]
    %v1100 = vld [vmem:[#allocation9 + $0x434] sm:$0xf]
    %v1101 = vld [vmem:[#allocation9 + $0x438] sm:$0xff]
    %v1102 = vld [vmem:[#allocation9 + $0x440] sm:$0xff]
    %v1103 = vld [vmem:[#allocation9 + $0x448] sm:$0xf]
    %v1104 = vld [vmem:[#allocation9 + $0x44c] sm:$0xff]
    %v1105 = vld [vmem:[#allocation9 + $0x454] sm:$0xff]
    %v1106 = vld [vmem:[#allocation9 + $0x45c] sm:$0xf]
    %v1107 = vld [vmem:[#allocation9 + $0x460] sm:$0xff]
    %v1108 = vld [vmem:[#allocation9 + $0x468] sm:$0xff]
    %v1109 = vld [vmem:[#allocation9 + $0x470] sm:$0xf]
    %v1110 = vld [vmem:[#allocation9 + $0x474] sm:$0xff]
    %v1111 = vld [vmem:[#allocation9 + $0x47c] sm:$0xff]
    %v1112 = vld [vmem:[#allocation9 + $0x484] sm:$0xf]
    %v1113 = vld [vmem:[#allocation9 + $0x488] sm:$0xff]
    %v1114 = vld [vmem:[#allocation9 + $0x490] sm:$0xff]
    %v1115 = vld [vmem:[#allocation9 + $0x498] sm:$0xf]
    %v1116 = vld [vmem:[#allocation9 + $0x49c] sm:$0xff]
    %v1117 = vld [vmem:[#allocation9 + $0x4a4] sm:$0xff]
    %v1118 = vld [vmem:[#allocation9 + $0x4ac] sm:$0xf]
    %v1119 = vld [vmem:[#allocation9 + $0x4b0] sm:$0xff]
    %v1120 = vld [vmem:[#allocation9 + $0x4b8] sm:$0xff]
    %v1121 = vld [vmem:[#allocation9 + $0x4c0] sm:$0xf]
    %v1122 = vld [vmem:[#allocation9 + $0x4c4] sm:$0xff]
    %v1123 = vld [vmem:[#allocation9 + $0x4cc] sm:$0xff]
    %v1124 = vld [vmem:[#allocation9 + $0x4d4] sm:$0xf]
    %v1125 = vld [vmem:[#allocation9 + $0x4d8] sm:$0xff]
    %v1126 = vld [vmem:[#allocation9 + $0x4e0] sm:$0xff]
    %v1127 = vld [vmem:[#allocation9 + $0x4e8] sm:$0xf]
    %v1128 = vld [vmem:[#allocation9 + $0x4ec] sm:$0xff]
    %v1129 = vld [vmem:[#allocation9 + $0x4f4] sm:$0xff]
    %v1130 = vld [vmem:[#allocation9 + $0x4fc] sm:$0xf]
    %v1131 = vld [vmem:[#allocation9 + $0x500] sm:$0xff]
    %v1132 = vld [vmem:[#allocation9 + $0x508] sm:$0xff]
    %v1133 = vld [vmem:[#allocation9 + $0x510] sm:$0xf]
    %v1134 = vld [vmem:[#allocation9 + $0x514] sm:$0xff]
    %v1135 = vld [vmem:[#allocation9 + $0x51c] sm:$0xff]
    %v1136 = vld [vmem:[#allocation9 + $0x524] sm:$0xf]
    %v1137 = vld [vmem:[#allocation9 + $0x528] sm:$0xff]
    %v1138 = vld [vmem:[#allocation9 + $0x530] sm:$0xff]
    %v1139 = vld [vmem:[#allocation9 + $0x538] sm:$0xf]
    %v1140 = vld [vmem:[#allocation9 + $0x53c] sm:$0xff]
    %v1141 = vld [vmem:[#allocation9 + $0x544] sm:$0xff]
    %v1142 = vld [vmem:[#allocation9 + $0x54c] sm:$0xf]
    %v1143 = vld [vmem:[#allocation9 + $0x550] sm:$0xff]
    %v1144 = vld [vmem:[#allocation9 + $0x558] sm:$0xff]
    %v1145 = vld [vmem:[#allocation9 + $0x560] sm:$0xf]
    %v1146 = vld [vmem:[#allocation9 + $0x564] sm:$0xff]
    %v1147 = vld [vmem:[#allocation9 + $0x56c] sm:$0xff]
    %v1148 = vld [vmem:[#allocation9 + $0x574] sm:$0xf]
    %v1149 = vld [vmem:[#allocation9 + $0x578] sm:$0xff]
    %v1150 = vld [vmem:[#allocation9 + $0x580] sm:$0xff]
    %v1151 = vld [vmem:[#allocation9 + $0x588] sm:$0xf]
    %v1152 = vld [vmem:[#allocation9 + $0x58c] sm:$0xff]
    %v1153 = vld [vmem:[#allocation9 + $0x594] sm:$0xff]
    %v1154 = vld [vmem:[#allocation9 + $0x59c] sm:$0xf]
    %v1155 = vld [vmem:[#allocation9 + $0x5a0] sm:$0xff]
    %v1156 = vld [vmem:[#allocation9 + $0x5a8] sm:$0xff]
    %v1157 = vld [vmem:[#allocation9 + $0x5b0] sm:$0xf]
    %v1158 = vld [vmem:[#allocation9 + $0x5b4] sm:$0xff]
    %v1159 = vld [vmem:[#allocation9 + $0x5bc] sm:$0xff]
    %v1160 = vld [vmem:[#allocation9 + $0x5c4] sm:$0xf]
    %v1161 = vld [vmem:[#allocation9 + $0x5c8] sm:$0xff]
    %v1162 = vld [vmem:[#allocation9 + $0x5d0] sm:$0xff]
    %v1163 = vld [vmem:[#allocation9 + $0x5d8] sm:$0xf]
    %v1164 = vld [vmem:[#allocation9 + $0x5dc] sm:$0xff]
    %v1165 = vld [vmem:[#allocation9 + $0x5e4] sm:$0xff]
    %v1166 = vld [vmem:[#allocation9 + $0x5ec] sm:$0xf]
    %v1167 = vld [vmem:[#allocation9 + $0x5f0] sm:$0xff]
    %v1168 = vld [vmem:[#allocation9 + $0x5f8] sm:$0xff]
    %v1169 = vld [vmem:[#allocation9 + $0x600] sm:$0xf]
    %v1170 = vld [vmem:[#allocation9 + $0x604] sm:$0xff]
    %v1171 = vld [vmem:[#allocation9 + $0x60c] sm:$0xff]
    %v1172 = vld [vmem:[#allocation9 + $0x614] sm:$0xf]
    %v1173 = vld [vmem:[#allocation9 + $0x618] sm:$0xff]
    %v1174 = vld [vmem:[#allocation9 + $0x620] sm:$0xff]
    %v1175 = vld [vmem:[#allocation9 + $0x628] sm:$0xf]
    %v1176 = vld [vmem:[#allocation9 + $0x62c] sm:$0xff]
    %v1177 = vld [vmem:[#allocation9 + $0x634] sm:$0xff]
    %v1178 = vld [vmem:[#allocation9 + $0x63c] sm:$0xf]
    %v1179 = vld [vmem:[#allocation9 + $0x640] sm:$0xff]
    %v1180 = vld [vmem:[#allocation9 + $0x648] sm:$0xff]
    %v1181 = vld [vmem:[#allocation9 + $0x650] sm:$0xf]
    %v1182 = vld [vmem:[#allocation9 + $0x654] sm:$0xff]
    %v1183 = vld [vmem:[#allocation9 + $0x65c] sm:$0xff]
    %v1184 = vld [vmem:[#allocation9 + $0x664] sm:$0xf]
    %v1185 = vld [vmem:[#allocation9 + $0x668] sm:$0xff]
    %v1186 = vld [vmem:[#allocation9 + $0x670] sm:$0xff]
    %v1187 = vld [vmem:[#allocation9 + $0x678] sm:$0xf]
    %v1188 = vld [vmem:[#allocation9 + $0x67c] sm:$0xff]
    %v1189 = vld [vmem:[#allocation9 + $0x684] sm:$0xff]
    %v1190 = vld [vmem:[#allocation9 + $0x68c] sm:$0xf]
    %v1191 = vld [vmem:[#allocation9 + $0x690] sm:$0xff]
    %v1192 = vld [vmem:[#allocation9 + $0x698] sm:$0xff]
    %v1193 = vld [vmem:[#allocation9 + $0x6a0] sm:$0xf]
    %v1194 = vld [vmem:[#allocation9 + $0x6a4] sm:$0xff]
    %v1195 = vld [vmem:[#allocation9 + $0x6ac] sm:$0xff]
    %v1196 = vld [vmem:[#allocation9 + $0x6b4] sm:$0xf]
    %v1197 = vld [vmem:[#allocation9 + $0x6b8] sm:$0xff]
    %v1198 = vld [vmem:[#allocation9 + $0x6c0] sm:$0xff]
    %v1199 = vld [vmem:[#allocation9 + $0x6c8] sm:$0xf]
    %v1200 = vld [vmem:[#allocation9 + $0x6cc] sm:$0xff]
    %v1201 = vld [vmem:[#allocation9 + $0x6d4] sm:$0xff]
    %v1202 = vld [vmem:[#allocation9 + $0x6dc] sm:$0xf]
    %v1203 = vld [vmem:[#allocation9 + $0x6e0] sm:$0xff]
    %v1204 = vld [vmem:[#allocation9 + $0x6e8] sm:$0xff]
    %v1205 = vld [vmem:[#allocation9 + $0x6f0] sm:$0xf]
    %v1206 = vld [vmem:[#allocation9 + $0x6f4] sm:$0xff]
    %v1207 = vld [vmem:[#allocation9 + $0x6fc] sm:$0xff]
    %v1208 = vld [vmem:[#allocation9 + $0x704] sm:$0xf]
    %v1209 = vld [vmem:[#allocation9 + $0x708] sm:$0xff]
    %v1210 = vld [vmem:[#allocation9 + $0x710] sm:$0xff]
    %v1211 = vld [vmem:[#allocation9 + $0x718] sm:$0xf]
    %v1212 = vld [vmem:[#allocation9 + $0x71c] sm:$0xff]
    %v1213 = vld [vmem:[#allocation9 + $0x724] sm:$0xff]
    %v1214 = vld [vmem:[#allocation9 + $0x72c] sm:$0xf]
    %v1215 = vld [vmem:[#allocation9 + $0x730] sm:$0xff]
    %v1216 = vld [vmem:[#allocation9 + $0x738] sm:$0xff]
    %v1217 = vld [vmem:[#allocation9 + $0x740] sm:$0xf]
    %v1218 = vld [vmem:[#allocation9 + $0x744] sm:$0xff]
    %v1219 = vld [vmem:[#allocation9 + $0x74c] sm:$0xff]
    %v1220 = vld [vmem:[#allocation9 + $0x754] sm:$0xf]
    %v1221 = vld [vmem:[#allocation9 + $0x758] sm:$0xff]
    %v1222 = vld [vmem:[#allocation9 + $0x760] sm:$0xff]
    %v1223 = vld [vmem:[#allocation9 + $0x768] sm:$0xf]
    %v1224 = vld [vmem:[#allocation9 + $0x76c] sm:$0xff]
    %v1225 = vld [vmem:[#allocation9 + $0x774] sm:$0xff]
    %v1226 = vld [vmem:[#allocation9 + $0x77c] sm:$0xf]
    %v1227 = vld [vmem:[#allocation9 + $0x780] sm:$0xff]
    %v1228 = vld [vmem:[#allocation9 + $0x788] sm:$0xff]
    %v1229 = vld [vmem:[#allocation9 + $0x790] sm:$0xf]
    %v1230 = vld [vmem:[#allocation9 + $0x794] sm:$0xff]
    %v1231 = vld [vmem:[#allocation9 + $0x79c] sm:$0xff]
    %v1232 = vld [vmem:[#allocation9 + $0x7a4] sm:$0xf]
    %v1233 = vld [vmem:[#allocation9 + $0x7a8] sm:$0xff]
    %v1234 = vld [vmem:[#allocation9 + $0x7b0] sm:$0xff]
    %v1235 = vld [vmem:[#allocation9 + $0x7b8] sm:$0xf]
    %v1236 = vld [vmem:[#allocation9 + $0x7bc] sm:$0xff]
    %v1237 = vld [vmem:[#allocation9 + $0x7c4] sm:$0xff]
    %v1238 = vld [vmem:[#allocation9 + $0x7cc] sm:$0xf]
    %v1239 = vld [vmem:[#allocation9 + $0x7d0] sm:$0xff]
    %v1240 = vld [vmem:[#allocation9 + $0x7d8] sm:$0xff]
    %v1241 = vld [vmem:[#allocation9 + $0x7e0] sm:$0xf]
    %v1242 = vld [vmem:[#allocation9 + $0x7e4] sm:$0xff]
    %v1243 = vld [vmem:[#allocation9 + $0x7ec] sm:$0xff]
    %v1244 = vld [vmem:[#allocation9 + $0x7f4] sm:$0xf]
    %v1245 = vld [vmem:[#allocation9 + $0x7f8] sm:$0xff]
    %v1246 = vld [vmem:[#allocation9 + $0x800] sm:$0xff]
    %v1247 = vld [vmem:[#allocation9 + $0x808] sm:$0xf]
    %v1248 = vld [vmem:[#allocation9 + $0x80c] sm:$0xff]
    %v1249 = vld [vmem:[#allocation9 + $0x814] sm:$0xff]
    %v1250 = vld [vmem:[#allocation9 + $0x81c] sm:$0xf]
    %v1251 = vld [vmem:[#allocation9 + $0x820] sm:$0xff]
    %v1252 = vld [vmem:[#allocation9 + $0x828] sm:$0xff]
    %v1253 = vld [vmem:[#allocation9 + $0x830] sm:$0xf]
    %v1254 = vld [vmem:[#allocation9 + $0x834] sm:$0xff]
    %v1255 = vld [vmem:[#allocation9 + $0x83c] sm:$0xff]
    %v1256 = vld [vmem:[#allocation9 + $0x844] sm:$0xf]
    %v1257 = vld [vmem:[#allocation9 + $0x848] sm:$0xff]
    %v1258 = vld [vmem:[#allocation9 + $0x850] sm:$0xff]
    %v1259 = vld [vmem:[#allocation9 + $0x858] sm:$0xf]
    %v1260 = vld [vmem:[#allocation9 + $0x85c] sm:$0xff]
    %v1261 = vld [vmem:[#allocation9 + $0x864] sm:$0xff]
    %v1262 = vld [vmem:[#allocation9 + $0x86c] sm:$0xf]
    %v1587 = vunpack.c.l.b16 %v939
    %v1588 = vunpack.c.h.b16 %v939
    %v1589 = vunpack.c.l.b16 %v940
    %v1590 = vunpack.c.h.b16 %v940
    %v1591 = vunpack.c.l.b16 %v941
    %v1592 = vunpack.c.l.b16 %v942
    %v1593 = vunpack.c.h.b16 %v942
    %v1594 = vunpack.c.l.b16 %v943
    %v1595 = vunpack.c.h.b16 %v943
    %v1596 = vunpack.c.l.b16 %v944
    %v1597 = vunpack.c.l.b16 %v945
    %v1598 = vunpack.c.h.b16 %v945
    %v1599 = vunpack.c.l.b16 %v946
    %v1600 = vunpack.c.h.b16 %v946
    %v1601 = vunpack.c.l.b16 %v947
    %v1602 = vunpack.c.l.b16 %v948
    %v1603 = vunpack.c.h.b16 %v948
    %v1604 = vunpack.c.l.b16 %v949
    %v1605 = vunpack.c.h.b16 %v949
    %v1606 = vunpack.c.l.b16 %v950
    %v1607 = vunpack.c.l.b16 %v951
    %v1608 = vunpack.c.h.b16 %v951
    %v1609 = vunpack.c.l.b16 %v952
    %v1610 = vunpack.c.h.b16 %v952
    %v1611 = vunpack.c.l.b16 %v953
    %v1612 = vunpack.c.l.b16 %v954
    %v1613 = vunpack.c.h.b16 %v954
    %v1614 = vunpack.c.l.b16 %v955
    %v1615 = vunpack.c.h.b16 %v955
    %v1616 = vunpack.c.l.b16 %v956
    %v1617 = vunpack.c.l.b16 %v957
    %v1618 = vunpack.c.h.b16 %v957
    %v1619 = vunpack.c.l.b16 %v958
    %v1620 = vunpack.c.h.b16 %v958
    %v1621 = vunpack.c.l.b16 %v959
    %v1622 = vunpack.c.l.b16 %v960
    %v1623 = vunpack.c.h.b16 %v960
    %v1624 = vunpack.c.l.b16 %v961
    %v1625 = vunpack.c.h.b16 %v961
    %v1626 = vunpack.c.l.b16 %v962
    %v1627 = vunpack.c.l.b16 %v963
    %v1628 = vunpack.c.h.b16 %v963
    %v1629 = vunpack.c.l.b16 %v964
    %v1630 = vunpack.c.h.b16 %v964
    %v1631 = vunpack.c.l.b16 %v965
    %v1632 = vunpack.c.l.b16 %v966
    %v1633 = vunpack.c.h.b16 %v966
    %v1634 = vunpack.c.l.b16 %v967
    %v1635 = vunpack.c.h.b16 %v967
    %v1636 = vunpack.c.l.b16 %v968
    %v1637 = vunpack.c.l.b16 %v969
    %v1638 = vunpack.c.h.b16 %v969
    %v1639 = vunpack.c.l.b16 %v970
    %v1640 = vunpack.c.h.b16 %v970
    %v1641 = vunpack.c.l.b16 %v971
    %v1642 = vunpack.c.l.b16 %v972
    %v1643 = vunpack.c.h.b16 %v972
    %v1644 = vunpack.c.l.b16 %v973
    %v1645 = vunpack.c.h.b16 %v973
    %v1646 = vunpack.c.l.b16 %v974
    %v1647 = vunpack.c.l.b16 %v975
    %v1648 = vunpack.c.h.b16 %v975
    %v1649 = vunpack.c.l.b16 %v976
    %v1650 = vunpack.c.h.b16 %v976
    %v1651 = vunpack.c.l.b16 %v977
    %v1652 = vunpack.c.l.b16 %v978
    %v1653 = vunpack.c.h.b16 %v978
    %v1654 = vunpack.c.l.b16 %v979
    %v1655 = vunpack.c.h.b16 %v979
    %v1656 = vunpack.c.l.b16 %v980
    %v1657 = vunpack.c.l.b16 %v981
    %v1658 = vunpack.c.h.b16 %v981
    %v1659 = vunpack.c.l.b16 %v982
    %v1660 = vunpack.c.h.b16 %v982
    %v1661 = vunpack.c.l.b16 %v983
    %v1662 = vunpack.c.l.b16 %v984
    %v1663 = vunpack.c.h.b16 %v984
    %v1664 = vunpack.c.l.b16 %v985
    %v1665 = vunpack.c.h.b16 %v985
    %v1666 = vunpack.c.l.b16 %v986
    %v1667 = vunpack.c.l.b16 %v987
    %v1668 = vunpack.c.h.b16 %v987
    %v1669 = vunpack.c.l.b16 %v988
    %v1670 = vunpack.c.h.b16 %v988
    %v1671 = vunpack.c.l.b16 %v989
    %v1672 = vunpack.c.l.b16 %v990
    %v1673 = vunpack.c.h.b16 %v990
    %v1674 = vunpack.c.l.b16 %v991
    %v1675 = vunpack.c.h.b16 %v991
    %v1676 = vunpack.c.l.b16 %v992
    %v1677 = vunpack.c.l.b16 %v993
    %v1678 = vunpack.c.h.b16 %v993
    %v1679 = vunpack.c.l.b16 %v994
    %v1680 = vunpack.c.h.b16 %v994
    %v1681 = vunpack.c.l.b16 %v995
    %v1682 = vunpack.c.l.b16 %v996
    %v1683 = vunpack.c.h.b16 %v996
    %v1684 = vunpack.c.l.b16 %v997
    %v1685 = vunpack.c.h.b16 %v997
    %v1686 = vunpack.c.l.b16 %v998
    %v1687 = vunpack.c.l.b16 %v999
    %v1688 = vunpack.c.h.b16 %v999
    %v1689 = vunpack.c.l.b16 %v1000
    %v1690 = vunpack.c.h.b16 %v1000
    %v1691 = vunpack.c.l.b16 %v1001
    %v1692 = vunpack.c.l.b16 %v1002
    %v1693 = vunpack.c.h.b16 %v1002
    %v1694 = vunpack.c.l.b16 %v1003
    %v1695 = vunpack.c.h.b16 %v1003
    %v1696 = vunpack.c.l.b16 %v1004
    %v1697 = vunpack.c.l.b16 %v1005
    %v1698 = vunpack.c.h.b16 %v1005
    %v1699 = vunpack.c.l.b16 %v1006
    %v1700 = vunpack.c.h.b16 %v1006
    %v1701 = vunpack.c.l.b16 %v1007
    %v1702 = vunpack.c.l.b16 %v1008
    %v1703 = vunpack.c.h.b16 %v1008
    %v1704 = vunpack.c.l.b16 %v1009
    %v1705 = vunpack.c.h.b16 %v1009
    %v1706 = vunpack.c.l.b16 %v1010
    %v1707 = vunpack.c.l.b16 %v1011
    %v1708 = vunpack.c.h.b16 %v1011
    %v1709 = vunpack.c.l.b16 %v1012
    %v1710 = vunpack.c.h.b16 %v1012
    %v1711 = vunpack.c.l.b16 %v1013
    %v1712 = vunpack.c.l.b16 %v1014
    %v1713 = vunpack.c.h.b16 %v1014
    %v1714 = vunpack.c.l.b16 %v1015
    %v1715 = vunpack.c.h.b16 %v1015
    %v1716 = vunpack.c.l.b16 %v1016
    %v1717 = vunpack.c.l.b16 %v1017
    %v1718 = vunpack.c.h.b16 %v1017
    %v1719 = vunpack.c.l.b16 %v1018
    %v1720 = vunpack.c.h.b16 %v1018
    %v1721 = vunpack.c.l.b16 %v1019
    %v1722 = vunpack.c.l.b16 %v1020
    %v1723 = vunpack.c.h.b16 %v1020
    %v1724 = vunpack.c.l.b16 %v1021
    %v1725 = vunpack.c.h.b16 %v1021
    %v1726 = vunpack.c.l.b16 %v1022
    %v1727 = vunpack.c.l.b16 %v1023
    %v1728 = vunpack.c.h.b16 %v1023
    %v1729 = vunpack.c.l.b16 %v1024
    %v1730 = vunpack.c.h.b16 %v1024
    %v1731 = vunpack.c.l.b16 %v1025
    %v1732 = vunpack.c.l.b16 %v1026
    %v1733 = vunpack.c.h.b16 %v1026
    %v1734 = vunpack.c.l.b16 %v1027
    %v1735 = vunpack.c.h.b16 %v1027
    %v1736 = vunpack.c.l.b16 %v1028
    %v1737 = vunpack.c.l.b16 %v1029
    %v1738 = vunpack.c.h.b16 %v1029
    %v1739 = vunpack.c.l.b16 %v1030
    %v1740 = vunpack.c.h.b16 %v1030
    %v1741 = vunpack.c.l.b16 %v1031
    %v1742 = vunpack.c.l.b16 %v1032
    %v1743 = vunpack.c.h.b16 %v1032
    %v1744 = vunpack.c.l.b16 %v1033
    %v1745 = vunpack.c.h.b16 %v1033
    %v1746 = vunpack.c.l.b16 %v1034
    %v1747 = vunpack.c.l.b16 %v1035
    %v1748 = vunpack.c.h.b16 %v1035
    %v1749 = vunpack.c.l.b16 %v1036
    %v1750 = vunpack.c.h.b16 %v1036
    %v1751 = vunpack.c.l.b16 %v1037
    %v1752 = vunpack.c.l.b16 %v1038
    %v1753 = vunpack.c.h.b16 %v1038
    %v1754 = vunpack.c.l.b16 %v1039
    %v1755 = vunpack.c.h.b16 %v1039
    %v1756 = vunpack.c.l.b16 %v1040
    %v1757 = vunpack.c.l.b16 %v1041
    %v1758 = vunpack.c.h.b16 %v1041
    %v1759 = vunpack.c.l.b16 %v1042
    %v1760 = vunpack.c.h.b16 %v1042
    %v1761 = vunpack.c.l.b16 %v1043
    %v1762 = vunpack.c.l.b16 %v1044
    %v1763 = vunpack.c.h.b16 %v1044
    %v1764 = vunpack.c.l.b16 %v1045
    %v1765 = vunpack.c.h.b16 %v1045
    %v1766 = vunpack.c.l.b16 %v1046
    %v1767 = vunpack.c.l.b16 %v1047
    %v1768 = vunpack.c.h.b16 %v1047
    %v1769 = vunpack.c.l.b16 %v1048
    %v1770 = vunpack.c.h.b16 %v1048
    %v1771 = vunpack.c.l.b16 %v1049
    %v1772 = vunpack.c.l.b16 %v1050
    %v1773 = vunpack.c.h.b16 %v1050
    %v1774 = vunpack.c.l.b16 %v1051
    %v1775 = vunpack.c.h.b16 %v1051
    %v1776 = vunpack.c.l.b16 %v1052
    %v1777 = vunpack.c.l.b16 %v1053
    %v1778 = vunpack.c.h.b16 %v1053
    %v1779 = vunpack.c.l.b16 %v1054
    %v1780 = vunpack.c.h.b16 %v1054
    %v1781 = vunpack.c.l.b16 %v1055
    %v1782 = vunpack.c.l.b16 %v1056
    %v1783 = vunpack.c.h.b16 %v1056
    %v1784 = vunpack.c.l.b16 %v1057
    %v1785 = vunpack.c.h.b16 %v1057
    %v1786 = vunpack.c.l.b16 %v1058
    %v1787 = vunpack.c.l.b16 %v1059
    %v1788 = vunpack.c.h.b16 %v1059
    %v1789 = vunpack.c.l.b16 %v1060
    %v1790 = vunpack.c.h.b16 %v1060
    %v1791 = vunpack.c.l.b16 %v1061
    %v1792 = vunpack.c.l.b16 %v1062
    %v1793 = vunpack.c.h.b16 %v1062
    %v1794 = vunpack.c.l.b16 %v1063
    %v1795 = vunpack.c.h.b16 %v1063
    %v1796 = vunpack.c.l.b16 %v1064
    %v1797 = vunpack.c.l.b16 %v1065
    %v1798 = vunpack.c.h.b16 %v1065
    %v1799 = vunpack.c.l.b16 %v1066
    %v1800 = vunpack.c.h.b16 %v1066
    %v1801 = vunpack.c.l.b16 %v1067
    %v1802 = vunpack.c.l.b16 %v1068
    %v1803 = vunpack.c.h.b16 %v1068
    %v1804 = vunpack.c.l.b16 %v1069
    %v1805 = vunpack.c.h.b16 %v1069
    %v1806 = vunpack.c.l.b16 %v1070
    %v1807 = vunpack.c.l.b16 %v1071
    %v1808 = vunpack.c.h.b16 %v1071
    %v1809 = vunpack.c.l.b16 %v1072
    %v1810 = vunpack.c.h.b16 %v1072
    %v1811 = vunpack.c.l.b16 %v1073
    %v1812 = vunpack.c.l.b16 %v1074
    %v1813 = vunpack.c.h.b16 %v1074
    %v1814 = vunpack.c.l.b16 %v1075
    %v1815 = vunpack.c.h.b16 %v1075
    %v1816 = vunpack.c.l.b16 %v1076
    %v1817 = vunpack.c.l.b16 %v1077
    %v1818 = vunpack.c.h.b16 %v1077
    %v1819 = vunpack.c.l.b16 %v1078
    %v1820 = vunpack.c.h.b16 %v1078
    %v1821 = vunpack.c.l.b16 %v1079
    %v1822 = vunpack.c.l.b16 %v1080
    %v1823 = vunpack.c.h.b16 %v1080
    %v1824 = vunpack.c.l.b16 %v1081
    %v1825 = vunpack.c.h.b16 %v1081
    %v1826 = vunpack.c.l.b16 %v1082
    %v1827 = vunpack.c.l.b16 %v1083
    %v1828 = vunpack.c.h.b16 %v1083
    %v1829 = vunpack.c.l.b16 %v1084
    %v1830 = vunpack.c.h.b16 %v1084
    %v1831 = vunpack.c.l.b16 %v1085
    %v1832 = vunpack.c.l.b16 %v1086
    %v1833 = vunpack.c.h.b16 %v1086
    %v1834 = vunpack.c.l.b16 %v1087
    %v1835 = vunpack.c.h.b16 %v1087
    %v1836 = vunpack.c.l.b16 %v1088
    %v1837 = vunpack.c.l.b16 %v1089
    %v1838 = vunpack.c.h.b16 %v1089
    %v1839 = vunpack.c.l.b16 %v1090
    %v1840 = vunpack.c.h.b16 %v1090
    %v1841 = vunpack.c.l.b16 %v1091
    %v1842 = vunpack.c.l.b16 %v1092
    %v1843 = vunpack.c.h.b16 %v1092
    %v1844 = vunpack.c.l.b16 %v1093
    %v1845 = vunpack.c.h.b16 %v1093
    %v1846 = vunpack.c.l.b16 %v1094
    %v1847 = vunpack.c.l.b16 %v1095
    %v1848 = vunpack.c.h.b16 %v1095
    %v1849 = vunpack.c.l.b16 %v1096
    %v1850 = vunpack.c.h.b16 %v1096
    %v1851 = vunpack.c.l.b16 %v1097
    %v1852 = vunpack.c.l.b16 %v1098
    %v1853 = vunpack.c.h.b16 %v1098
    %v1854 = vunpack.c.l.b16 %v1099
    %v1855 = vunpack.c.h.b16 %v1099
    %v1856 = vunpack.c.l.b16 %v1100
    %v1857 = vunpack.c.l.b16 %v1101
    %v1858 = vunpack.c.h.b16 %v1101
    %v1859 = vunpack.c.l.b16 %v1102
    %v1860 = vunpack.c.h.b16 %v1102
    %v1861 = vunpack.c.l.b16 %v1103
    %v1862 = vunpack.c.l.b16 %v1104
    %v1863 = vunpack.c.h.b16 %v1104
    %v1864 = vunpack.c.l.b16 %v1105
    %v1865 = vunpack.c.h.b16 %v1105
    %v1866 = vunpack.c.l.b16 %v1106
    %v1867 = vunpack.c.l.b16 %v1107
    %v1868 = vunpack.c.h.b16 %v1107
    %v1869 = vunpack.c.l.b16 %v1108
    %v1870 = vunpack.c.h.b16 %v1108
    %v1871 = vunpack.c.l.b16 %v1109
    %v1872 = vunpack.c.l.b16 %v1110
    %v1873 = vunpack.c.h.b16 %v1110
    %v1874 = vunpack.c.l.b16 %v1111
    %v1875 = vunpack.c.h.b16 %v1111
    %v1876 = vunpack.c.l.b16 %v1112
    %v1877 = vunpack.c.l.b16 %v1113
    %v1878 = vunpack.c.h.b16 %v1113
    %v1879 = vunpack.c.l.b16 %v1114
    %v1880 = vunpack.c.h.b16 %v1114
    %v1881 = vunpack.c.l.b16 %v1115
    %v1882 = vunpack.c.l.b16 %v1116
    %v1883 = vunpack.c.h.b16 %v1116
    %v1884 = vunpack.c.l.b16 %v1117
    %v1885 = vunpack.c.h.b16 %v1117
    %v1886 = vunpack.c.l.b16 %v1118
    %v1887 = vunpack.c.l.b16 %v1119
    %v1888 = vunpack.c.h.b16 %v1119
    %v1889 = vunpack.c.l.b16 %v1120
    %v1890 = vunpack.c.h.b16 %v1120
    %v1891 = vunpack.c.l.b16 %v1121
    %v1892 = vunpack.c.l.b16 %v1122
    %v1893 = vunpack.c.h.b16 %v1122
    %v1894 = vunpack.c.l.b16 %v1123
    %v1895 = vunpack.c.h.b16 %v1123
    %v1896 = vunpack.c.l.b16 %v1124
    %v1897 = vunpack.c.l.b16 %v1125
    %v1898 = vunpack.c.h.b16 %v1125
    %v1899 = vunpack.c.l.b16 %v1126
    %v1900 = vunpack.c.h.b16 %v1126
    %v1901 = vunpack.c.l.b16 %v1127
    %v1902 = vunpack.c.l.b16 %v1128
    %v1903 = vunpack.c.h.b16 %v1128
    %v1904 = vunpack.c.l.b16 %v1129
    %v1905 = vunpack.c.h.b16 %v1129
    %v1906 = vunpack.c.l.b16 %v1130
    %v1907 = vunpack.c.l.b16 %v1131
    %v1908 = vunpack.c.h.b16 %v1131
    %v1909 = vunpack.c.l.b16 %v1132
    %v1910 = vunpack.c.h.b16 %v1132
    %v1911 = vunpack.c.l.b16 %v1133
    %v1912 = vunpack.c.l.b16 %v1134
    %v1913 = vunpack.c.h.b16 %v1134
    %v1914 = vunpack.c.l.b16 %v1135
    %v1915 = vunpack.c.h.b16 %v1135
    %v1916 = vunpack.c.l.b16 %v1136
    %v1917 = vunpack.c.l.b16 %v1137
    %v1918 = vunpack.c.h.b16 %v1137
    %v1919 = vunpack.c.l.b16 %v1138
    %v1920 = vunpack.c.h.b16 %v1138
    %v1921 = vunpack.c.l.b16 %v1139
    %v1922 = vunpack.c.l.b16 %v1140
    %v1923 = vunpack.c.h.b16 %v1140
    %v1924 = vunpack.c.l.b16 %v1141
    %v1925 = vunpack.c.h.b16 %v1141
    %v1926 = vunpack.c.l.b16 %v1142
    %v1927 = vunpack.c.l.b16 %v1143
    %v1928 = vunpack.c.h.b16 %v1143
    %v1929 = vunpack.c.l.b16 %v1144
    %v1930 = vunpack.c.h.b16 %v1144
    %v1931 = vunpack.c.l.b16 %v1145
    %v1932 = vunpack.c.l.b16 %v1146
    %v1933 = vunpack.c.h.b16 %v1146
    %v1934 = vunpack.c.l.b16 %v1147
    %v1935 = vunpack.c.h.b16 %v1147
    %v1936 = vunpack.c.l.b16 %v1148
    %v1937 = vunpack.c.l.b16 %v1149
    %v1938 = vunpack.c.h.b16 %v1149
    %v1939 = vunpack.c.l.b16 %v1150
    %v1940 = vunpack.c.h.b16 %v1150
    %v1941 = vunpack.c.l.b16 %v1151
    %v1942 = vunpack.c.l.b16 %v1152
    %v1943 = vunpack.c.h.b16 %v1152
    %v1944 = vunpack.c.l.b16 %v1153
    %v1945 = vunpack.c.h.b16 %v1153
    %v1946 = vunpack.c.l.b16 %v1154
    %v1947 = vunpack.c.l.b16 %v1155
    %v1948 = vunpack.c.h.b16 %v1155
    %v1949 = vunpack.c.l.b16 %v1156
    %v1950 = vunpack.c.h.b16 %v1156
    %v1951 = vunpack.c.l.b16 %v1157
    %v1952 = vunpack.c.l.b16 %v1158
    %v1953 = vunpack.c.h.b16 %v1158
    %v1954 = vunpack.c.l.b16 %v1159
    %v1955 = vunpack.c.h.b16 %v1159
    %v1956 = vunpack.c.l.b16 %v1160
    %v1957 = vunpack.c.l.b16 %v1161
    %v1958 = vunpack.c.h.b16 %v1161
    %v1959 = vunpack.c.l.b16 %v1162
    %v1960 = vunpack.c.h.b16 %v1162
    %v1961 = vunpack.c.l.b16 %v1163
    %v1962 = vunpack.c.l.b16 %v1164
    %v1963 = vunpack.c.h.b16 %v1164
    %v1964 = vunpack.c.l.b16 %v1165
    %v1965 = vunpack.c.h.b16 %v1165
    %v1966 = vunpack.c.l.b16 %v1166
    %v1967 = vunpack.c.l.b16 %v1167
    %v1968 = vunpack.c.h.b16 %v1167
    %v1969 = vunpack.c.l.b16 %v1168
    %v1970 = vunpack.c.h.b16 %v1168
    %v1971 = vunpack.c.l.b16 %v1169
    %v1972 = vunpack.c.l.b16 %v1170
    %v1973 = vunpack.c.h.b16 %v1170
    %v1974 = vunpack.c.l.b16 %v1171
    %v1975 = vunpack.c.h.b16 %v1171
    %v1976 = vunpack.c.l.b16 %v1172
    %v1977 = vunpack.c.l.b16 %v1173
    %v1978 = vunpack.c.h.b16 %v1173
    %v1979 = vunpack.c.l.b16 %v1174
    %v1980 = vunpack.c.h.b16 %v1174
    %v1981 = vunpack.c.l.b16 %v1175
    %v1982 = vunpack.c.l.b16 %v1176
    %v1983 = vunpack.c.h.b16 %v1176
    %v1984 = vunpack.c.l.b16 %v1177
    %v1985 = vunpack.c.h.b16 %v1177
    %v1986 = vunpack.c.l.b16 %v1178
    %v1987 = vunpack.c.l.b16 %v1179
    %v1988 = vunpack.c.h.b16 %v1179
    %v1989 = vunpack.c.l.b16 %v1180
    %v1990 = vunpack.c.h.b16 %v1180
    %v1991 = vunpack.c.l.b16 %v1181
    %v1992 = vunpack.c.l.b16 %v1182
    %v1993 = vunpack.c.h.b16 %v1182
    %v1994 = vunpack.c.l.b16 %v1183
    %v1995 = vunpack.c.h.b16 %v1183
    %v1996 = vunpack.c.l.b16 %v1184
    %v1997 = vunpack.c.l.b16 %v1185
    %v1998 = vunpack.c.h.b16 %v1185
    %v1999 = vunpack.c.l.b16 %v1186
    %v2000 = vunpack.c.h.b16 %v1186
    %v2001 = vunpack.c.l.b16 %v1187
    %v2002 = vunpack.c.l.b16 %v1188
    %v2003 = vunpack.c.h.b16 %v1188
    %v2004 = vunpack.c.l.b16 %v1189
    %v2005 = vunpack.c.h.b16 %v1189
    %v2006 = vunpack.c.l.b16 %v1190
    %v2007 = vunpack.c.l.b16 %v1191
    %v2008 = vunpack.c.h.b16 %v1191
    %v2009 = vunpack.c.l.b16 %v1192
    %v2010 = vunpack.c.h.b16 %v1192
    %v2011 = vunpack.c.l.b16 %v1193
    %v2012 = vunpack.c.l.b16 %v1194
    %v2013 = vunpack.c.h.b16 %v1194
    %v2014 = vunpack.c.l.b16 %v1195
    %v2015 = vunpack.c.h.b16 %v1195
    %v2016 = vunpack.c.l.b16 %v1196
    %v2017 = vunpack.c.l.b16 %v1197
    %v2018 = vunpack.c.h.b16 %v1197
    %v2019 = vunpack.c.l.b16 %v1198
    %v2020 = vunpack.c.h.b16 %v1198
    %v2021 = vunpack.c.l.b16 %v1199
    %v2022 = vunpack.c.l.b16 %v1200
    %v2023 = vunpack.c.h.b16 %v1200
    %v2024 = vunpack.c.l.b16 %v1201
    %v2025 = vunpack.c.h.b16 %v1201
    %v2026 = vunpack.c.l.b16 %v1202
    %v2027 = vunpack.c.l.b16 %v1203
    %v2028 = vunpack.c.h.b16 %v1203
    %v2029 = vunpack.c.l.b16 %v1204
    %v2030 = vunpack.c.h.b16 %v1204
    %v2031 = vunpack.c.l.b16 %v1205
    %v2032 = vunpack.c.l.b16 %v1206
    %v2033 = vunpack.c.h.b16 %v1206
    %v2034 = vunpack.c.l.b16 %v1207
    %v2035 = vunpack.c.h.b16 %v1207
    %v2036 = vunpack.c.l.b16 %v1208
    %v2037 = vunpack.c.l.b16 %v1209
    %v2038 = vunpack.c.h.b16 %v1209
    %v2039 = vunpack.c.l.b16 %v1210
    %v2040 = vunpack.c.h.b16 %v1210
    %v2041 = vunpack.c.l.b16 %v1211
    %v2042 = vunpack.c.l.b16 %v1212
    %v2043 = vunpack.c.h.b16 %v1212
    %v2044 = vunpack.c.l.b16 %v1213
    %v2045 = vunpack.c.h.b16 %v1213
    %v2046 = vunpack.c.l.b16 %v1214
    %v2047 = vunpack.c.l.b16 %v1215
    %v2048 = vunpack.c.h.b16 %v1215
    %v2049 = vunpack.c.l.b16 %v1216
    %v2050 = vunpack.c.h.b16 %v1216
    %v2051 = vunpack.c.l.b16 %v1217
    %v2052 = vunpack.c.l.b16 %v1218
    %v2053 = vunpack.c.h.b16 %v1218
    %v2054 = vunpack.c.l.b16 %v1219
    %v2055 = vunpack.c.h.b16 %v1219
    %v2056 = vunpack.c.l.b16 %v1220
    %v2057 = vunpack.c.l.b16 %v1221
    %v2058 = vunpack.c.h.b16 %v1221
    %v2059 = vunpack.c.l.b16 %v1222
    %v2060 = vunpack.c.h.b16 %v1222
    %v2061 = vunpack.c.l.b16 %v1223
    %v2062 = vunpack.c.l.b16 %v1224
    %v2063 = vunpack.c.h.b16 %v1224
    %v2064 = vunpack.c.l.b16 %v1225
    %v2065 = vunpack.c.h.b16 %v1225
    %v2066 = vunpack.c.l.b16 %v1226
    %v2067 = vunpack.c.l.b16 %v1227
    %v2068 = vunpack.c.h.b16 %v1227
    %v2069 = vunpack.c.l.b16 %v1228
    %v2070 = vunpack.c.h.b16 %v1228
    %v2071 = vunpack.c.l.b16 %v1229
    %v2072 = vunpack.c.l.b16 %v1230
    %v2073 = vunpack.c.h.b16 %v1230
    %v2074 = vunpack.c.l.b16 %v1231
    %v2075 = vunpack.c.h.b16 %v1231
    %v2076 = vunpack.c.l.b16 %v1232
    %v2077 = vunpack.c.l.b16 %v1233
    %v2078 = vunpack.c.h.b16 %v1233
    %v2079 = vunpack.c.l.b16 %v1234
    %v2080 = vunpack.c.h.b16 %v1234
    %v2081 = vunpack.c.l.b16 %v1235
    %v2082 = vunpack.c.l.b16 %v1236
    %v2083 = vunpack.c.h.b16 %v1236
    %v2084 = vunpack.c.l.b16 %v1237
    %v2085 = vunpack.c.h.b16 %v1237
    %v2086 = vunpack.c.l.b16 %v1238
    %v2087 = vunpack.c.l.b16 %v1239
    %v2088 = vunpack.c.h.b16 %v1239
    %v2089 = vunpack.c.l.b16 %v1240
    %v2090 = vunpack.c.h.b16 %v1240
    %v2091 = vunpack.c.l.b16 %v1241
    %v2092 = vunpack.c.l.b16 %v1242
    %v2093 = vunpack.c.h.b16 %v1242
    %v2094 = vunpack.c.l.b16 %v1243
    %v2095 = vunpack.c.h.b16 %v1243
    %v2096 = vunpack.c.l.b16 %v1244
    %v2097 = vunpack.c.l.b16 %v1245
    %v2098 = vunpack.c.h.b16 %v1245
    %v2099 = vunpack.c.l.b16 %v1246
    %v2100 = vunpack.c.h.b16 %v1246
    %v2101 = vunpack.c.l.b16 %v1247
    %v2102 = vunpack.c.l.b16 %v1248
    %v2103 = vunpack.c.h.b16 %v1248
    %v2104 = vunpack.c.l.b16 %v1249
    %v2105 = vunpack.c.h.b16 %v1249
    %v2106 = vunpack.c.l.b16 %v1250
    %v2107 = vunpack.c.l.b16 %v1251
    %v2108 = vunpack.c.h.b16 %v1251
    %v2109 = vunpack.c.l.b16 %v1252
    %v2110 = vunpack.c.h.b16 %v1252
    %v2111 = vunpack.c.l.b16 %v1253
    %v2112 = vunpack.c.l.b16 %v1254
    %v2113 = vunpack.c.h.b16 %v1254
    %v2114 = vunpack.c.l.b16 %v1255
    %v2115 = vunpack.c.h.b16 %v1255
    %v2116 = vunpack.c.l.b16 %v1256
    %v2117 = vunpack.c.l.b16 %v1257
    %v2118 = vunpack.c.h.b16 %v1257
    %v2119 = vunpack.c.l.b16 %v1258
    %v2120 = vunpack.c.h.b16 %v1258
    %v2121 = vunpack.c.l.b16 %v1259
    %v2122 = vunpack.c.l.b16 %v1260
    %v2123 = vunpack.c.h.b16 %v1260
    %v2124 = vunpack.c.l.b16 %v1261
    %v2125 = vunpack.c.h.b16 %v1261
    %v2126 = vunpack.c.l.b16 %v1262
    %v2127 = vpack.c.b16 %v1592, %v1587
    %v2128 = vpack.c.b16 %v1593, %v1588
    %v2129 = vpack.c.b16 %v1594, %v1589
    %v2130 = vpack.c.b16 %v1595, %v1590
    %v2131 = vpack.c.b16 %v1596, %v1591
    %v2132 = vpack.c.b16 %v1602, %v1597
    %v2133 = vpack.c.b16 %v1603, %v1598
    %v2134 = vpack.c.b16 %v1604, %v1599
    %v2135 = vpack.c.b16 %v1605, %v1600
    %v2136 = vpack.c.b16 %v1606, %v1601
    %v2137 = vpack.c.b16 %v1612, %v1607
    %v2138 = vpack.c.b16 %v1613, %v1608
    %v2139 = vpack.c.b16 %v1614, %v1609
    %v2140 = vpack.c.b16 %v1615, %v1610
    %v2141 = vpack.c.b16 %v1616, %v1611
    %v2142 = vpack.c.b16 %v1622, %v1617
    %v2143 = vpack.c.b16 %v1623, %v1618
    %v2144 = vpack.c.b16 %v1624, %v1619
    %v2145 = vpack.c.b16 %v1625, %v1620
    %v2146 = vpack.c.b16 %v1626, %v1621
    %v2147 = vpack.c.b16 %v1632, %v1627
    %v2148 = vpack.c.b16 %v1633, %v1628
    %v2149 = vpack.c.b16 %v1634, %v1629
    %v2150 = vpack.c.b16 %v1635, %v1630
    %v2151 = vpack.c.b16 %v1636, %v1631
    %v2152 = vpack.c.b16 %v1642, %v1637
    %v2153 = vpack.c.b16 %v1643, %v1638
    %v2154 = vpack.c.b16 %v1644, %v1639
    %v2155 = vpack.c.b16 %v1645, %v1640
    %v2156 = vpack.c.b16 %v1646, %v1641
    %v2157 = vpack.c.b16 %v1652, %v1647
    %v2158 = vpack.c.b16 %v1653, %v1648
    %v2159 = vpack.c.b16 %v1654, %v1649
    %v2160 = vpack.c.b16 %v1655, %v1650
    %v2161 = vpack.c.b16 %v1656, %v1651
    %v2162 = vpack.c.b16 %v1662, %v1657
    %v2163 = vpack.c.b16 %v1663, %v1658
    %v2164 = vpack.c.b16 %v1664, %v1659
    %v2165 = vpack.c.b16 %v1665, %v1660
    %v2166 = vpack.c.b16 %v1666, %v1661
    %v2167 = vpack.c.b16 %v1672, %v1667
    %v2168 = vpack.c.b16 %v1673, %v1668
    %v2169 = vpack.c.b16 %v1674, %v1669
    %v2170 = vpack.c.b16 %v1675, %v1670
    %v2171 = vpack.c.b16 %v1676, %v1671
    %v2172 = vpack.c.b16 %v1682, %v1677
    %v2173 = vpack.c.b16 %v1683, %v1678
    %v2174 = vpack.c.b16 %v1684, %v1679
    %v2175 = vpack.c.b16 %v1685, %v1680
    %v2176 = vpack.c.b16 %v1686, %v1681
    %v2177 = vpack.c.b16 %v1692, %v1687
    %v2178 = vpack.c.b16 %v1693, %v1688
    %v2179 = vpack.c.b16 %v1694, %v1689
    %v2180 = vpack.c.b16 %v1695, %v1690
    %v2181 = vpack.c.b16 %v1696, %v1691
    %v2182 = vpack.c.b16 %v1702, %v1697
    %v2183 = vpack.c.b16 %v1703, %v1698
    %v2184 = vpack.c.b16 %v1704, %v1699
    %v2185 = vpack.c.b16 %v1705, %v1700
    %v2186 = vpack.c.b16 %v1706, %v1701
    %v2187 = vpack.c.b16 %v1712, %v1707
    %v2188 = vpack.c.b16 %v1713, %v1708
    %v2189 = vpack.c.b16 %v1714, %v1709
    %v2190 = vpack.c.b16 %v1715, %v1710
    %v2191 = vpack.c.b16 %v1716, %v1711
    %v2192 = vpack.c.b16 %v1722, %v1717
    %v2193 = vpack.c.b16 %v1723, %v1718
    %v2194 = vpack.c.b16 %v1724, %v1719
    %v2195 = vpack.c.b16 %v1725, %v1720
    %v2196 = vpack.c.b16 %v1726, %v1721
    %v2197 = vpack.c.b16 %v1732, %v1727
    %v2198 = vpack.c.b16 %v1733, %v1728
    %v2199 = vpack.c.b16 %v1734, %v1729
    %v2200 = vpack.c.b16 %v1735, %v1730
    %v2201 = vpack.c.b16 %v1736, %v1731
    %v2202 = vpack.c.b16 %v1742, %v1737
    %v2203 = vpack.c.b16 %v1743, %v1738
    %v2204 = vpack.c.b16 %v1744, %v1739
    %v2205 = vpack.c.b16 %v1745, %v1740
    %v2206 = vpack.c.b16 %v1746, %v1741
    %v2207 = vpack.c.b16 %v1752, %v1747
    %v2208 = vpack.c.b16 %v1753, %v1748
    %v2209 = vpack.c.b16 %v1754, %v1749
    %v2210 = vpack.c.b16 %v1755, %v1750
    %v2211 = vpack.c.b16 %v1756, %v1751
    %v2212 = vpack.c.b16 %v1762, %v1757
    %v2213 = vpack.c.b16 %v1763, %v1758
    %v2214 = vpack.c.b16 %v1764, %v1759
    %v2215 = vpack.c.b16 %v1765, %v1760
    %v2216 = vpack.c.b16 %v1766, %v1761
    %v2217 = vpack.c.b16 %v1772, %v1767
    %v2218 = vpack.c.b16 %v1773, %v1768
    %v2219 = vpack.c.b16 %v1774, %v1769
    %v2220 = vpack.c.b16 %v1775, %v1770
    %v2221 = vpack.c.b16 %v1776, %v1771
    %v2222 = vpack.c.b16 %v1782, %v1777
    %v2223 = vpack.c.b16 %v1783, %v1778
    %v2224 = vpack.c.b16 %v1784, %v1779
    %v2225 = vpack.c.b16 %v1785, %v1780
    %v2226 = vpack.c.b16 %v1786, %v1781
    %v2227 = vpack.c.b16 %v1792, %v1787
    %v2228 = vpack.c.b16 %v1793, %v1788
    %v2229 = vpack.c.b16 %v1794, %v1789
    %v2230 = vpack.c.b16 %v1795, %v1790
    %v2231 = vpack.c.b16 %v1796, %v1791
    %v2232 = vpack.c.b16 %v1802, %v1797
    %v2233 = vpack.c.b16 %v1803, %v1798
    %v2234 = vpack.c.b16 %v1804, %v1799
    %v2235 = vpack.c.b16 %v1805, %v1800
    %v2236 = vpack.c.b16 %v1806, %v1801
    %v2237 = vpack.c.b16 %v1812, %v1807
    %v2238 = vpack.c.b16 %v1813, %v1808
    %v2239 = vpack.c.b16 %v1814, %v1809
    %v2240 = vpack.c.b16 %v1815, %v1810
    %v2241 = vpack.c.b16 %v1816, %v1811
    %v2242 = vpack.c.b16 %v1822, %v1817
    %v2243 = vpack.c.b16 %v1823, %v1818
    %v2244 = vpack.c.b16 %v1824, %v1819
    %v2245 = vpack.c.b16 %v1825, %v1820
    %v2246 = vpack.c.b16 %v1826, %v1821
    %v2247 = vpack.c.b16 %v1832, %v1827
    %v2248 = vpack.c.b16 %v1833, %v1828
    %v2249 = vpack.c.b16 %v1834, %v1829
    %v2250 = vpack.c.b16 %v1835, %v1830
    %v2251 = vpack.c.b16 %v1836, %v1831
    %v2252 = vpack.c.b16 %v1842, %v1837
    %v2253 = vpack.c.b16 %v1843, %v1838
    %v2254 = vpack.c.b16 %v1844, %v1839
    %v2255 = vpack.c.b16 %v1845, %v1840
    %v2256 = vpack.c.b16 %v1846, %v1841
    %v2257 = vpack.c.b16 %v1852, %v1847
    %v2258 = vpack.c.b16 %v1853, %v1848
    %v2259 = vpack.c.b16 %v1854, %v1849
    %v2260 = vpack.c.b16 %v1855, %v1850
    %v2261 = vpack.c.b16 %v1856, %v1851
    %v2262 = vpack.c.b16 %v1862, %v1857
    %v2263 = vpack.c.b16 %v1863, %v1858
    %v2264 = vpack.c.b16 %v1864, %v1859
    %v2265 = vpack.c.b16 %v1865, %v1860
    %v2266 = vpack.c.b16 %v1866, %v1861
    %v2267 = vpack.c.b16 %v1872, %v1867
    %v2268 = vpack.c.b16 %v1873, %v1868
    %v2269 = vpack.c.b16 %v1874, %v1869
    %v2270 = vpack.c.b16 %v1875, %v1870
    %v2271 = vpack.c.b16 %v1876, %v1871
    %v2272 = vpack.c.b16 %v1882, %v1877
    %v2273 = vpack.c.b16 %v1883, %v1878
    %v2274 = vpack.c.b16 %v1884, %v1879
    %v2275 = vpack.c.b16 %v1885, %v1880
    %v2276 = vpack.c.b16 %v1886, %v1881
    %v2277 = vpack.c.b16 %v1892, %v1887
    %v2278 = vpack.c.b16 %v1893, %v1888
    %v2279 = vpack.c.b16 %v1894, %v1889
    %v2280 = vpack.c.b16 %v1895, %v1890
    %v2281 = vpack.c.b16 %v1896, %v1891
    %v2282 = vpack.c.b16 %v1902, %v1897
    %v2283 = vpack.c.b16 %v1903, %v1898
    %v2284 = vpack.c.b16 %v1904, %v1899
    %v2285 = vpack.c.b16 %v1905, %v1900
    %v2286 = vpack.c.b16 %v1906, %v1901
    %v2287 = vpack.c.b16 %v1912, %v1907
    %v2288 = vpack.c.b16 %v1913, %v1908
    %v2289 = vpack.c.b16 %v1914, %v1909
    %v2290 = vpack.c.b16 %v1915, %v1910
    %v2291 = vpack.c.b16 %v1916, %v1911
    %v2292 = vpack.c.b16 %v1922, %v1917
    %v2293 = vpack.c.b16 %v1923, %v1918
    %v2294 = vpack.c.b16 %v1924, %v1919
    %v2295 = vpack.c.b16 %v1925, %v1920
    %v2296 = vpack.c.b16 %v1926, %v1921
    %v2297 = vpack.c.b16 %v1932, %v1927
    %v2298 = vpack.c.b16 %v1933, %v1928
    %v2299 = vpack.c.b16 %v1934, %v1929
    %v2300 = vpack.c.b16 %v1935, %v1930
    %v2301 = vpack.c.b16 %v1936, %v1931
    %v2302 = vpack.c.b16 %v1942, %v1937
    %v2303 = vpack.c.b16 %v1943, %v1938
    %v2304 = vpack.c.b16 %v1944, %v1939
    %v2305 = vpack.c.b16 %v1945, %v1940
    %v2306 = vpack.c.b16 %v1946, %v1941
    %v2307 = vpack.c.b16 %v1952, %v1947
    %v2308 = vpack.c.b16 %v1953, %v1948
    %v2309 = vpack.c.b16 %v1954, %v1949
    %v2310 = vpack.c.b16 %v1955, %v1950
    %v2311 = vpack.c.b16 %v1956, %v1951
    %v2312 = vpack.c.b16 %v1962, %v1957
    %v2313 = vpack.c.b16 %v1963, %v1958
    %v2314 = vpack.c.b16 %v1964, %v1959
    %v2315 = vpack.c.b16 %v1965, %v1960
    %v2316 = vpack.c.b16 %v1966, %v1961
    %v2317 = vpack.c.b16 %v1972, %v1967
    %v2318 = vpack.c.b16 %v1973, %v1968
    %v2319 = vpack.c.b16 %v1974, %v1969
    %v2320 = vpack.c.b16 %v1975, %v1970
    %v2321 = vpack.c.b16 %v1976, %v1971
    %v2322 = vpack.c.b16 %v1982, %v1977
    %v2323 = vpack.c.b16 %v1983, %v1978
    %v2324 = vpack.c.b16 %v1984, %v1979
    %v2325 = vpack.c.b16 %v1985, %v1980
    %v2326 = vpack.c.b16 %v1986, %v1981
    %v2327 = vpack.c.b16 %v1992, %v1987
    %v2328 = vpack.c.b16 %v1993, %v1988
    %v2329 = vpack.c.b16 %v1994, %v1989
    %v2330 = vpack.c.b16 %v1995, %v1990
    %v2331 = vpack.c.b16 %v1996, %v1991
    %v2332 = vpack.c.b16 %v2002, %v1997
    %v2333 = vpack.c.b16 %v2003, %v1998
    %v2334 = vpack.c.b16 %v2004, %v1999
    %v2335 = vpack.c.b16 %v2005, %v2000
    %v2336 = vpack.c.b16 %v2006, %v2001
    %v2337 = vpack.c.b16 %v2012, %v2007
    %v2338 = vpack.c.b16 %v2013, %v2008
    %v2339 = vpack.c.b16 %v2014, %v2009
    %v2340 = vpack.c.b16 %v2015, %v2010
    %v2341 = vpack.c.b16 %v2016, %v2011
    %v2342 = vpack.c.b16 %v2022, %v2017
    %v2343 = vpack.c.b16 %v2023, %v2018
    %v2344 = vpack.c.b16 %v2024, %v2019
    %v2345 = vpack.c.b16 %v2025, %v2020
    %v2346 = vpack.c.b16 %v2026, %v2021
    %v2347 = vpack.c.b16 %v2032, %v2027
    %v2348 = vpack.c.b16 %v2033, %v2028
    %v2349 = vpack.c.b16 %v2034, %v2029
    %v2350 = vpack.c.b16 %v2035, %v2030
    %v2351 = vpack.c.b16 %v2036, %v2031
    %v2352 = vpack.c.b16 %v2042, %v2037
    %v2353 = vpack.c.b16 %v2043, %v2038
    %v2354 = vpack.c.b16 %v2044, %v2039
    %v2355 = vpack.c.b16 %v2045, %v2040
    %v2356 = vpack.c.b16 %v2046, %v2041
    %v2357 = vpack.c.b16 %v2052, %v2047
    %v2358 = vpack.c.b16 %v2053, %v2048
    %v2359 = vpack.c.b16 %v2054, %v2049
    %v2360 = vpack.c.b16 %v2055, %v2050
    %v2361 = vpack.c.b16 %v2056, %v2051
    %v2362 = vpack.c.b16 %v2062, %v2057
    %v2363 = vpack.c.b16 %v2063, %v2058
    %v2364 = vpack.c.b16 %v2064, %v2059
    %v2365 = vpack.c.b16 %v2065, %v2060
    %v2366 = vpack.c.b16 %v2066, %v2061
    %v2367 = vpack.c.b16 %v2072, %v2067
    %v2368 = vpack.c.b16 %v2073, %v2068
    %v2369 = vpack.c.b16 %v2074, %v2069
    %v2370 = vpack.c.b16 %v2075, %v2070
    %v2371 = vpack.c.b16 %v2076, %v2071
    %v2372 = vpack.c.b16 %v2082, %v2077
    %v2373 = vpack.c.b16 %v2083, %v2078
    %v2374 = vpack.c.b16 %v2084, %v2079
    %v2375 = vpack.c.b16 %v2085, %v2080
    %v2376 = vpack.c.b16 %v2086, %v2081
    %v2377 = vpack.c.b16 %v2092, %v2087
    %v2378 = vpack.c.b16 %v2093, %v2088
    %v2379 = vpack.c.b16 %v2094, %v2089
    %v2380 = vpack.c.b16 %v2095, %v2090
    %v2381 = vpack.c.b16 %v2096, %v2091
    %v2382 = vpack.c.b16 %v2102, %v2097
    %v2383 = vpack.c.b16 %v2103, %v2098
    %v2384 = vpack.c.b16 %v2104, %v2099
    %v2385 = vpack.c.b16 %v2105, %v2100
    %v2386 = vpack.c.b16 %v2106, %v2101
    %v2387 = vpack.c.b16 %v2112, %v2107
    %v2388 = vpack.c.b16 %v2113, %v2108
    %v2389 = vpack.c.b16 %v2114, %v2109
    %v2390 = vpack.c.b16 %v2115, %v2110
    %v2391 = vpack.c.b16 %v2116, %v2111
    %v2392 = vpack.c.b16 %v2122, %v2117
    %v2393 = vpack.c.b16 %v2123, %v2118
    %v2394 = vpack.c.b16 %v2124, %v2119
    %v2395 = vpack.c.b16 %v2125, %v2120
    %v2396 = vpack.c.b16 %v2126, %v2121
    %v2668 = vsel %vm880, %v903, 0
    %v2671 = vsel %vm880, %v910, 0
    %v2674 = vsel %vm880, %v917, 0
    %v2677 = vsel %vm880, %v924, 0
    %v2680 = vsel %vm880, %v931, 0
    %v2683 = vsel %vm880, %v938, 0
    %2685 = vmatprep.subr.bf16.mxu0 %v2128
    %2686 = vmatpush1.bf16.msra.mxu0 %v2127
    %2687 = vmatprep.subr.bf16.mxu0 %v2133
    %2688 = vmatpush1.bf16.msra.mxu0 %v2132
    %2689 = vmatprep.subr.bf16.mxu0 %v2138
    %2690 = vmatpush1.bf16.msra.mxu0 %v2137
    %2691 = vmatprep.subr.bf16.mxu0 %v2143
    %2692 = vmatpush1.bf16.msra.mxu0 %v2142
    %2693 = vmatprep.subr.bf16.mxu0 %v2148
    %2694 = vmatpush1.bf16.msra.mxu0 %v2147
    %2695 = vmatprep.subr.bf16.mxu0 %v2153
    %2696 = vmatpush1.bf16.msra.mxu0 %v2152
    %2697 = vmatprep.subr.bf16.mxu0 %v2158
    %2698 = vmatpush1.bf16.msra.mxu0 %v2157
    %2699 = vmatprep.subr.bf16.mxu0 %v2163
    %2700 = vmatpush1.bf16.msra.mxu0 %v2162
    %2701 = vmatprep.subr.bf16.mxu0 %v2168
    %2702 = vmatpush1.bf16.msra.mxu0 %v2167
    %2703 = vmatprep.subr.bf16.mxu0 %v2173
    %2704 = vmatpush1.bf16.msra.mxu0 %v2172
    %2705 = vmatprep.subr.bf16.mxu0 %v2178
    %2706 = vmatpush1.bf16.msra.mxu0 %v2177
    %2707 = vmatprep.subr.bf16.mxu0 %v2183
    %2708 = vmatpush1.bf16.msra.mxu0 %v2182
    %2709 = vmatprep.subr.bf16.mxu0 %v2188
    %2710 = vmatpush1.bf16.msra.mxu0 %v2187
    %2711 = vmatprep.subr.bf16.mxu0 %v2193
    %2712 = vmatpush1.bf16.msra.mxu0 %v2192
    %2713 = vmatprep.subr.bf16.mxu0 %v2198
    %2714 = vmatpush1.bf16.msra.mxu0 %v2197
    %2715 = vmatprep.subr.bf16.mxu0 %v2203
    %2716 = vmatpush1.bf16.msra.mxu0 %v2202
    %2717 = vmatprep.mubr.bf16.mxu0 %v898
    %2718 = vmatmul.mubr.bf16.gmra.mrb[0].mxu0 %v897
    %v2719 = vpop.f32.mrb[0].mxu0
    %v2720 = vadd.f32 0.0, %v2719
    %v2721 = vpop.f32.mrb[0].mxu0
    %v2722 = vadd.f32 0.0, %v2721
    %v2723 = vpop.f32.mrb[0].mxu0
    %v2724 = vadd.f32 0.0, %v2723
    %v2725 = vpop.f32.mrb[0].mxu0
    %v2726 = vadd.f32 0.0, %v2725
    %2727 = vmatprep.mubr.bf16.mxu0 %v905
    %2728 = vmatmul.mubr.bf16.gmra.mrb[0].mxu0 %v904
    %v2729 = vpop.f32.mrb[0].mxu0
    %v2730 = vadd.f32 0.0, %v2729
    %v2731 = vpop.f32.mrb[0].mxu0
    %v2732 = vadd.f32 0.0, %v2731
    %v2733 = vpop.f32.mrb[0].mxu0
    %v2734 = vadd.f32 0.0, %v2733
    %v2735 = vpop.f32.mrb[0].mxu0
    %v2736 = vadd.f32 0.0, %v2735
    %2737 = vmatprep.mubr.bf16.mxu0 %v912
    %2738 = vmatmul.mubr.bf16.gmra.mrb[0].mxu0 %v911
    %v2739 = vpop.f32.mrb[0].mxu0
    %v2740 = vadd.f32 0.0, %v2739
    %v2741 = vpop.f32.mrb[0].mxu0
    %v2742 = vadd.f32 0.0, %v2741
    %v2743 = vpop.f32.mrb[0].mxu0
    %v2744 = vadd.f32 0.0, %v2743
    %v2745 = vpop.f32.mrb[0].mxu0
    %v2746 = vadd.f32 0.0, %v2745
    %2747 = vmatprep.mubr.bf16.mxu0 %v919
    %2748 = vmatmul.mubr.bf16.gmra.mrb[0].mxu0 %v918
    %v2749 = vpop.f32.mrb[0].mxu0
    %v2750 = vadd.f32 0.0, %v2749
    %v2751 = vpop.f32.mrb[0].mxu0
    %v2752 = vadd.f32 0.0, %v2751
    %v2753 = vpop.f32.mrb[0].mxu0
    %v2754 = vadd.f32 0.0, %v2753
    %v2755 = vpop.f32.mrb[0].mxu0
    %v2756 = vadd.f32 0.0, %v2755
    %2757 = vmatprep.mubr.bf16.mxu0 %v926
    %2758 = vmatmul.mubr.bf16.gmra.mrb[0].mxu0 %v925
    %v2759 = vpop.f32.mrb[0].mxu0
    %v2760 = vadd.f32 0.0, %v2759
    %v2761 = vpop.f32.mrb[0].mxu0
    %v2762 = vadd.f32 0.0, %v2761
    %v2763 = vpop.f32.mrb[0].mxu0
    %v2764 = vadd.f32 0.0, %v2763
    %v2765 = vpop.f32.mrb[0].mxu0
    %v2766 = vadd.f32 0.0, %v2765
    %2767 = vmatprep.mubr.bf16.mxu0 %v933
    %2768 = vmatmul.mubr.bf16.gmra.mrb[0].mxu0 %v932
    %v2769 = vpop.f32.mrb[0].mxu0
    %v2770 = vadd.f32 0.0, %v2769
    %v2771 = vpop.f32.mrb[0].mxu0
    %v2772 = vadd.f32 0.0, %v2771
    %v2773 = vpop.f32.mrb[0].mxu0
    %v2774 = vadd.f32 0.0, %v2773
    %v2775 = vpop.f32.mrb[0].mxu0
    %v2776 = vadd.f32 0.0, %v2775
    %2777 = vdwg.mxu0
    %2778 = vmatprep.subr.bf16.mxu0 %v2208
    %2779 = vmatpush1.bf16.msra.mxu0 %v2207
    %2780 = vmatprep.subr.bf16.mxu0 %v2213
    %2781 = vmatpush1.bf16.msra.mxu0 %v2212
    %2782 = vmatprep.subr.bf16.mxu0 %v2218
    %2783 = vmatpush1.bf16.msra.mxu0 %v2217
    %2784 = vmatprep.subr.bf16.mxu0 %v2223
    %2785 = vmatpush1.bf16.msra.mxu0 %v2222
    %2786 = vmatprep.subr.bf16.mxu0 %v2228
    %2787 = vmatpush1.bf16.msra.mxu0 %v2227
    %2788 = vmatprep.subr.bf16.mxu0 %v2233
    %2789 = vmatpush1.bf16.msra.mxu0 %v2232
    %2790 = vmatprep.subr.bf16.mxu0 %v2238
    %2791 = vmatpush1.bf16.msra.mxu0 %v2237
    %2792 = vmatprep.subr.bf16.mxu0 %v2243
    %2793 = vmatpush1.bf16.msra.mxu0 %v2242
    %2794 = vmatprep.subr.bf16.mxu0 %v2248
    %2795 = vmatpush1.bf16.msra.mxu0 %v2247
    %2796 = vmatprep.subr.bf16.mxu0 %v2253
    %2797 = vmatpush1.bf16.msra.mxu0 %v2252
    %2798 = vmatprep.subr.bf16.mxu0 %v2258
    %2799 = vmatpush1.bf16.msra.mxu0 %v2257
    %2800 = vmatprep.subr.bf16.mxu0 %v2263
    %2801 = vmatpush1.bf16.msra.mxu0 %v2262
    %2802 = vmatprep.subr.bf16.mxu0 %v2268
    %2803 = vmatpush1.bf16.msra.mxu0 %v2267
    %2804 = vmatprep.subr.bf16.mxu0 %v2273
    %2805 = vmatpush1.bf16.msra.mxu0 %v2272
    %2806 = vmatprep.subr.bf16.mxu0 %v2278
    %2807 = vmatpush1.bf16.msra.mxu0 %v2277
    %2808 = vmatprep.subr.bf16.mxu0 %v2283
    %2809 = vmatpush1.bf16.msra.mxu0 %v2282
    %2810 = vmatprep.mubr.bf16.mxu0 %v900
    %2811 = vmatmul.mubr.bf16.gmra.mrb[0].mxu0 %v899
    %v2812 = vpop.f32.mrb[0].mxu0
    %v2813 = vadd.f32 %v2720, %v2812
    %v2814 = vpop.f32.mrb[0].mxu0
    %v2815 = vadd.f32 %v2722, %v2814
    %v2816 = vpop.f32.mrb[0].mxu0
    %v2817 = vadd.f32 %v2724, %v2816
    %v2818 = vpop.f32.mrb[0].mxu0
    %v2819 = vadd.f32 %v2726, %v2818
    %2820 = vmatprep.mubr.bf16.mxu0 %v907
    %2821 = vmatmul.mubr.bf16.gmra.mrb[0].mxu0 %v906
    %v2822 = vpop.f32.mrb[0].mxu0
    %v2823 = vadd.f32 %v2730, %v2822
    %v2824 = vpop.f32.mrb[0].mxu0
    %v2825 = vadd.f32 %v2732, %v2824
    %v2826 = vpop.f32.mrb[0].mxu0
    %v2827 = vadd.f32 %v2734, %v2826
    %v2828 = vpop.f32.mrb[0].mxu0
    %v2829 = vadd.f32 %v2736, %v2828
    %2830 = vmatprep.mubr.bf16.mxu0 %v914
    %2831 = vmatmul.mubr.bf16.gmra.mrb[0].mxu0 %v913
    %v2832 = vpop.f32.mrb[0].mxu0
    %v2833 = vadd.f32 %v2740, %v2832
    %v2834 = vpop.f32.mrb[0].mxu0
    %v2835 = vadd.f32 %v2742, %v2834
    %v2836 = vpop.f32.mrb[0].mxu0
    %v2837 = vadd.f32 %v2744, %v2836
    %v2838 = vpop.f32.mrb[0].mxu0
    %v2839 = vadd.f32 %v2746, %v2838
    %2840 = vmatprep.mubr.bf16.mxu0 %v921
    %2841 = vmatmul.mubr.bf16.gmra.mrb[0].mxu0 %v920
    %v2842 = vpop.f32.mrb[0].mxu0
    %v2843 = vadd.f32 %v2750, %v2842
    %v2844 = vpop.f32.mrb[0].mxu0
    %v2845 = vadd.f32 %v2752, %v2844
    %v2846 = vpop.f32.mrb[0].mxu0
    %v2847 = vadd.f32 %v2754, %v2846
    %v2848 = vpop.f32.mrb[0].mxu0
    %v2849 = vadd.f32 %v2756, %v2848
    %2850 = vmatprep.mubr.bf16.mxu0 %v928
    %2851 = vmatmul.mubr.bf16.gmra.mrb[0].mxu0 %v927
    %v2852 = vpop.f32.mrb[0].mxu0
    %v2853 = vadd.f32 %v2760, %v2852
    %v2854 = vpop.f32.mrb[0].mxu0
    %v2855 = vadd.f32 %v2762, %v2854
    %v2856 = vpop.f32.mrb[0].mxu0
    %v2857 = vadd.f32 %v2764, %v2856
    %v2858 = vpop.f32.mrb[0].mxu0
    %v2859 = vadd.f32 %v2766, %v2858
    %2860 = vmatprep.mubr.bf16.mxu0 %v935
    %2861 = vmatmul.mubr.bf16.gmra.mrb[0].mxu0 %v934
    %v2862 = vpop.f32.mrb[0].mxu0
    %v2863 = vadd.f32 %v2770, %v2862
    %v2864 = vpop.f32.mrb[0].mxu0
    %v2865 = vadd.f32 %v2772, %v2864
    %v2866 = vpop.f32.mrb[0].mxu0
    %v2867 = vadd.f32 %v2774, %v2866
    %v2868 = vpop.f32.mrb[0].mxu0
    %v2869 = vadd.f32 %v2776, %v2868
    %2870 = vdwg.mxu0
    %2871 = vmatprep.subr.bf16.mxu0 %v2288
    %2872 = vmatpush1.bf16.msra.mxu0 %v2287
    %2873 = vmatprep.subr.bf16.mxu0 %v2293
    %2874 = vmatpush1.bf16.msra.mxu0 %v2292
    %2875 = vmatprep.subr.bf16.mxu0 %v2298
    %2876 = vmatpush1.bf16.msra.mxu0 %v2297
    %2877 = vmatprep.subr.bf16.mxu0 %v2303
    %2878 = vmatpush1.bf16.msra.mxu0 %v2302
    %2879 = vmatprep.subr.bf16.mxu0 %v2308
    %2880 = vmatpush1.bf16.msra.mxu0 %v2307
    %2881 = vmatprep.subr.bf16.mxu0 %v2313
    %2882 = vmatpush1.bf16.msra.mxu0 %v2312
    %2883 = vmatprep.subr.bf16.mxu0 %v2318
    %2884 = vmatpush1.bf16.msra.mxu0 %v2317
    %2885 = vmatprep.subr.bf16.mxu0 %v2323
    %2886 = vmatpush1.bf16.msra.mxu0 %v2322
    %2887 = vmatprep.subr.bf16.mxu0 %v2328
    %2888 = vmatpush1.bf16.msra.mxu0 %v2327
    %2889 = vmatprep.subr.bf16.mxu0 %v2333
    %2890 = vmatpush1.bf16.msra.mxu0 %v2332
    %2891 = vmatprep.subr.bf16.mxu0 %v2338
    %2892 = vmatpush1.bf16.msra.mxu0 %v2337
    %2893 = vmatprep.subr.bf16.mxu0 %v2343
    %2894 = vmatpush1.bf16.msra.mxu0 %v2342
    %2895 = vmatprep.subr.bf16.mxu0 %v2348
    %2896 = vmatpush1.bf16.msra.mxu0 %v2347
    %2897 = vmatprep.subr.bf16.mxu0 %v2353
    %2898 = vmatpush1.bf16.msra.mxu0 %v2352
    %2899 = vmatprep.subr.bf16.mxu0 %v2358
    %2900 = vmatpush1.bf16.msra.mxu0 %v2357
    %2901 = vmatprep.subr.bf16.mxu0 %v2363
    %2902 = vmatpush1.bf16.msra.mxu0 %v2362
    %2903 = vmatprep.mubr.bf16.mxu0 %v902
    %2904 = vmatmul.mubr.bf16.gmra.mrb[0].mxu0 %v901
    %v2905 = vpop.f32.mrb[0].mxu0
    %v2906 = vadd.f32 %v2813, %v2905
    %v2907 = vpop.f32.mrb[0].mxu0
    %v2908 = vadd.f32 %v2815, %v2907
    %v2909 = vpop.f32.mrb[0].mxu0
    %v2910 = vadd.f32 %v2817, %v2909
    %v2911 = vpop.f32.mrb[0].mxu0
    %v2912 = vadd.f32 %v2819, %v2911
    %2913 = vmatprep.mubr.bf16.mxu0 %v909
    %2914 = vmatmul.mubr.bf16.gmra.mrb[0].mxu0 %v908
    %v2915 = vpop.f32.mrb[0].mxu0
    %v2916 = vadd.f32 %v2823, %v2915
    %v2917 = vpop.f32.mrb[0].mxu0
    %v2918 = vadd.f32 %v2825, %v2917
    %v2919 = vpop.f32.mrb[0].mxu0
    %v2920 = vadd.f32 %v2827, %v2919
    %v2921 = vpop.f32.mrb[0].mxu0
    %v2922 = vadd.f32 %v2829, %v2921
    %2923 = vmatprep.mubr.bf16.mxu0 %v916
    %2924 = vmatmul.mubr.bf16.gmra.mrb[0].mxu0 %v915
    %v2925 = vpop.f32.mrb[0].mxu0
    %v2926 = vadd.f32 %v2833, %v2925
    %v2927 = vpop.f32.mrb[0].mxu0
    %v2928 = vadd.f32 %v2835, %v2927
    %v2929 = vpop.f32.mrb[0].mxu0
    %v2930 = vadd.f32 %v2837, %v2929
    %v2931 = vpop.f32.mrb[0].mxu0
    %v2932 = vadd.f32 %v2839, %v2931
    %2933 = vmatprep.mubr.bf16.mxu0 %v923
    %2934 = vmatmul.mubr.bf16.gmra.mrb[0].mxu0 %v922
    %v2935 = vpop.f32.mrb[0].mxu0
    %v2936 = vadd.f32 %v2843, %v2935
    %v2937 = vpop.f32.mrb[0].mxu0
    %v2938 = vadd.f32 %v2845, %v2937
    %v2939 = vpop.f32.mrb[0].mxu0
    %v2940 = vadd.f32 %v2847, %v2939
    %v2941 = vpop.f32.mrb[0].mxu0
    %v2942 = vadd.f32 %v2849, %v2941
    %2943 = vmatprep.mubr.bf16.mxu0 %v930
    %2944 = vmatmul.mubr.bf16.gmra.mrb[0].mxu0 %v929
    %v2945 = vpop.f32.mrb[0].mxu0
    %v2946 = vadd.f32 %v2853, %v2945
    %v2947 = vpop.f32.mrb[0].mxu0
    %v2948 = vadd.f32 %v2855, %v2947
    %v2949 = vpop.f32.mrb[0].mxu0
    %v2950 = vadd.f32 %v2857, %v2949
    %v2951 = vpop.f32.mrb[0].mxu0
    %v2952 = vadd.f32 %v2859, %v2951
    %2953 = vmatprep.mubr.bf16.mxu0 %v937
    %2954 = vmatmul.mubr.bf16.gmra.mrb[0].mxu0 %v936
    %v2955 = vpop.f32.mrb[0].mxu0
    %v2956 = vadd.f32 %v2863, %v2955
    %v2957 = vpop.f32.mrb[0].mxu0
    %v2958 = vadd.f32 %v2865, %v2957
    %v2959 = vpop.f32.mrb[0].mxu0
    %v2960 = vadd.f32 %v2867, %v2959
    %v2961 = vpop.f32.mrb[0].mxu0
    %v2962 = vadd.f32 %v2869, %v2961
    %2963 = vdwg.mxu0
    %2964 = vmatprep.subr.bf16.mxu0 %v2368
    %2965 = vmatpush1.bf16.msra.mxu0 %v2367
    %2966 = vmatprep.subr.bf16.mxu0 %v2373
    %2967 = vmatpush1.bf16.msra.mxu0 %v2372
    %2968 = vmatprep.subr.bf16.mxu0 %v2378
    %2969 = vmatpush1.bf16.msra.mxu0 %v2377
    %2970 = vmatprep.subr.bf16.mxu0 %v2383
    %2971 = vmatpush1.bf16.msra.mxu0 %v2382
    %2972 = vmatprep.subr.bf16.mxu0 %v2388
    %2973 = vmatpush1.bf16.msra.mxu0 %v2387
    %2974 = vmatprep.subr.bf16.mxu0 %v2393
    %2975 = vmatpush1.bf16.msra.mxu0 %v2392
    %2976 = vmatprep.subr.bf16.mxu0 0
    %2977 = vmatpush1.bf16.msra.mxu0 0
    %2978 = vmatprep.subr.bf16.mxu0 0
    %2979 = vmatpush1.bf16.msra.mxu0 0
    %2980 = vmatprep.subr.bf16.mxu0 0
    %2981 = vmatpush1.bf16.msra.mxu0 0
    %2982 = vmatprep.subr.bf16.mxu0 0
    %2983 = vmatpush1.bf16.msra.mxu0 0
    %2984 = vmatprep.subr.bf16.mxu0 0
    %2985 = vmatpush1.bf16.msra.mxu0 0
    %2986 = vmatprep.subr.bf16.mxu0 0
    %2987 = vmatpush1.bf16.msra.mxu0 0
    %2988 = vmatprep.subr.bf16.mxu0 0
    %2989 = vmatpush1.bf16.msra.mxu0 0
    %2990 = vmatprep.subr.bf16.mxu0 0
    %2991 = vmatpush1.bf16.msra.mxu0 0
    %2992 = vmatprep.subr.bf16.mxu0 0
    %2993 = vmatpush1.bf16.msra.mxu0 0
    %2994 = vmatprep.subr.bf16.mxu0 0
    %2995 = vmatpush1.bf16.msra.mxu0 0
    %2996 = vmatprep.mubr.bf16.mxu0 0
    %2997 = vmatmul.mubr.bf16.gmra.mrb[0].mxu0 %v2668
    %v2998 = vpop.f32.mrb[0].mxu0
    %v2999 = vadd.f32 %v2906, %v2998
    %v3000 = vpop.f32.mrb[0].mxu0
    %v3001 = vadd.f32 %v2908, %v3000
    %v3002 = vpop.f32.mrb[0].mxu0
    %v3003 = vadd.f32 %v2910, %v3002
    %v3004 = vpop.f32.mrb[0].mxu0
    %v3005 = vadd.f32 %v2912, %v3004
    %3006 = vmatprep.mubr.bf16.mxu0 0
    %3007 = vmatmul.mubr.bf16.gmra.mrb[0].mxu0 %v2671
    %v3008 = vpop.f32.mrb[0].mxu0
    %v3009 = vadd.f32 %v2916, %v3008
    %v3010 = vpop.f32.mrb[0].mxu0
    %v3011 = vadd.f32 %v2918, %v3010
    %v3012 = vpop.f32.mrb[0].mxu0
    %v3013 = vadd.f32 %v2920, %v3012
    %v3014 = vpop.f32.mrb[0].mxu0
    %v3015 = vadd.f32 %v2922, %v3014
    %3016 = vmatprep.mubr.bf16.mxu0 0
    %3017 = vmatmul.mubr.bf16.gmra.mrb[0].mxu0 %v2674
    %v3018 = vpop.f32.mrb[0].mxu0
    %v3019 = vadd.f32 %v2926, %v3018
    %v3020 = vpop.f32.mrb[0].mxu0
    %v3021 = vadd.f32 %v2928, %v3020
    %v3022 = vpop.f32.mrb[0].mxu0
    %v3023 = vadd.f32 %v2930, %v3022
    %v3024 = vpop.f32.mrb[0].mxu0
    %v3025 = vadd.f32 %v2932, %v3024
    %3026 = vmatprep.mubr.bf16.mxu0 0
    %3027 = vmatmul.mubr.bf16.gmra.mrb[0].mxu0 %v2677
    %v3028 = vpop.f32.mrb[0].mxu0
    %v3029 = vadd.f32 %v2936, %v3028
    %v3030 = vpop.f32.mrb[0].mxu0
    %v3031 = vadd.f32 %v2938, %v3030
    %v3032 = vpop.f32.mrb[0].mxu0
    %v3033 = vadd.f32 %v2940, %v3032
    %v3034 = vpop.f32.mrb[0].mxu0
    %v3035 = vadd.f32 %v2942, %v3034
    %3036 = vmatprep.mubr.bf16.mxu0 0
    %3037 = vmatmul.mubr.bf16.gmra.mrb[0].mxu0 %v2680
    %v3038 = vpop.f32.mrb[0].mxu0
    %v3039 = vadd.f32 %v2946, %v3038
    %v3040 = vpop.f32.mrb[0].mxu0
    %v3041 = vadd.f32 %v2948, %v3040
    %v3042 = vpop.f32.mrb[0].mxu0
    %v3043 = vadd.f32 %v2950, %v3042
    %v3044 = vpop.f32.mrb[0].mxu0
    %v3045 = vadd.f32 %v2952, %v3044
    %3046 = vmatprep.mubr.bf16.mxu0 0
    %3047 = vmatmul.mubr.bf16.gmra.mrb[0].mxu0 %v2683
    %v3048 = vpop.f32.mrb[0].mxu0
    %v3049 = vadd.f32 %v2956, %v3048
    %v3050 = vpop.f32.mrb[0].mxu0
    %v3051 = vadd.f32 %v2958, %v3050
    %v3052 = vpop.f32.mrb[0].mxu0
    %v3053 = vadd.f32 %v2960, %v3052
    %v3054 = vpop.f32.mrb[0].mxu0
    %v3055 = vadd.f32 %v2962, %v3054
    %3056 = vdwg.mxu0
    %3057 = vmatprep.subr.bf16.mxu0 %v2130
    %3058 = vmatpush1.bf16.msra.mxu0 %v2129
    %3059 = vmatprep.subr.bf16.mxu0 %v2135
    %3060 = vmatpush1.bf16.msra.mxu0 %v2134
    %3061 = vmatprep.subr.bf16.mxu0 %v2140
    %3062 = vmatpush1.bf16.msra.mxu0 %v2139
    %3063 = vmatprep.subr.bf16.mxu0 %v2145
    %3064 = vmatpush1.bf16.msra.mxu0 %v2144
    %3065 = vmatprep.subr.bf16.mxu0 %v2150
    %3066 = vmatpush1.bf16.msra.mxu0 %v2149
    %3067 = vmatprep.subr.bf16.mxu0 %v2155
    %3068 = vmatpush1.bf16.msra.mxu0 %v2154
    %3069 = vmatprep.subr.bf16.mxu0 %v2160
    %3070 = vmatpush1.bf16.msra.mxu0 %v2159
    %3071 = vmatprep.subr.bf16.mxu0 %v2165
    %3072 = vmatpush1.bf16.msra.mxu0 %v2164
    %3073 = vmatprep.subr.bf16.mxu0 %v2170
    %3074 = vmatpush1.bf16.msra.mxu0 %v2169
    %3075 = vmatprep.subr.bf16.mxu0 %v2175
    %3076 = vmatpush1.bf16.msra.mxu0 %v2174
    %3077 = vmatprep.subr.bf16.mxu0 %v2180
    %3078 = vmatpush1.bf16.msra.mxu0 %v2179
    %3079 = vmatprep.subr.bf16.mxu0 %v2185
    %3080 = vmatpush1.bf16.msra.mxu0 %v2184
    %3081 = vmatprep.subr.bf16.mxu0 %v2190
    %3082 = vmatpush1.bf16.msra.mxu0 %v2189
    %3083 = vmatprep.subr.bf16.mxu0 %v2195
    %3084 = vmatpush1.bf16.msra.mxu0 %v2194
    %3085 = vmatprep.subr.bf16.mxu0 %v2200
    %3086 = vmatpush1.bf16.msra.mxu0 %v2199
    %3087 = vmatprep.subr.bf16.mxu0 %v2205
    %3088 = vmatpush1.bf16.msra.mxu0 %v2204
    %3089 = vmatprep.mubr.bf16.mxu0 %v898
    %3090 = vmatmul.mubr.bf16.gmra.mrb[0].mxu0 %v897
    %v3091 = vpop.f32.mrb[0].mxu0
    %v3092 = vadd.f32 0.0, %v3091
    %v3093 = vpop.f32.mrb[0].mxu0
    %v3094 = vadd.f32 0.0, %v3093
    %v3095 = vpop.f32.mrb[0].mxu0
    %v3096 = vadd.f32 0.0, %v3095
    %v3097 = vpop.f32.mrb[0].mxu0
    %v3098 = vadd.f32 0.0, %v3097
    %3099 = vmatprep.mubr.bf16.mxu0 %v905
    %3100 = vmatmul.mubr.bf16.gmra.mrb[0].mxu0 %v904
    %v3101 = vpop.f32.mrb[0].mxu0
    %v3102 = vadd.f32 0.0, %v3101
    %v3103 = vpop.f32.mrb[0].mxu0
    %v3104 = vadd.f32 0.0, %v3103
    %v3105 = vpop.f32.mrb[0].mxu0
    %v3106 = vadd.f32 0.0, %v3105
    %v3107 = vpop.f32.mrb[0].mxu0
    %v3108 = vadd.f32 0.0, %v3107
    %3109 = vmatprep.mubr.bf16.mxu0 %v912
    %3110 = vmatmul.mubr.bf16.gmra.mrb[0].mxu0 %v911
    %v3111 = vpop.f32.mrb[0].mxu0
    %v3112 = vadd.f32 0.0, %v3111
    %v3113 = vpop.f32.mrb[0].mxu0
    %v3114 = vadd.f32 0.0, %v3113
    %v3115 = vpop.f32.mrb[0].mxu0
    %v3116 = vadd.f32 0.0, %v3115
    %v3117 = vpop.f32.mrb[0].mxu0
    %v3118 = vadd.f32 0.0, %v3117
    %3119 = vmatprep.mubr.bf16.mxu0 %v919
    %3120 = vmatmul.mubr.bf16.gmra.mrb[0].mxu0 %v918
    %v3121 = vpop.f32.mrb[0].mxu0
    %v3122 = vadd.f32 0.0, %v3121
    %v3123 = vpop.f32.mrb[0].mxu0
    %v3124 = vadd.f32 0.0, %v3123
    %v3125 = vpop.f32.mrb[0].mxu0
    %v3126 = vadd.f32 0.0, %v3125
    %v3127 = vpop.f32.mrb[0].mxu0
    %v3128 = vadd.f32 0.0, %v3127
    %3129 = vmatprep.mubr.bf16.mxu0 %v926
    %3130 = vmatmul.mubr.bf16.gmra.mrb[0].mxu0 %v925
    %v3131 = vpop.f32.mrb[0].mxu0
    %v3132 = vadd.f32 0.0, %v3131
    %v3133 = vpop.f32.mrb[0].mxu0
    %v3134 = vadd.f32 0.0, %v3133
    %v3135 = vpop.f32.mrb[0].mxu0
    %v3136 = vadd.f32 0.0, %v3135
    %v3137 = vpop.f32.mrb[0].mxu0
    %v3138 = vadd.f32 0.0, %v3137
    %3139 = vmatprep.mubr.bf16.mxu0 %v933
    %3140 = vmatmul.mubr.bf16.gmra.mrb[0].mxu0 %v932
    %v3141 = vpop.f32.mrb[0].mxu0
    %v3142 = vadd.f32 0.0, %v3141
    %v3143 = vpop.f32.mrb[0].mxu0
    %v3144 = vadd.f32 0.0, %v3143
    %v3145 = vpop.f32.mrb[0].mxu0
    %v3146 = vadd.f32 0.0, %v3145
    %v3147 = vpop.f32.mrb[0].mxu0
    %v3148 = vadd.f32 0.0, %v3147
    %3149 = vdwg.mxu0
    %3150 = vmatprep.subr.bf16.mxu0 %v2210
    %3151 = vmatpush1.bf16.msra.mxu0 %v2209
    %3152 = vmatprep.subr.bf16.mxu0 %v2215
    %3153 = vmatpush1.bf16.msra.mxu0 %v2214
    %3154 = vmatprep.subr.bf16.mxu0 %v2220
    %3155 = vmatpush1.bf16.msra.mxu0 %v2219
    %3156 = vmatprep.subr.bf16.mxu0 %v2225
    %3157 = vmatpush1.bf16.msra.mxu0 %v2224
    %3158 = vmatprep.subr.bf16.mxu0 %v2230
    %3159 = vmatpush1.bf16.msra.mxu0 %v2229
    %3160 = vmatprep.subr.bf16.mxu0 %v2235
    %3161 = vmatpush1.bf16.msra.mxu0 %v2234
    %3162 = vmatprep.subr.bf16.mxu0 %v2240
    %3163 = vmatpush1.bf16.msra.mxu0 %v2239
    %3164 = vmatprep.subr.bf16.mxu0 %v2245
    %3165 = vmatpush1.bf16.msra.mxu0 %v2244
    %3166 = vmatprep.subr.bf16.mxu0 %v2250
    %3167 = vmatpush1.bf16.msra.mxu0 %v2249
    %3168 = vmatprep.subr.bf16.mxu0 %v2255
    %3169 = vmatpush1.bf16.msra.mxu0 %v2254
    %3170 = vmatprep.subr.bf16.mxu0 %v2260
    %3171 = vmatpush1.bf16.msra.mxu0 %v2259
    %3172 = vmatprep.subr.bf16.mxu0 %v2265
    %3173 = vmatpush1.bf16.msra.mxu0 %v2264
    %3174 = vmatprep.subr.bf16.mxu0 %v2270
    %3175 = vmatpush1.bf16.msra.mxu0 %v2269
    %3176 = vmatprep.subr.bf16.mxu0 %v2275
    %3177 = vmatpush1.bf16.msra.mxu0 %v2274
    %3178 = vmatprep.subr.bf16.mxu0 %v2280
    %3179 = vmatpush1.bf16.msra.mxu0 %v2279
    %3180 = vmatprep.subr.bf16.mxu0 %v2285
    %3181 = vmatpush1.bf16.msra.mxu0 %v2284
    %3182 = vmatprep.mubr.bf16.mxu0 %v900
    %3183 = vmatmul.mubr.bf16.gmra.mrb[0].mxu0 %v899
    %v3184 = vpop.f32.mrb[0].mxu0
    %v3185 = vadd.f32 %v3092, %v3184
    %v3186 = vpop.f32.mrb[0].mxu0
    %v3187 = vadd.f32 %v3094, %v3186
    %v3188 = vpop.f32.mrb[0].mxu0
    %v3189 = vadd.f32 %v3096, %v3188
    %v3190 = vpop.f32.mrb[0].mxu0
    %v3191 = vadd.f32 %v3098, %v3190
    %3192 = vmatprep.mubr.bf16.mxu0 %v907
    %3193 = vmatmul.mubr.bf16.gmra.mrb[0].mxu0 %v906
    %v3194 = vpop.f32.mrb[0].mxu0
    %v3195 = vadd.f32 %v3102, %v3194
    %v3196 = vpop.f32.mrb[0].mxu0
    %v3197 = vadd.f32 %v3104, %v3196
    %v3198 = vpop.f32.mrb[0].mxu0
    %v3199 = vadd.f32 %v3106, %v3198
    %v3200 = vpop.f32.mrb[0].mxu0
    %v3201 = vadd.f32 %v3108, %v3200
    %3202 = vmatprep.mubr.bf16.mxu0 %v914
    %3203 = vmatmul.mubr.bf16.gmra.mrb[0].mxu0 %v913
    %v3204 = vpop.f32.mrb[0].mxu0
    %v3205 = vadd.f32 %v3112, %v3204
    %v3206 = vpop.f32.mrb[0].mxu0
    %v3207 = vadd.f32 %v3114, %v3206
    %v3208 = vpop.f32.mrb[0].mxu0
    %v3209 = vadd.f32 %v3116, %v3208
    %v3210 = vpop.f32.mrb[0].mxu0
    %v3211 = vadd.f32 %v3118, %v3210
    %3212 = vmatprep.mubr.bf16.mxu0 %v921
    %3213 = vmatmul.mubr.bf16.gmra.mrb[0].mxu0 %v920
    %v3214 = vpop.f32.mrb[0].mxu0
    %v3215 = vadd.f32 %v3122, %v3214
    %v3216 = vpop.f32.mrb[0].mxu0
    %v3217 = vadd.f32 %v3124, %v3216
    %v3218 = vpop.f32.mrb[0].mxu0
    %v3219 = vadd.f32 %v3126, %v3218
    %v3220 = vpop.f32.mrb[0].mxu0
    %v3221 = vadd.f32 %v3128, %v3220
    %3222 = vmatprep.mubr.bf16.mxu0 %v928
    %3223 = vmatmul.mubr.bf16.gmra.mrb[0].mxu0 %v927
    %v3224 = vpop.f32.mrb[0].mxu0
    %v3225 = vadd.f32 %v3132, %v3224
    %v3226 = vpop.f32.mrb[0].mxu0
    %v3227 = vadd.f32 %v3134, %v3226
    %v3228 = vpop.f32.mrb[0].mxu0
    %v3229 = vadd.f32 %v3136, %v3228
    %v3230 = vpop.f32.mrb[0].mxu0
    %v3231 = vadd.f32 %v3138, %v3230
    %3232 = vmatprep.mubr.bf16.mxu0 %v935
    %3233 = vmatmul.mubr.bf16.gmra.mrb[0].mxu0 %v934
    %v3234 = vpop.f32.mrb[0].mxu0
    %v3235 = vadd.f32 %v3142, %v3234
    %v3236 = vpop.f32.mrb[0].mxu0
    %v3237 = vadd.f32 %v3144, %v3236
    %v3238 = vpop.f32.mrb[0].mxu0
    %v3239 = vadd.f32 %v3146, %v3238
    %v3240 = vpop.f32.mrb[0].mxu0
    %v3241 = vadd.f32 %v3148, %v3240
    %3242 = vdwg.mxu0
    %3243 = vmatprep.subr.bf16.mxu0 %v2290
    %3244 = vmatpush1.bf16.msra.mxu0 %v2289
    %3245 = vmatprep.subr.bf16.mxu0 %v2295
    %3246 = vmatpush1.bf16.msra.mxu0 %v2294
    %3247 = vmatprep.subr.bf16.mxu0 %v2300
    %3248 = vmatpush1.bf16.msra.mxu0 %v2299
    %3249 = vmatprep.subr.bf16.mxu0 %v2305
    %3250 = vmatpush1.bf16.msra.mxu0 %v2304
    %3251 = vmatprep.subr.bf16.mxu0 %v2310
    %3252 = vmatpush1.bf16.msra.mxu0 %v2309
    %3253 = vmatprep.subr.bf16.mxu0 %v2315
    %3254 = vmatpush1.bf16.msra.mxu0 %v2314
    %3255 = vmatprep.subr.bf16.mxu0 %v2320
    %3256 = vmatpush1.bf16.msra.mxu0 %v2319
    %3257 = vmatprep.subr.bf16.mxu0 %v2325
    %3258 = vmatpush1.bf16.msra.mxu0 %v2324
    %3259 = vmatprep.subr.bf16.mxu0 %v2330
    %3260 = vmatpush1.bf16.msra.mxu0 %v2329
    %3261 = vmatprep.subr.bf16.mxu0 %v2335
    %3262 = vmatpush1.bf16.msra.mxu0 %v2334
    %3263 = vmatprep.subr.bf16.mxu0 %v2340
    %3264 = vmatpush1.bf16.msra.mxu0 %v2339
    %3265 = vmatprep.subr.bf16.mxu0 %v2345
    %3266 = vmatpush1.bf16.msra.mxu0 %v2344
    %3267 = vmatprep.subr.bf16.mxu0 %v2350
    %3268 = vmatpush1.bf16.msra.mxu0 %v2349
    %3269 = vmatprep.subr.bf16.mxu0 %v2355
    %3270 = vmatpush1.bf16.msra.mxu0 %v2354
    %3271 = vmatprep.subr.bf16.mxu0 %v2360
    %3272 = vmatpush1.bf16.msra.mxu0 %v2359
    %3273 = vmatprep.subr.bf16.mxu0 %v2365
    %3274 = vmatpush1.bf16.msra.mxu0 %v2364
    %3275 = vmatprep.mubr.bf16.mxu0 %v902
    %3276 = vmatmul.mubr.bf16.gmra.mrb[0].mxu0 %v901
    %v3277 = vpop.f32.mrb[0].mxu0
    %v3278 = vadd.f32 %v3185, %v3277
    %v3279 = vpop.f32.mrb[0].mxu0
    %v3280 = vadd.f32 %v3187, %v3279
    %v3281 = vpop.f32.mrb[0].mxu0
    %v3282 = vadd.f32 %v3189, %v3281
    %v3283 = vpop.f32.mrb[0].mxu0
    %v3284 = vadd.f32 %v3191, %v3283
    %3285 = vmatprep.mubr.bf16.mxu0 %v909
    %3286 = vmatmul.mubr.bf16.gmra.mrb[0].mxu0 %v908
    %v3287 = vpop.f32.mrb[0].mxu0
    %v3288 = vadd.f32 %v3195, %v3287
    %v3289 = vpop.f32.mrb[0].mxu0
    %v3290 = vadd.f32 %v3197, %v3289
    %v3291 = vpop.f32.mrb[0].mxu0
    %v3292 = vadd.f32 %v3199, %v3291
    %v3293 = vpop.f32.mrb[0].mxu0
    %v3294 = vadd.f32 %v3201, %v3293
    %3295 = vmatprep.mubr.bf16.mxu0 %v916
    %3296 = vmatmul.mubr.bf16.gmra.mrb[0].mxu0 %v915
    %v3297 = vpop.f32.mrb[0].mxu0
    %v3298 = vadd.f32 %v3205, %v3297
    %v3299 = vpop.f32.mrb[0].mxu0
    %v3300 = vadd.f32 %v3207, %v3299
    %v3301 = vpop.f32.mrb[0].mxu0
    %v3302 = vadd.f32 %v3209, %v3301
    %v3303 = vpop.f32.mrb[0].mxu0
    %v3304 = vadd.f32 %v3211, %v3303
    %3305 = vmatprep.mubr.bf16.mxu0 %v923
    %3306 = vmatmul.mubr.bf16.gmra.mrb[0].mxu0 %v922
    %v3307 = vpop.f32.mrb[0].mxu0
    %v3308 = vadd.f32 %v3215, %v3307
    %v3309 = vpop.f32.mrb[0].mxu0
    %v3310 = vadd.f32 %v3217, %v3309
    %v3311 = vpop.f32.mrb[0].mxu0
    %v3312 = vadd.f32 %v3219, %v3311
    %v3313 = vpop.f32.mrb[0].mxu0
    %v3314 = vadd.f32 %v3221, %v3313
    %3315 = vmatprep.mubr.bf16.mxu0 %v930
    %3316 = vmatmul.mubr.bf16.gmra.mrb[0].mxu0 %v929
    %v3317 = vpop.f32.mrb[0].mxu0
    %v3318 = vadd.f32 %v3225, %v3317
    %v3319 = vpop.f32.mrb[0].mxu0
    %v3320 = vadd.f32 %v3227, %v3319
    %v3321 = vpop.f32.mrb[0].mxu0
    %v3322 = vadd.f32 %v3229, %v3321
    %v3323 = vpop.f32.mrb[0].mxu0
    %v3324 = vadd.f32 %v3231, %v3323
    %3325 = vmatprep.mubr.bf16.mxu0 %v937
    %3326 = vmatmul.mubr.bf16.gmra.mrb[0].mxu0 %v936
    %v3327 = vpop.f32.mrb[0].mxu0
    %v3328 = vadd.f32 %v3235, %v3327
    %v3329 = vpop.f32.mrb[0].mxu0
    %v3330 = vadd.f32 %v3237, %v3329
    %v3331 = vpop.f32.mrb[0].mxu0
    %v3332 = vadd.f32 %v3239, %v3331
    %v3333 = vpop.f32.mrb[0].mxu0
    %v3334 = vadd.f32 %v3241, %v3333
    %3335 = vdwg.mxu0
    %3336 = vmatprep.subr.bf16.mxu0 %v2370
    %3337 = vmatpush1.bf16.msra.mxu0 %v2369
    %3338 = vmatprep.subr.bf16.mxu0 %v2375
    %3339 = vmatpush1.bf16.msra.mxu0 %v2374
    %3340 = vmatprep.subr.bf16.mxu0 %v2380
    %3341 = vmatpush1.bf16.msra.mxu0 %v2379
    %3342 = vmatprep.subr.bf16.mxu0 %v2385
    %3343 = vmatpush1.bf16.msra.mxu0 %v2384
    %3344 = vmatprep.subr.bf16.mxu0 %v2390
    %3345 = vmatpush1.bf16.msra.mxu0 %v2389
    %3346 = vmatprep.subr.bf16.mxu0 %v2395
    %3347 = vmatpush1.bf16.msra.mxu0 %v2394
    %3348 = vmatprep.subr.bf16.mxu0 0
    %3349 = vmatpush1.bf16.msra.mxu0 0
    %3350 = vmatprep.subr.bf16.mxu0 0
    %3351 = vmatpush1.bf16.msra.mxu0 0
    %3352 = vmatprep.subr.bf16.mxu0 0
    %3353 = vmatpush1.bf16.msra.mxu0 0
    %3354 = vmatprep.subr.bf16.mxu0 0
    %3355 = vmatpush1.bf16.msra.mxu0 0
    %3356 = vmatprep.subr.bf16.mxu0 0
    %3357 = vmatpush1.bf16.msra.mxu0 0
    %3358 = vmatprep.subr.bf16.mxu0 0
    %3359 = vmatpush1.bf16.msra.mxu0 0
    %3360 = vmatprep.subr.bf16.mxu0 0
    %3361 = vmatpush1.bf16.msra.mxu0 0
    %3362 = vmatprep.subr.bf16.mxu0 0
    %3363 = vmatpush1.bf16.msra.mxu0 0
    %3364 = vmatprep.subr.bf16.mxu0 0
    %3365 = vmatpush1.bf16.msra.mxu0 0
    %3366 = vmatprep.subr.bf16.mxu0 0
    %3367 = vmatpush1.bf16.msra.mxu0 0
    %3368 = vmatprep.mubr.bf16.mxu0 0
    %3369 = vmatmul.mubr.bf16.gmra.mrb[0].mxu0 %v2668
    %v3370 = vpop.f32.mrb[0].mxu0
    %v3371 = vadd.f32 %v3278, %v3370
    %v3372 = vpop.f32.mrb[0].mxu0
    %v3373 = vadd.f32 %v3280, %v3372
    %v3374 = vpop.f32.mrb[0].mxu0
    %v3375 = vadd.f32 %v3282, %v3374
    %v3376 = vpop.f32.mrb[0].mxu0
    %v3377 = vadd.f32 %v3284, %v3376
    %3378 = vmatprep.mubr.bf16.mxu0 0
    %3379 = vmatmul.mubr.bf16.gmra.mrb[0].mxu0 %v2671
    %v3380 = vpop.f32.mrb[0].mxu0
    %v3381 = vadd.f32 %v3288, %v3380
    %v3382 = vpop.f32.mrb[0].mxu0
    %v3383 = vadd.f32 %v3290, %v3382
    %v3384 = vpop.f32.mrb[0].mxu0
    %v3385 = vadd.f32 %v3292, %v3384
    %v3386 = vpop.f32.mrb[0].mxu0
    %v3387 = vadd.f32 %v3294, %v3386
    %3388 = vmatprep.mubr.bf16.mxu0 0
    %3389 = vmatmul.mubr.bf16.gmra.mrb[0].mxu0 %v2674
    %v3390 = vpop.f32.mrb[0].mxu0
    %v3391 = vadd.f32 %v3298, %v3390
    %v3392 = vpop.f32.mrb[0].mxu0
    %v3393 = vadd.f32 %v3300, %v3392
    %v3394 = vpop.f32.mrb[0].mxu0
    %v3395 = vadd.f32 %v3302, %v3394
    %v3396 = vpop.f32.mrb[0].mxu0
    %v3397 = vadd.f32 %v3304, %v3396
    %3398 = vmatprep.mubr.bf16.mxu0 0
    %3399 = vmatmul.mubr.bf16.gmra.mrb[0].mxu0 %v2677
    %v3400 = vpop.f32.mrb[0].mxu0
    %v3401 = vadd.f32 %v3308, %v3400
    %v3402 = vpop.f32.mrb[0].mxu0
    %v3403 = vadd.f32 %v3310, %v3402
    %v3404 = vpop.f32.mrb[0].mxu0
    %v3405 = vadd.f32 %v3312, %v3404
    %v3406 = vpop.f32.mrb[0].mxu0
    %v3407 = vadd.f32 %v3314, %v3406
    %3408 = vmatprep.mubr.bf16.mxu0 0
    %3409 = vmatmul.mubr.bf16.gmra.mrb[0].mxu0 %v2680
    %v3410 = vpop.f32.mrb[0].mxu0
    %v3411 = vadd.f32 %v3318, %v3410
    %v3412 = vpop.f32.mrb[0].mxu0
    %v3413 = vadd.f32 %v3320, %v3412
    %v3414 = vpop.f32.mrb[0].mxu0
    %v3415 = vadd.f32 %v3322, %v3414
    %v3416 = vpop.f32.mrb[0].mxu0
    %v3417 = vadd.f32 %v3324, %v3416
    %3418 = vmatprep.mubr.bf16.mxu0 0
    %3419 = vmatmul.mubr.bf16.gmra.mrb[0].mxu0 %v2683
    %v3420 = vpop.f32.mrb[0].mxu0
    %v3421 = vadd.f32 %v3328, %v3420
    %v3422 = vpop.f32.mrb[0].mxu0
    %v3423 = vadd.f32 %v3330, %v3422
    %v3424 = vpop.f32.mrb[0].mxu0
    %v3425 = vadd.f32 %v3332, %v3424
    %v3426 = vpop.f32.mrb[0].mxu0
    %v3427 = vadd.f32 %v3334, %v3426
    %3428 = vdwg.mxu0
    %3429 = vmatprep.subr.bf16.mxu0 0
    %3430 = vmatpush1.bf16.msra.mxu0 %v2131
    %3431 = vmatprep.subr.bf16.mxu0 0
    %3432 = vmatpush1.bf16.msra.mxu0 %v2136
    %3433 = vmatprep.subr.bf16.mxu0 0
    %3434 = vmatpush1.bf16.msra.mxu0 %v2141
    %3435 = vmatprep.subr.bf16.mxu0 0
    %3436 = vmatpush1.bf16.msra.mxu0 %v2146
    %3437 = vmatprep.subr.bf16.mxu0 0
    %3438 = vmatpush1.bf16.msra.mxu0 %v2151
    %3439 = vmatprep.subr.bf16.mxu0 0
    %3440 = vmatpush1.bf16.msra.mxu0 %v2156
    %3441 = vmatprep.subr.bf16.mxu0 0
    %3442 = vmatpush1.bf16.msra.mxu0 %v2161
    %3443 = vmatprep.subr.bf16.mxu0 0
    %3444 = vmatpush1.bf16.msra.mxu0 %v2166
    %3445 = vmatprep.subr.bf16.mxu0 0
    %3446 = vmatpush1.bf16.msra.mxu0 %v2171
    %3447 = vmatprep.subr.bf16.mxu0 0
    %3448 = vmatpush1.bf16.msra.mxu0 %v2176
    %3449 = vmatprep.subr.bf16.mxu0 0
    %3450 = vmatpush1.bf16.msra.mxu0 %v2181
    %3451 = vmatprep.subr.bf16.mxu0 0
    %3452 = vmatpush1.bf16.msra.mxu0 %v2186
    %3453 = vmatprep.subr.bf16.mxu0 0
    %3454 = vmatpush1.bf16.msra.mxu0 %v2191
    %3455 = vmatprep.subr.bf16.mxu0 0
    %3456 = vmatpush1.bf16.msra.mxu0 %v2196
    %3457 = vmatprep.subr.bf16.mxu0 0
    %3458 = vmatpush1.bf16.msra.mxu0 %v2201
    %3459 = vmatprep.subr.bf16.mxu0 0
    %3460 = vmatpush1.bf16.msra.mxu0 %v2206
    %3461 = vmatprep.mubr.bf16.mxu0 %v898
    %3462 = vmatmul.mubr.bf16.gmra.mrb[0].mxu0 %v897
    %v3463 = vpop.f32.mrb[0].mxu0
    %v3464 = vadd.f32 0.0, %v3463
    %v3465 = vpop.f32.mrb[0].mxu0
    %v3466 = vpop.f32.mrb[0].mxu0
    %v3467 = vadd.f32 0.0, %v3466
    %v3468 = vpop.f32.mrb[0].mxu0
    %3469 = vmatprep.mubr.bf16.mxu0 %v905
    %3470 = vmatmul.mubr.bf16.gmra.mrb[0].mxu0 %v904
    %v3471 = vpop.f32.mrb[0].mxu0
    %v3472 = vadd.f32 0.0, %v3471
    %v3473 = vpop.f32.mrb[0].mxu0
    %v3474 = vpop.f32.mrb[0].mxu0
    %v3475 = vadd.f32 0.0, %v3474
    %v3476 = vpop.f32.mrb[0].mxu0
    %3477 = vmatprep.mubr.bf16.mxu0 %v912
    %3478 = vmatmul.mubr.bf16.gmra.mrb[0].mxu0 %v911
    %v3479 = vpop.f32.mrb[0].mxu0
    %v3480 = vadd.f32 0.0, %v3479
    %v3481 = vpop.f32.mrb[0].mxu0
    %v3482 = vpop.f32.mrb[0].mxu0
    %v3483 = vadd.f32 0.0, %v3482
    %v3484 = vpop.f32.mrb[0].mxu0
    %3485 = vmatprep.mubr.bf16.mxu0 %v919
    %3486 = vmatmul.mubr.bf16.gmra.mrb[0].mxu0 %v918
    %v3487 = vpop.f32.mrb[0].mxu0
    %v3488 = vadd.f32 0.0, %v3487
    %v3489 = vpop.f32.mrb[0].mxu0
    %v3490 = vpop.f32.mrb[0].mxu0
    %v3491 = vadd.f32 0.0, %v3490
    %v3492 = vpop.f32.mrb[0].mxu0
    %3493 = vmatprep.mubr.bf16.mxu0 %v926
    %3494 = vmatmul.mubr.bf16.gmra.mrb[0].mxu0 %v925
    %v3495 = vpop.f32.mrb[0].mxu0
    %v3496 = vadd.f32 0.0, %v3495
    %v3497 = vpop.f32.mrb[0].mxu0
    %v3498 = vpop.f32.mrb[0].mxu0
    %v3499 = vadd.f32 0.0, %v3498
    %v3500 = vpop.f32.mrb[0].mxu0
    %3501 = vmatprep.mubr.bf16.mxu0 %v933
    %3502 = vmatmul.mubr.bf16.gmra.mrb[0].mxu0 %v932
    %v3503 = vpop.f32.mrb[0].mxu0
    %v3504 = vadd.f32 0.0, %v3503
    %v3505 = vpop.f32.mrb[0].mxu0
    %v3506 = vpop.f32.mrb[0].mxu0
    %v3507 = vadd.f32 0.0, %v3506
    %v3508 = vpop.f32.mrb[0].mxu0
    %3509 = vdwg.mxu0
    %3510 = vmatprep.subr.bf16.mxu0 0
    %3511 = vmatpush1.bf16.msra.mxu0 %v2211
    %3512 = vmatprep.subr.bf16.mxu0 0
    %3513 = vmatpush1.bf16.msra.mxu0 %v2216
    %3514 = vmatprep.subr.bf16.mxu0 0
    %3515 = vmatpush1.bf16.msra.mxu0 %v2221
    %3516 = vmatprep.subr.bf16.mxu0 0
    %3517 = vmatpush1.bf16.msra.mxu0 %v2226
    %3518 = vmatprep.subr.bf16.mxu0 0
    %3519 = vmatpush1.bf16.msra.mxu0 %v2231
    %3520 = vmatprep.subr.bf16.mxu0 0
    %3521 = vmatpush1.bf16.msra.mxu0 %v2236
    %3522 = vmatprep.subr.bf16.mxu0 0
    %3523 = vmatpush1.bf16.msra.mxu0 %v2241
    %3524 = vmatprep.subr.bf16.mxu0 0
    %3525 = vmatpush1.bf16.msra.mxu0 %v2246
    %3526 = vmatprep.subr.bf16.mxu0 0
    %3527 = vmatpush1.bf16.msra.mxu0 %v2251
    %3528 = vmatprep.subr.bf16.mxu0 0
    %3529 = vmatpush1.bf16.msra.mxu0 %v2256
    %3530 = vmatprep.subr.bf16.mxu0 0
    %3531 = vmatpush1.bf16.msra.mxu0 %v2261
    %3532 = vmatprep.subr.bf16.mxu0 0
    %3533 = vmatpush1.bf16.msra.mxu0 %v2266
    %3534 = vmatprep.subr.bf16.mxu0 0
    %3535 = vmatpush1.bf16.msra.mxu0 %v2271
    %3536 = vmatprep.subr.bf16.mxu0 0
    %3537 = vmatpush1.bf16.msra.mxu0 %v2276
    %3538 = vmatprep.subr.bf16.mxu0 0
    %3539 = vmatpush1.bf16.msra.mxu0 %v2281
    %3540 = vmatprep.subr.bf16.mxu0 0
    %3541 = vmatpush1.bf16.msra.mxu0 %v2286
    %3542 = vmatprep.mubr.bf16.mxu0 %v900
    %3543 = vmatmul.mubr.bf16.gmra.mrb[0].mxu0 %v899
    %v3544 = vpop.f32.mrb[0].mxu0
    %v3545 = vadd.f32 %v3464, %v3544
    %v3546 = vpop.f32.mrb[0].mxu0
    %v3547 = vpop.f32.mrb[0].mxu0
    %v3548 = vadd.f32 %v3467, %v3547
    %v3549 = vpop.f32.mrb[0].mxu0
    %3550 = vmatprep.mubr.bf16.mxu0 %v907
    %3551 = vmatmul.mubr.bf16.gmra.mrb[0].mxu0 %v906
    %v3552 = vpop.f32.mrb[0].mxu0
    %v3553 = vadd.f32 %v3472, %v3552
    %v3554 = vpop.f32.mrb[0].mxu0
    %v3555 = vpop.f32.mrb[0].mxu0
    %v3556 = vadd.f32 %v3475, %v3555
    %v3557 = vpop.f32.mrb[0].mxu0
    %3558 = vmatprep.mubr.bf16.mxu0 %v914
    %3559 = vmatmul.mubr.bf16.gmra.mrb[0].mxu0 %v913
    %v3560 = vpop.f32.mrb[0].mxu0
    %v3561 = vadd.f32 %v3480, %v3560
    %v3562 = vpop.f32.mrb[0].mxu0
    %v3563 = vpop.f32.mrb[0].mxu0
    %v3564 = vadd.f32 %v3483, %v3563
    %v3565 = vpop.f32.mrb[0].mxu0
    %3566 = vmatprep.mubr.bf16.mxu0 %v921
    %3567 = vmatmul.mubr.bf16.gmra.mrb[0].mxu0 %v920
    %v3568 = vpop.f32.mrb[0].mxu0
    %v3569 = vadd.f32 %v3488, %v3568
    %v3570 = vpop.f32.mrb[0].mxu0
    %v3571 = vpop.f32.mrb[0].mxu0
    %v3572 = vadd.f32 %v3491, %v3571
    %v3573 = vpop.f32.mrb[0].mxu0
    %3574 = vmatprep.mubr.bf16.mxu0 %v928
    %3575 = vmatmul.mubr.bf16.gmra.mrb[0].mxu0 %v927
    %v3576 = vpop.f32.mrb[0].mxu0
    %v3577 = vadd.f32 %v3496, %v3576
    %v3578 = vpop.f32.mrb[0].mxu0
    %v3579 = vpop.f32.mrb[0].mxu0
    %v3580 = vadd.f32 %v3499, %v3579
    %v3581 = vpop.f32.mrb[0].mxu0
    %3582 = vmatprep.mubr.bf16.mxu0 %v935
    %3583 = vmatmul.mubr.bf16.gmra.mrb[0].mxu0 %v934
    %v3584 = vpop.f32.mrb[0].mxu0
    %v3585 = vadd.f32 %v3504, %v3584
    %v3586 = vpop.f32.mrb[0].mxu0
    %v3587 = vpop.f32.mrb[0].mxu0
    %v3588 = vadd.f32 %v3507, %v3587
    %v3589 = vpop.f32.mrb[0].mxu0
    %3590 = vdwg.mxu0
    %3591 = vmatprep.subr.bf16.mxu0 0
    %3592 = vmatpush1.bf16.msra.mxu0 %v2291
    %3593 = vmatprep.subr.bf16.mxu0 0
    %3594 = vmatpush1.bf16.msra.mxu0 %v2296
    %3595 = vmatprep.subr.bf16.mxu0 0
    %3596 = vmatpush1.bf16.msra.mxu0 %v2301
    %3597 = vmatprep.subr.bf16.mxu0 0
    %3598 = vmatpush1.bf16.msra.mxu0 %v2306
    %3599 = vmatprep.subr.bf16.mxu0 0
    %3600 = vmatpush1.bf16.msra.mxu0 %v2311
    %3601 = vmatprep.subr.bf16.mxu0 0
    %3602 = vmatpush1.bf16.msra.mxu0 %v2316
    %3603 = vmatprep.subr.bf16.mxu0 0
    %3604 = vmatpush1.bf16.msra.mxu0 %v2321
    %3605 = vmatprep.subr.bf16.mxu0 0
    %3606 = vmatpush1.bf16.msra.mxu0 %v2326
    %3607 = vmatprep.subr.bf16.mxu0 0
    %3608 = vmatpush1.bf16.msra.mxu0 %v2331
    %3609 = vmatprep.subr.bf16.mxu0 0
    %3610 = vmatpush1.bf16.msra.mxu0 %v2336
    %3611 = vmatprep.subr.bf16.mxu0 0
    %3612 = vmatpush1.bf16.msra.mxu0 %v2341
    %3613 = vmatprep.subr.bf16.mxu0 0
    %3614 = vmatpush1.bf16.msra.mxu0 %v2346
    %3615 = vmatprep.subr.bf16.mxu0 0
    %3616 = vmatpush1.bf16.msra.mxu0 %v2351
    %3617 = vmatprep.subr.bf16.mxu0 0
    %3618 = vmatpush1.bf16.msra.mxu0 %v2356
    %3619 = vmatprep.subr.bf16.mxu0 0
    %3620 = vmatpush1.bf16.msra.mxu0 %v2361
    %3621 = vmatprep.subr.bf16.mxu0 0
    %3622 = vmatpush1.bf16.msra.mxu0 %v2366
    %3623 = vmatprep.mubr.bf16.mxu0 %v902
    %3624 = vmatmul.mubr.bf16.gmra.mrb[0].mxu0 %v901
    %v3625 = vpop.f32.mrb[0].mxu0
    %v3626 = vadd.f32 %v3545, %v3625
    %v3627 = vpop.f32.mrb[0].mxu0
    %v3628 = vpop.f32.mrb[0].mxu0
    %v3629 = vadd.f32 %v3548, %v3628
    %v3630 = vpop.f32.mrb[0].mxu0
    %3631 = vmatprep.mubr.bf16.mxu0 %v909
    %3632 = vmatmul.mubr.bf16.gmra.mrb[0].mxu0 %v908
    %v3633 = vpop.f32.mrb[0].mxu0
    %v3634 = vadd.f32 %v3553, %v3633
    %v3635 = vpop.f32.mrb[0].mxu0
    %v3636 = vpop.f32.mrb[0].mxu0
    %v3637 = vadd.f32 %v3556, %v3636
    %v3638 = vpop.f32.mrb[0].mxu0
    %3639 = vmatprep.mubr.bf16.mxu0 %v916
    %3640 = vmatmul.mubr.bf16.gmra.mrb[0].mxu0 %v915
    %v3641 = vpop.f32.mrb[0].mxu0
    %v3642 = vadd.f32 %v3561, %v3641
    %v3643 = vpop.f32.mrb[0].mxu0
    %v3644 = vpop.f32.mrb[0].mxu0
    %v3645 = vadd.f32 %v3564, %v3644
    %v3646 = vpop.f32.mrb[0].mxu0
    %3647 = vmatprep.mubr.bf16.mxu0 %v923
    %3648 = vmatmul.mubr.bf16.gmra.mrb[0].mxu0 %v922
    %v3649 = vpop.f32.mrb[0].mxu0
    %v3650 = vadd.f32 %v3569, %v3649
    %v3651 = vpop.f32.mrb[0].mxu0
    %v3652 = vpop.f32.mrb[0].mxu0
    %v3653 = vadd.f32 %v3572, %v3652
    %v3654 = vpop.f32.mrb[0].mxu0
    %3655 = vmatprep.mubr.bf16.mxu0 %v930
    %3656 = vmatmul.mubr.bf16.gmra.mrb[0].mxu0 %v929
    %v3657 = vpop.f32.mrb[0].mxu0
    %v3658 = vadd.f32 %v3577, %v3657
    %v3659 = vpop.f32.mrb[0].mxu0
    %v3660 = vpop.f32.mrb[0].mxu0
    %v3661 = vadd.f32 %v3580, %v3660
    %v3662 = vpop.f32.mrb[0].mxu0
    %3663 = vmatprep.mubr.bf16.mxu0 %v937
    %3664 = vmatmul.mubr.bf16.gmra.mrb[0].mxu0 %v936
    %v3665 = vpop.f32.mrb[0].mxu0
    %v3666 = vadd.f32 %v3585, %v3665
    %v3667 = vpop.f32.mrb[0].mxu0
    %v3668 = vpop.f32.mrb[0].mxu0
    %v3669 = vadd.f32 %v3588, %v3668
    %v3670 = vpop.f32.mrb[0].mxu0
    %3671 = vdwg.mxu0
    %3672 = vmatprep.subr.bf16.mxu0 0
    %3673 = vmatpush1.bf16.msra.mxu0 %v2371
    %3674 = vmatprep.subr.bf16.mxu0 0
    %3675 = vmatpush1.bf16.msra.mxu0 %v2376
    %3676 = vmatprep.subr.bf16.mxu0 0
    %3677 = vmatpush1.bf16.msra.mxu0 %v2381
    %3678 = vmatprep.subr.bf16.mxu0 0
    %3679 = vmatpush1.bf16.msra.mxu0 %v2386
    %3680 = vmatprep.subr.bf16.mxu0 0
    %3681 = vmatpush1.bf16.msra.mxu0 %v2391
    %3682 = vmatprep.subr.bf16.mxu0 0
    %3683 = vmatpush1.bf16.msra.mxu0 %v2396
    %3684 = vmatprep.subr.bf16.mxu0 0
    %3685 = vmatpush1.bf16.msra.mxu0 0
    %3686 = vmatprep.subr.bf16.mxu0 0
    %3687 = vmatpush1.bf16.msra.mxu0 0
    %3688 = vmatprep.subr.bf16.mxu0 0
    %3689 = vmatpush1.bf16.msra.mxu0 0
    %3690 = vmatprep.subr.bf16.mxu0 0
    %3691 = vmatpush1.bf16.msra.mxu0 0
    %3692 = vmatprep.subr.bf16.mxu0 0
    %3693 = vmatpush1.bf16.msra.mxu0 0
    %3694 = vmatprep.subr.bf16.mxu0 0
    %3695 = vmatpush1.bf16.msra.mxu0 0
    %3696 = vmatprep.subr.bf16.mxu0 0
    %3697 = vmatpush1.bf16.msra.mxu0 0
    %3698 = vmatprep.subr.bf16.mxu0 0
    %3699 = vmatpush1.bf16.msra.mxu0 0
    %3700 = vmatprep.subr.bf16.mxu0 0
    %3701 = vmatpush1.bf16.msra.mxu0 0
    %3702 = vmatprep.subr.bf16.mxu0 0
    %3703 = vmatpush1.bf16.msra.mxu0 0
    %3704 = vmatprep.mubr.bf16.mxu0 0
    %3705 = vmatmul.mubr.bf16.gmra.mrb[0].mxu0 %v2668
    %v3706 = vpop.f32.mrb[0].mxu0
    %v3707 = vadd.f32 %v3626, %v3706
    %v3708 = vpop.f32.mrb[0].mxu0
    %v3709 = vpop.f32.mrb[0].mxu0
    %v3710 = vadd.f32 %v3629, %v3709
    %v3711 = vpop.f32.mrb[0].mxu0
    %3712 = vmatprep.mubr.bf16.mxu0 0
    %3713 = vmatmul.mubr.bf16.gmra.mrb[0].mxu0 %v2671
    %v3714 = vpop.f32.mrb[0].mxu0
    %v3715 = vadd.f32 %v3634, %v3714
    %v3716 = vpop.f32.mrb[0].mxu0
    %v3717 = vpop.f32.mrb[0].mxu0
    %v3718 = vadd.f32 %v3637, %v3717
    %v3719 = vpop.f32.mrb[0].mxu0
    %3720 = vmatprep.mubr.bf16.mxu0 0
    %3721 = vmatmul.mubr.bf16.gmra.mrb[0].mxu0 %v2674
    %v3722 = vpop.f32.mrb[0].mxu0
    %v3723 = vadd.f32 %v3642, %v3722
    %v3724 = vpop.f32.mrb[0].mxu0
    %v3725 = vpop.f32.mrb[0].mxu0
    %v3726 = vadd.f32 %v3645, %v3725
    %v3727 = vpop.f32.mrb[0].mxu0
    %3728 = vmatprep.mubr.bf16.mxu0 0
    %3729 = vmatmul.mubr.bf16.gmra.mrb[0].mxu0 %v2677
    %v3730 = vpop.f32.mrb[0].mxu0
    %v3731 = vadd.f32 %v3650, %v3730
    %v3732 = vpop.f32.mrb[0].mxu0
    %v3733 = vpop.f32.mrb[0].mxu0
    %v3734 = vadd.f32 %v3653, %v3733
    %v3735 = vpop.f32.mrb[0].mxu0
    %3736 = vmatprep.mubr.bf16.mxu0 0
    %3737 = vmatmul.mubr.bf16.gmra.mrb[0].mxu0 %v2680
    %v3738 = vpop.f32.mrb[0].mxu0
    %v3739 = vadd.f32 %v3658, %v3738
    %v3740 = vpop.f32.mrb[0].mxu0
    %v3741 = vpop.f32.mrb[0].mxu0
    %v3742 = vadd.f32 %v3661, %v3741
    %v3743 = vpop.f32.mrb[0].mxu0
    %3744 = vmatprep.mubr.bf16.mxu0 0
    %3745 = vmatmul.mubr.bf16.gmra.mrb[0].mxu0 %v2683
    %v3746 = vpop.f32.mrb[0].mxu0
    %v3747 = vadd.f32 %v3666, %v3746
    %v3748 = vpop.f32.mrb[0].mxu0
    %v3749 = vpop.f32.mrb[0].mxu0
    %v3750 = vadd.f32 %v3669, %v3749
    %v3751 = vpop.f32.mrb[0].mxu0
    %3752 = vdwg.mxu0
    %v3753 = vld [vmem:[#allocation11] ss:$2 sm:$0x1f]
    %v3755 = vlaneseq
    %v3756 = vshrl.u32 %v3755, 7
    %v3757 = vsub.s32 0, %v3756
    %v3758 = vrot.slane %v3753, %v3757
    %v3759 = vlaneseq
    %v3760 = vshrl.u32 %v3759, 7
    %v3761 = vsub.s32 1, %v3760
    %v3762 = vrot.slane %v3753, %v3761
    %v3763 = vlaneseq
    %v3764 = vshrl.u32 %v3763, 7
    %v3765 = vsub.s32 2, %v3764
    %v3766 = vrot.slane %v3753, %v3765
    %v3767 = vlaneseq
    %v3768 = vshrl.u32 %v3767, 7
    %v3769 = vsub.s32 3, %v3768
    %v3770 = vrot.slane %v3753, %v3769
    %v3771 = vlaneseq
    %v3772 = vshrl.u32 %v3771, 7
    %v3773 = vsub.s32 4, %v3772
    %v3774 = vrot.slane %v3753, %v3773
    %v3780 = vmul.f32 %v2999, %v3758
    %v3781 = vmul.f32 %v3001, %v3762
    %v3782 = vmul.f32 %v3371, %v3766
    %v3783 = vmul.f32 %v3373, %v3770
    %v3784 = vmul.f32 %v3707, %v3774
    %v3785 = vmul.f32 %v3003, %v3758
    %v3786 = vmul.f32 %v3005, %v3762
    %v3787 = vmul.f32 %v3375, %v3766
    %v3788 = vmul.f32 %v3377, %v3770
    %v3789 = vmul.f32 %v3710, %v3774
    %v3790 = vmul.f32 %v3009, %v3758
    %v3791 = vmul.f32 %v3011, %v3762
    %v3792 = vmul.f32 %v3381, %v3766
    %v3793 = vmul.f32 %v3383, %v3770
    %v3794 = vmul.f32 %v3715, %v3774
    %v3795 = vmul.f32 %v3013, %v3758
    %v3796 = vmul.f32 %v3015, %v3762
    %v3797 = vmul.f32 %v3385, %v3766
    %v3798 = vmul.f32 %v3387, %v3770
    %v3799 = vmul.f32 %v3718, %v3774
    %v3800 = vmul.f32 %v3019, %v3758
    %v3801 = vmul.f32 %v3021, %v3762
    %v3802 = vmul.f32 %v3391, %v3766
    %v3803 = vmul.f32 %v3393, %v3770
    %v3804 = vmul.f32 %v3723, %v3774
    %v3805 = vmul.f32 %v3023, %v3758
    %v3806 = vmul.f32 %v3025, %v3762
    %v3807 = vmul.f32 %v3395, %v3766
    %v3808 = vmul.f32 %v3397, %v3770
    %v3809 = vmul.f32 %v3726, %v3774
    %v3810 = vmul.f32 %v3029, %v3758
    %v3811 = vmul.f32 %v3031, %v3762
    %v3812 = vmul.f32 %v3401, %v3766
    %v3813 = vmul.f32 %v3403, %v3770
    %v3814 = vmul.f32 %v3731, %v3774
    %v3815 = vmul.f32 %v3033, %v3758
    %v3816 = vmul.f32 %v3035, %v3762
    %v3817 = vmul.f32 %v3405, %v3766
    %v3818 = vmul.f32 %v3407, %v3770
    %v3819 = vmul.f32 %v3734, %v3774
    %v3820 = vmul.f32 %v3039, %v3758
    %v3821 = vmul.f32 %v3041, %v3762
    %v3822 = vmul.f32 %v3411, %v3766
    %v3823 = vmul.f32 %v3413, %v3770
    %v3824 = vmul.f32 %v3739, %v3774
    %v3825 = vmul.f32 %v3043, %v3758
    %v3826 = vmul.f32 %v3045, %v3762
    %v3827 = vmul.f32 %v3415, %v3766
    %v3828 = vmul.f32 %v3417, %v3770
    %v3829 = vmul.f32 %v3742, %v3774
    %v3830 = vmul.f32 %v3049, %v3758
    %v3831 = vmul.f32 %v3051, %v3762
    %v3832 = vmul.f32 %v3421, %v3766
    %v3833 = vmul.f32 %v3423, %v3770
    %v3834 = vmul.f32 %v3747, %v3774
    %v3835 = vmul.f32 %v3053, %v3758
    %v3836 = vmul.f32 %v3055, %v3762
    %v3837 = vmul.f32 %v3425, %v3766
    %v3838 = vmul.f32 %v3427, %v3770
    %v3839 = vmul.f32 %v3750, %v3774
    %s3840 = scalar_lea.vmem [#allocation11], 1
    %v3841 = vld [vmem:[%s3840] ss:$2 sm:$0x1f]
    %v3843 = vlaneseq
    %v3844 = vshrl.u32 %v3843, 7
    %v3845 = vsub.s32 0, %v3844
    %v3846 = vrot.slane %v3841, %v3845
    %v3847 = vlaneseq
    %v3848 = vshrl.u32 %v3847, 7
    %v3849 = vsub.s32 1, %v3848
    %v3850 = vrot.slane %v3841, %v3849
    %v3851 = vlaneseq
    %v3852 = vshrl.u32 %v3851, 7
    %v3853 = vsub.s32 2, %v3852
    %v3854 = vrot.slane %v3841, %v3853
    %v3855 = vlaneseq
    %v3856 = vshrl.u32 %v3855, 7
    %v3857 = vsub.s32 3, %v3856
    %v3858 = vrot.slane %v3841, %v3857
    %v3859 = vlaneseq
    %v3860 = vshrl.u32 %v3859, 7
    %v3861 = vsub.s32 4, %v3860
    %v3862 = vrot.slane %v3841, %v3861
    %v3868 = vadd.f32 %v3780, %v3846
    %v3869 = vadd.f32 %v3781, %v3850
    %v3870 = vadd.f32 %v3782, %v3854
    %v3871 = vadd.f32 %v3783, %v3858
    %v3872 = vadd.f32 %v3784, %v3862
    %v3873 = vadd.f32 %v3785, %v3846
    %v3874 = vadd.f32 %v3786, %v3850
    %v3875 = vadd.f32 %v3787, %v3854
    %v3876 = vadd.f32 %v3788, %v3858
    %v3877 = vadd.f32 %v3789, %v3862
    %v3878 = vadd.f32 %v3790, %v3846
    %v3879 = vadd.f32 %v3791, %v3850
    %v3880 = vadd.f32 %v3792, %v3854
    %v3881 = vadd.f32 %v3793, %v3858
    %v3882 = vadd.f32 %v3794, %v3862
    %v3883 = vadd.f32 %v3795, %v3846
    %v3884 = vadd.f32 %v3796, %v3850
    %v3885 = vadd.f32 %v3797, %v3854
    %v3886 = vadd.f32 %v3798, %v3858
    %v3887 = vadd.f32 %v3799, %v3862
    %v3888 = vadd.f32 %v3800, %v3846
    %v3889 = vadd.f32 %v3801, %v3850
    %v3890 = vadd.f32 %v3802, %v3854
    %v3891 = vadd.f32 %v3803, %v3858
    %v3892 = vadd.f32 %v3804, %v3862
    %v3893 = vadd.f32 %v3805, %v3846
    %v3894 = vadd.f32 %v3806, %v3850
    %v3895 = vadd.f32 %v3807, %v3854
    %v3896 = vadd.f32 %v3808, %v3858
    %v3897 = vadd.f32 %v3809, %v3862
    %v3898 = vadd.f32 %v3810, %v3846
    %v3899 = vadd.f32 %v3811, %v3850
    %v3900 = vadd.f32 %v3812, %v3854
    %v3901 = vadd.f32 %v3813, %v3858
    %v3902 = vadd.f32 %v3814, %v3862
    %v3903 = vadd.f32 %v3815, %v3846
    %v3904 = vadd.f32 %v3816, %v3850
    %v3905 = vadd.f32 %v3817, %v3854
    %v3906 = vadd.f32 %v3818, %v3858
    %v3907 = vadd.f32 %v3819, %v3862
    %v3908 = vadd.f32 %v3820, %v3846
    %v3909 = vadd.f32 %v3821, %v3850
    %v3910 = vadd.f32 %v3822, %v3854
    %v3911 = vadd.f32 %v3823, %v3858
    %v3912 = vadd.f32 %v3824, %v3862
    %v3913 = vadd.f32 %v3825, %v3846
    %v3914 = vadd.f32 %v3826, %v3850
    %v3915 = vadd.f32 %v3827, %v3854
    %v3916 = vadd.f32 %v3828, %v3858
    %v3917 = vadd.f32 %v3829, %v3862
    %v3918 = vadd.f32 %v3830, %v3846
    %v3919 = vadd.f32 %v3831, %v3850
    %v3920 = vadd.f32 %v3832, %v3854
    %v3921 = vadd.f32 %v3833, %v3858
    %v3922 = vadd.f32 %v3834, %v3862
    %v3923 = vadd.f32 %v3835, %v3846
    %v3924 = vadd.f32 %v3836, %v3850
    %v3925 = vadd.f32 %v3837, %v3854
    %v3926 = vadd.f32 %v3838, %v3858
    %v3927 = vadd.f32 %v3839, %v3862
    %v3928 = vmax.f32 %v3868, 0.0
    %v3929 = vmax.f32 %v3869, 0.0
    %v3930 = vmax.f32 %v3870, 0.0
    %v3931 = vmax.f32 %v3871, 0.0
    %v3932 = vmax.f32 %v3872, 0.0
    %v3933 = vmax.f32 %v3873, 0.0
    %v3934 = vmax.f32 %v3874, 0.0
    %v3935 = vmax.f32 %v3875, 0.0
    %v3936 = vmax.f32 %v3876, 0.0
    %v3937 = vmax.f32 %v3877, 0.0
    %v3938 = vmax.f32 %v3878, 0.0
    %v3939 = vmax.f32 %v3879, 0.0
    %v3940 = vmax.f32 %v3880, 0.0
    %v3941 = vmax.f32 %v3881, 0.0
    %v3942 = vmax.f32 %v3882, 0.0
    %v3943 = vmax.f32 %v3883, 0.0
    %v3944 = vmax.f32 %v3884, 0.0
    %v3945 = vmax.f32 %v3885, 0.0
    %v3946 = vmax.f32 %v3886, 0.0
    %v3947 = vmax.f32 %v3887, 0.0
    %v3948 = vmax.f32 %v3888, 0.0
    %v3949 = vmax.f32 %v3889, 0.0
    %v3950 = vmax.f32 %v3890, 0.0
    %v3951 = vmax.f32 %v3891, 0.0
    %v3952 = vmax.f32 %v3892, 0.0
    %v3953 = vmax.f32 %v3893, 0.0
    %v3954 = vmax.f32 %v3894, 0.0
    %v3955 = vmax.f32 %v3895, 0.0
    %v3956 = vmax.f32 %v3896, 0.0
    %v3957 = vmax.f32 %v3897, 0.0
    %v3958 = vmax.f32 %v3898, 0.0
    %v3959 = vmax.f32 %v3899, 0.0
    %v3960 = vmax.f32 %v3900, 0.0
    %v3961 = vmax.f32 %v3901, 0.0
    %v3962 = vmax.f32 %v3902, 0.0
    %v3963 = vmax.f32 %v3903, 0.0
    %v3964 = vmax.f32 %v3904, 0.0
    %v3965 = vmax.f32 %v3905, 0.0
    %v3966 = vmax.f32 %v3906, 0.0
    %v3967 = vmax.f32 %v3907, 0.0
    %v3968 = vmax.f32 %v3908, 0.0
    %v3969 = vmax.f32 %v3909, 0.0
    %v3970 = vmax.f32 %v3910, 0.0
    %v3971 = vmax.f32 %v3911, 0.0
    %v3972 = vmax.f32 %v3912, 0.0
    %v3973 = vmax.f32 %v3913, 0.0
    %v3974 = vmax.f32 %v3914, 0.0
    %v3975 = vmax.f32 %v3915, 0.0
    %v3976 = vmax.f32 %v3916, 0.0
    %v3977 = vmax.f32 %v3917, 0.0
    %v3978 = vmax.f32 %v3918, 0.0
    %v3979 = vmax.f32 %v3919, 0.0
    %v3980 = vmax.f32 %v3920, 0.0
    %v3981 = vmax.f32 %v3921, 0.0
    %v3982 = vmax.f32 %v3922, 0.0
    %v3983 = vmax.f32 %v3923, 0.0
    %v3984 = vmax.f32 %v3924, 0.0
    %v3985 = vmax.f32 %v3925, 0.0
    %v3986 = vmax.f32 %v3926, 0.0
    %v3987 = vmax.f32 %v3927, 0.0
    %v3988 = vpack.c.bf16 %v3933, %v3928
    %v3989 = vpack.c.bf16 %v3934, %v3929
    %v3990 = vpack.c.bf16 %v3935, %v3930
    %v3991 = vpack.c.bf16 %v3936, %v3931
    %v3992 = vpack.c.bf16 %v3937, %v3932
    %v3993 = vpack.c.bf16 %v3943, %v3938
    %v3994 = vpack.c.bf16 %v3944, %v3939
    %v3995 = vpack.c.bf16 %v3945, %v3940
    %v3996 = vpack.c.bf16 %v3946, %v3941
    %v3997 = vpack.c.bf16 %v3947, %v3942
    %v3998 = vpack.c.bf16 %v3953, %v3948
    %v3999 = vpack.c.bf16 %v3954, %v3949
    %v4000 = vpack.c.bf16 %v3955, %v3950
    %v4001 = vpack.c.bf16 %v3956, %v3951
    %v4002 = vpack.c.bf16 %v3957, %v3952
    %v4003 = vpack.c.bf16 %v3963, %v3958
    %v4004 = vpack.c.bf16 %v3964, %v3959
    %v4005 = vpack.c.bf16 %v3965, %v3960
    %v4006 = vpack.c.bf16 %v3966, %v3961
    %v4007 = vpack.c.bf16 %v3967, %v3962
    %v4008 = vpack.c.bf16 %v3973, %v3968
    %v4009 = vpack.c.bf16 %v3974, %v3969
    %v4010 = vpack.c.bf16 %v3975, %v3970
    %v4011 = vpack.c.bf16 %v3976, %v3971
    %v4012 = vpack.c.bf16 %v3977, %v3972
    %v4013 = vpack.c.bf16 %v3983, %v3978
    %v4014 = vpack.c.bf16 %v3984, %v3979
    %v4015 = vpack.c.bf16 %v3985, %v3980
    %v4016 = vpack.c.bf16 %v3986, %v3981
    %v4017 = vpack.c.bf16 %v3987, %v3982
    %v4018 = vld [vmem:[#allocation12] sm:$0xff]
    %v4019 = vld [vmem:[#allocation12 + $0x8] sm:$0xff]
    %v4020 = vld [vmem:[#allocation12 + $0x10] sm:$0xff]
    %v4021 = vld [vmem:[#allocation12 + $0x18] sm:$0xff]
    %v4022 = vld [vmem:[#allocation12 + $0x20] sm:$0xff]
    %v4023 = vld [vmem:[#allocation12 + $0x28] sm:$0xff]
    %v4024 = vld [vmem:[#allocation12 + $0x30] sm:$0xff]
    %v4025 = vld [vmem:[#allocation12 + $0x38] sm:$0xff]
    %v4026 = vld [vmem:[#allocation12 + $0x40] sm:$0xff]
    %v4027 = vld [vmem:[#allocation12 + $0x48] sm:$0xff]
    %v4028 = vld [vmem:[#allocation12 + $0x50] sm:$0xff]
    %v4029 = vld [vmem:[#allocation12 + $0x58] sm:$0xff]
    %v4030 = vld [vmem:[#allocation12 + $0x60] sm:$0xff]
    %v4031 = vld [vmem:[#allocation12 + $0x68] sm:$0xff]
    %v4032 = vld [vmem:[#allocation12 + $0x70] sm:$0xff]
    %v4033 = vld [vmem:[#allocation12 + $0x78] sm:$0xff]
    %v4034 = vld [vmem:[#allocation12 + $0x80] sm:$0xff]
    %v4035 = vld [vmem:[#allocation12 + $0x88] sm:$0xff]
    %v4036 = vld [vmem:[#allocation12 + $0x90] sm:$0xff]
    %v4037 = vld [vmem:[#allocation12 + $0x98] sm:$0xff]
    %v4038 = vld [vmem:[#allocation12 + $0xa0] sm:$0xff]
    %v4039 = vld [vmem:[#allocation12 + $0xa8] sm:$0xff]
    %v4040 = vld [vmem:[#allocation12 + $0xb0] sm:$0xff]
    %v4041 = vld [vmem:[#allocation12 + $0xb8] sm:$0xff]
    %v4042 = vld [vmem:[#allocation12 + $0xc0] sm:$0xff]
    %v4043 = vld [vmem:[#allocation12 + $0xc8] sm:$0xff]
    %v4044 = vld [vmem:[#allocation12 + $0xd0] sm:$0xff]
    %v4045 = vld [vmem:[#allocation12 + $0xd8] sm:$0xff]
    %v4046 = vld [vmem:[#allocation12 + $0xe0] sm:$0xff]
    %v4047 = vld [vmem:[#allocation12 + $0xe8] sm:$0xff]
    %v4048 = vld [vmem:[#allocation12 + $0xf0] sm:$0xff]
    %v4049 = vld [vmem:[#allocation12 + $0xf8] sm:$0xff]
    %v4050 = vld [vmem:[#allocation12 + $0x100] sm:$0xff]
    %v4051 = vld [vmem:[#allocation12 + $0x108] sm:$0xff]
    %v4052 = vld [vmem:[#allocation12 + $0x110] sm:$0xff]
    %v4053 = vld [vmem:[#allocation12 + $0x118] sm:$0xff]
    %v4054 = vld [vmem:[#allocation12 + $0x120] sm:$0xff]
    %v4055 = vld [vmem:[#allocation12 + $0x128] sm:$0xff]
    %v4056 = vld [vmem:[#allocation12 + $0x130] sm:$0xff]
    %v4057 = vld [vmem:[#allocation12 + $0x138] sm:$0xff]
    %v4058 = vld [vmem:[#allocation12 + $0x140] sm:$0xff]
    %v4059 = vld [vmem:[#allocation12 + $0x148] sm:$0xff]
    %v4060 = vld [vmem:[#allocation12 + $0x150] sm:$0xff]
    %v4061 = vld [vmem:[#allocation12 + $0x158] sm:$0xff]
    %v4062 = vld [vmem:[#allocation12 + $0x160] sm:$0xff]
    %v4063 = vld [vmem:[#allocation12 + $0x168] sm:$0xff]
    %v4064 = vld [vmem:[#allocation12 + $0x170] sm:$0xff]
    %v4065 = vld [vmem:[#allocation12 + $0x178] sm:$0xff]
    %v4066 = vld [vmem:[#allocation12 + $0x180] sm:$0xff]
    %v4067 = vld [vmem:[#allocation12 + $0x188] sm:$0xff]
    %v4068 = vld [vmem:[#allocation12 + $0x190] sm:$0xff]
    %v4069 = vld [vmem:[#allocation12 + $0x198] sm:$0xff]
    %v4070 = vld [vmem:[#allocation12 + $0x1a0] sm:$0xff]
    %v4071 = vld [vmem:[#allocation12 + $0x1a8] sm:$0xff]
    %v4072 = vld [vmem:[#allocation12 + $0x1b0] sm:$0xff]
    %v4073 = vld [vmem:[#allocation12 + $0x1b8] sm:$0xff]
    %v4074 = vld [vmem:[#allocation12 + $0x1c0] sm:$0xff]
    %v4075 = vld [vmem:[#allocation12 + $0x1c8] sm:$0xff]
    %v4076 = vld [vmem:[#allocation12 + $0x1d0] sm:$0xff]
    %v4077 = vld [vmem:[#allocation12 + $0x1d8] sm:$0xff]
    %v4078 = vld [vmem:[#allocation12 + $0x1e0] sm:$0xff]
    %v4079 = vld [vmem:[#allocation12 + $0x1e8] sm:$0xff]
    %v4080 = vld [vmem:[#allocation12 + $0x1f0] sm:$0xff]
    %v4081 = vld [vmem:[#allocation12 + $0x1f8] sm:$0xff]
    %v4082 = vld [vmem:[#allocation12 + $0x200] sm:$0xff]
    %v4083 = vld [vmem:[#allocation12 + $0x208] sm:$0xff]
    %v4084 = vld [vmem:[#allocation12 + $0x210] sm:$0xff]
    %v4085 = vld [vmem:[#allocation12 + $0x218] sm:$0xff]
    %v4086 = vld [vmem:[#allocation12 + $0x220] sm:$0xff]
    %v4087 = vld [vmem:[#allocation12 + $0x228] sm:$0xff]
    %v4088 = vld [vmem:[#allocation12 + $0x230] sm:$0xff]
    %v4089 = vld [vmem:[#allocation12 + $0x238] sm:$0xff]
    %s4090 = scalar_lea.vmem [#allocation12], 576
    %v4091 = vld [vmem:[%s4090] sm:$0xff]
    %v4092 = vld [vmem:[%s4090 + $0x8] sm:$0xff]
    %v4093 = vld [vmem:[%s4090 + $0x10] sm:$0xff]
    %v4094 = vld [vmem:[%s4090 + $0x18] sm:$0xff]
    %v4095 = vld [vmem:[%s4090 + $0x20] sm:$0xff]
    %v4096 = vld [vmem:[%s4090 + $0x28] sm:$0xff]
    %v4097 = vld [vmem:[%s4090 + $0x30] sm:$0xff]
    %v4098 = vld [vmem:[%s4090 + $0x38] sm:$0xff]
    %v4099 = vld [vmem:[%s4090 + $0x40] sm:$0xff]
    %v4100 = vld [vmem:[%s4090 + $0x48] sm:$0xff]
    %v4101 = vld [vmem:[%s4090 + $0x50] sm:$0xff]
    %v4102 = vld [vmem:[%s4090 + $0x58] sm:$0xff]
    %v4103 = vld [vmem:[%s4090 + $0x60] sm:$0xff]
    %v4104 = vld [vmem:[%s4090 + $0x68] sm:$0xff]
    %v4105 = vld [vmem:[%s4090 + $0x70] sm:$0xff]
    %v4106 = vld [vmem:[%s4090 + $0x78] sm:$0xff]
    %v4107 = vld [vmem:[%s4090 + $0x80] sm:$0xff]
    %v4108 = vld [vmem:[%s4090 + $0x88] sm:$0xff]
    %v4109 = vld [vmem:[%s4090 + $0x90] sm:$0xff]
    %v4110 = vld [vmem:[%s4090 + $0x98] sm:$0xff]
    %v4111 = vld [vmem:[%s4090 + $0xa0] sm:$0xff]
    %v4112 = vld [vmem:[%s4090 + $0xa8] sm:$0xff]
    %v4113 = vld [vmem:[%s4090 + $0xb0] sm:$0xff]
    %v4114 = vld [vmem:[%s4090 + $0xb8] sm:$0xff]
    %v4115 = vld [vmem:[%s4090 + $0xc0] sm:$0xff]
    %v4116 = vld [vmem:[%s4090 + $0xc8] sm:$0xff]
    %v4117 = vld [vmem:[%s4090 + $0xd0] sm:$0xff]
    %v4118 = vld [vmem:[%s4090 + $0xd8] sm:$0xff]
    %v4119 = vld [vmem:[%s4090 + $0xe0] sm:$0xff]
    %v4120 = vld [vmem:[%s4090 + $0xe8] sm:$0xff]
    %v4121 = vld [vmem:[%s4090 + $0xf0] sm:$0xff]
    %v4122 = vld [vmem:[%s4090 + $0xf8] sm:$0xff]
    %v4123 = vld [vmem:[%s4090 + $0x100] sm:$0xff]
    %v4124 = vld [vmem:[%s4090 + $0x108] sm:$0xff]
    %v4125 = vld [vmem:[%s4090 + $0x110] sm:$0xff]
    %v4126 = vld [vmem:[%s4090 + $0x118] sm:$0xff]
    %v4127 = vld [vmem:[%s4090 + $0x120] sm:$0xff]
    %v4128 = vld [vmem:[%s4090 + $0x128] sm:$0xff]
    %v4129 = vld [vmem:[%s4090 + $0x130] sm:$0xff]
    %v4130 = vld [vmem:[%s4090 + $0x138] sm:$0xff]
    %v4131 = vld [vmem:[%s4090 + $0x140] sm:$0xff]
    %v4132 = vld [vmem:[%s4090 + $0x148] sm:$0xff]
    %v4133 = vld [vmem:[%s4090 + $0x150] sm:$0xff]
    %v4134 = vld [vmem:[%s4090 + $0x158] sm:$0xff]
    %v4135 = vld [vmem:[%s4090 + $0x160] sm:$0xff]
    %v4136 = vld [vmem:[%s4090 + $0x168] sm:$0xff]
    %v4137 = vld [vmem:[%s4090 + $0x170] sm:$0xff]
    %v4138 = vld [vmem:[%s4090 + $0x178] sm:$0xff]
    %v4139 = vld [vmem:[%s4090 + $0x180] sm:$0xff]
    %v4140 = vld [vmem:[%s4090 + $0x188] sm:$0xff]
    %v4141 = vld [vmem:[%s4090 + $0x190] sm:$0xff]
    %v4142 = vld [vmem:[%s4090 + $0x198] sm:$0xff]
    %v4143 = vld [vmem:[%s4090 + $0x1a0] sm:$0xff]
    %v4144 = vld [vmem:[%s4090 + $0x1a8] sm:$0xff]
    %v4145 = vld [vmem:[%s4090 + $0x1b0] sm:$0xff]
    %v4146 = vld [vmem:[%s4090 + $0x1b8] sm:$0xff]
    %v4147 = vld [vmem:[%s4090 + $0x1c0] sm:$0xff]
    %v4148 = vld [vmem:[%s4090 + $0x1c8] sm:$0xff]
    %v4149 = vld [vmem:[%s4090 + $0x1d0] sm:$0xff]
    %v4150 = vld [vmem:[%s4090 + $0x1d8] sm:$0xff]
    %v4151 = vld [vmem:[%s4090 + $0x1e0] sm:$0xff]
    %v4152 = vld [vmem:[%s4090 + $0x1e8] sm:$0xff]
    %v4153 = vld [vmem:[%s4090 + $0x1f0] sm:$0xff]
    %v4154 = vld [vmem:[%s4090 + $0x1f8] sm:$0xff]
    %v4155 = vld [vmem:[%s4090 + $0x200] sm:$0xff]
    %v4156 = vld [vmem:[%s4090 + $0x208] sm:$0xff]
    %v4157 = vld [vmem:[%s4090 + $0x210] sm:$0xff]
    %v4158 = vld [vmem:[%s4090 + $0x218] sm:$0xff]
    %v4159 = vld [vmem:[%s4090 + $0x220] sm:$0xff]
    %v4160 = vld [vmem:[%s4090 + $0x228] sm:$0xff]
    %v4161 = vld [vmem:[%s4090 + $0x230] sm:$0xff]
    %v4162 = vld [vmem:[%s4090 + $0x238] sm:$0xff]
    %v4235 = vunpack.c.l.b16 %v4091
    %v4236 = vunpack.c.h.b16 %v4091
    %v4237 = vunpack.c.l.b16 %v4092
    %v4238 = vunpack.c.h.b16 %v4092
    %v4239 = vunpack.c.l.b16 %v4093
    %v4240 = vunpack.c.h.b16 %v4093
    %v4241 = vunpack.c.l.b16 %v4094
    %v4242 = vunpack.c.h.b16 %v4094
    %v4243 = vunpack.c.l.b16 %v4095
    %v4244 = vunpack.c.h.b16 %v4095
    %v4245 = vunpack.c.l.b16 %v4096
    %v4246 = vunpack.c.h.b16 %v4096
    %v4247 = vunpack.c.l.b16 %v4097
    %v4248 = vunpack.c.h.b16 %v4097
    %v4249 = vunpack.c.l.b16 %v4098
    %v4250 = vunpack.c.h.b16 %v4098
    %v4251 = vunpack.c.l.b16 %v4099
    %v4252 = vunpack.c.h.b16 %v4099
    %v4253 = vunpack.c.l.b16 %v4100
    %v4254 = vunpack.c.h.b16 %v4100
    %v4255 = vunpack.c.l.b16 %v4101
    %v4256 = vunpack.c.h.b16 %v4101
    %v4257 = vunpack.c.l.b16 %v4102
    %v4258 = vunpack.c.h.b16 %v4102
    %v4259 = vunpack.c.l.b16 %v4103
    %v4260 = vunpack.c.h.b16 %v4103
    %v4261 = vunpack.c.l.b16 %v4104
    %v4262 = vunpack.c.h.b16 %v4104
    %v4263 = vunpack.c.l.b16 %v4105
    %v4264 = vunpack.c.h.b16 %v4105
    %v4265 = vunpack.c.l.b16 %v4106
    %v4266 = vunpack.c.h.b16 %v4106
    %v4267 = vunpack.c.l.b16 %v4107
    %v4268 = vunpack.c.h.b16 %v4107
    %v4269 = vunpack.c.l.b16 %v4108
    %v4270 = vunpack.c.h.b16 %v4108
    %v4271 = vunpack.c.l.b16 %v4109
    %v4272 = vunpack.c.h.b16 %v4109
    %v4273 = vunpack.c.l.b16 %v4110
    %v4274 = vunpack.c.h.b16 %v4110
    %v4275 = vunpack.c.l.b16 %v4111
    %v4276 = vunpack.c.h.b16 %v4111
    %v4277 = vunpack.c.l.b16 %v4112
    %v4278 = vunpack.c.h.b16 %v4112
    %v4279 = vunpack.c.l.b16 %v4113
    %v4280 = vunpack.c.h.b16 %v4113
    %v4281 = vunpack.c.l.b16 %v4114
    %v4282 = vunpack.c.h.b16 %v4114
    %v4283 = vunpack.c.l.b16 %v4115
    %v4284 = vunpack.c.h.b16 %v4115
    %v4285 = vunpack.c.l.b16 %v4116
    %v4286 = vunpack.c.h.b16 %v4116
    %v4287 = vunpack.c.l.b16 %v4117
    %v4288 = vunpack.c.h.b16 %v4117
    %v4289 = vunpack.c.l.b16 %v4118
    %v4290 = vunpack.c.h.b16 %v4118
    %v4291 = vunpack.c.l.b16 %v4119
    %v4292 = vunpack.c.h.b16 %v4119
    %v4293 = vunpack.c.l.b16 %v4120
    %v4294 = vunpack.c.h.b16 %v4120
    %v4295 = vunpack.c.l.b16 %v4121
    %v4296 = vunpack.c.h.b16 %v4121
    %v4297 = vunpack.c.l.b16 %v4122
    %v4298 = vunpack.c.h.b16 %v4122
    %v4299 = vunpack.c.l.b16 %v4123
    %v4300 = vunpack.c.h.b16 %v4123
    %v4301 = vunpack.c.l.b16 %v4124
    %v4302 = vunpack.c.h.b16 %v4124
    %v4303 = vunpack.c.l.b16 %v4125
    %v4304 = vunpack.c.h.b16 %v4125
    %v4305 = vunpack.c.l.b16 %v4126
    %v4306 = vunpack.c.h.b16 %v4126
    %v4307 = vunpack.c.l.b16 %v4127
    %v4308 = vunpack.c.h.b16 %v4127
    %v4309 = vunpack.c.l.b16 %v4128
    %v4310 = vunpack.c.h.b16 %v4128
    %v4311 = vunpack.c.l.b16 %v4129
    %v4312 = vunpack.c.h.b16 %v4129
    %v4313 = vunpack.c.l.b16 %v4130
    %v4314 = vunpack.c.h.b16 %v4130
    %v4315 = vunpack.c.l.b16 %v4131
    %v4316 = vunpack.c.h.b16 %v4131
    %v4317 = vunpack.c.l.b16 %v4132
    %v4318 = vunpack.c.h.b16 %v4132
    %v4319 = vunpack.c.l.b16 %v4133
    %v4320 = vunpack.c.h.b16 %v4133
    %v4321 = vunpack.c.l.b16 %v4134
    %v4322 = vunpack.c.h.b16 %v4134
    %v4323 = vunpack.c.l.b16 %v4135
    %v4324 = vunpack.c.h.b16 %v4135
    %v4325 = vunpack.c.l.b16 %v4136
    %v4326 = vunpack.c.h.b16 %v4136
    %v4327 = vunpack.c.l.b16 %v4137
    %v4328 = vunpack.c.h.b16 %v4137
    %v4329 = vunpack.c.l.b16 %v4138
    %v4330 = vunpack.c.h.b16 %v4138
    %v4331 = vunpack.c.l.b16 %v4139
    %v4332 = vunpack.c.h.b16 %v4139
    %v4333 = vunpack.c.l.b16 %v4140
    %v4334 = vunpack.c.h.b16 %v4140
    %v4335 = vunpack.c.l.b16 %v4141
    %v4336 = vunpack.c.h.b16 %v4141
    %v4337 = vunpack.c.l.b16 %v4142
    %v4338 = vunpack.c.h.b16 %v4142
    %v4339 = vunpack.c.l.b16 %v4143
    %v4340 = vunpack.c.h.b16 %v4143
    %v4341 = vunpack.c.l.b16 %v4144
    %v4342 = vunpack.c.h.b16 %v4144
    %v4343 = vunpack.c.l.b16 %v4145
    %v4344 = vunpack.c.h.b16 %v4145
    %v4345 = vunpack.c.l.b16 %v4146
    %v4346 = vunpack.c.h.b16 %v4146
    %v4347 = vunpack.c.l.b16 %v4147
    %v4348 = vunpack.c.h.b16 %v4147
    %v4349 = vunpack.c.l.b16 %v4148
    %v4350 = vunpack.c.h.b16 %v4148
    %v4351 = vunpack.c.l.b16 %v4149
    %v4352 = vunpack.c.h.b16 %v4149
    %v4353 = vunpack.c.l.b16 %v4150
    %v4354 = vunpack.c.h.b16 %v4150
    %v4355 = vunpack.c.l.b16 %v4151
    %v4356 = vunpack.c.h.b16 %v4151
    %v4357 = vunpack.c.l.b16 %v4152
    %v4358 = vunpack.c.h.b16 %v4152
    %v4359 = vunpack.c.l.b16 %v4153
    %v4360 = vunpack.c.h.b16 %v4153
    %v4361 = vunpack.c.l.b16 %v4154
    %v4362 = vunpack.c.h.b16 %v4154
    %v4363 = vunpack.c.l.b16 %v4155
    %v4364 = vunpack.c.h.b16 %v4155
    %v4365 = vunpack.c.l.b16 %v4156
    %v4366 = vunpack.c.h.b16 %v4156
    %v4367 = vunpack.c.l.b16 %v4157
    %v4368 = vunpack.c.h.b16 %v4157
    %v4369 = vunpack.c.l.b16 %v4158
    %v4370 = vunpack.c.h.b16 %v4158
    %v4371 = vunpack.c.l.b16 %v4159
    %v4372 = vunpack.c.h.b16 %v4159
    %v4373 = vunpack.c.l.b16 %v4160
    %v4374 = vunpack.c.h.b16 %v4160
    %v4375 = vunpack.c.l.b16 %v4161
    %v4376 = vunpack.c.h.b16 %v4161
    %v4377 = vunpack.c.l.b16 %v4162
    %v4378 = vunpack.c.h.b16 %v4162
    %v4379 = vpack.c.b16 %v4237, %v4235
    %v4380 = vpack.c.b16 %v4238, %v4236
    %v4381 = vpack.c.b16 %v4241, %v4239
    %v4382 = vpack.c.b16 %v4242, %v4240
    %v4383 = vpack.c.b16 %v4245, %v4243
    %v4384 = vpack.c.b16 %v4246, %v4244
    %v4385 = vpack.c.b16 %v4249, %v4247
    %v4386 = vpack.c.b16 %v4250, %v4248
    %v4387 = vpack.c.b16 %v4253, %v4251
    %v4388 = vpack.c.b16 %v4254, %v4252
    %v4389 = vpack.c.b16 %v4257, %v4255
    %v4390 = vpack.c.b16 %v4258, %v4256
    %v4391 = vpack.c.b16 %v4261, %v4259
    %v4392 = vpack.c.b16 %v4262, %v4260
    %v4393 = vpack.c.b16 %v4265, %v4263
    %v4394 = vpack.c.b16 %v4266, %v4264
    %v4395 = vpack.c.b16 %v4269, %v4267
    %v4396 = vpack.c.b16 %v4270, %v4268
    %v4397 = vpack.c.b16 %v4273, %v4271
    %v4398 = vpack.c.b16 %v4274, %v4272
    %v4399 = vpack.c.b16 %v4277, %v4275
    %v4400 = vpack.c.b16 %v4278, %v4276
    %v4401 = vpack.c.b16 %v4281, %v4279
    %v4402 = vpack.c.b16 %v4282, %v4280
    %v4403 = vpack.c.b16 %v4285, %v4283
    %v4404 = vpack.c.b16 %v4286, %v4284
    %v4405 = vpack.c.b16 %v4289, %v4287
    %v4406 = vpack.c.b16 %v4290, %v4288
    %v4407 = vpack.c.b16 %v4293, %v4291
    %v4408 = vpack.c.b16 %v4294, %v4292
    %v4409 = vpack.c.b16 %v4297, %v4295
    %v4410 = vpack.c.b16 %v4298, %v4296
    %v4411 = vpack.c.b16 %v4301, %v4299
    %v4412 = vpack.c.b16 %v4302, %v4300
    %v4413 = vpack.c.b16 %v4305, %v4303
    %v4414 = vpack.c.b16 %v4306, %v4304
    %v4415 = vpack.c.b16 %v4309, %v4307
    %v4416 = vpack.c.b16 %v4310, %v4308
    %v4417 = vpack.c.b16 %v4313, %v4311
    %v4418 = vpack.c.b16 %v4314, %v4312
    %v4419 = vpack.c.b16 %v4317, %v4315
    %v4420 = vpack.c.b16 %v4318, %v4316
    %v4421 = vpack.c.b16 %v4321, %v4319
    %v4422 = vpack.c.b16 %v4322, %v4320
    %v4423 = vpack.c.b16 %v4325, %v4323
    %v4424 = vpack.c.b16 %v4326, %v4324
    %v4425 = vpack.c.b16 %v4329, %v4327
    %v4426 = vpack.c.b16 %v4330, %v4328
    %v4427 = vpack.c.b16 %v4333, %v4331
    %v4428 = vpack.c.b16 %v4334, %v4332
    %v4429 = vpack.c.b16 %v4337, %v4335
    %v4430 = vpack.c.b16 %v4338, %v4336
    %v4431 = vpack.c.b16 %v4341, %v4339
    %v4432 = vpack.c.b16 %v4342, %v4340
    %v4433 = vpack.c.b16 %v4345, %v4343
    %v4434 = vpack.c.b16 %v4346, %v4344
    %v4435 = vpack.c.b16 %v4349, %v4347
    %v4436 = vpack.c.b16 %v4350, %v4348
    %v4437 = vpack.c.b16 %v4353, %v4351
    %v4438 = vpack.c.b16 %v4354, %v4352
    %v4439 = vpack.c.b16 %v4357, %v4355
    %v4440 = vpack.c.b16 %v4358, %v4356
    %v4441 = vpack.c.b16 %v4361, %v4359
    %v4442 = vpack.c.b16 %v4362, %v4360
    %v4443 = vpack.c.b16 %v4365, %v4363
    %v4444 = vpack.c.b16 %v4366, %v4364
    %v4445 = vpack.c.b16 %v4369, %v4367
    %v4446 = vpack.c.b16 %v4370, %v4368
    %v4447 = vpack.c.b16 %v4373, %v4371
    %v4448 = vpack.c.b16 %v4374, %v4372
    %v4449 = vpack.c.b16 %v4377, %v4375
    %v4450 = vpack.c.b16 %v4378, %v4376
    %v4524 = vsel %vm804, %v3997, 0
    %4526 = vmatprep.subr.bf16.mxu0 %v4380
    %4527 = vmatpush1.bf16.msra.mxu0 %v4379
    %4528 = vmatprep.subr.bf16.mxu0 %v4382
    %4529 = vmatpush1.bf16.msra.mxu0 %v4381
    %4530 = vmatprep.subr.bf16.mxu0 %v4384
    %4531 = vmatpush1.bf16.msra.mxu0 %v4383
    %4532 = vmatprep.subr.bf16.mxu0 %v4386
    %4533 = vmatpush1.bf16.msra.mxu0 %v4385
    %4534 = vmatprep.subr.bf16.mxu0 %v4388
    %4535 = vmatpush1.bf16.msra.mxu0 %v4387
    %4536 = vmatprep.subr.bf16.mxu0 %v4390
    %4537 = vmatpush1.bf16.msra.mxu0 %v4389
    %4538 = vmatprep.subr.bf16.mxu0 %v4392
    %4539 = vmatpush1.bf16.msra.mxu0 %v4391
    %4540 = vmatprep.subr.bf16.mxu0 %v4394
    %4541 = vmatpush1.bf16.msra.mxu0 %v4393
    %4542 = vmatprep.subr.bf16.mxu0 %v4396
    %4543 = vmatpush1.bf16.msra.mxu0 %v4395
    %4544 = vmatprep.subr.bf16.mxu0 %v4398
    %4545 = vmatpush1.bf16.msra.mxu0 %v4397
    %4546 = vmatprep.subr.bf16.mxu0 %v4400
    %4547 = vmatpush1.bf16.msra.mxu0 %v4399
    %4548 = vmatprep.subr.bf16.mxu0 %v4402
    %4549 = vmatpush1.bf16.msra.mxu0 %v4401
    %4550 = vmatprep.subr.bf16.mxu0 %v4404
    %4551 = vmatpush1.bf16.msra.mxu0 %v4403
    %4552 = vmatprep.subr.bf16.mxu0 %v4406
    %4553 = vmatpush1.bf16.msra.mxu0 %v4405
    %4554 = vmatprep.subr.bf16.mxu0 %v4408
    %4555 = vmatpush1.bf16.msra.mxu0 %v4407
    %4556 = vmatprep.subr.bf16.mxu0 %v4410
    %4557 = vmatpush1.bf16.msra.mxu0 %v4409
    %4558 = vmatprep.mubr.bf16.mxu0 %v3994
    %4559 = vmatmul.mubr.bf16.gmra.mrb[0].mxu0 %v3993
    %v4560 = vpop.f32.mrb[0].mxu0
    %v4561 = vadd.f32 0.0, %v4560
    %v4562 = vpop.f32.mrb[0].mxu0
    %v4563 = vadd.f32 0.0, %v4562
    %v4564 = vpop.f32.mrb[0].mxu0
    %v4565 = vadd.f32 0.0, %v4564
    %v4566 = vpop.f32.mrb[0].mxu0
    %v4567 = vadd.f32 0.0, %v4566
    %4568 = vdwg.mxu0
    %4569 = vmatprep.subr.bf16.mxu0 %v4412
    %4570 = vmatpush1.bf16.msra.mxu0 %v4411
    %4571 = vmatprep.subr.bf16.mxu0 %v4414
    %4572 = vmatpush1.bf16.msra.mxu0 %v4413
    %4573 = vmatprep.subr.bf16.mxu0 %v4416
    %4574 = vmatpush1.bf16.msra.mxu0 %v4415
    %4575 = vmatprep.subr.bf16.mxu0 %v4418
    %4576 = vmatpush1.bf16.msra.mxu0 %v4417
    %4577 = vmatprep.subr.bf16.mxu0 %v4420
    %4578 = vmatpush1.bf16.msra.mxu0 %v4419
    %4579 = vmatprep.subr.bf16.mxu0 %v4422
    %4580 = vmatpush1.bf16.msra.mxu0 %v4421
    %4581 = vmatprep.subr.bf16.mxu0 %v4424
    %4582 = vmatpush1.bf16.msra.mxu0 %v4423
    %4583 = vmatprep.subr.bf16.mxu0 %v4426
    %4584 = vmatpush1.bf16.msra.mxu0 %v4425
    %4585 = vmatprep.subr.bf16.mxu0 %v4428
    %4586 = vmatpush1.bf16.msra.mxu0 %v4427
    %4587 = vmatprep.subr.bf16.mxu0 %v4430
    %4588 = vmatpush1.bf16.msra.mxu0 %v4429
    %4589 = vmatprep.subr.bf16.mxu0 %v4432
    %4590 = vmatpush1.bf16.msra.mxu0 %v4431
    %4591 = vmatprep.subr.bf16.mxu0 %v4434
    %4592 = vmatpush1.bf16.msra.mxu0 %v4433
    %4593 = vmatprep.subr.bf16.mxu0 %v4436
    %4594 = vmatpush1.bf16.msra.mxu0 %v4435
    %4595 = vmatprep.subr.bf16.mxu0 %v4438
    %4596 = vmatpush1.bf16.msra.mxu0 %v4437
    %4597 = vmatprep.subr.bf16.mxu0 %v4440
    %4598 = vmatpush1.bf16.msra.mxu0 %v4439
    %4599 = vmatprep.subr.bf16.mxu0 %v4442
    %4600 = vmatpush1.bf16.msra.mxu0 %v4441
    %4601 = vmatprep.mubr.bf16.mxu0 %v3996
    %4602 = vmatmul.mubr.bf16.gmra.mrb[0].mxu0 %v3995
    %v4603 = vpop.f32.mrb[0].mxu0
    %v4604 = vadd.f32 %v4561, %v4603
    %v4605 = vpop.f32.mrb[0].mxu0
    %v4606 = vadd.f32 %v4563, %v4605
    %v4607 = vpop.f32.mrb[0].mxu0
    %v4608 = vadd.f32 %v4565, %v4607
    %v4609 = vpop.f32.mrb[0].mxu0
    %v4610 = vadd.f32 %v4567, %v4609
    %4611 = vdwg.mxu0
    %4612 = vmatprep.subr.bf16.mxu0 %v4444
    %4613 = vmatpush1.bf16.msra.mxu0 %v4443
    %4614 = vmatprep.subr.bf16.mxu0 %v4446
    %4615 = vmatpush1.bf16.msra.mxu0 %v4445
    %4616 = vmatprep.subr.bf16.mxu0 %v4448
    %4617 = vmatpush1.bf16.msra.mxu0 %v4447
    %4618 = vmatprep.subr.bf16.mxu0 %v4450
    %4619 = vmatpush1.bf16.msra.mxu0 %v4449
    %4620 = vmatprep.subr.bf16.mxu0 0
    %4621 = vmatpush1.bf16.msra.mxu0 0
    %4622 = vmatprep.subr.bf16.mxu0 0
    %4623 = vmatpush1.bf16.msra.mxu0 0
    %4624 = vmatprep.subr.bf16.mxu0 0
    %4625 = vmatpush1.bf16.msra.mxu0 0
    %4626 = vmatprep.subr.bf16.mxu0 0
    %4627 = vmatpush1.bf16.msra.mxu0 0
    %4628 = vmatprep.subr.bf16.mxu0 0
    %4629 = vmatpush1.bf16.msra.mxu0 0
    %4630 = vmatprep.subr.bf16.mxu0 0
    %4631 = vmatpush1.bf16.msra.mxu0 0
    %4632 = vmatprep.subr.bf16.mxu0 0
    %4633 = vmatpush1.bf16.msra.mxu0 0
    %4634 = vmatprep.subr.bf16.mxu0 0
    %4635 = vmatpush1.bf16.msra.mxu0 0
    %4636 = vmatprep.subr.bf16.mxu0 0
    %4637 = vmatpush1.bf16.msra.mxu0 0
    %4638 = vmatprep.subr.bf16.mxu0 0
    %4639 = vmatpush1.bf16.msra.mxu0 0
    %4640 = vmatprep.subr.bf16.mxu0 0
    %4641 = vmatpush1.bf16.msra.mxu0 0
    %4642 = vmatprep.subr.bf16.mxu0 0
    %4643 = vmatpush1.bf16.msra.mxu0 0
    %4644 = vmatprep.mubr.bf16.mxu0 0
    %4645 = vmatmul.mubr.bf16.gmra.mrb[0].mxu0 %v4524
    %v4646 = vpop.f32.mrb[0].mxu0
    %v4647 = vadd.f32 %v4604, %v4646
    %v4648 = vpop.f32.mrb[0].mxu0
    %v4649 = vadd.f32 %v4606, %v4648
    %v4650 = vpop.f32.mrb[0].mxu0
    %v4651 = vadd.f32 %v4608, %v4650
    %v4652 = vpop.f32.mrb[0].mxu0
    %v4653 = vadd.f32 %v4610, %v4652
    %4654 = vdwg.mxu0
    %v4727 = vunpack.c.l.b16 %v4018
    %v4728 = vunpack.c.h.b16 %v4018
    %v4729 = vunpack.c.l.b16 %v4019
    %v4730 = vunpack.c.h.b16 %v4019
    %v4731 = vunpack.c.l.b16 %v4020
    %v4732 = vunpack.c.h.b16 %v4020
    %v4733 = vunpack.c.l.b16 %v4021
    %v4734 = vunpack.c.h.b16 %v4021
    %v4735 = vunpack.c.l.b16 %v4022
    %v4736 = vunpack.c.h.b16 %v4022
    %v4737 = vunpack.c.l.b16 %v4023
    %v4738 = vunpack.c.h.b16 %v4023
    %v4739 = vunpack.c.l.b16 %v4024
    %v4740 = vunpack.c.h.b16 %v4024
    %v4741 = vunpack.c.l.b16 %v4025
    %v4742 = vunpack.c.h.b16 %v4025
    %v4743 = vunpack.c.l.b16 %v4026
    %v4744 = vunpack.c.h.b16 %v4026
    %v4745 = vunpack.c.l.b16 %v4027
    %v4746 = vunpack.c.h.b16 %v4027
    %v4747 = vunpack.c.l.b16 %v4028
    %v4748 = vunpack.c.h.b16 %v4028
    %v4749 = vunpack.c.l.b16 %v4029
    %v4750 = vunpack.c.h.b16 %v4029
    %v4751 = vunpack.c.l.b16 %v4030
    %v4752 = vunpack.c.h.b16 %v4030
    %v4753 = vunpack.c.l.b16 %v4031
    %v4754 = vunpack.c.h.b16 %v4031
    %v4755 = vunpack.c.l.b16 %v4032
    %v4756 = vunpack.c.h.b16 %v4032
    %v4757 = vunpack.c.l.b16 %v4033
    %v4758 = vunpack.c.h.b16 %v4033
    %v4759 = vunpack.c.l.b16 %v4034
    %v4760 = vunpack.c.h.b16 %v4034
    %v4761 = vunpack.c.l.b16 %v4035
    %v4762 = vunpack.c.h.b16 %v4035
    %v4763 = vunpack.c.l.b16 %v4036
    %v4764 = vunpack.c.h.b16 %v4036
    %v4765 = vunpack.c.l.b16 %v4037
    %v4766 = vunpack.c.h.b16 %v4037
    %v4767 = vunpack.c.l.b16 %v4038
    %v4768 = vunpack.c.h.b16 %v4038
    %v4769 = vunpack.c.l.b16 %v4039
    %v4770 = vunpack.c.h.b16 %v4039
    %v4771 = vunpack.c.l.b16 %v4040
    %v4772 = vunpack.c.h.b16 %v4040
    %v4773 = vunpack.c.l.b16 %v4041
    %v4774 = vunpack.c.h.b16 %v4041
    %v4775 = vunpack.c.l.b16 %v4042
    %v4776 = vunpack.c.h.b16 %v4042
    %v4777 = vunpack.c.l.b16 %v4043
    %v4778 = vunpack.c.h.b16 %v4043
    %v4779 = vunpack.c.l.b16 %v4044
    %v4780 = vunpack.c.h.b16 %v4044
    %v4781 = vunpack.c.l.b16 %v4045
    %v4782 = vunpack.c.h.b16 %v4045
    %v4783 = vunpack.c.l.b16 %v4046
    %v4784 = vunpack.c.h.b16 %v4046
    %v4785 = vunpack.c.l.b16 %v4047
    %v4786 = vunpack.c.h.b16 %v4047
    %v4787 = vunpack.c.l.b16 %v4048
    %v4788 = vunpack.c.h.b16 %v4048
    %v4789 = vunpack.c.l.b16 %v4049
    %v4790 = vunpack.c.h.b16 %v4049
    %v4791 = vunpack.c.l.b16 %v4050
    %v4792 = vunpack.c.h.b16 %v4050
    %v4793 = vunpack.c.l.b16 %v4051
    %v4794 = vunpack.c.h.b16 %v4051
    %v4795 = vunpack.c.l.b16 %v4052
    %v4796 = vunpack.c.h.b16 %v4052
    %v4797 = vunpack.c.l.b16 %v4053
    %v4798 = vunpack.c.h.b16 %v4053
    %v4799 = vunpack.c.l.b16 %v4054
    %v4800 = vunpack.c.h.b16 %v4054
    %v4801 = vunpack.c.l.b16 %v4055
    %v4802 = vunpack.c.h.b16 %v4055
    %v4803 = vunpack.c.l.b16 %v4056
    %v4804 = vunpack.c.h.b16 %v4056
    %v4805 = vunpack.c.l.b16 %v4057
    %v4806 = vunpack.c.h.b16 %v4057
    %v4807 = vunpack.c.l.b16 %v4058
    %v4808 = vunpack.c.h.b16 %v4058
    %v4809 = vunpack.c.l.b16 %v4059
    %v4810 = vunpack.c.h.b16 %v4059
    %v4811 = vunpack.c.l.b16 %v4060
    %v4812 = vunpack.c.h.b16 %v4060
    %v4813 = vunpack.c.l.b16 %v4061
    %v4814 = vunpack.c.h.b16 %v4061
    %v4815 = vunpack.c.l.b16 %v4062
    %v4816 = vunpack.c.h.b16 %v4062
    %v4817 = vunpack.c.l.b16 %v4063
    %v4818 = vunpack.c.h.b16 %v4063
    %v4819 = vunpack.c.l.b16 %v4064
    %v4820 = vunpack.c.h.b16 %v4064
    %v4821 = vunpack.c.l.b16 %v4065
    %v4822 = vunpack.c.h.b16 %v4065
    %v4823 = vunpack.c.l.b16 %v4066
    %v4824 = vunpack.c.h.b16 %v4066
    %v4825 = vunpack.c.l.b16 %v4067
    %v4826 = vunpack.c.h.b16 %v4067
    %v4827 = vunpack.c.l.b16 %v4068
    %v4828 = vunpack.c.h.b16 %v4068
    %v4829 = vunpack.c.l.b16 %v4069
    %v4830 = vunpack.c.h.b16 %v4069
    %v4831 = vunpack.c.l.b16 %v4070
    %v4832 = vunpack.c.h.b16 %v4070
    %v4833 = vunpack.c.l.b16 %v4071
    %v4834 = vunpack.c.h.b16 %v4071
    %v4835 = vunpack.c.l.b16 %v4072
    %v4836 = vunpack.c.h.b16 %v4072
    %v4837 = vunpack.c.l.b16 %v4073
    %v4838 = vunpack.c.h.b16 %v4073
    %v4839 = vunpack.c.l.b16 %v4074
    %v4840 = vunpack.c.h.b16 %v4074
    %v4841 = vunpack.c.l.b16 %v4075
    %v4842 = vunpack.c.h.b16 %v4075
    %v4843 = vunpack.c.l.b16 %v4076
    %v4844 = vunpack.c.h.b16 %v4076
    %v4845 = vunpack.c.l.b16 %v4077
    %v4846 = vunpack.c.h.b16 %v4077
    %v4847 = vunpack.c.l.b16 %v4078
    %v4848 = vunpack.c.h.b16 %v4078
    %v4849 = vunpack.c.l.b16 %v4079
    %v4850 = vunpack.c.h.b16 %v4079
    %v4851 = vunpack.c.l.b16 %v4080
    %v4852 = vunpack.c.h.b16 %v4080
    %v4853 = vunpack.c.l.b16 %v4081
    %v4854 = vunpack.c.h.b16 %v4081
    %v4855 = vunpack.c.l.b16 %v4082
    %v4856 = vunpack.c.h.b16 %v4082
    %v4857 = vunpack.c.l.b16 %v4083
    %v4858 = vunpack.c.h.b16 %v4083
    %v4859 = vunpack.c.l.b16 %v4084
    %v4860 = vunpack.c.h.b16 %v4084
    %v4861 = vunpack.c.l.b16 %v4085
    %v4862 = vunpack.c.h.b16 %v4085
    %v4863 = vunpack.c.l.b16 %v4086
    %v4864 = vunpack.c.h.b16 %v4086
    %v4865 = vunpack.c.l.b16 %v4087
    %v4866 = vunpack.c.h.b16 %v4087
    %v4867 = vunpack.c.l.b16 %v4088
    %v4868 = vunpack.c.h.b16 %v4088
    %v4869 = vunpack.c.l.b16 %v4089
    %v4870 = vunpack.c.h.b16 %v4089
    %v4871 = vpack.c.b16 %v4729, %v4727
    %v4872 = vpack.c.b16 %v4730, %v4728
    %v4873 = vpack.c.b16 %v4733, %v4731
    %v4874 = vpack.c.b16 %v4734, %v4732
    %v4875 = vpack.c.b16 %v4737, %v4735
    %v4876 = vpack.c.b16 %v4738, %v4736
    %v4877 = vpack.c.b16 %v4741, %v4739
    %v4878 = vpack.c.b16 %v4742, %v4740
    %v4879 = vpack.c.b16 %v4745, %v4743
    %v4880 = vpack.c.b16 %v4746, %v4744
    %v4881 = vpack.c.b16 %v4749, %v4747
    %v4882 = vpack.c.b16 %v4750, %v4748
    %v4883 = vpack.c.b16 %v4753, %v4751
    %v4884 = vpack.c.b16 %v4754, %v4752
    %v4885 = vpack.c.b16 %v4757, %v4755
    %v4886 = vpack.c.b16 %v4758, %v4756
    %v4887 = vpack.c.b16 %v4761, %v4759
    %v4888 = vpack.c.b16 %v4762, %v4760
    %v4889 = vpack.c.b16 %v4765, %v4763
    %v4890 = vpack.c.b16 %v4766, %v4764
    %v4891 = vpack.c.b16 %v4769, %v4767
    %v4892 = vpack.c.b16 %v4770, %v4768
    %v4893 = vpack.c.b16 %v4773, %v4771
    %v4894 = vpack.c.b16 %v4774, %v4772
    %v4895 = vpack.c.b16 %v4777, %v4775
    %v4896 = vpack.c.b16 %v4778, %v4776
    %v4897 = vpack.c.b16 %v4781, %v4779
    %v4898 = vpack.c.b16 %v4782, %v4780
    %v4899 = vpack.c.b16 %v4785, %v4783
    %v4900 = vpack.c.b16 %v4786, %v4784
    %v4901 = vpack.c.b16 %v4789, %v4787
    %v4902 = vpack.c.b16 %v4790, %v4788
    %v4903 = vpack.c.b16 %v4793, %v4791
    %v4904 = vpack.c.b16 %v4794, %v4792
    %v4905 = vpack.c.b16 %v4797, %v4795
    %v4906 = vpack.c.b16 %v4798, %v4796
    %v4907 = vpack.c.b16 %v4801, %v4799
    %v4908 = vpack.c.b16 %v4802, %v4800
    %v4909 = vpack.c.b16 %v4805, %v4803
    %v4910 = vpack.c.b16 %v4806, %v4804
    %v4911 = vpack.c.b16 %v4809, %v4807
    %v4912 = vpack.c.b16 %v4810, %v4808
    %v4913 = vpack.c.b16 %v4813, %v4811
    %v4914 = vpack.c.b16 %v4814, %v4812
    %v4915 = vpack.c.b16 %v4817, %v4815
    %v4916 = vpack.c.b16 %v4818, %v4816
    %v4917 = vpack.c.b16 %v4821, %v4819
    %v4918 = vpack.c.b16 %v4822, %v4820
    %v4919 = vpack.c.b16 %v4825, %v4823
    %v4920 = vpack.c.b16 %v4826, %v4824
    %v4921 = vpack.c.b16 %v4829, %v4827
    %v4922 = vpack.c.b16 %v4830, %v4828
    %v4923 = vpack.c.b16 %v4833, %v4831
    %v4924 = vpack.c.b16 %v4834, %v4832
    %v4925 = vpack.c.b16 %v4837, %v4835
    %v4926 = vpack.c.b16 %v4838, %v4836
    %v4927 = vpack.c.b16 %v4841, %v4839
    %v4928 = vpack.c.b16 %v4842, %v4840
    %v4929 = vpack.c.b16 %v4845, %v4843
    %v4930 = vpack.c.b16 %v4846, %v4844
    %v4931 = vpack.c.b16 %v4849, %v4847
    %v4932 = vpack.c.b16 %v4850, %v4848
    %v4933 = vpack.c.b16 %v4853, %v4851
    %v4934 = vpack.c.b16 %v4854, %v4852
    %v4935 = vpack.c.b16 %v4857, %v4855
    %v4936 = vpack.c.b16 %v4858, %v4856
    %v4937 = vpack.c.b16 %v4861, %v4859
    %v4938 = vpack.c.b16 %v4862, %v4860
    %v4939 = vpack.c.b16 %v4865, %v4863
    %v4940 = vpack.c.b16 %v4866, %v4864
    %v4941 = vpack.c.b16 %v4869, %v4867
    %v4942 = vpack.c.b16 %v4870, %v4868
    %v5016 = vsel %vm804, %v3992, 0
    %5018 = vmatprep.subr.bf16.mxu0 %v4872
    %5019 = vmatpush1.bf16.msra.mxu0 %v4871
    %5020 = vmatprep.subr.bf16.mxu0 %v4874
    %5021 = vmatpush1.bf16.msra.mxu0 %v4873
    %5022 = vmatprep.subr.bf16.mxu0 %v4876
    %5023 = vmatpush1.bf16.msra.mxu0 %v4875
    %5024 = vmatprep.subr.bf16.mxu0 %v4878
    %5025 = vmatpush1.bf16.msra.mxu0 %v4877
    %5026 = vmatprep.subr.bf16.mxu0 %v4880
    %5027 = vmatpush1.bf16.msra.mxu0 %v4879
    %5028 = vmatprep.subr.bf16.mxu0 %v4882
    %5029 = vmatpush1.bf16.msra.mxu0 %v4881
    %5030 = vmatprep.subr.bf16.mxu0 %v4884
    %5031 = vmatpush1.bf16.msra.mxu0 %v4883
    %5032 = vmatprep.subr.bf16.mxu0 %v4886
    %5033 = vmatpush1.bf16.msra.mxu0 %v4885
    %5034 = vmatprep.subr.bf16.mxu0 %v4888
    %5035 = vmatpush1.bf16.msra.mxu0 %v4887
    %5036 = vmatprep.subr.bf16.mxu0 %v4890
    %5037 = vmatpush1.bf16.msra.mxu0 %v4889
    %5038 = vmatprep.subr.bf16.mxu0 %v4892
    %5039 = vmatpush1.bf16.msra.mxu0 %v4891
    %5040 = vmatprep.subr.bf16.mxu0 %v4894
    %5041 = vmatpush1.bf16.msra.mxu0 %v4893
    %5042 = vmatprep.subr.bf16.mxu0 %v4896
    %5043 = vmatpush1.bf16.msra.mxu0 %v4895
    %5044 = vmatprep.subr.bf16.mxu0 %v4898
    %5045 = vmatpush1.bf16.msra.mxu0 %v4897
    %5046 = vmatprep.subr.bf16.mxu0 %v4900
    %5047 = vmatpush1.bf16.msra.mxu0 %v4899
    %5048 = vmatprep.subr.bf16.mxu0 %v4902
    %5049 = vmatpush1.bf16.msra.mxu0 %v4901
    %5050 = vmatprep.mubr.bf16.mxu0 %v3989
    %5051 = vmatmul.mubr.bf16.gmra.mrb[0].mxu0 %v3988
    %v5052 = vpop.f32.mrb[0].mxu0
    %v5053 = vadd.f32 %v4647, %v5052
    %v5054 = vpop.f32.mrb[0].mxu0
    %v5055 = vadd.f32 %v4649, %v5054
    %v5056 = vpop.f32.mrb[0].mxu0
    %v5057 = vadd.f32 %v4651, %v5056
    %v5058 = vpop.f32.mrb[0].mxu0
    %v5059 = vadd.f32 %v4653, %v5058
    %5060 = vdwg.mxu0
    %5061 = vmatprep.subr.bf16.mxu0 %v4904
    %5062 = vmatpush1.bf16.msra.mxu0 %v4903
    %5063 = vmatprep.subr.bf16.mxu0 %v4906
    %5064 = vmatpush1.bf16.msra.mxu0 %v4905
    %5065 = vmatprep.subr.bf16.mxu0 %v4908
    %5066 = vmatpush1.bf16.msra.mxu0 %v4907
    %5067 = vmatprep.subr.bf16.mxu0 %v4910
    %5068 = vmatpush1.bf16.msra.mxu0 %v4909
    %5069 = vmatprep.subr.bf16.mxu0 %v4912
    %5070 = vmatpush1.bf16.msra.mxu0 %v4911
    %5071 = vmatprep.subr.bf16.mxu0 %v4914
    %5072 = vmatpush1.bf16.msra.mxu0 %v4913
    %5073 = vmatprep.subr.bf16.mxu0 %v4916
    %5074 = vmatpush1.bf16.msra.mxu0 %v4915
    %5075 = vmatprep.subr.bf16.mxu0 %v4918
    %5076 = vmatpush1.bf16.msra.mxu0 %v4917
    %5077 = vmatprep.subr.bf16.mxu0 %v4920
    %5078 = vmatpush1.bf16.msra.mxu0 %v4919
    %5079 = vmatprep.subr.bf16.mxu0 %v4922
    %5080 = vmatpush1.bf16.msra.mxu0 %v4921
    %5081 = vmatprep.subr.bf16.mxu0 %v4924
    %5082 = vmatpush1.bf16.msra.mxu0 %v4923
    %5083 = vmatprep.subr.bf16.mxu0 %v4926
    %5084 = vmatpush1.bf16.msra.mxu0 %v4925
    %5085 = vmatprep.subr.bf16.mxu0 %v4928
    %5086 = vmatpush1.bf16.msra.mxu0 %v4927
    %5087 = vmatprep.subr.bf16.mxu0 %v4930
    %5088 = vmatpush1.bf16.msra.mxu0 %v4929
    %5089 = vmatprep.subr.bf16.mxu0 %v4932
    %5090 = vmatpush1.bf16.msra.mxu0 %v4931
    %5091 = vmatprep.subr.bf16.mxu0 %v4934
    %5092 = vmatpush1.bf16.msra.mxu0 %v4933
    %5093 = vmatprep.mubr.bf16.mxu0 %v3991
    %5094 = vmatmul.mubr.bf16.gmra.mrb[0].mxu0 %v3990
    %v5095 = vpop.f32.mrb[0].mxu0
    %v5096 = vadd.f32 %v5053, %v5095
    %v5097 = vpop.f32.mrb[0].mxu0
    %v5098 = vadd.f32 %v5055, %v5097
    %v5099 = vpop.f32.mrb[0].mxu0
    %v5100 = vadd.f32 %v5057, %v5099
    %v5101 = vpop.f32.mrb[0].mxu0
    %v5102 = vadd.f32 %v5059, %v5101
    %5103 = vdwg.mxu0
    %5104 = vmatprep.subr.bf16.mxu0 %v4936
    %5105 = vmatpush1.bf16.msra.mxu0 %v4935
    %5106 = vmatprep.subr.bf16.mxu0 %v4938
    %5107 = vmatpush1.bf16.msra.mxu0 %v4937
    %5108 = vmatprep.subr.bf16.mxu0 %v4940
    %5109 = vmatpush1.bf16.msra.mxu0 %v4939
    %5110 = vmatprep.subr.bf16.mxu0 %v4942
    %5111 = vmatpush1.bf16.msra.mxu0 %v4941
    %5112 = vmatprep.subr.bf16.mxu0 0
    %5113 = vmatpush1.bf16.msra.mxu0 0
    %5114 = vmatprep.subr.bf16.mxu0 0
    %5115 = vmatpush1.bf16.msra.mxu0 0
    %5116 = vmatprep.subr.bf16.mxu0 0
    %5117 = vmatpush1.bf16.msra.mxu0 0
    %5118 = vmatprep.subr.bf16.mxu0 0
    %5119 = vmatpush1.bf16.msra.mxu0 0
    %5120 = vmatprep.subr.bf16.mxu0 0
    %5121 = vmatpush1.bf16.msra.mxu0 0
    %5122 = vmatprep.subr.bf16.mxu0 0
    %5123 = vmatpush1.bf16.msra.mxu0 0
    %5124 = vmatprep.subr.bf16.mxu0 0
    %5125 = vmatpush1.bf16.msra.mxu0 0
    %5126 = vmatprep.subr.bf16.mxu0 0
    %5127 = vmatpush1.bf16.msra.mxu0 0
    %5128 = vmatprep.subr.bf16.mxu0 0
    %5129 = vmatpush1.bf16.msra.mxu0 0
    %5130 = vmatprep.subr.bf16.mxu0 0
    %5131 = vmatpush1.bf16.msra.mxu0 0
    %5132 = vmatprep.subr.bf16.mxu0 0
    %5133 = vmatpush1.bf16.msra.mxu0 0
    %5134 = vmatprep.subr.bf16.mxu0 0
    %5135 = vmatpush1.bf16.msra.mxu0 0
    %5136 = vmatprep.mubr.bf16.mxu0 0
    %5137 = vmatmul.mubr.bf16.gmra.mrb[0].mxu0 %v5016
    %v5138 = vpop.f32.mrb[0].mxu0
    %v5139 = vadd.f32 %v5096, %v5138
    %v5140 = vpop.f32.mrb[0].mxu0
    %v5141 = vadd.f32 %v5098, %v5140
    %v5142 = vpop.f32.mrb[0].mxu0
    %v5143 = vadd.f32 %v5100, %v5142
    %v5144 = vpop.f32.mrb[0].mxu0
    %v5145 = vadd.f32 %v5102, %v5144
    %5146 = vdwg.mxu0
    %s5147 = scalar_lea.vmem [#allocation12], 1152
    %v5148 = vld [vmem:[%s5147] sm:$0xff]
    %v5149 = vld [vmem:[%s5147 + $0x8] sm:$0xff]
    %v5150 = vld [vmem:[%s5147 + $0x10] sm:$0xff]
    %v5151 = vld [vmem:[%s5147 + $0x18] sm:$0xff]
    %v5152 = vld [vmem:[%s5147 + $0x20] sm:$0xff]
    %v5153 = vld [vmem:[%s5147 + $0x28] sm:$0xff]
    %v5154 = vld [vmem:[%s5147 + $0x30] sm:$0xff]
    %v5155 = vld [vmem:[%s5147 + $0x38] sm:$0xff]
    %v5156 = vld [vmem:[%s5147 + $0x40] sm:$0xff]
    %v5157 = vld [vmem:[%s5147 + $0x48] sm:$0xff]
    %v5158 = vld [vmem:[%s5147 + $0x50] sm:$0xff]
    %v5159 = vld [vmem:[%s5147 + $0x58] sm:$0xff]
    %v5160 = vld [vmem:[%s5147 + $0x60] sm:$0xff]
    %v5161 = vld [vmem:[%s5147 + $0x68] sm:$0xff]
    %v5162 = vld [vmem:[%s5147 + $0x70] sm:$0xff]
    %v5163 = vld [vmem:[%s5147 + $0x78] sm:$0xff]
    %v5164 = vld [vmem:[%s5147 + $0x80] sm:$0xff]
    %v5165 = vld [vmem:[%s5147 + $0x88] sm:$0xff]
    %v5166 = vld [vmem:[%s5147 + $0x90] sm:$0xff]
    %v5167 = vld [vmem:[%s5147 + $0x98] sm:$0xff]
    %v5168 = vld [vmem:[%s5147 + $0xa0] sm:$0xff]
    %v5169 = vld [vmem:[%s5147 + $0xa8] sm:$0xff]
    %v5170 = vld [vmem:[%s5147 + $0xb0] sm:$0xff]
    %v5171 = vld [vmem:[%s5147 + $0xb8] sm:$0xff]
    %v5172 = vld [vmem:[%s5147 + $0xc0] sm:$0xff]
    %v5173 = vld [vmem:[%s5147 + $0xc8] sm:$0xff]
    %v5174 = vld [vmem:[%s5147 + $0xd0] sm:$0xff]
    %v5175 = vld [vmem:[%s5147 + $0xd8] sm:$0xff]
    %v5176 = vld [vmem:[%s5147 + $0xe0] sm:$0xff]
    %v5177 = vld [vmem:[%s5147 + $0xe8] sm:$0xff]
    %v5178 = vld [vmem:[%s5147 + $0xf0] sm:$0xff]
    %v5179 = vld [vmem:[%s5147 + $0xf8] sm:$0xff]
    %v5180 = vld [vmem:[%s5147 + $0x100] sm:$0xff]
    %v5181 = vld [vmem:[%s5147 + $0x108] sm:$0xff]
    %v5182 = vld [vmem:[%s5147 + $0x110] sm:$0xff]
    %v5183 = vld [vmem:[%s5147 + $0x118] sm:$0xff]
    %v5184 = vld [vmem:[%s5147 + $0x120] sm:$0xff]
    %v5185 = vld [vmem:[%s5147 + $0x128] sm:$0xff]
    %v5186 = vld [vmem:[%s5147 + $0x130] sm:$0xff]
    %v5187 = vld [vmem:[%s5147 + $0x138] sm:$0xff]
    %v5188 = vld [vmem:[%s5147 + $0x140] sm:$0xff]
    %v5189 = vld [vmem:[%s5147 + $0x148] sm:$0xff]
    %v5190 = vld [vmem:[%s5147 + $0x150] sm:$0xff]
    %v5191 = vld [vmem:[%s5147 + $0x158] sm:$0xff]
    %v5192 = vld [vmem:[%s5147 + $0x160] sm:$0xff]
    %v5193 = vld [vmem:[%s5147 + $0x168] sm:$0xff]
    %v5194 = vld [vmem:[%s5147 + $0x170] sm:$0xff]
    %v5195 = vld [vmem:[%s5147 + $0x178] sm:$0xff]
    %v5196 = vld [vmem:[%s5147 + $0x180] sm:$0xff]
    %v5197 = vld [vmem:[%s5147 + $0x188] sm:$0xff]
    %v5198 = vld [vmem:[%s5147 + $0x190] sm:$0xff]
    %v5199 = vld [vmem:[%s5147 + $0x198] sm:$0xff]
    %v5200 = vld [vmem:[%s5147 + $0x1a0] sm:$0xff]
    %v5201 = vld [vmem:[%s5147 + $0x1a8] sm:$0xff]
    %v5202 = vld [vmem:[%s5147 + $0x1b0] sm:$0xff]
    %v5203 = vld [vmem:[%s5147 + $0x1b8] sm:$0xff]
    %v5204 = vld [vmem:[%s5147 + $0x1c0] sm:$0xff]
    %v5205 = vld [vmem:[%s5147 + $0x1c8] sm:$0xff]
    %v5206 = vld [vmem:[%s5147 + $0x1d0] sm:$0xff]
    %v5207 = vld [vmem:[%s5147 + $0x1d8] sm:$0xff]
    %v5208 = vld [vmem:[%s5147 + $0x1e0] sm:$0xff]
    %v5209 = vld [vmem:[%s5147 + $0x1e8] sm:$0xff]
    %v5210 = vld [vmem:[%s5147 + $0x1f0] sm:$0xff]
    %v5211 = vld [vmem:[%s5147 + $0x1f8] sm:$0xff]
    %v5212 = vld [vmem:[%s5147 + $0x200] sm:$0xff]
    %v5213 = vld [vmem:[%s5147 + $0x208] sm:$0xff]
    %v5214 = vld [vmem:[%s5147 + $0x210] sm:$0xff]
    %v5215 = vld [vmem:[%s5147 + $0x218] sm:$0xff]
    %v5216 = vld [vmem:[%s5147 + $0x220] sm:$0xff]
    %v5217 = vld [vmem:[%s5147 + $0x228] sm:$0xff]
    %v5218 = vld [vmem:[%s5147 + $0x230] sm:$0xff]
    %v5219 = vld [vmem:[%s5147 + $0x238] sm:$0xff]
    %v5292 = vunpack.c.l.b16 %v5148
    %v5293 = vunpack.c.h.b16 %v5148
    %v5294 = vunpack.c.l.b16 %v5149
    %v5295 = vunpack.c.h.b16 %v5149
    %v5296 = vunpack.c.l.b16 %v5150
    %v5297 = vunpack.c.h.b16 %v5150
    %v5298 = vunpack.c.l.b16 %v5151
    %v5299 = vunpack.c.h.b16 %v5151
    %v5300 = vunpack.c.l.b16 %v5152
    %v5301 = vunpack.c.h.b16 %v5152
    %v5302 = vunpack.c.l.b16 %v5153
    %v5303 = vunpack.c.h.b16 %v5153
    %v5304 = vunpack.c.l.b16 %v5154
    %v5305 = vunpack.c.h.b16 %v5154
    %v5306 = vunpack.c.l.b16 %v5155
    %v5307 = vunpack.c.h.b16 %v5155
    %v5308 = vunpack.c.l.b16 %v5156
    %v5309 = vunpack.c.h.b16 %v5156
    %v5310 = vunpack.c.l.b16 %v5157
    %v5311 = vunpack.c.h.b16 %v5157
    %v5312 = vunpack.c.l.b16 %v5158
    %v5313 = vunpack.c.h.b16 %v5158
    %v5314 = vunpack.c.l.b16 %v5159
    %v5315 = vunpack.c.h.b16 %v5159
    %v5316 = vunpack.c.l.b16 %v5160
    %v5317 = vunpack.c.h.b16 %v5160
    %v5318 = vunpack.c.l.b16 %v5161
    %v5319 = vunpack.c.h.b16 %v5161
    %v5320 = vunpack.c.l.b16 %v5162
    %v5321 = vunpack.c.h.b16 %v5162
    %v5322 = vunpack.c.l.b16 %v5163
    %v5323 = vunpack.c.h.b16 %v5163
    %v5324 = vunpack.c.l.b16 %v5164
    %v5325 = vunpack.c.h.b16 %v5164
    %v5326 = vunpack.c.l.b16 %v5165
    %v5327 = vunpack.c.h.b16 %v5165
    %v5328 = vunpack.c.l.b16 %v5166
    %v5329 = vunpack.c.h.b16 %v5166
    %v5330 = vunpack.c.l.b16 %v5167
    %v5331 = vunpack.c.h.b16 %v5167
    %v5332 = vunpack.c.l.b16 %v5168
    %v5333 = vunpack.c.h.b16 %v5168
    %v5334 = vunpack.c.l.b16 %v5169
    %v5335 = vunpack.c.h.b16 %v5169
    %v5336 = vunpack.c.l.b16 %v5170
    %v5337 = vunpack.c.h.b16 %v5170
    %v5338 = vunpack.c.l.b16 %v5171
    %v5339 = vunpack.c.h.b16 %v5171
    %v5340 = vunpack.c.l.b16 %v5172
    %v5341 = vunpack.c.h.b16 %v5172
    %v5342 = vunpack.c.l.b16 %v5173
    %v5343 = vunpack.c.h.b16 %v5173
    %v5344 = vunpack.c.l.b16 %v5174
    %v5345 = vunpack.c.h.b16 %v5174
    %v5346 = vunpack.c.l.b16 %v5175
    %v5347 = vunpack.c.h.b16 %v5175
    %v5348 = vunpack.c.l.b16 %v5176
    %v5349 = vunpack.c.h.b16 %v5176
    %v5350 = vunpack.c.l.b16 %v5177
    %v5351 = vunpack.c.h.b16 %v5177
    %v5352 = vunpack.c.l.b16 %v5178
    %v5353 = vunpack.c.h.b16 %v5178
    %v5354 = vunpack.c.l.b16 %v5179
    %v5355 = vunpack.c.h.b16 %v5179
    %v5356 = vunpack.c.l.b16 %v5180
    %v5357 = vunpack.c.h.b16 %v5180
    %v5358 = vunpack.c.l.b16 %v5181
    %v5359 = vunpack.c.h.b16 %v5181
    %v5360 = vunpack.c.l.b16 %v5182
    %v5361 = vunpack.c.h.b16 %v5182
    %v5362 = vunpack.c.l.b16 %v5183
    %v5363 = vunpack.c.h.b16 %v5183
    %v5364 = vunpack.c.l.b16 %v5184
    %v5365 = vunpack.c.h.b16 %v5184
    %v5366 = vunpack.c.l.b16 %v5185
    %v5367 = vunpack.c.h.b16 %v5185
    %v5368 = vunpack.c.l.b16 %v5186
    %v5369 = vunpack.c.h.b16 %v5186
    %v5370 = vunpack.c.l.b16 %v5187
    %v5371 = vunpack.c.h.b16 %v5187
    %v5372 = vunpack.c.l.b16 %v5188
    %v5373 = vunpack.c.h.b16 %v5188
    %v5374 = vunpack.c.l.b16 %v5189
    %v5375 = vunpack.c.h.b16 %v5189
    %v5376 = vunpack.c.l.b16 %v5190
    %v5377 = vunpack.c.h.b16 %v5190
    %v5378 = vunpack.c.l.b16 %v5191
    %v5379 = vunpack.c.h.b16 %v5191
    %v5380 = vunpack.c.l.b16 %v5192
    %v5381 = vunpack.c.h.b16 %v5192
    %v5382 = vunpack.c.l.b16 %v5193
    %v5383 = vunpack.c.h.b16 %v5193
    %v5384 = vunpack.c.l.b16 %v5194
    %v5385 = vunpack.c.h.b16 %v5194
    %v5386 = vunpack.c.l.b16 %v5195
    %v5387 = vunpack.c.h.b16 %v5195
    %v5388 = vunpack.c.l.b16 %v5196
    %v5389 = vunpack.c.h.b16 %v5196
    %v5390 = vunpack.c.l.b16 %v5197
    %v5391 = vunpack.c.h.b16 %v5197
    %v5392 = vunpack.c.l.b16 %v5198
    %v5393 = vunpack.c.h.b16 %v5198
    %v5394 = vunpack.c.l.b16 %v5199
    %v5395 = vunpack.c.h.b16 %v5199
    %v5396 = vunpack.c.l.b16 %v5200
    %v5397 = vunpack.c.h.b16 %v5200
    %v5398 = vunpack.c.l.b16 %v5201
    %v5399 = vunpack.c.h.b16 %v5201
    %v5400 = vunpack.c.l.b16 %v5202
    %v5401 = vunpack.c.h.b16 %v5202
    %v5402 = vunpack.c.l.b16 %v5203
    %v5403 = vunpack.c.h.b16 %v5203
    %v5404 = vunpack.c.l.b16 %v5204
    %v5405 = vunpack.c.h.b16 %v5204
    %v5406 = vunpack.c.l.b16 %v5205
    %v5407 = vunpack.c.h.b16 %v5205
    %v5408 = vunpack.c.l.b16 %v5206
    %v5409 = vunpack.c.h.b16 %v5206
    %v5410 = vunpack.c.l.b16 %v5207
    %v5411 = vunpack.c.h.b16 %v5207
    %v5412 = vunpack.c.l.b16 %v5208
    %v5413 = vunpack.c.h.b16 %v5208
    %v5414 = vunpack.c.l.b16 %v5209
    %v5415 = vunpack.c.h.b16 %v5209
    %v5416 = vunpack.c.l.b16 %v5210
    %v5417 = vunpack.c.h.b16 %v5210
    %v5418 = vunpack.c.l.b16 %v5211
    %v5419 = vunpack.c.h.b16 %v5211
    %v5420 = vunpack.c.l.b16 %v5212
    %v5421 = vunpack.c.h.b16 %v5212
    %v5422 = vunpack.c.l.b16 %v5213
    %v5423 = vunpack.c.h.b16 %v5213
    %v5424 = vunpack.c.l.b16 %v5214
    %v5425 = vunpack.c.h.b16 %v5214
    %v5426 = vunpack.c.l.b16 %v5215
    %v5427 = vunpack.c.h.b16 %v5215
    %v5428 = vunpack.c.l.b16 %v5216
    %v5429 = vunpack.c.h.b16 %v5216
    %v5430 = vunpack.c.l.b16 %v5217
    %v5431 = vunpack.c.h.b16 %v5217
    %v5432 = vunpack.c.l.b16 %v5218
    %v5433 = vunpack.c.h.b16 %v5218
    %v5434 = vunpack.c.l.b16 %v5219
    %v5435 = vunpack.c.h.b16 %v5219
    %v5436 = vpack.c.b16 %v5294, %v5292
    %v5437 = vpack.c.b16 %v5295, %v5293
    %v5438 = vpack.c.b16 %v5298, %v5296
    %v5439 = vpack.c.b16 %v5299, %v5297
    %v5440 = vpack.c.b16 %v5302, %v5300
    %v5441 = vpack.c.b16 %v5303, %v5301
    %v5442 = vpack.c.b16 %v5306, %v5304
    %v5443 = vpack.c.b16 %v5307, %v5305
    %v5444 = vpack.c.b16 %v5310, %v5308
    %v5445 = vpack.c.b16 %v5311, %v5309
    %v5446 = vpack.c.b16 %v5314, %v5312
    %v5447 = vpack.c.b16 %v5315, %v5313
    %v5448 = vpack.c.b16 %v5318, %v5316
    %v5449 = vpack.c.b16 %v5319, %v5317
    %v5450 = vpack.c.b16 %v5322, %v5320
    %v5451 = vpack.c.b16 %v5323, %v5321
    %v5452 = vpack.c.b16 %v5326, %v5324
    %v5453 = vpack.c.b16 %v5327, %v5325
    %v5454 = vpack.c.b16 %v5330, %v5328
    %v5455 = vpack.c.b16 %v5331, %v5329
    %v5456 = vpack.c.b16 %v5334, %v5332
    %v5457 = vpack.c.b16 %v5335, %v5333
    %v5458 = vpack.c.b16 %v5338, %v5336
    %v5459 = vpack.c.b16 %v5339, %v5337
    %v5460 = vpack.c.b16 %v5342, %v5340
    %v5461 = vpack.c.b16 %v5343, %v5341
    %v5462 = vpack.c.b16 %v5346, %v5344
    %v5463 = vpack.c.b16 %v5347, %v5345
    %v5464 = vpack.c.b16 %v5350, %v5348
    %v5465 = vpack.c.b16 %v5351, %v5349
    %v5466 = vpack.c.b16 %v5354, %v5352
    %v5467 = vpack.c.b16 %v5355, %v5353
    %v5468 = vpack.c.b16 %v5358, %v5356
    %v5469 = vpack.c.b16 %v5359, %v5357
    %v5470 = vpack.c.b16 %v5362, %v5360
    %v5471 = vpack.c.b16 %v5363, %v5361
    %v5472 = vpack.c.b16 %v5366, %v5364
    %v5473 = vpack.c.b16 %v5367, %v5365
    %v5474 = vpack.c.b16 %v5370, %v5368
    %v5475 = vpack.c.b16 %v5371, %v5369
    %v5476 = vpack.c.b16 %v5374, %v5372
    %v5477 = vpack.c.b16 %v5375, %v5373
    %v5478 = vpack.c.b16 %v5378, %v5376
    %v5479 = vpack.c.b16 %v5379, %v5377
    %v5480 = vpack.c.b16 %v5382, %v5380
    %v5481 = vpack.c.b16 %v5383, %v5381
    %v5482 = vpack.c.b16 %v5386, %v5384
    %v5483 = vpack.c.b16 %v5387, %v5385
    %v5484 = vpack.c.b16 %v5390, %v5388
    %v5485 = vpack.c.b16 %v5391, %v5389
    %v5486 = vpack.c.b16 %v5394, %v5392
    %v5487 = vpack.c.b16 %v5395, %v5393
    %v5488 = vpack.c.b16 %v5398, %v5396
    %v5489 = vpack.c.b16 %v5399, %v5397
    %v5490 = vpack.c.b16 %v5402, %v5400
    %v5491 = vpack.c.b16 %v5403, %v5401
    %v5492 = vpack.c.b16 %v5406, %v5404
    %v5493 = vpack.c.b16 %v5407, %v5405
    %v5494 = vpack.c.b16 %v5410, %v5408
    %v5495 = vpack.c.b16 %v5411, %v5409
    %v5496 = vpack.c.b16 %v5414, %v5412
    %v5497 = vpack.c.b16 %v5415, %v5413
    %v5498 = vpack.c.b16 %v5418, %v5416
    %v5499 = vpack.c.b16 %v5419, %v5417
    %v5500 = vpack.c.b16 %v5422, %v5420
    %v5501 = vpack.c.b16 %v5423, %v5421
    %v5502 = vpack.c.b16 %v5426, %v5424
    %v5503 = vpack.c.b16 %v5427, %v5425
    %v5504 = vpack.c.b16 %v5430, %v5428
    %v5505 = vpack.c.b16 %v5431, %v5429
    %v5506 = vpack.c.b16 %v5434, %v5432
    %v5507 = vpack.c.b16 %v5435, %v5433
    %v5581 = vsel %vm804, %v4002, 0
    %5583 = vmatprep.subr.bf16.mxu0 %v5437
    %5584 = vmatpush1.bf16.msra.mxu0 %v5436
    %5585 = vmatprep.subr.bf16.mxu0 %v5439
    %5586 = vmatpush1.bf16.msra.mxu0 %v5438
    %5587 = vmatprep.subr.bf16.mxu0 %v5441
    %5588 = vmatpush1.bf16.msra.mxu0 %v5440
    %5589 = vmatprep.subr.bf16.mxu0 %v5443
    %5590 = vmatpush1.bf16.msra.mxu0 %v5442
    %5591 = vmatprep.subr.bf16.mxu0 %v5445
    %5592 = vmatpush1.bf16.msra.mxu0 %v5444
    %5593 = vmatprep.subr.bf16.mxu0 %v5447
    %5594 = vmatpush1.bf16.msra.mxu0 %v5446
    %5595 = vmatprep.subr.bf16.mxu0 %v5449
    %5596 = vmatpush1.bf16.msra.mxu0 %v5448
    %5597 = vmatprep.subr.bf16.mxu0 %v5451
    %5598 = vmatpush1.bf16.msra.mxu0 %v5450
    %5599 = vmatprep.subr.bf16.mxu0 %v5453
    %5600 = vmatpush1.bf16.msra.mxu0 %v5452
    %5601 = vmatprep.subr.bf16.mxu0 %v5455
    %5602 = vmatpush1.bf16.msra.mxu0 %v5454
    %5603 = vmatprep.subr.bf16.mxu0 %v5457
    %5604 = vmatpush1.bf16.msra.mxu0 %v5456
    %5605 = vmatprep.subr.bf16.mxu0 %v5459
    %5606 = vmatpush1.bf16.msra.mxu0 %v5458
    %5607 = vmatprep.subr.bf16.mxu0 %v5461
    %5608 = vmatpush1.bf16.msra.mxu0 %v5460
    %5609 = vmatprep.subr.bf16.mxu0 %v5463
    %5610 = vmatpush1.bf16.msra.mxu0 %v5462
    %5611 = vmatprep.subr.bf16.mxu0 %v5465
    %5612 = vmatpush1.bf16.msra.mxu0 %v5464
    %5613 = vmatprep.subr.bf16.mxu0 %v5467
    %5614 = vmatpush1.bf16.msra.mxu0 %v5466
    %5615 = vmatprep.mubr.bf16.mxu0 %v3999
    %5616 = vmatmul.mubr.bf16.gmra.mrb[0].mxu0 %v3998
    %v5617 = vpop.f32.mrb[0].mxu0
    %v5618 = vadd.f32 0.0, %v5617
    %v5619 = vpop.f32.mrb[0].mxu0
    %v5620 = vadd.f32 0.0, %v5619
    %v5621 = vpop.f32.mrb[0].mxu0
    %v5622 = vadd.f32 0.0, %v5621
    %v5623 = vpop.f32.mrb[0].mxu0
    %v5624 = vadd.f32 0.0, %v5623
    %5625 = vdwg.mxu0
    %5626 = vmatprep.subr.bf16.mxu0 %v5469
    %5627 = vmatpush1.bf16.msra.mxu0 %v5468
    %5628 = vmatprep.subr.bf16.mxu0 %v5471
    %5629 = vmatpush1.bf16.msra.mxu0 %v5470
    %5630 = vmatprep.subr.bf16.mxu0 %v5473
    %5631 = vmatpush1.bf16.msra.mxu0 %v5472
    %5632 = vmatprep.subr.bf16.mxu0 %v5475
    %5633 = vmatpush1.bf16.msra.mxu0 %v5474
    %5634 = vmatprep.subr.bf16.mxu0 %v5477
    %5635 = vmatpush1.bf16.msra.mxu0 %v5476
    %5636 = vmatprep.subr.bf16.mxu0 %v5479
    %5637 = vmatpush1.bf16.msra.mxu0 %v5478
    %5638 = vmatprep.subr.bf16.mxu0 %v5481
    %5639 = vmatpush1.bf16.msra.mxu0 %v5480
    %5640 = vmatprep.subr.bf16.mxu0 %v5483
    %5641 = vmatpush1.bf16.msra.mxu0 %v5482
    %5642 = vmatprep.subr.bf16.mxu0 %v5485
    %5643 = vmatpush1.bf16.msra.mxu0 %v5484
    %5644 = vmatprep.subr.bf16.mxu0 %v5487
    %5645 = vmatpush1.bf16.msra.mxu0 %v5486
    %5646 = vmatprep.subr.bf16.mxu0 %v5489
    %5647 = vmatpush1.bf16.msra.mxu0 %v5488
    %5648 = vmatprep.subr.bf16.mxu0 %v5491
    %5649 = vmatpush1.bf16.msra.mxu0 %v5490
    %5650 = vmatprep.subr.bf16.mxu0 %v5493
    %5651 = vmatpush1.bf16.msra.mxu0 %v5492
    %5652 = vmatprep.subr.bf16.mxu0 %v5495
    %5653 = vmatpush1.bf16.msra.mxu0 %v5494
    %5654 = vmatprep.subr.bf16.mxu0 %v5497
    %5655 = vmatpush1.bf16.msra.mxu0 %v5496
    %5656 = vmatprep.subr.bf16.mxu0 %v5499
    %5657 = vmatpush1.bf16.msra.mxu0 %v5498
    %5658 = vmatprep.mubr.bf16.mxu0 %v4001
    %5659 = vmatmul.mubr.bf16.gmra.mrb[0].mxu0 %v4000
    %v5660 = vpop.f32.mrb[0].mxu0
    %v5661 = vadd.f32 %v5618, %v5660
    %v5662 = vpop.f32.mrb[0].mxu0
    %v5663 = vadd.f32 %v5620, %v5662
    %v5664 = vpop.f32.mrb[0].mxu0
    %v5665 = vadd.f32 %v5622, %v5664
    %v5666 = vpop.f32.mrb[0].mxu0
    %v5667 = vadd.f32 %v5624, %v5666
    %5668 = vdwg.mxu0
    %5669 = vmatprep.subr.bf16.mxu0 %v5501
    %5670 = vmatpush1.bf16.msra.mxu0 %v5500
    %5671 = vmatprep.subr.bf16.mxu0 %v5503
    %5672 = vmatpush1.bf16.msra.mxu0 %v5502
    %5673 = vmatprep.subr.bf16.mxu0 %v5505
    %5674 = vmatpush1.bf16.msra.mxu0 %v5504
    %5675 = vmatprep.subr.bf16.mxu0 %v5507
    %5676 = vmatpush1.bf16.msra.mxu0 %v5506
    %5677 = vmatprep.subr.bf16.mxu0 0
    %5678 = vmatpush1.bf16.msra.mxu0 0
    %5679 = vmatprep.subr.bf16.mxu0 0
    %5680 = vmatpush1.bf16.msra.mxu0 0
    %5681 = vmatprep.subr.bf16.mxu0 0
    %5682 = vmatpush1.bf16.msra.mxu0 0
    %5683 = vmatprep.subr.bf16.mxu0 0
    %5684 = vmatpush1.bf16.msra.mxu0 0
    %5685 = vmatprep.subr.bf16.mxu0 0
    %5686 = vmatpush1.bf16.msra.mxu0 0
    %5687 = vmatprep.subr.bf16.mxu0 0
    %5688 = vmatpush1.bf16.msra.mxu0 0
    %5689 = vmatprep.subr.bf16.mxu0 0
    %5690 = vmatpush1.bf16.msra.mxu0 0
    %5691 = vmatprep.subr.bf16.mxu0 0
    %5692 = vmatpush1.bf16.msra.mxu0 0
    %5693 = vmatprep.subr.bf16.mxu0 0
    %5694 = vmatpush1.bf16.msra.mxu0 0
    %5695 = vmatprep.subr.bf16.mxu0 0
    %5696 = vmatpush1.bf16.msra.mxu0 0
    %5697 = vmatprep.subr.bf16.mxu0 0
    %5698 = vmatpush1.bf16.msra.mxu0 0
    %5699 = vmatprep.subr.bf16.mxu0 0
    %5700 = vmatpush1.bf16.msra.mxu0 0
    %5701 = vmatprep.mubr.bf16.mxu0 0
    %5702 = vmatmul.mubr.bf16.gmra.mrb[0].mxu0 %v5581
    %v5703 = vpop.f32.mrb[0].mxu0
    %v5704 = vadd.f32 %v5661, %v5703
    %v5705 = vpop.f32.mrb[0].mxu0
    %v5706 = vadd.f32 %v5663, %v5705
    %v5707 = vpop.f32.mrb[0].mxu0
    %v5708 = vadd.f32 %v5665, %v5707
    %v5709 = vpop.f32.mrb[0].mxu0
    %v5710 = vadd.f32 %v5667, %v5709
    %5711 = vdwg.mxu0
    %v5712 = vadd.f32 %v5139, %v5704
    %v5713 = vadd.f32 %v5141, %v5706
    %v5714 = vadd.f32 %v5143, %v5708
    %v5715 = vadd.f32 %v5145, %v5710
    %s5716 = scalar_lea.vmem [#allocation12], 1728
    %v5717 = vld [vmem:[%s5716] sm:$0xff]
    %v5718 = vld [vmem:[%s5716 + $0x8] sm:$0xff]
    %v5719 = vld [vmem:[%s5716 + $0x10] sm:$0xff]
    %v5720 = vld [vmem:[%s5716 + $0x18] sm:$0xff]
    %v5721 = vld [vmem:[%s5716 + $0x20] sm:$0xff]
    %v5722 = vld [vmem:[%s5716 + $0x28] sm:$0xff]
    %v5723 = vld [vmem:[%s5716 + $0x30] sm:$0xff]
    %v5724 = vld [vmem:[%s5716 + $0x38] sm:$0xff]
    %v5725 = vld [vmem:[%s5716 + $0x40] sm:$0xff]
    %v5726 = vld [vmem:[%s5716 + $0x48] sm:$0xff]
    %v5727 = vld [vmem:[%s5716 + $0x50] sm:$0xff]
    %v5728 = vld [vmem:[%s5716 + $0x58] sm:$0xff]
    %v5729 = vld [vmem:[%s5716 + $0x60] sm:$0xff]
    %v5730 = vld [vmem:[%s5716 + $0x68] sm:$0xff]
    %v5731 = vld [vmem:[%s5716 + $0x70] sm:$0xff]
    %v5732 = vld [vmem:[%s5716 + $0x78] sm:$0xff]
    %v5733 = vld [vmem:[%s5716 + $0x80] sm:$0xff]
    %v5734 = vld [vmem:[%s5716 + $0x88] sm:$0xff]
    %v5735 = vld [vmem:[%s5716 + $0x90] sm:$0xff]
    %v5736 = vld [vmem:[%s5716 + $0x98] sm:$0xff]
    %v5737 = vld [vmem:[%s5716 + $0xa0] sm:$0xff]
    %v5738 = vld [vmem:[%s5716 + $0xa8] sm:$0xff]
    %v5739 = vld [vmem:[%s5716 + $0xb0] sm:$0xff]
    %v5740 = vld [vmem:[%s5716 + $0xb8] sm:$0xff]
    %v5741 = vld [vmem:[%s5716 + $0xc0] sm:$0xff]
    %v5742 = vld [vmem:[%s5716 + $0xc8] sm:$0xff]
    %v5743 = vld [vmem:[%s5716 + $0xd0] sm:$0xff]
    %v5744 = vld [vmem:[%s5716 + $0xd8] sm:$0xff]
    %v5745 = vld [vmem:[%s5716 + $0xe0] sm:$0xff]
    %v5746 = vld [vmem:[%s5716 + $0xe8] sm:$0xff]
    %v5747 = vld [vmem:[%s5716 + $0xf0] sm:$0xff]
    %v5748 = vld [vmem:[%s5716 + $0xf8] sm:$0xff]
    %v5749 = vld [vmem:[%s5716 + $0x100] sm:$0xff]
    %v5750 = vld [vmem:[%s5716 + $0x108] sm:$0xff]
    %v5751 = vld [vmem:[%s5716 + $0x110] sm:$0xff]
    %v5752 = vld [vmem:[%s5716 + $0x118] sm:$0xff]
    %v5753 = vld [vmem:[%s5716 + $0x120] sm:$0xff]
    %v5754 = vld [vmem:[%s5716 + $0x128] sm:$0xff]
    %v5755 = vld [vmem:[%s5716 + $0x130] sm:$0xff]
    %v5756 = vld [vmem:[%s5716 + $0x138] sm:$0xff]
    %v5757 = vld [vmem:[%s5716 + $0x140] sm:$0xff]
    %v5758 = vld [vmem:[%s5716 + $0x148] sm:$0xff]
    %v5759 = vld [vmem:[%s5716 + $0x150] sm:$0xff]
    %v5760 = vld [vmem:[%s5716 + $0x158] sm:$0xff]
    %v5761 = vld [vmem:[%s5716 + $0x160] sm:$0xff]
    %v5762 = vld [vmem:[%s5716 + $0x168] sm:$0xff]
    %v5763 = vld [vmem:[%s5716 + $0x170] sm:$0xff]
    %v5764 = vld [vmem:[%s5716 + $0x178] sm:$0xff]
    %v5765 = vld [vmem:[%s5716 + $0x180] sm:$0xff]
    %v5766 = vld [vmem:[%s5716 + $0x188] sm:$0xff]
    %v5767 = vld [vmem:[%s5716 + $0x190] sm:$0xff]
    %v5768 = vld [vmem:[%s5716 + $0x198] sm:$0xff]
    %v5769 = vld [vmem:[%s5716 + $0x1a0] sm:$0xff]
    %v5770 = vld [vmem:[%s5716 + $0x1a8] sm:$0xff]
    %v5771 = vld [vmem:[%s5716 + $0x1b0] sm:$0xff]
    %v5772 = vld [vmem:[%s5716 + $0x1b8] sm:$0xff]
    %v5773 = vld [vmem:[%s5716 + $0x1c0] sm:$0xff]
    %v5774 = vld [vmem:[%s5716 + $0x1c8] sm:$0xff]
    %v5775 = vld [vmem:[%s5716 + $0x1d0] sm:$0xff]
    %v5776 = vld [vmem:[%s5716 + $0x1d8] sm:$0xff]
    %v5777 = vld [vmem:[%s5716 + $0x1e0] sm:$0xff]
    %v5778 = vld [vmem:[%s5716 + $0x1e8] sm:$0xff]
    %v5779 = vld [vmem:[%s5716 + $0x1f0] sm:$0xff]
    %v5780 = vld [vmem:[%s5716 + $0x1f8] sm:$0xff]
    %v5781 = vld [vmem:[%s5716 + $0x200] sm:$0xff]
    %v5782 = vld [vmem:[%s5716 + $0x208] sm:$0xff]
    %v5783 = vld [vmem:[%s5716 + $0x210] sm:$0xff]
    %v5784 = vld [vmem:[%s5716 + $0x218] sm:$0xff]
    %v5785 = vld [vmem:[%s5716 + $0x220] sm:$0xff]
    %v5786 = vld [vmem:[%s5716 + $0x228] sm:$0xff]
    %v5787 = vld [vmem:[%s5716 + $0x230] sm:$0xff]
    %v5788 = vld [vmem:[%s5716 + $0x238] sm:$0xff]
    %v5861 = vunpack.c.l.b16 %v5717
    %v5862 = vunpack.c.h.b16 %v5717
    %v5863 = vunpack.c.l.b16 %v5718
    %v5864 = vunpack.c.h.b16 %v5718
    %v5865 = vunpack.c.l.b16 %v5719
    %v5866 = vunpack.c.h.b16 %v5719
    %v5867 = vunpack.c.l.b16 %v5720
    %v5868 = vunpack.c.h.b16 %v5720
    %v5869 = vunpack.c.l.b16 %v5721
    %v5870 = vunpack.c.h.b16 %v5721
    %v5871 = vunpack.c.l.b16 %v5722
    %v5872 = vunpack.c.h.b16 %v5722
    %v5873 = vunpack.c.l.b16 %v5723
    %v5874 = vunpack.c.h.b16 %v5723
    %v5875 = vunpack.c.l.b16 %v5724
    %v5876 = vunpack.c.h.b16 %v5724
    %v5877 = vunpack.c.l.b16 %v5725
    %v5878 = vunpack.c.h.b16 %v5725
    %v5879 = vunpack.c.l.b16 %v5726
    %v5880 = vunpack.c.h.b16 %v5726
    %v5881 = vunpack.c.l.b16 %v5727
    %v5882 = vunpack.c.h.b16 %v5727
    %v5883 = vunpack.c.l.b16 %v5728
    %v5884 = vunpack.c.h.b16 %v5728
    %v5885 = vunpack.c.l.b16 %v5729
    %v5886 = vunpack.c.h.b16 %v5729
    %v5887 = vunpack.c.l.b16 %v5730
    %v5888 = vunpack.c.h.b16 %v5730
    %v5889 = vunpack.c.l.b16 %v5731
    %v5890 = vunpack.c.h.b16 %v5731
    %v5891 = vunpack.c.l.b16 %v5732
    %v5892 = vunpack.c.h.b16 %v5732
    %v5893 = vunpack.c.l.b16 %v5733
    %v5894 = vunpack.c.h.b16 %v5733
    %v5895 = vunpack.c.l.b16 %v5734
    %v5896 = vunpack.c.h.b16 %v5734
    %v5897 = vunpack.c.l.b16 %v5735
    %v5898 = vunpack.c.h.b16 %v5735
    %v5899 = vunpack.c.l.b16 %v5736
    %v5900 = vunpack.c.h.b16 %v5736
    %v5901 = vunpack.c.l.b16 %v5737
    %v5902 = vunpack.c.h.b16 %v5737
    %v5903 = vunpack.c.l.b16 %v5738
    %v5904 = vunpack.c.h.b16 %v5738
    %v5905 = vunpack.c.l.b16 %v5739
    %v5906 = vunpack.c.h.b16 %v5739
    %v5907 = vunpack.c.l.b16 %v5740
    %v5908 = vunpack.c.h.b16 %v5740
    %v5909 = vunpack.c.l.b16 %v5741
    %v5910 = vunpack.c.h.b16 %v5741
    %v5911 = vunpack.c.l.b16 %v5742
    %v5912 = vunpack.c.h.b16 %v5742
    %v5913 = vunpack.c.l.b16 %v5743
    %v5914 = vunpack.c.h.b16 %v5743
    %v5915 = vunpack.c.l.b16 %v5744
    %v5916 = vunpack.c.h.b16 %v5744
    %v5917 = vunpack.c.l.b16 %v5745
    %v5918 = vunpack.c.h.b16 %v5745
    %v5919 = vunpack.c.l.b16 %v5746
    %v5920 = vunpack.c.h.b16 %v5746
    %v5921 = vunpack.c.l.b16 %v5747
    %v5922 = vunpack.c.h.b16 %v5747
    %v5923 = vunpack.c.l.b16 %v5748
    %v5924 = vunpack.c.h.b16 %v5748
    %v5925 = vunpack.c.l.b16 %v5749
    %v5926 = vunpack.c.h.b16 %v5749
    %v5927 = vunpack.c.l.b16 %v5750
    %v5928 = vunpack.c.h.b16 %v5750
    %v5929 = vunpack.c.l.b16 %v5751
    %v5930 = vunpack.c.h.b16 %v5751
    %v5931 = vunpack.c.l.b16 %v5752
    %v5932 = vunpack.c.h.b16 %v5752
    %v5933 = vunpack.c.l.b16 %v5753
    %v5934 = vunpack.c.h.b16 %v5753
    %v5935 = vunpack.c.l.b16 %v5754
    %v5936 = vunpack.c.h.b16 %v5754
    %v5937 = vunpack.c.l.b16 %v5755
    %v5938 = vunpack.c.h.b16 %v5755
    %v5939 = vunpack.c.l.b16 %v5756
    %v5940 = vunpack.c.h.b16 %v5756
    %v5941 = vunpack.c.l.b16 %v5757
    %v5942 = vunpack.c.h.b16 %v5757
    %v5943 = vunpack.c.l.b16 %v5758
    %v5944 = vunpack.c.h.b16 %v5758
    %v5945 = vunpack.c.l.b16 %v5759
    %v5946 = vunpack.c.h.b16 %v5759
    %v5947 = vunpack.c.l.b16 %v5760
    %v5948 = vunpack.c.h.b16 %v5760
    %v5949 = vunpack.c.l.b16 %v5761
    %v5950 = vunpack.c.h.b16 %v5761
    %v5951 = vunpack.c.l.b16 %v5762
    %v5952 = vunpack.c.h.b16 %v5762
    %v5953 = vunpack.c.l.b16 %v5763
    %v5954 = vunpack.c.h.b16 %v5763
    %v5955 = vunpack.c.l.b16 %v5764
    %v5956 = vunpack.c.h.b16 %v5764
    %v5957 = vunpack.c.l.b16 %v5765
    %v5958 = vunpack.c.h.b16 %v5765
    %v5959 = vunpack.c.l.b16 %v5766
    %v5960 = vunpack.c.h.b16 %v5766
    %v5961 = vunpack.c.l.b16 %v5767
    %v5962 = vunpack.c.h.b16 %v5767
    %v5963 = vunpack.c.l.b16 %v5768
    %v5964 = vunpack.c.h.b16 %v5768
    %v5965 = vunpack.c.l.b16 %v5769
    %v5966 = vunpack.c.h.b16 %v5769
    %v5967 = vunpack.c.l.b16 %v5770
    %v5968 = vunpack.c.h.b16 %v5770
    %v5969 = vunpack.c.l.b16 %v5771
    %v5970 = vunpack.c.h.b16 %v5771
    %v5971 = vunpack.c.l.b16 %v5772
    %v5972 = vunpack.c.h.b16 %v5772
    %v5973 = vunpack.c.l.b16 %v5773
    %v5974 = vunpack.c.h.b16 %v5773
    %v5975 = vunpack.c.l.b16 %v5774
    %v5976 = vunpack.c.h.b16 %v5774
    %v5977 = vunpack.c.l.b16 %v5775
    %v5978 = vunpack.c.h.b16 %v5775
    %v5979 = vunpack.c.l.b16 %v5776
    %v5980 = vunpack.c.h.b16 %v5776
    %v5981 = vunpack.c.l.b16 %v5777
    %v5982 = vunpack.c.h.b16 %v5777
    %v5983 = vunpack.c.l.b16 %v5778
    %v5984 = vunpack.c.h.b16 %v5778
    %v5985 = vunpack.c.l.b16 %v5779
    %v5986 = vunpack.c.h.b16 %v5779
    %v5987 = vunpack.c.l.b16 %v5780
    %v5988 = vunpack.c.h.b16 %v5780
    %v5989 = vunpack.c.l.b16 %v5781
    %v5990 = vunpack.c.h.b16 %v5781
    %v5991 = vunpack.c.l.b16 %v5782
    %v5992 = vunpack.c.h.b16 %v5782
    %v5993 = vunpack.c.l.b16 %v5783
    %v5994 = vunpack.c.h.b16 %v5783
    %v5995 = vunpack.c.l.b16 %v5784
    %v5996 = vunpack.c.h.b16 %v5784
    %v5997 = vunpack.c.l.b16 %v5785
    %v5998 = vunpack.c.h.b16 %v5785
    %v5999 = vunpack.c.l.b16 %v5786
    %v6000 = vunpack.c.h.b16 %v5786
    %v6001 = vunpack.c.l.b16 %v5787
    %v6002 = vunpack.c.h.b16 %v5787
    %v6003 = vunpack.c.l.b16 %v5788
    %v6004 = vunpack.c.h.b16 %v5788
    %v6005 = vpack.c.b16 %v5863, %v5861
    %v6006 = vpack.c.b16 %v5864, %v5862
    %v6007 = vpack.c.b16 %v5867, %v5865
    %v6008 = vpack.c.b16 %v5868, %v5866
    %v6009 = vpack.c.b16 %v5871, %v5869
    %v6010 = vpack.c.b16 %v5872, %v5870
    %v6011 = vpack.c.b16 %v5875, %v5873
    %v6012 = vpack.c.b16 %v5876, %v5874
    %v6013 = vpack.c.b16 %v5879, %v5877
    %v6014 = vpack.c.b16 %v5880, %v5878
    %v6015 = vpack.c.b16 %v5883, %v5881
    %v6016 = vpack.c.b16 %v5884, %v5882
    %v6017 = vpack.c.b16 %v5887, %v5885
    %v6018 = vpack.c.b16 %v5888, %v5886
    %v6019 = vpack.c.b16 %v5891, %v5889
    %v6020 = vpack.c.b16 %v5892, %v5890
    %v6021 = vpack.c.b16 %v5895, %v5893
    %v6022 = vpack.c.b16 %v5896, %v5894
    %v6023 = vpack.c.b16 %v5899, %v5897
    %v6024 = vpack.c.b16 %v5900, %v5898
    %v6025 = vpack.c.b16 %v5903, %v5901
    %v6026 = vpack.c.b16 %v5904, %v5902
    %v6027 = vpack.c.b16 %v5907, %v5905
    %v6028 = vpack.c.b16 %v5908, %v5906
    %v6029 = vpack.c.b16 %v5911, %v5909
    %v6030 = vpack.c.b16 %v5912, %v5910
    %v6031 = vpack.c.b16 %v5915, %v5913
    %v6032 = vpack.c.b16 %v5916, %v5914
    %v6033 = vpack.c.b16 %v5919, %v5917
    %v6034 = vpack.c.b16 %v5920, %v5918
    %v6035 = vpack.c.b16 %v5923, %v5921
    %v6036 = vpack.c.b16 %v5924, %v5922
    %v6037 = vpack.c.b16 %v5927, %v5925
    %v6038 = vpack.c.b16 %v5928, %v5926
    %v6039 = vpack.c.b16 %v5931, %v5929
    %v6040 = vpack.c.b16 %v5932, %v5930
    %v6041 = vpack.c.b16 %v5935, %v5933
    %v6042 = vpack.c.b16 %v5936, %v5934
    %v6043 = vpack.c.b16 %v5939, %v5937
    %v6044 = vpack.c.b16 %v5940, %v5938
    %v6045 = vpack.c.b16 %v5943, %v5941
    %v6046 = vpack.c.b16 %v5944, %v5942
    %v6047 = vpack.c.b16 %v5947, %v5945
    %v6048 = vpack.c.b16 %v5948, %v5946
    %v6049 = vpack.c.b16 %v5951, %v5949
    %v6050 = vpack.c.b16 %v5952, %v5950
    %v6051 = vpack.c.b16 %v5955, %v5953
    %v6052 = vpack.c.b16 %v5956, %v5954
    %v6053 = vpack.c.b16 %v5959, %v5957
    %v6054 = vpack.c.b16 %v5960, %v5958
    %v6055 = vpack.c.b16 %v5963, %v5961
    %v6056 = vpack.c.b16 %v5964, %v5962
    %v6057 = vpack.c.b16 %v5967, %v5965
    %v6058 = vpack.c.b16 %v5968, %v5966
    %v6059 = vpack.c.b16 %v5971, %v5969
    %v6060 = vpack.c.b16 %v5972, %v5970
    %v6061 = vpack.c.b16 %v5975, %v5973
    %v6062 = vpack.c.b16 %v5976, %v5974
    %v6063 = vpack.c.b16 %v5979, %v5977
    %v6064 = vpack.c.b16 %v5980, %v5978
    %v6065 = vpack.c.b16 %v5983, %v5981
    %v6066 = vpack.c.b16 %v5984, %v5982
    %v6067 = vpack.c.b16 %v5987, %v5985
    %v6068 = vpack.c.b16 %v5988, %v5986
    %v6069 = vpack.c.b16 %v5991, %v5989
    %v6070 = vpack.c.b16 %v5992, %v5990
    %v6071 = vpack.c.b16 %v5995, %v5993
    %v6072 = vpack.c.b16 %v5996, %v5994
    %v6073 = vpack.c.b16 %v5999, %v5997
    %v6074 = vpack.c.b16 %v6000, %v5998
    %v6075 = vpack.c.b16 %v6003, %v6001
    %v6076 = vpack.c.b16 %v6004, %v6002
    %v6150 = vsel %vm804, %v4007, 0
    %6152 = vmatprep.subr.bf16.mxu0 %v6006
    %6153 = vmatpush1.bf16.msra.mxu0 %v6005
    %6154 = vmatprep.subr.bf16.mxu0 %v6008
    %6155 = vmatpush1.bf16.msra.mxu0 %v6007
    %6156 = vmatprep.subr.bf16.mxu0 %v6010
    %6157 = vmatpush1.bf16.msra.mxu0 %v6009
    %6158 = vmatprep.subr.bf16.mxu0 %v6012
    %6159 = vmatpush1.bf16.msra.mxu0 %v6011
    %6160 = vmatprep.subr.bf16.mxu0 %v6014
    %6161 = vmatpush1.bf16.msra.mxu0 %v6013
    %6162 = vmatprep.subr.bf16.mxu0 %v6016
    %6163 = vmatpush1.bf16.msra.mxu0 %v6015
    %6164 = vmatprep.subr.bf16.mxu0 %v6018
    %6165 = vmatpush1.bf16.msra.mxu0 %v6017
    %6166 = vmatprep.subr.bf16.mxu0 %v6020
    %6167 = vmatpush1.bf16.msra.mxu0 %v6019
    %6168 = vmatprep.subr.bf16.mxu0 %v6022
    %6169 = vmatpush1.bf16.msra.mxu0 %v6021
    %6170 = vmatprep.subr.bf16.mxu0 %v6024
    %6171 = vmatpush1.bf16.msra.mxu0 %v6023
    %6172 = vmatprep.subr.bf16.mxu0 %v6026
    %6173 = vmatpush1.bf16.msra.mxu0 %v6025
    %6174 = vmatprep.subr.bf16.mxu0 %v6028
    %6175 = vmatpush1.bf16.msra.mxu0 %v6027
    %6176 = vmatprep.subr.bf16.mxu0 %v6030
    %6177 = vmatpush1.bf16.msra.mxu0 %v6029
    %6178 = vmatprep.subr.bf16.mxu0 %v6032
    %6179 = vmatpush1.bf16.msra.mxu0 %v6031
    %6180 = vmatprep.subr.bf16.mxu0 %v6034
    %6181 = vmatpush1.bf16.msra.mxu0 %v6033
    %6182 = vmatprep.subr.bf16.mxu0 %v6036
    %6183 = vmatpush1.bf16.msra.mxu0 %v6035
    %6184 = vmatprep.mubr.bf16.mxu0 %v4004
    %6185 = vmatmul.mubr.bf16.gmra.mrb[0].mxu0 %v4003
    %v6186 = vpop.f32.mrb[0].mxu0
    %v6187 = vadd.f32 0.0, %v6186
    %v6188 = vpop.f32.mrb[0].mxu0
    %v6189 = vadd.f32 0.0, %v6188
    %v6190 = vpop.f32.mrb[0].mxu0
    %v6191 = vadd.f32 0.0, %v6190
    %v6192 = vpop.f32.mrb[0].mxu0
    %v6193 = vadd.f32 0.0, %v6192
    %6194 = vdwg.mxu0
    %6195 = vmatprep.subr.bf16.mxu0 %v6038
    %6196 = vmatpush1.bf16.msra.mxu0 %v6037
    %6197 = vmatprep.subr.bf16.mxu0 %v6040
    %6198 = vmatpush1.bf16.msra.mxu0 %v6039
    %6199 = vmatprep.subr.bf16.mxu0 %v6042
    %6200 = vmatpush1.bf16.msra.mxu0 %v6041
    %6201 = vmatprep.subr.bf16.mxu0 %v6044
    %6202 = vmatpush1.bf16.msra.mxu0 %v6043
    %6203 = vmatprep.subr.bf16.mxu0 %v6046
    %6204 = vmatpush1.bf16.msra.mxu0 %v6045
    %6205 = vmatprep.subr.bf16.mxu0 %v6048
    %6206 = vmatpush1.bf16.msra.mxu0 %v6047
    %6207 = vmatprep.subr.bf16.mxu0 %v6050
    %6208 = vmatpush1.bf16.msra.mxu0 %v6049
    %6209 = vmatprep.subr.bf16.mxu0 %v6052
    %6210 = vmatpush1.bf16.msra.mxu0 %v6051
    %6211 = vmatprep.subr.bf16.mxu0 %v6054
    %6212 = vmatpush1.bf16.msra.mxu0 %v6053
    %6213 = vmatprep.subr.bf16.mxu0 %v6056
    %6214 = vmatpush1.bf16.msra.mxu0 %v6055
    %6215 = vmatprep.subr.bf16.mxu0 %v6058
    %6216 = vmatpush1.bf16.msra.mxu0 %v6057
    %6217 = vmatprep.subr.bf16.mxu0 %v6060
    %6218 = vmatpush1.bf16.msra.mxu0 %v6059
    %6219 = vmatprep.subr.bf16.mxu0 %v6062
    %6220 = vmatpush1.bf16.msra.mxu0 %v6061
    %6221 = vmatprep.subr.bf16.mxu0 %v6064
    %6222 = vmatpush1.bf16.msra.mxu0 %v6063
    %6223 = vmatprep.subr.bf16.mxu0 %v6066
    %6224 = vmatpush1.bf16.msra.mxu0 %v6065
    %6225 = vmatprep.subr.bf16.mxu0 %v6068
    %6226 = vmatpush1.bf16.msra.mxu0 %v6067
    %6227 = vmatprep.mubr.bf16.mxu0 %v4006
    %6228 = vmatmul.mubr.bf16.gmra.mrb[0].mxu0 %v4005
    %v6229 = vpop.f32.mrb[0].mxu0
    %v6230 = vadd.f32 %v6187, %v6229
    %v6231 = vpop.f32.mrb[0].mxu0
    %v6232 = vadd.f32 %v6189, %v6231
    %v6233 = vpop.f32.mrb[0].mxu0
    %v6234 = vadd.f32 %v6191, %v6233
    %v6235 = vpop.f32.mrb[0].mxu0
    %v6236 = vadd.f32 %v6193, %v6235
    %6237 = vdwg.mxu0
    %6238 = vmatprep.subr.bf16.mxu0 %v6070
    %6239 = vmatpush1.bf16.msra.mxu0 %v6069
    %6240 = vmatprep.subr.bf16.mxu0 %v6072
    %6241 = vmatpush1.bf16.msra.mxu0 %v6071
    %6242 = vmatprep.subr.bf16.mxu0 %v6074
    %6243 = vmatpush1.bf16.msra.mxu0 %v6073
    %6244 = vmatprep.subr.bf16.mxu0 %v6076
    %6245 = vmatpush1.bf16.msra.mxu0 %v6075
    %6246 = vmatprep.subr.bf16.mxu0 0
    %6247 = vmatpush1.bf16.msra.mxu0 0
    %6248 = vmatprep.subr.bf16.mxu0 0
    %6249 = vmatpush1.bf16.msra.mxu0 0
    %6250 = vmatprep.subr.bf16.mxu0 0
    %6251 = vmatpush1.bf16.msra.mxu0 0
    %6252 = vmatprep.subr.bf16.mxu0 0
    %6253 = vmatpush1.bf16.msra.mxu0 0
    %6254 = vmatprep.subr.bf16.mxu0 0
    %6255 = vmatpush1.bf16.msra.mxu0 0
    %6256 = vmatprep.subr.bf16.mxu0 0
    %6257 = vmatpush1.bf16.msra.mxu0 0
    %6258 = vmatprep.subr.bf16.mxu0 0
    %6259 = vmatpush1.bf16.msra.mxu0 0
    %6260 = vmatprep.subr.bf16.mxu0 0
    %6261 = vmatpush1.bf16.msra.mxu0 0
    %6262 = vmatprep.subr.bf16.mxu0 0
    %6263 = vmatpush1.bf16.msra.mxu0 0
    %6264 = vmatprep.subr.bf16.mxu0 0
    %6265 = vmatpush1.bf16.msra.mxu0 0
    %6266 = vmatprep.subr.bf16.mxu0 0
    %6267 = vmatpush1.bf16.msra.mxu0 0
    %6268 = vmatprep.subr.bf16.mxu0 0
    %6269 = vmatpush1.bf16.msra.mxu0 0
    %6270 = vmatprep.mubr.bf16.mxu0 0
    %6271 = vmatmul.mubr.bf16.gmra.mrb[0].mxu0 %v6150
    %v6272 = vpop.f32.mrb[0].mxu0
    %v6273 = vadd.f32 %v6230, %v6272
    %v6274 = vpop.f32.mrb[0].mxu0
    %v6275 = vadd.f32 %v6232, %v6274
    %v6276 = vpop.f32.mrb[0].mxu0
    %v6277 = vadd.f32 %v6234, %v6276
    %v6278 = vpop.f32.mrb[0].mxu0
    %v6279 = vadd.f32 %v6236, %v6278
    %6280 = vdwg.mxu0
    %v6281 = vadd.f32 %v5712, %v6273
    %v6282 = vadd.f32 %v5713, %v6275
    %v6283 = vadd.f32 %v5714, %v6277
    %v6284 = vadd.f32 %v5715, %v6279
    %s6285 = scalar_lea.vmem [#allocation12], 2304
    %v6286 = vld [vmem:[%s6285] sm:$0xff]
    %v6287 = vld [vmem:[%s6285 + $0x8] sm:$0xff]
    %v6288 = vld [vmem:[%s6285 + $0x10] sm:$0xff]
    %v6289 = vld [vmem:[%s6285 + $0x18] sm:$0xff]
    %v6290 = vld [vmem:[%s6285 + $0x20] sm:$0xff]
    %v6291 = vld [vmem:[%s6285 + $0x28] sm:$0xff]
    %v6292 = vld [vmem:[%s6285 + $0x30] sm:$0xff]
    %v6293 = vld [vmem:[%s6285 + $0x38] sm:$0xff]
    %v6294 = vld [vmem:[%s6285 + $0x40] sm:$0xff]
    %v6295 = vld [vmem:[%s6285 + $0x48] sm:$0xff]
    %v6296 = vld [vmem:[%s6285 + $0x50] sm:$0xff]
    %v6297 = vld [vmem:[%s6285 + $0x58] sm:$0xff]
    %v6298 = vld [vmem:[%s6285 + $0x60] sm:$0xff]
    %v6299 = vld [vmem:[%s6285 + $0x68] sm:$0xff]
    %v6300 = vld [vmem:[%s6285 + $0x70] sm:$0xff]
    %v6301 = vld [vmem:[%s6285 + $0x78] sm:$0xff]
    %v6302 = vld [vmem:[%s6285 + $0x80] sm:$0xff]
    %v6303 = vld [vmem:[%s6285 + $0x88] sm:$0xff]
    %v6304 = vld [vmem:[%s6285 + $0x90] sm:$0xff]
    %v6305 = vld [vmem:[%s6285 + $0x98] sm:$0xff]
    %v6306 = vld [vmem:[%s6285 + $0xa0] sm:$0xff]
    %v6307 = vld [vmem:[%s6285 + $0xa8] sm:$0xff]
    %v6308 = vld [vmem:[%s6285 + $0xb0] sm:$0xff]
    %v6309 = vld [vmem:[%s6285 + $0xb8] sm:$0xff]
    %v6310 = vld [vmem:[%s6285 + $0xc0] sm:$0xff]
    %v6311 = vld [vmem:[%s6285 + $0xc8] sm:$0xff]
    %v6312 = vld [vmem:[%s6285 + $0xd0] sm:$0xff]
    %v6313 = vld [vmem:[%s6285 + $0xd8] sm:$0xff]
    %v6314 = vld [vmem:[%s6285 + $0xe0] sm:$0xff]
    %v6315 = vld [vmem:[%s6285 + $0xe8] sm:$0xff]
    %v6316 = vld [vmem:[%s6285 + $0xf0] sm:$0xff]
    %v6317 = vld [vmem:[%s6285 + $0xf8] sm:$0xff]
    %v6318 = vld [vmem:[%s6285 + $0x100] sm:$0xff]
    %v6319 = vld [vmem:[%s6285 + $0x108] sm:$0xff]
    %v6320 = vld [vmem:[%s6285 + $0x110] sm:$0xff]
    %v6321 = vld [vmem:[%s6285 + $0x118] sm:$0xff]
    %v6322 = vld [vmem:[%s6285 + $0x120] sm:$0xff]
    %v6323 = vld [vmem:[%s6285 + $0x128] sm:$0xff]
    %v6324 = vld [vmem:[%s6285 + $0x130] sm:$0xff]
    %v6325 = vld [vmem:[%s6285 + $0x138] sm:$0xff]
    %v6326 = vld [vmem:[%s6285 + $0x140] sm:$0xff]
    %v6327 = vld [vmem:[%s6285 + $0x148] sm:$0xff]
    %v6328 = vld [vmem:[%s6285 + $0x150] sm:$0xff]
    %v6329 = vld [vmem:[%s6285 + $0x158] sm:$0xff]
    %v6330 = vld [vmem:[%s6285 + $0x160] sm:$0xff]
    %v6331 = vld [vmem:[%s6285 + $0x168] sm:$0xff]
    %v6332 = vld [vmem:[%s6285 + $0x170] sm:$0xff]
    %v6333 = vld [vmem:[%s6285 + $0x178] sm:$0xff]
    %v6334 = vld [vmem:[%s6285 + $0x180] sm:$0xff]
    %v6335 = vld [vmem:[%s6285 + $0x188] sm:$0xff]
    %v6336 = vld [vmem:[%s6285 + $0x190] sm:$0xff]
    %v6337 = vld [vmem:[%s6285 + $0x198] sm:$0xff]
    %v6338 = vld [vmem:[%s6285 + $0x1a0] sm:$0xff]
    %v6339 = vld [vmem:[%s6285 + $0x1a8] sm:$0xff]
    %v6340 = vld [vmem:[%s6285 + $0x1b0] sm:$0xff]
    %v6341 = vld [vmem:[%s6285 + $0x1b8] sm:$0xff]
    %v6342 = vld [vmem:[%s6285 + $0x1c0] sm:$0xff]
    %v6343 = vld [vmem:[%s6285 + $0x1c8] sm:$0xff]
    %v6344 = vld [vmem:[%s6285 + $0x1d0] sm:$0xff]
    %v6345 = vld [vmem:[%s6285 + $0x1d8] sm:$0xff]
    %v6346 = vld [vmem:[%s6285 + $0x1e0] sm:$0xff]
    %v6347 = vld [vmem:[%s6285 + $0x1e8] sm:$0xff]
    %v6348 = vld [vmem:[%s6285 + $0x1f0] sm:$0xff]
    %v6349 = vld [vmem:[%s6285 + $0x1f8] sm:$0xff]
    %v6350 = vld [vmem:[%s6285 + $0x200] sm:$0xff]
    %v6351 = vld [vmem:[%s6285 + $0x208] sm:$0xff]
    %v6352 = vld [vmem:[%s6285 + $0x210] sm:$0xff]
    %v6353 = vld [vmem:[%s6285 + $0x218] sm:$0xff]
    %v6354 = vld [vmem:[%s6285 + $0x220] sm:$0xff]
    %v6355 = vld [vmem:[%s6285 + $0x228] sm:$0xff]
    %v6356 = vld [vmem:[%s6285 + $0x230] sm:$0xff]
    %v6357 = vld [vmem:[%s6285 + $0x238] sm:$0xff]
    %v6430 = vunpack.c.l.b16 %v6286
    %v6431 = vunpack.c.h.b16 %v6286
    %v6432 = vunpack.c.l.b16 %v6287
    %v6433 = vunpack.c.h.b16 %v6287
    %v6434 = vunpack.c.l.b16 %v6288
    %v6435 = vunpack.c.h.b16 %v6288
    %v6436 = vunpack.c.l.b16 %v6289
    %v6437 = vunpack.c.h.b16 %v6289
    %v6438 = vunpack.c.l.b16 %v6290
    %v6439 = vunpack.c.h.b16 %v6290
    %v6440 = vunpack.c.l.b16 %v6291
    %v6441 = vunpack.c.h.b16 %v6291
    %v6442 = vunpack.c.l.b16 %v6292
    %v6443 = vunpack.c.h.b16 %v6292
    %v6444 = vunpack.c.l.b16 %v6293
    %v6445 = vunpack.c.h.b16 %v6293
    %v6446 = vunpack.c.l.b16 %v6294
    %v6447 = vunpack.c.h.b16 %v6294
    %v6448 = vunpack.c.l.b16 %v6295
    %v6449 = vunpack.c.h.b16 %v6295
    %v6450 = vunpack.c.l.b16 %v6296
    %v6451 = vunpack.c.h.b16 %v6296
    %v6452 = vunpack.c.l.b16 %v6297
    %v6453 = vunpack.c.h.b16 %v6297
    %v6454 = vunpack.c.l.b16 %v6298
    %v6455 = vunpack.c.h.b16 %v6298
    %v6456 = vunpack.c.l.b16 %v6299
    %v6457 = vunpack.c.h.b16 %v6299
    %v6458 = vunpack.c.l.b16 %v6300
    %v6459 = vunpack.c.h.b16 %v6300
    %v6460 = vunpack.c.l.b16 %v6301
    %v6461 = vunpack.c.h.b16 %v6301
    %v6462 = vunpack.c.l.b16 %v6302
    %v6463 = vunpack.c.h.b16 %v6302
    %v6464 = vunpack.c.l.b16 %v6303
    %v6465 = vunpack.c.h.b16 %v6303
    %v6466 = vunpack.c.l.b16 %v6304
    %v6467 = vunpack.c.h.b16 %v6304
    %v6468 = vunpack.c.l.b16 %v6305
    %v6469 = vunpack.c.h.b16 %v6305
    %v6470 = vunpack.c.l.b16 %v6306
    %v6471 = vunpack.c.h.b16 %v6306
    %v6472 = vunpack.c.l.b16 %v6307
    %v6473 = vunpack.c.h.b16 %v6307
    %v6474 = vunpack.c.l.b16 %v6308
    %v6475 = vunpack.c.h.b16 %v6308
    %v6476 = vunpack.c.l.b16 %v6309
    %v6477 = vunpack.c.h.b16 %v6309
    %v6478 = vunpack.c.l.b16 %v6310
    %v6479 = vunpack.c.h.b16 %v6310
    %v6480 = vunpack.c.l.b16 %v6311
    %v6481 = vunpack.c.h.b16 %v6311
    %v6482 = vunpack.c.l.b16 %v6312
    %v6483 = vunpack.c.h.b16 %v6312
    %v6484 = vunpack.c.l.b16 %v6313
    %v6485 = vunpack.c.h.b16 %v6313
    %v6486 = vunpack.c.l.b16 %v6314
    %v6487 = vunpack.c.h.b16 %v6314
    %v6488 = vunpack.c.l.b16 %v6315
    %v6489 = vunpack.c.h.b16 %v6315
    %v6490 = vunpack.c.l.b16 %v6316
    %v6491 = vunpack.c.h.b16 %v6316
    %v6492 = vunpack.c.l.b16 %v6317
    %v6493 = vunpack.c.h.b16 %v6317
    %v6494 = vunpack.c.l.b16 %v6318
    %v6495 = vunpack.c.h.b16 %v6318
    %v6496 = vunpack.c.l.b16 %v6319
    %v6497 = vunpack.c.h.b16 %v6319
    %v6498 = vunpack.c.l.b16 %v6320
    %v6499 = vunpack.c.h.b16 %v6320
    %v6500 = vunpack.c.l.b16 %v6321
    %v6501 = vunpack.c.h.b16 %v6321
    %v6502 = vunpack.c.l.b16 %v6322
    %v6503 = vunpack.c.h.b16 %v6322
    %v6504 = vunpack.c.l.b16 %v6323
    %v6505 = vunpack.c.h.b16 %v6323
    %v6506 = vunpack.c.l.b16 %v6324
    %v6507 = vunpack.c.h.b16 %v6324
    %v6508 = vunpack.c.l.b16 %v6325
    %v6509 = vunpack.c.h.b16 %v6325
    %v6510 = vunpack.c.l.b16 %v6326
    %v6511 = vunpack.c.h.b16 %v6326
    %v6512 = vunpack.c.l.b16 %v6327
    %v6513 = vunpack.c.h.b16 %v6327
    %v6514 = vunpack.c.l.b16 %v6328
    %v6515 = vunpack.c.h.b16 %v6328
    %v6516 = vunpack.c.l.b16 %v6329
    %v6517 = vunpack.c.h.b16 %v6329
    %v6518 = vunpack.c.l.b16 %v6330
    %v6519 = vunpack.c.h.b16 %v6330
    %v6520 = vunpack.c.l.b16 %v6331
    %v6521 = vunpack.c.h.b16 %v6331
    %v6522 = vunpack.c.l.b16 %v6332
    %v6523 = vunpack.c.h.b16 %v6332
    %v6524 = vunpack.c.l.b16 %v6333
    %v6525 = vunpack.c.h.b16 %v6333
    %v6526 = vunpack.c.l.b16 %v6334
    %v6527 = vunpack.c.h.b16 %v6334
    %v6528 = vunpack.c.l.b16 %v6335
    %v6529 = vunpack.c.h.b16 %v6335
    %v6530 = vunpack.c.l.b16 %v6336
    %v6531 = vunpack.c.h.b16 %v6336
    %v6532 = vunpack.c.l.b16 %v6337
    %v6533 = vunpack.c.h.b16 %v6337
    %v6534 = vunpack.c.l.b16 %v6338
    %v6535 = vunpack.c.h.b16 %v6338
    %v6536 = vunpack.c.l.b16 %v6339
    %v6537 = vunpack.c.h.b16 %v6339
    %v6538 = vunpack.c.l.b16 %v6340
    %v6539 = vunpack.c.h.b16 %v6340
    %v6540 = vunpack.c.l.b16 %v6341
    %v6541 = vunpack.c.h.b16 %v6341
    %v6542 = vunpack.c.l.b16 %v6342
    %v6543 = vunpack.c.h.b16 %v6342
    %v6544 = vunpack.c.l.b16 %v6343
    %v6545 = vunpack.c.h.b16 %v6343
    %v6546 = vunpack.c.l.b16 %v6344
    %v6547 = vunpack.c.h.b16 %v6344
    %v6548 = vunpack.c.l.b16 %v6345
    %v6549 = vunpack.c.h.b16 %v6345
    %v6550 = vunpack.c.l.b16 %v6346
    %v6551 = vunpack.c.h.b16 %v6346
    %v6552 = vunpack.c.l.b16 %v6347
    %v6553 = vunpack.c.h.b16 %v6347
    %v6554 = vunpack.c.l.b16 %v6348
    %v6555 = vunpack.c.h.b16 %v6348
    %v6556 = vunpack.c.l.b16 %v6349
    %v6557 = vunpack.c.h.b16 %v6349
    %v6558 = vunpack.c.l.b16 %v6350
    %v6559 = vunpack.c.h.b16 %v6350
    %v6560 = vunpack.c.l.b16 %v6351
    %v6561 = vunpack.c.h.b16 %v6351
    %v6562 = vunpack.c.l.b16 %v6352
    %v6563 = vunpack.c.h.b16 %v6352
    %v6564 = vunpack.c.l.b16 %v6353
    %v6565 = vunpack.c.h.b16 %v6353
    %v6566 = vunpack.c.l.b16 %v6354
    %v6567 = vunpack.c.h.b16 %v6354
    %v6568 = vunpack.c.l.b16 %v6355
    %v6569 = vunpack.c.h.b16 %v6355
    %v6570 = vunpack.c.l.b16 %v6356
    %v6571 = vunpack.c.h.b16 %v6356
    %v6572 = vunpack.c.l.b16 %v6357
    %v6573 = vunpack.c.h.b16 %v6357
    %v6574 = vpack.c.b16 %v6432, %v6430
    %v6575 = vpack.c.b16 %v6433, %v6431
    %v6576 = vpack.c.b16 %v6436, %v6434
    %v6577 = vpack.c.b16 %v6437, %v6435
    %v6578 = vpack.c.b16 %v6440, %v6438
    %v6579 = vpack.c.b16 %v6441, %v6439
    %v6580 = vpack.c.b16 %v6444, %v6442
    %v6581 = vpack.c.b16 %v6445, %v6443
    %v6582 = vpack.c.b16 %v6448, %v6446
    %v6583 = vpack.c.b16 %v6449, %v6447
    %v6584 = vpack.c.b16 %v6452, %v6450
    %v6585 = vpack.c.b16 %v6453, %v6451
    %v6586 = vpack.c.b16 %v6456, %v6454
    %v6587 = vpack.c.b16 %v6457, %v6455
    %v6588 = vpack.c.b16 %v6460, %v6458
    %v6589 = vpack.c.b16 %v6461, %v6459
    %v6590 = vpack.c.b16 %v6464, %v6462
    %v6591 = vpack.c.b16 %v6465, %v6463
    %v6592 = vpack.c.b16 %v6468, %v6466
    %v6593 = vpack.c.b16 %v6469, %v6467
    %v6594 = vpack.c.b16 %v6472, %v6470
    %v6595 = vpack.c.b16 %v6473, %v6471
    %v6596 = vpack.c.b16 %v6476, %v6474
    %v6597 = vpack.c.b16 %v6477, %v6475
    %v6598 = vpack.c.b16 %v6480, %v6478
    %v6599 = vpack.c.b16 %v6481, %v6479
    %v6600 = vpack.c.b16 %v6484, %v6482
    %v6601 = vpack.c.b16 %v6485, %v6483
    %v6602 = vpack.c.b16 %v6488, %v6486
    %v6603 = vpack.c.b16 %v6489, %v6487
    %v6604 = vpack.c.b16 %v6492, %v6490
    %v6605 = vpack.c.b16 %v6493, %v6491
    %v6606 = vpack.c.b16 %v6496, %v6494
    %v6607 = vpack.c.b16 %v6497, %v6495
    %v6608 = vpack.c.b16 %v6500, %v6498
    %v6609 = vpack.c.b16 %v6501, %v6499
    %v6610 = vpack.c.b16 %v6504, %v6502
    %v6611 = vpack.c.b16 %v6505, %v6503
    %v6612 = vpack.c.b16 %v6508, %v6506
    %v6613 = vpack.c.b16 %v6509, %v6507
    %v6614 = vpack.c.b16 %v6512, %v6510
    %v6615 = vpack.c.b16 %v6513, %v6511
    %v6616 = vpack.c.b16 %v6516, %v6514
    %v6617 = vpack.c.b16 %v6517, %v6515
    %v6618 = vpack.c.b16 %v6520, %v6518
    %v6619 = vpack.c.b16 %v6521, %v6519
    %v6620 = vpack.c.b16 %v6524, %v6522
    %v6621 = vpack.c.b16 %v6525, %v6523
    %v6622 = vpack.c.b16 %v6528, %v6526
    %v6623 = vpack.c.b16 %v6529, %v6527
    %v6624 = vpack.c.b16 %v6532, %v6530
    %v6625 = vpack.c.b16 %v6533, %v6531
    %v6626 = vpack.c.b16 %v6536, %v6534
    %v6627 = vpack.c.b16 %v6537, %v6535
    %v6628 = vpack.c.b16 %v6540, %v6538
    %v6629 = vpack.c.b16 %v6541, %v6539
    %v6630 = vpack.c.b16 %v6544, %v6542
    %v6631 = vpack.c.b16 %v6545, %v6543
    %v6632 = vpack.c.b16 %v6548, %v6546
    %v6633 = vpack.c.b16 %v6549, %v6547
    %v6634 = vpack.c.b16 %v6552, %v6550
    %v6635 = vpack.c.b16 %v6553, %v6551
    %v6636 = vpack.c.b16 %v6556, %v6554
    %v6637 = vpack.c.b16 %v6557, %v6555
    %v6638 = vpack.c.b16 %v6560, %v6558
    %v6639 = vpack.c.b16 %v6561, %v6559
    %v6640 = vpack.c.b16 %v6564, %v6562
    %v6641 = vpack.c.b16 %v6565, %v6563
    %v6642 = vpack.c.b16 %v6568, %v6566
    %v6643 = vpack.c.b16 %v6569, %v6567
    %v6644 = vpack.c.b16 %v6572, %v6570
    %v6645 = vpack.c.b16 %v6573, %v6571
    %v6719 = vsel %vm804, %v4012, 0
    %6721 = vmatprep.subr.bf16.mxu0 %v6575
    %6722 = vmatpush1.bf16.msra.mxu0 %v6574
    %6723 = vmatprep.subr.bf16.mxu0 %v6577
    %6724 = vmatpush1.bf16.msra.mxu0 %v6576
    %6725 = vmatprep.subr.bf16.mxu0 %v6579
    %6726 = vmatpush1.bf16.msra.mxu0 %v6578
    %6727 = vmatprep.subr.bf16.mxu0 %v6581
    %6728 = vmatpush1.bf16.msra.mxu0 %v6580
    %6729 = vmatprep.subr.bf16.mxu0 %v6583
    %6730 = vmatpush1.bf16.msra.mxu0 %v6582
    %6731 = vmatprep.subr.bf16.mxu0 %v6585
    %6732 = vmatpush1.bf16.msra.mxu0 %v6584
    %6733 = vmatprep.subr.bf16.mxu0 %v6587
    %6734 = vmatpush1.bf16.msra.mxu0 %v6586
    %6735 = vmatprep.subr.bf16.mxu0 %v6589
    %6736 = vmatpush1.bf16.msra.mxu0 %v6588
    %6737 = vmatprep.subr.bf16.mxu0 %v6591
    %6738 = vmatpush1.bf16.msra.mxu0 %v6590
    %6739 = vmatprep.subr.bf16.mxu0 %v6593
    %6740 = vmatpush1.bf16.msra.mxu0 %v6592
    %6741 = vmatprep.subr.bf16.mxu0 %v6595
    %6742 = vmatpush1.bf16.msra.mxu0 %v6594
    %6743 = vmatprep.subr.bf16.mxu0 %v6597
    %6744 = vmatpush1.bf16.msra.mxu0 %v6596
    %6745 = vmatprep.subr.bf16.mxu0 %v6599
    %6746 = vmatpush1.bf16.msra.mxu0 %v6598
    %6747 = vmatprep.subr.bf16.mxu0 %v6601
    %6748 = vmatpush1.bf16.msra.mxu0 %v6600
    %6749 = vmatprep.subr.bf16.mxu0 %v6603
    %6750 = vmatpush1.bf16.msra.mxu0 %v6602
    %6751 = vmatprep.subr.bf16.mxu0 %v6605
    %6752 = vmatpush1.bf16.msra.mxu0 %v6604
    %6753 = vmatprep.mubr.bf16.mxu0 %v4009
    %6754 = vmatmul.mubr.bf16.gmra.mrb[0].mxu0 %v4008
    %v6755 = vpop.f32.mrb[0].mxu0
    %v6756 = vadd.f32 0.0, %v6755
    %v6757 = vpop.f32.mrb[0].mxu0
    %v6758 = vadd.f32 0.0, %v6757
    %v6759 = vpop.f32.mrb[0].mxu0
    %v6760 = vadd.f32 0.0, %v6759
    %v6761 = vpop.f32.mrb[0].mxu0
    %v6762 = vadd.f32 0.0, %v6761
    %6763 = vdwg.mxu0
    %6764 = vmatprep.subr.bf16.mxu0 %v6607
    %6765 = vmatpush1.bf16.msra.mxu0 %v6606
    %6766 = vmatprep.subr.bf16.mxu0 %v6609
    %6767 = vmatpush1.bf16.msra.mxu0 %v6608
    %6768 = vmatprep.subr.bf16.mxu0 %v6611
    %6769 = vmatpush1.bf16.msra.mxu0 %v6610
    %6770 = vmatprep.subr.bf16.mxu0 %v6613
    %6771 = vmatpush1.bf16.msra.mxu0 %v6612
    %6772 = vmatprep.subr.bf16.mxu0 %v6615
    %6773 = vmatpush1.bf16.msra.mxu0 %v6614
    %6774 = vmatprep.subr.bf16.mxu0 %v6617
    %6775 = vmatpush1.bf16.msra.mxu0 %v6616
    %6776 = vmatprep.subr.bf16.mxu0 %v6619
    %6777 = vmatpush1.bf16.msra.mxu0 %v6618
    %6778 = vmatprep.subr.bf16.mxu0 %v6621
    %6779 = vmatpush1.bf16.msra.mxu0 %v6620
    %6780 = vmatprep.subr.bf16.mxu0 %v6623
    %6781 = vmatpush1.bf16.msra.mxu0 %v6622
    %6782 = vmatprep.subr.bf16.mxu0 %v6625
    %6783 = vmatpush1.bf16.msra.mxu0 %v6624
    %6784 = vmatprep.subr.bf16.mxu0 %v6627
    %6785 = vmatpush1.bf16.msra.mxu0 %v6626
    %6786 = vmatprep.subr.bf16.mxu0 %v6629
    %6787 = vmatpush1.bf16.msra.mxu0 %v6628
    %6788 = vmatprep.subr.bf16.mxu0 %v6631
    %6789 = vmatpush1.bf16.msra.mxu0 %v6630
    %6790 = vmatprep.subr.bf16.mxu0 %v6633
    %6791 = vmatpush1.bf16.msra.mxu0 %v6632
    %6792 = vmatprep.subr.bf16.mxu0 %v6635
    %6793 = vmatpush1.bf16.msra.mxu0 %v6634
    %6794 = vmatprep.subr.bf16.mxu0 %v6637
    %6795 = vmatpush1.bf16.msra.mxu0 %v6636
    %6796 = vmatprep.mubr.bf16.mxu0 %v4011
    %6797 = vmatmul.mubr.bf16.gmra.mrb[0].mxu0 %v4010
    %v6798 = vpop.f32.mrb[0].mxu0
    %v6799 = vadd.f32 %v6756, %v6798
    %v6800 = vpop.f32.mrb[0].mxu0
    %v6801 = vadd.f32 %v6758, %v6800
    %v6802 = vpop.f32.mrb[0].mxu0
    %v6803 = vadd.f32 %v6760, %v6802
    %v6804 = vpop.f32.mrb[0].mxu0
    %v6805 = vadd.f32 %v6762, %v6804
    %6806 = vdwg.mxu0
    %6807 = vmatprep.subr.bf16.mxu0 %v6639
    %6808 = vmatpush1.bf16.msra.mxu0 %v6638
    %6809 = vmatprep.subr.bf16.mxu0 %v6641
    %6810 = vmatpush1.bf16.msra.mxu0 %v6640
    %6811 = vmatprep.subr.bf16.mxu0 %v6643
    %6812 = vmatpush1.bf16.msra.mxu0 %v6642
    %6813 = vmatprep.subr.bf16.mxu0 %v6645
    %6814 = vmatpush1.bf16.msra.mxu0 %v6644
    %6815 = vmatprep.subr.bf16.mxu0 0
    %6816 = vmatpush1.bf16.msra.mxu0 0
    %6817 = vmatprep.subr.bf16.mxu0 0
    %6818 = vmatpush1.bf16.msra.mxu0 0
    %6819 = vmatprep.subr.bf16.mxu0 0
    %6820 = vmatpush1.bf16.msra.mxu0 0
    %6821 = vmatprep.subr.bf16.mxu0 0
    %6822 = vmatpush1.bf16.msra.mxu0 0
    %6823 = vmatprep.subr.bf16.mxu0 0
    %6824 = vmatpush1.bf16.msra.mxu0 0
    %6825 = vmatprep.subr.bf16.mxu0 0
    %6826 = vmatpush1.bf16.msra.mxu0 0
    %6827 = vmatprep.subr.bf16.mxu0 0
    %6828 = vmatpush1.bf16.msra.mxu0 0
    %6829 = vmatprep.subr.bf16.mxu0 0
    %6830 = vmatpush1.bf16.msra.mxu0 0
    %6831 = vmatprep.subr.bf16.mxu0 0
    %6832 = vmatpush1.bf16.msra.mxu0 0
    %6833 = vmatprep.subr.bf16.mxu0 0
    %6834 = vmatpush1.bf16.msra.mxu0 0
    %6835 = vmatprep.subr.bf16.mxu0 0
    %6836 = vmatpush1.bf16.msra.mxu0 0
    %6837 = vmatprep.subr.bf16.mxu0 0
    %6838 = vmatpush1.bf16.msra.mxu0 0
    %6839 = vmatprep.mubr.bf16.mxu0 0
    %6840 = vmatmul.mubr.bf16.gmra.mrb[0].mxu0 %v6719
    %v6841 = vpop.f32.mrb[0].mxu0
    %v6842 = vadd.f32 %v6799, %v6841
    %v6843 = vpop.f32.mrb[0].mxu0
    %v6844 = vadd.f32 %v6801, %v6843
    %v6845 = vpop.f32.mrb[0].mxu0
    %v6846 = vadd.f32 %v6803, %v6845
    %v6847 = vpop.f32.mrb[0].mxu0
    %v6848 = vadd.f32 %v6805, %v6847
    %6849 = vdwg.mxu0
    %v6850 = vadd.f32 %v6281, %v6842
    %v6851 = vadd.f32 %v6282, %v6844
    %v6852 = vadd.f32 %v6283, %v6846
    %v6853 = vadd.f32 %v6284, %v6848
    %s6854 = scalar_lea.vmem [#allocation12], 2880
    %v6855 = vld [vmem:[%s6854] sm:$0xff]
    %v6856 = vld [vmem:[%s6854 + $0x8] sm:$0xff]
    %v6857 = vld [vmem:[%s6854 + $0x10] sm:$0xff]
    %v6858 = vld [vmem:[%s6854 + $0x18] sm:$0xff]
    %v6859 = vld [vmem:[%s6854 + $0x20] sm:$0xff]
    %v6860 = vld [vmem:[%s6854 + $0x28] sm:$0xff]
    %v6861 = vld [vmem:[%s6854 + $0x30] sm:$0xff]
    %v6862 = vld [vmem:[%s6854 + $0x38] sm:$0xff]
    %v6863 = vld [vmem:[%s6854 + $0x40] sm:$0xff]
    %v6864 = vld [vmem:[%s6854 + $0x48] sm:$0xff]
    %v6865 = vld [vmem:[%s6854 + $0x50] sm:$0xff]
    %v6866 = vld [vmem:[%s6854 + $0x58] sm:$0xff]
    %v6867 = vld [vmem:[%s6854 + $0x60] sm:$0xff]
    %v6868 = vld [vmem:[%s6854 + $0x68] sm:$0xff]
    %v6869 = vld [vmem:[%s6854 + $0x70] sm:$0xff]
    %v6870 = vld [vmem:[%s6854 + $0x78] sm:$0xff]
    %v6871 = vld [vmem:[%s6854 + $0x80] sm:$0xff]
    %v6872 = vld [vmem:[%s6854 + $0x88] sm:$0xff]
    %v6873 = vld [vmem:[%s6854 + $0x90] sm:$0xff]
    %v6874 = vld [vmem:[%s6854 + $0x98] sm:$0xff]
    %v6875 = vld [vmem:[%s6854 + $0xa0] sm:$0xff]
    %v6876 = vld [vmem:[%s6854 + $0xa8] sm:$0xff]
    %v6877 = vld [vmem:[%s6854 + $0xb0] sm:$0xff]
    %v6878 = vld [vmem:[%s6854 + $0xb8] sm:$0xff]
    %v6879 = vld [vmem:[%s6854 + $0xc0] sm:$0xff]
    %v6880 = vld [vmem:[%s6854 + $0xc8] sm:$0xff]
    %v6881 = vld [vmem:[%s6854 + $0xd0] sm:$0xff]
    %v6882 = vld [vmem:[%s6854 + $0xd8] sm:$0xff]
    %v6883 = vld [vmem:[%s6854 + $0xe0] sm:$0xff]
    %v6884 = vld [vmem:[%s6854 + $0xe8] sm:$0xff]
    %v6885 = vld [vmem:[%s6854 + $0xf0] sm:$0xff]
    %v6886 = vld [vmem:[%s6854 + $0xf8] sm:$0xff]
    %v6887 = vld [vmem:[%s6854 + $0x100] sm:$0xff]
    %v6888 = vld [vmem:[%s6854 + $0x108] sm:$0xff]
    %v6889 = vld [vmem:[%s6854 + $0x110] sm:$0xff]
    %v6890 = vld [vmem:[%s6854 + $0x118] sm:$0xff]
    %v6891 = vld [vmem:[%s6854 + $0x120] sm:$0xff]
    %v6892 = vld [vmem:[%s6854 + $0x128] sm:$0xff]
    %v6893 = vld [vmem:[%s6854 + $0x130] sm:$0xff]
    %v6894 = vld [vmem:[%s6854 + $0x138] sm:$0xff]
    %v6895 = vld [vmem:[%s6854 + $0x140] sm:$0xff]
    %v6896 = vld [vmem:[%s6854 + $0x148] sm:$0xff]
    %v6897 = vld [vmem:[%s6854 + $0x150] sm:$0xff]
    %v6898 = vld [vmem:[%s6854 + $0x158] sm:$0xff]
    %v6899 = vld [vmem:[%s6854 + $0x160] sm:$0xff]
    %v6900 = vld [vmem:[%s6854 + $0x168] sm:$0xff]
    %v6901 = vld [vmem:[%s6854 + $0x170] sm:$0xff]
    %v6902 = vld [vmem:[%s6854 + $0x178] sm:$0xff]
    %v6903 = vld [vmem:[%s6854 + $0x180] sm:$0xff]
    %v6904 = vld [vmem:[%s6854 + $0x188] sm:$0xff]
    %v6905 = vld [vmem:[%s6854 + $0x190] sm:$0xff]
    %v6906 = vld [vmem:[%s6854 + $0x198] sm:$0xff]
    %v6907 = vld [vmem:[%s6854 + $0x1a0] sm:$0xff]
    %v6908 = vld [vmem:[%s6854 + $0x1a8] sm:$0xff]
    %v6909 = vld [vmem:[%s6854 + $0x1b0] sm:$0xff]
    %v6910 = vld [vmem:[%s6854 + $0x1b8] sm:$0xff]
    %v6911 = vld [vmem:[%s6854 + $0x1c0] sm:$0xff]
    %v6912 = vld [vmem:[%s6854 + $0x1c8] sm:$0xff]
    %v6913 = vld [vmem:[%s6854 + $0x1d0] sm:$0xff]
    %v6914 = vld [vmem:[%s6854 + $0x1d8] sm:$0xff]
    %v6915 = vld [vmem:[%s6854 + $0x1e0] sm:$0xff]
    %v6916 = vld [vmem:[%s6854 + $0x1e8] sm:$0xff]
    %v6917 = vld [vmem:[%s6854 + $0x1f0] sm:$0xff]
    %v6918 = vld [vmem:[%s6854 + $0x1f8] sm:$0xff]
    %v6919 = vld [vmem:[%s6854 + $0x200] sm:$0xff]
    %v6920 = vld [vmem:[%s6854 + $0x208] sm:$0xff]
    %v6921 = vld [vmem:[%s6854 + $0x210] sm:$0xff]
    %v6922 = vld [vmem:[%s6854 + $0x218] sm:$0xff]
    %v6923 = vld [vmem:[%s6854 + $0x220] sm:$0xff]
    %v6924 = vld [vmem:[%s6854 + $0x228] sm:$0xff]
    %v6925 = vld [vmem:[%s6854 + $0x230] sm:$0xff]
    %v6926 = vld [vmem:[%s6854 + $0x238] sm:$0xff]
    %v6999 = vunpack.c.l.b16 %v6855
    %v7000 = vunpack.c.h.b16 %v6855
    %v7001 = vunpack.c.l.b16 %v6856
    %v7002 = vunpack.c.h.b16 %v6856
    %v7003 = vunpack.c.l.b16 %v6857
    %v7004 = vunpack.c.h.b16 %v6857
    %v7005 = vunpack.c.l.b16 %v6858
    %v7006 = vunpack.c.h.b16 %v6858
    %v7007 = vunpack.c.l.b16 %v6859
    %v7008 = vunpack.c.h.b16 %v6859
    %v7009 = vunpack.c.l.b16 %v6860
    %v7010 = vunpack.c.h.b16 %v6860
    %v7011 = vunpack.c.l.b16 %v6861
    %v7012 = vunpack.c.h.b16 %v6861
    %v7013 = vunpack.c.l.b16 %v6862
    %v7014 = vunpack.c.h.b16 %v6862
    %v7015 = vunpack.c.l.b16 %v6863
    %v7016 = vunpack.c.h.b16 %v6863
    %v7017 = vunpack.c.l.b16 %v6864
    %v7018 = vunpack.c.h.b16 %v6864
    %v7019 = vunpack.c.l.b16 %v6865
    %v7020 = vunpack.c.h.b16 %v6865
    %v7021 = vunpack.c.l.b16 %v6866
    %v7022 = vunpack.c.h.b16 %v6866
    %v7023 = vunpack.c.l.b16 %v6867
    %v7024 = vunpack.c.h.b16 %v6867
    %v7025 = vunpack.c.l.b16 %v6868
    %v7026 = vunpack.c.h.b16 %v6868
    %v7027 = vunpack.c.l.b16 %v6869
    %v7028 = vunpack.c.h.b16 %v6869
    %v7029 = vunpack.c.l.b16 %v6870
    %v7030 = vunpack.c.h.b16 %v6870
    %v7031 = vunpack.c.l.b16 %v6871
    %v7032 = vunpack.c.h.b16 %v6871
    %v7033 = vunpack.c.l.b16 %v6872
    %v7034 = vunpack.c.h.b16 %v6872
    %v7035 = vunpack.c.l.b16 %v6873
    %v7036 = vunpack.c.h.b16 %v6873
    %v7037 = vunpack.c.l.b16 %v6874
    %v7038 = vunpack.c.h.b16 %v6874
    %v7039 = vunpack.c.l.b16 %v6875
    %v7040 = vunpack.c.h.b16 %v6875
    %v7041 = vunpack.c.l.b16 %v6876
    %v7042 = vunpack.c.h.b16 %v6876
    %v7043 = vunpack.c.l.b16 %v6877
    %v7044 = vunpack.c.h.b16 %v6877
    %v7045 = vunpack.c.l.b16 %v6878
    %v7046 = vunpack.c.h.b16 %v6878
    %v7047 = vunpack.c.l.b16 %v6879
    %v7048 = vunpack.c.h.b16 %v6879
    %v7049 = vunpack.c.l.b16 %v6880
    %v7050 = vunpack.c.h.b16 %v6880
    %v7051 = vunpack.c.l.b16 %v6881
    %v7052 = vunpack.c.h.b16 %v6881
    %v7053 = vunpack.c.l.b16 %v6882
    %v7054 = vunpack.c.h.b16 %v6882
    %v7055 = vunpack.c.l.b16 %v6883
    %v7056 = vunpack.c.h.b16 %v6883
    %v7057 = vunpack.c.l.b16 %v6884
    %v7058 = vunpack.c.h.b16 %v6884
    %v7059 = vunpack.c.l.b16 %v6885
    %v7060 = vunpack.c.h.b16 %v6885
    %v7061 = vunpack.c.l.b16 %v6886
    %v7062 = vunpack.c.h.b16 %v6886
    %v7063 = vunpack.c.l.b16 %v6887
    %v7064 = vunpack.c.h.b16 %v6887
    %v7065 = vunpack.c.l.b16 %v6888
    %v7066 = vunpack.c.h.b16 %v6888
    %v7067 = vunpack.c.l.b16 %v6889
    %v7068 = vunpack.c.h.b16 %v6889
    %v7069 = vunpack.c.l.b16 %v6890
    %v7070 = vunpack.c.h.b16 %v6890
    %v7071 = vunpack.c.l.b16 %v6891
    %v7072 = vunpack.c.h.b16 %v6891
    %v7073 = vunpack.c.l.b16 %v6892
    %v7074 = vunpack.c.h.b16 %v6892
    %v7075 = vunpack.c.l.b16 %v6893
    %v7076 = vunpack.c.h.b16 %v6893
    %v7077 = vunpack.c.l.b16 %v6894
    %v7078 = vunpack.c.h.b16 %v6894
    %v7079 = vunpack.c.l.b16 %v6895
    %v7080 = vunpack.c.h.b16 %v6895
    %v7081 = vunpack.c.l.b16 %v6896
    %v7082 = vunpack.c.h.b16 %v6896
    %v7083 = vunpack.c.l.b16 %v6897
    %v7084 = vunpack.c.h.b16 %v6897
    %v7085 = vunpack.c.l.b16 %v6898
    %v7086 = vunpack.c.h.b16 %v6898
    %v7087 = vunpack.c.l.b16 %v6899
    %v7088 = vunpack.c.h.b16 %v6899
    %v7089 = vunpack.c.l.b16 %v6900
    %v7090 = vunpack.c.h.b16 %v6900
    %v7091 = vunpack.c.l.b16 %v6901
    %v7092 = vunpack.c.h.b16 %v6901
    %v7093 = vunpack.c.l.b16 %v6902
    %v7094 = vunpack.c.h.b16 %v6902
    %v7095 = vunpack.c.l.b16 %v6903
    %v7096 = vunpack.c.h.b16 %v6903
    %v7097 = vunpack.c.l.b16 %v6904
    %v7098 = vunpack.c.h.b16 %v6904
    %v7099 = vunpack.c.l.b16 %v6905
    %v7100 = vunpack.c.h.b16 %v6905
    %v7101 = vunpack.c.l.b16 %v6906
    %v7102 = vunpack.c.h.b16 %v6906
    %v7103 = vunpack.c.l.b16 %v6907
    %v7104 = vunpack.c.h.b16 %v6907
    %v7105 = vunpack.c.l.b16 %v6908
    %v7106 = vunpack.c.h.b16 %v6908
    %v7107 = vunpack.c.l.b16 %v6909
    %v7108 = vunpack.c.h.b16 %v6909
    %v7109 = vunpack.c.l.b16 %v6910
    %v7110 = vunpack.c.h.b16 %v6910
    %v7111 = vunpack.c.l.b16 %v6911
    %v7112 = vunpack.c.h.b16 %v6911
    %v7113 = vunpack.c.l.b16 %v6912
    %v7114 = vunpack.c.h.b16 %v6912
    %v7115 = vunpack.c.l.b16 %v6913
    %v7116 = vunpack.c.h.b16 %v6913
    %v7117 = vunpack.c.l.b16 %v6914
    %v7118 = vunpack.c.h.b16 %v6914
    %v7119 = vunpack.c.l.b16 %v6915
    %v7120 = vunpack.c.h.b16 %v6915
    %v7121 = vunpack.c.l.b16 %v6916
    %v7122 = vunpack.c.h.b16 %v6916
    %v7123 = vunpack.c.l.b16 %v6917
    %v7124 = vunpack.c.h.b16 %v6917
    %v7125 = vunpack.c.l.b16 %v6918
    %v7126 = vunpack.c.h.b16 %v6918
    %v7127 = vunpack.c.l.b16 %v6919
    %v7128 = vunpack.c.h.b16 %v6919
    %v7129 = vunpack.c.l.b16 %v6920
    %v7130 = vunpack.c.h.b16 %v6920
    %v7131 = vunpack.c.l.b16 %v6921
    %v7132 = vunpack.c.h.b16 %v6921
    %v7133 = vunpack.c.l.b16 %v6922
    %v7134 = vunpack.c.h.b16 %v6922
    %v7135 = vunpack.c.l.b16 %v6923
    %v7136 = vunpack.c.h.b16 %v6923
    %v7137 = vunpack.c.l.b16 %v6924
    %v7138 = vunpack.c.h.b16 %v6924
    %v7139 = vunpack.c.l.b16 %v6925
    %v7140 = vunpack.c.h.b16 %v6925
    %v7141 = vunpack.c.l.b16 %v6926
    %v7142 = vunpack.c.h.b16 %v6926
    %v7143 = vpack.c.b16 %v7001, %v6999
    %v7144 = vpack.c.b16 %v7002, %v7000
    %v7145 = vpack.c.b16 %v7005, %v7003
    %v7146 = vpack.c.b16 %v7006, %v7004
    %v7147 = vpack.c.b16 %v7009, %v7007
    %v7148 = vpack.c.b16 %v7010, %v7008
    %v7149 = vpack.c.b16 %v7013, %v7011
    %v7150 = vpack.c.b16 %v7014, %v7012
    %v7151 = vpack.c.b16 %v7017, %v7015
    %v7152 = vpack.c.b16 %v7018, %v7016
    %v7153 = vpack.c.b16 %v7021, %v7019
    %v7154 = vpack.c.b16 %v7022, %v7020
    %v7155 = vpack.c.b16 %v7025, %v7023
    %v7156 = vpack.c.b16 %v7026, %v7024
    %v7157 = vpack.c.b16 %v7029, %v7027
    %v7158 = vpack.c.b16 %v7030, %v7028
    %v7159 = vpack.c.b16 %v7033, %v7031
    %v7160 = vpack.c.b16 %v7034, %v7032
    %v7161 = vpack.c.b16 %v7037, %v7035
    %v7162 = vpack.c.b16 %v7038, %v7036
    %v7163 = vpack.c.b16 %v7041, %v7039
    %v7164 = vpack.c.b16 %v7042, %v7040
    %v7165 = vpack.c.b16 %v7045, %v7043
    %v7166 = vpack.c.b16 %v7046, %v7044
    %v7167 = vpack.c.b16 %v7049, %v7047
    %v7168 = vpack.c.b16 %v7050, %v7048
    %v7169 = vpack.c.b16 %v7053, %v7051
    %v7170 = vpack.c.b16 %v7054, %v7052
    %v7171 = vpack.c.b16 %v7057, %v7055
    %v7172 = vpack.c.b16 %v7058, %v7056
    %v7173 = vpack.c.b16 %v7061, %v7059
    %v7174 = vpack.c.b16 %v7062, %v7060
    %v7175 = vpack.c.b16 %v7065, %v7063
    %v7176 = vpack.c.b16 %v7066, %v7064
    %v7177 = vpack.c.b16 %v7069, %v7067
    %v7178 = vpack.c.b16 %v7070, %v7068
    %v7179 = vpack.c.b16 %v7073, %v7071
    %v7180 = vpack.c.b16 %v7074, %v7072
    %v7181 = vpack.c.b16 %v7077, %v7075
    %v7182 = vpack.c.b16 %v7078, %v7076
    %v7183 = vpack.c.b16 %v7081, %v7079
    %v7184 = vpack.c.b16 %v7082, %v7080
    %v7185 = vpack.c.b16 %v7085, %v7083
    %v7186 = vpack.c.b16 %v7086, %v7084
    %v7187 = vpack.c.b16 %v7089, %v7087
    %v7188 = vpack.c.b16 %v7090, %v7088
    %v7189 = vpack.c.b16 %v7093, %v7091
    %v7190 = vpack.c.b16 %v7094, %v7092
    %v7191 = vpack.c.b16 %v7097, %v7095
    %v7192 = vpack.c.b16 %v7098, %v7096
    %v7193 = vpack.c.b16 %v7101, %v7099
    %v7194 = vpack.c.b16 %v7102, %v7100
    %v7195 = vpack.c.b16 %v7105, %v7103
    %v7196 = vpack.c.b16 %v7106, %v7104
    %v7197 = vpack.c.b16 %v7109, %v7107
    %v7198 = vpack.c.b16 %v7110, %v7108
    %v7199 = vpack.c.b16 %v7113, %v7111
    %v7200 = vpack.c.b16 %v7114, %v7112
    %v7201 = vpack.c.b16 %v7117, %v7115
    %v7202 = vpack.c.b16 %v7118, %v7116
    %v7203 = vpack.c.b16 %v7121, %v7119
    %v7204 = vpack.c.b16 %v7122, %v7120
    %v7205 = vpack.c.b16 %v7125, %v7123
    %v7206 = vpack.c.b16 %v7126, %v7124
    %v7207 = vpack.c.b16 %v7129, %v7127
    %v7208 = vpack.c.b16 %v7130, %v7128
    %v7209 = vpack.c.b16 %v7133, %v7131
    %v7210 = vpack.c.b16 %v7134, %v7132
    %v7211 = vpack.c.b16 %v7137, %v7135
    %v7212 = vpack.c.b16 %v7138, %v7136
    %v7213 = vpack.c.b16 %v7141, %v7139
    %v7214 = vpack.c.b16 %v7142, %v7140
    %v7288 = vsel %vm804, %v4017, 0
    %7290 = vmatprep.subr.bf16.mxu0 %v7144
    %7291 = vmatpush1.bf16.msra.mxu0 %v7143
    %7292 = vmatprep.subr.bf16.mxu0 %v7146
    %7293 = vmatpush1.bf16.msra.mxu0 %v7145
    %7294 = vmatprep.subr.bf16.mxu0 %v7148
    %7295 = vmatpush1.bf16.msra.mxu0 %v7147
    %7296 = vmatprep.subr.bf16.mxu0 %v7150
    %7297 = vmatpush1.bf16.msra.mxu0 %v7149
    %7298 = vmatprep.subr.bf16.mxu0 %v7152
    %7299 = vmatpush1.bf16.msra.mxu0 %v7151
    %7300 = vmatprep.subr.bf16.mxu0 %v7154
    %7301 = vmatpush1.bf16.msra.mxu0 %v7153
    %7302 = vmatprep.subr.bf16.mxu0 %v7156
    %7303 = vmatpush1.bf16.msra.mxu0 %v7155
    %7304 = vmatprep.subr.bf16.mxu0 %v7158
    %7305 = vmatpush1.bf16.msra.mxu0 %v7157
    %7306 = vmatprep.subr.bf16.mxu0 %v7160
    %7307 = vmatpush1.bf16.msra.mxu0 %v7159
    %7308 = vmatprep.subr.bf16.mxu0 %v7162
    %7309 = vmatpush1.bf16.msra.mxu0 %v7161
    %7310 = vmatprep.subr.bf16.mxu0 %v7164
    %7311 = vmatpush1.bf16.msra.mxu0 %v7163
    %7312 = vmatprep.subr.bf16.mxu0 %v7166
    %7313 = vmatpush1.bf16.msra.mxu0 %v7165
    %7314 = vmatprep.subr.bf16.mxu0 %v7168
    %7315 = vmatpush1.bf16.msra.mxu0 %v7167
    %7316 = vmatprep.subr.bf16.mxu0 %v7170
    %7317 = vmatpush1.bf16.msra.mxu0 %v7169
    %7318 = vmatprep.subr.bf16.mxu0 %v7172
    %7319 = vmatpush1.bf16.msra.mxu0 %v7171
    %7320 = vmatprep.subr.bf16.mxu0 %v7174
    %7321 = vmatpush1.bf16.msra.mxu0 %v7173
    %7322 = vmatprep.mubr.bf16.mxu0 %v4014
    %7323 = vmatmul.mubr.bf16.gmra.mrb[0].mxu0 %v4013
    %v7324 = vpop.f32.mrb[0].mxu0
    %v7325 = vadd.f32 0.0, %v7324
    %v7326 = vpop.f32.mrb[0].mxu0
    %v7327 = vadd.f32 0.0, %v7326
    %v7328 = vpop.f32.mrb[0].mxu0
    %v7329 = vadd.f32 0.0, %v7328
    %v7330 = vpop.f32.mrb[0].mxu0
    %v7331 = vadd.f32 0.0, %v7330
    %7332 = vdwg.mxu0
    %7333 = vmatprep.subr.bf16.mxu0 %v7176
    %7334 = vmatpush1.bf16.msra.mxu0 %v7175
    %7335 = vmatprep.subr.bf16.mxu0 %v7178
    %7336 = vmatpush1.bf16.msra.mxu0 %v7177
    %7337 = vmatprep.subr.bf16.mxu0 %v7180
    %7338 = vmatpush1.bf16.msra.mxu0 %v7179
    %7339 = vmatprep.subr.bf16.mxu0 %v7182
    %7340 = vmatpush1.bf16.msra.mxu0 %v7181
    %7341 = vmatprep.subr.bf16.mxu0 %v7184
    %7342 = vmatpush1.bf16.msra.mxu0 %v7183
    %7343 = vmatprep.subr.bf16.mxu0 %v7186
    %7344 = vmatpush1.bf16.msra.mxu0 %v7185
    %7345 = vmatprep.subr.bf16.mxu0 %v7188
    %7346 = vmatpush1.bf16.msra.mxu0 %v7187
    %7347 = vmatprep.subr.bf16.mxu0 %v7190
    %7348 = vmatpush1.bf16.msra.mxu0 %v7189
    %7349 = vmatprep.subr.bf16.mxu0 %v7192
    %7350 = vmatpush1.bf16.msra.mxu0 %v7191
    %7351 = vmatprep.subr.bf16.mxu0 %v7194
    %7352 = vmatpush1.bf16.msra.mxu0 %v7193
    %7353 = vmatprep.subr.bf16.mxu0 %v7196
    %7354 = vmatpush1.bf16.msra.mxu0 %v7195
    %7355 = vmatprep.subr.bf16.mxu0 %v7198
    %7356 = vmatpush1.bf16.msra.mxu0 %v7197
    %7357 = vmatprep.subr.bf16.mxu0 %v7200
    %7358 = vmatpush1.bf16.msra.mxu0 %v7199
    %7359 = vmatprep.subr.bf16.mxu0 %v7202
    %7360 = vmatpush1.bf16.msra.mxu0 %v7201
    %7361 = vmatprep.subr.bf16.mxu0 %v7204
    %7362 = vmatpush1.bf16.msra.mxu0 %v7203
    %7363 = vmatprep.subr.bf16.mxu0 %v7206
    %7364 = vmatpush1.bf16.msra.mxu0 %v7205
    %7365 = vmatprep.mubr.bf16.mxu0 %v4016
    %7366 = vmatmul.mubr.bf16.gmra.mrb[0].mxu0 %v4015
    %v7367 = vpop.f32.mrb[0].mxu0
    %v7368 = vadd.f32 %v7325, %v7367
    %v7369 = vpop.f32.mrb[0].mxu0
    %v7370 = vadd.f32 %v7327, %v7369
    %v7371 = vpop.f32.mrb[0].mxu0
    %v7372 = vadd.f32 %v7329, %v7371
    %v7373 = vpop.f32.mrb[0].mxu0
    %v7374 = vadd.f32 %v7331, %v7373
    %7375 = vdwg.mxu0
    %7376 = vmatprep.subr.bf16.mxu0 %v7208
    %7377 = vmatpush1.bf16.msra.mxu0 %v7207
    %7378 = vmatprep.subr.bf16.mxu0 %v7210
    %7379 = vmatpush1.bf16.msra.mxu0 %v7209
    %7380 = vmatprep.subr.bf16.mxu0 %v7212
    %7381 = vmatpush1.bf16.msra.mxu0 %v7211
    %7382 = vmatprep.subr.bf16.mxu0 %v7214
    %7383 = vmatpush1.bf16.msra.mxu0 %v7213
    %7384 = vmatprep.subr.bf16.mxu0 0
    %7385 = vmatpush1.bf16.msra.mxu0 0
    %7386 = vmatprep.subr.bf16.mxu0 0
    %7387 = vmatpush1.bf16.msra.mxu0 0
    %7388 = vmatprep.subr.bf16.mxu0 0
    %7389 = vmatpush1.bf16.msra.mxu0 0
    %7390 = vmatprep.subr.bf16.mxu0 0
    %7391 = vmatpush1.bf16.msra.mxu0 0
    %7392 = vmatprep.subr.bf16.mxu0 0
    %7393 = vmatpush1.bf16.msra.mxu0 0
    %7394 = vmatprep.subr.bf16.mxu0 0
    %7395 = vmatpush1.bf16.msra.mxu0 0
    %7396 = vmatprep.subr.bf16.mxu0 0
    %7397 = vmatpush1.bf16.msra.mxu0 0
    %7398 = vmatprep.subr.bf16.mxu0 0
    %7399 = vmatpush1.bf16.msra.mxu0 0
    %7400 = vmatprep.subr.bf16.mxu0 0
    %7401 = vmatpush1.bf16.msra.mxu0 0
    %7402 = vmatprep.subr.bf16.mxu0 0
    %7403 = vmatpush1.bf16.msra.mxu0 0
    %7404 = vmatprep.subr.bf16.mxu0 0
    %7405 = vmatpush1.bf16.msra.mxu0 0
    %7406 = vmatprep.subr.bf16.mxu0 0
    %7407 = vmatpush1.bf16.msra.mxu0 0
    %7408 = vmatprep.mubr.bf16.mxu0 0
    %7409 = vmatmul.mubr.bf16.gmra.mrb[0].mxu0 %v7288
    %v7410 = vpop.f32.mrb[0].mxu0
    %v7411 = vadd.f32 %v7368, %v7410
    %v7412 = vpop.f32.mrb[0].mxu0
    %v7413 = vadd.f32 %v7370, %v7412
    %v7414 = vpop.f32.mrb[0].mxu0
    %v7415 = vadd.f32 %v7372, %v7414
    %v7416 = vpop.f32.mrb[0].mxu0
    %v7417 = vadd.f32 %v7374, %v7416
    %7418 = vdwg.mxu0
    %v7419 = vadd.f32 %v6850, %v7411
    %v7420 = vadd.f32 %v6851, %v7413
    %v7421 = vadd.f32 %v6852, %v7415
    %v7422 = vadd.f32 %v6853, %v7417
    %v7423 = vld [vmem:[#allocation14] ss:$2 sm:$0x3]
    %v7425 = vlaneseq
    %v7426 = vshrl.u32 %v7425, 7
    %v7427 = vsub.s32 0, %v7426
    %v7428 = vrot.slane %v7423, %v7427
    %v7429 = vlaneseq
    %v7430 = vshrl.u32 %v7429, 7
    %v7431 = vsub.s32 1, %v7430
    %v7432 = vrot.slane %v7423, %v7431
    %v7435 = vmul.f32 %v7419, %v7428
    %v7436 = vmul.f32 %v7420, %v7432
    %v7437 = vmul.f32 %v7421, %v7428
    %v7438 = vmul.f32 %v7422, %v7432
    %s7439 = scalar_lea.vmem [#allocation14], 1
    %v7440 = vld [vmem:[%s7439] ss:$2 sm:$0x3]
    %v7442 = vlaneseq
    %v7443 = vshrl.u32 %v7442, 7
    %v7444 = vsub.s32 0, %v7443
    %v7445 = vrot.slane %v7440, %v7444
    %v7446 = vlaneseq
    %v7447 = vshrl.u32 %v7446, 7
    %v7448 = vsub.s32 1, %v7447
    %v7449 = vrot.slane %v7440, %v7448
    %v7452 = vadd.f32 %v7435, %v7445
    %v7453 = vadd.f32 %v7436, %v7449
    %v7454 = vadd.f32 %v7437, %v7445
    %v7455 = vadd.f32 %v7438, %v7449
    %v7456 = vmax.f32 %v7452, 0.0
    %v7457 = vmax.f32 %v7453, 0.0
    %v7458 = vmax.f32 %v7454, 0.0
    %v7459 = vmax.f32 %v7455, 0.0
    %v7460 = vpack.c.bf16 %v7458, %v7456
    %v7461 = vpack.c.bf16 %v7459, %v7457
    %v7462 = vld [vmem:[#allocation15] sm:$0xff]
    %v7463 = vld [vmem:[#allocation15 + $0x8] sm:$0xff]
    %v7464 = vld [vmem:[#allocation15 + $0x10] sm:$0xff]
    %v7465 = vld [vmem:[#allocation15 + $0x18] sm:$0xff]
    %v7466 = vld [vmem:[#allocation15 + $0x20] sm:$0xff]
    %v7467 = vld [vmem:[#allocation15 + $0x28] sm:$0xff]
    %v7468 = vld [vmem:[#allocation15 + $0x30] sm:$0xff]
    %v7469 = vld [vmem:[#allocation15 + $0x38] sm:$0xff]
    %v7470 = vld [vmem:[#allocation15 + $0x40] sm:$0xff]
    %v7471 = vld [vmem:[#allocation15 + $0x48] sm:$0xff]
    %v7472 = vld [vmem:[#allocation15 + $0x50] sm:$0xff]
    %v7473 = vld [vmem:[#allocation15 + $0x58] sm:$0xff]
    %v7474 = vld [vmem:[#allocation15 + $0x60] sm:$0xff]
    %v7475 = vld [vmem:[#allocation15 + $0x68] sm:$0xff]
    %v7476 = vld [vmem:[#allocation15 + $0x70] sm:$0xff]
    %v7477 = vld [vmem:[#allocation15 + $0x78] sm:$0xff]
    %v7478 = vld [vmem:[#allocation15 + $0x80] sm:$0xff]
    %v7479 = vld [vmem:[#allocation15 + $0x88] sm:$0xff]
    %v7480 = vld [vmem:[#allocation15 + $0x90] sm:$0xff]
    %v7481 = vld [vmem:[#allocation15 + $0x98] sm:$0xff]
    %v7482 = vld [vmem:[#allocation15 + $0xa0] sm:$0xff]
    %v7483 = vld [vmem:[#allocation15 + $0xa8] sm:$0xff]
    %v7484 = vld [vmem:[#allocation15 + $0xb0] sm:$0xff]
    %v7485 = vld [vmem:[#allocation15 + $0xb8] sm:$0xff]
    %v7510 = vunpack.c.l.b16 %v7462
    %v7511 = vunpack.c.h.b16 %v7462
    %v7512 = vunpack.c.l.b16 %v7463
    %v7513 = vunpack.c.h.b16 %v7463
    %v7514 = vunpack.c.l.b16 %v7464
    %v7515 = vunpack.c.h.b16 %v7464
    %v7516 = vunpack.c.l.b16 %v7465
    %v7517 = vunpack.c.h.b16 %v7465
    %v7518 = vunpack.c.l.b16 %v7466
    %v7519 = vunpack.c.h.b16 %v7466
    %v7520 = vunpack.c.l.b16 %v7467
    %v7521 = vunpack.c.h.b16 %v7467
    %v7522 = vunpack.c.l.b16 %v7468
    %v7523 = vunpack.c.h.b16 %v7468
    %v7524 = vunpack.c.l.b16 %v7469
    %v7525 = vunpack.c.h.b16 %v7469
    %v7526 = vunpack.c.l.b16 %v7470
    %v7527 = vunpack.c.h.b16 %v7470
    %v7528 = vunpack.c.l.b16 %v7471
    %v7529 = vunpack.c.h.b16 %v7471
    %v7530 = vunpack.c.l.b16 %v7472
    %v7531 = vunpack.c.h.b16 %v7472
    %v7532 = vunpack.c.l.b16 %v7473
    %v7533 = vunpack.c.h.b16 %v7473
    %v7534 = vunpack.c.l.b16 %v7474
    %v7535 = vunpack.c.h.b16 %v7474
    %v7536 = vunpack.c.l.b16 %v7475
    %v7537 = vunpack.c.h.b16 %v7475
    %v7538 = vunpack.c.l.b16 %v7476
    %v7539 = vunpack.c.h.b16 %v7476
    %v7540 = vunpack.c.l.b16 %v7477
    %v7541 = vunpack.c.h.b16 %v7477
    %v7542 = vunpack.c.l.b16 %v7478
    %v7543 = vunpack.c.h.b16 %v7478
    %v7544 = vunpack.c.l.b16 %v7479
    %v7545 = vunpack.c.h.b16 %v7479
    %v7546 = vunpack.c.l.b16 %v7480
    %v7547 = vunpack.c.h.b16 %v7480
    %v7548 = vunpack.c.l.b16 %v7481
    %v7549 = vunpack.c.h.b16 %v7481
    %v7550 = vunpack.c.l.b16 %v7482
    %v7551 = vunpack.c.h.b16 %v7482
    %v7552 = vunpack.c.l.b16 %v7483
    %v7553 = vunpack.c.h.b16 %v7483
    %v7554 = vunpack.c.l.b16 %v7484
    %v7555 = vunpack.c.h.b16 %v7484
    %v7556 = vunpack.c.l.b16 %v7485
    %v7557 = vunpack.c.h.b16 %v7485
    %v7558 = vpack.c.b16 %v7512, %v7510
    %v7559 = vpack.c.b16 %v7513, %v7511
    %v7560 = vpack.c.b16 %v7516, %v7514
    %v7561 = vpack.c.b16 %v7517, %v7515
    %v7562 = vpack.c.b16 %v7520, %v7518
    %v7563 = vpack.c.b16 %v7521, %v7519
    %v7564 = vpack.c.b16 %v7524, %v7522
    %v7565 = vpack.c.b16 %v7525, %v7523
    %v7566 = vpack.c.b16 %v7528, %v7526
    %v7567 = vpack.c.b16 %v7529, %v7527
    %v7568 = vpack.c.b16 %v7532, %v7530
    %v7569 = vpack.c.b16 %v7533, %v7531
    %v7570 = vpack.c.b16 %v7536, %v7534
    %v7571 = vpack.c.b16 %v7537, %v7535
    %v7572 = vpack.c.b16 %v7540, %v7538
    %v7573 = vpack.c.b16 %v7541, %v7539
    %v7574 = vpack.c.b16 %v7544, %v7542
    %v7575 = vpack.c.b16 %v7545, %v7543
    %v7576 = vpack.c.b16 %v7548, %v7546
    %v7577 = vpack.c.b16 %v7549, %v7547
    %v7578 = vpack.c.b16 %v7552, %v7550
    %v7579 = vpack.c.b16 %v7553, %v7551
    %v7580 = vpack.c.b16 %v7556, %v7554
    %v7581 = vpack.c.b16 %v7557, %v7555
    %v7607 = vsel %vm804, %v7461, 0
    %7609 = vmatprep.subr.bf16.mxu0 %v7559
    %7610 = vmatpush1.bf16.msra.mxu0 %v7558
    %7611 = vmatprep.subr.bf16.mxu0 %v7561
    %7612 = vmatpush1.bf16.msra.mxu0 %v7560
    %7613 = vmatprep.subr.bf16.mxu0 %v7563
    %7614 = vmatpush1.bf16.msra.mxu0 %v7562
    %7615 = vmatprep.subr.bf16.mxu0 %v7565
    %7616 = vmatpush1.bf16.msra.mxu0 %v7564
    %7617 = vmatprep.subr.bf16.mxu0 %v7567
    %7618 = vmatpush1.bf16.msra.mxu0 %v7566
    %7619 = vmatprep.subr.bf16.mxu0 %v7569
    %7620 = vmatpush1.bf16.msra.mxu0 %v7568
    %7621 = vmatprep.subr.bf16.mxu0 %v7571
    %7622 = vmatpush1.bf16.msra.mxu0 %v7570
    %7623 = vmatprep.subr.bf16.mxu0 %v7573
    %7624 = vmatpush1.bf16.msra.mxu0 %v7572
    %7625 = vmatprep.subr.bf16.mxu0 %v7575
    %7626 = vmatpush1.bf16.msra.mxu0 %v7574
    %7627 = vmatprep.subr.bf16.mxu0 %v7577
    %7628 = vmatpush1.bf16.msra.mxu0 %v7576
    %7629 = vmatprep.subr.bf16.mxu0 %v7579
    %7630 = vmatpush1.bf16.msra.mxu0 %v7578
    %7631 = vmatprep.subr.bf16.mxu0 %v7581
    %7632 = vmatpush1.bf16.msra.mxu0 %v7580
    %7633 = vmatprep.subr.bf16.mxu0 0
    %7634 = vmatpush1.bf16.msra.mxu0 0
    %7635 = vmatprep.subr.bf16.mxu0 0
    %7636 = vmatpush1.bf16.msra.mxu0 0
    %7637 = vmatprep.subr.bf16.mxu0 0
    %7638 = vmatpush1.bf16.msra.mxu0 0
    %7639 = vmatprep.subr.bf16.mxu0 0
    %7640 = vmatpush1.bf16.msra.mxu0 0
    %7641 = vmatprep.mubr.bf16.mxu0 %v7607
    %7642 = vmatmul.mubr.bf16.gmra.mrb[0].mxu0 %v7460
    %v7643 = vpop.f32.mrb[0].mxu0
    %v7644 = vadd.f32 0.0, %v7643
    %v7645 = vpop.f32.mrb[0].mxu0
    %v7646 = vadd.f32 0.0, %v7645
    %v7647 = vpop.f32.mrb[0].mxu0
    %v7648 = vadd.f32 0.0, %v7647
    %v7649 = vpop.f32.mrb[0].mxu0
    %v7650 = vadd.f32 0.0, %v7649
    %7651 = vdwg.mxu0
    %v7652 = vld [vmem:[#allocation17] ss:$2 sm:$0x3]
    %v7654 = vlaneseq
    %v7655 = vshrl.u32 %v7654, 7
    %v7656 = vsub.s32 0, %v7655
    %v7657 = vrot.slane %v7652, %v7656
    %v7658 = vlaneseq
    %v7659 = vshrl.u32 %v7658, 7
    %v7660 = vsub.s32 1, %v7659
    %v7661 = vrot.slane %v7652, %v7660
    %v7664 = vmul.f32 %v7644, %v7657
    %v7665 = vmul.f32 %v7646, %v7661
    %v7666 = vmul.f32 %v7648, %v7657
    %v7667 = vmul.f32 %v7650, %v7661
    %s7668 = scalar_lea.vmem [#allocation17], 1
    %v7669 = vld [vmem:[%s7668] ss:$2 sm:$0x3]
    %v7671 = vlaneseq
    %v7672 = vshrl.u32 %v7671, 7
    %v7673 = vsub.s32 0, %v7672
    %v7674 = vrot.slane %v7669, %v7673
    %v7675 = vlaneseq
    %v7676 = vshrl.u32 %v7675, 7
    %v7677 = vsub.s32 1, %v7676
    %v7678 = vrot.slane %v7669, %v7677
    %v7681 = vadd.f32 %v7664, %v7674
    %v7682 = vadd.f32 %v7665, %v7678
    %v7683 = vadd.f32 %v7666, %v7674
    %v7684 = vadd.f32 %v7667, %v7678
    %v7685 = vmax.f32 %v7681, 0.0
    %v7686 = vmax.f32 %v7682, 0.0
    %v7687 = vmax.f32 %v7683, 0.0
    %v7688 = vmax.f32 %v7684, 0.0
    %v7689 = vpack.c.bf16 %v7687, %v7685
    %v7690 = vpack.c.bf16 %v7688, %v7686
    %v7691 = vld [vmem:[#allocation18] sm:$0xf]
    %v7692 = vld [vmem:[#allocation18 + $0x4] sm:$0xf]
    %v7693 = vld [vmem:[#allocation18 + $0x8] sm:$0xf]
    %v7694 = vld [vmem:[#allocation18 + $0xc] sm:$0xf]
    %v7695 = vld [vmem:[#allocation18 + $0x10] sm:$0xf]
    %v7696 = vld [vmem:[#allocation18 + $0x14] sm:$0xf]
    %v7697 = vld [vmem:[#allocation18 + $0x18] sm:$0xf]
    %v7698 = vld [vmem:[#allocation18 + $0x1c] sm:$0xf]
    %v7699 = vld [vmem:[#allocation18 + $0x20] sm:$0xf]
    %v7700 = vld [vmem:[#allocation18 + $0x24] sm:$0xf]
    %v7701 = vld [vmem:[#allocation18 + $0x28] sm:$0xf]
    %v7702 = vld [vmem:[#allocation18 + $0x2c] sm:$0xf]
    %v7703 = vld [vmem:[#allocation18 + $0x30] sm:$0xf]
    %v7704 = vld [vmem:[#allocation18 + $0x34] sm:$0xf]
    %v7705 = vld [vmem:[#allocation18 + $0x38] sm:$0xf]
    %v7706 = vld [vmem:[#allocation18 + $0x3c] sm:$0xf]
    %v7707 = vld [vmem:[#allocation18 + $0x40] sm:$0xf]
    %v7708 = vld [vmem:[#allocation18 + $0x44] sm:$0xf]
    %v7709 = vld [vmem:[#allocation18 + $0x48] sm:$0xf]
    %v7710 = vld [vmem:[#allocation18 + $0x4c] sm:$0xf]
    %v7711 = vld [vmem:[#allocation18 + $0x50] sm:$0xf]
    %v7712 = vld [vmem:[#allocation18 + $0x54] sm:$0xf]
    %v7713 = vld [vmem:[#allocation18 + $0x58] sm:$0xf]
    %v7714 = vld [vmem:[#allocation18 + $0x5c] sm:$0xf]
    %v7715 = vld [vmem:[#allocation20] sm:$0x1]
    %v7717 = vlaneseq
    %v7718 = vshrl.u32 %v7717, 7
    %v7719 = vsub.s32 0, %v7718
    %v7720 = vrot.slane %v7715, %v7719
    %v7746 = vunpack.c.l.b16 %v7691
    %v7747 = vunpack.c.l.b16 %v7692
    %v7748 = vunpack.c.l.b16 %v7693
    %v7749 = vunpack.c.l.b16 %v7694
    %v7750 = vunpack.c.l.b16 %v7695
    %v7751 = vunpack.c.l.b16 %v7696
    %v7752 = vunpack.c.l.b16 %v7697
    %v7753 = vunpack.c.l.b16 %v7698
    %v7754 = vunpack.c.l.b16 %v7699
    %v7755 = vunpack.c.l.b16 %v7700
    %v7756 = vunpack.c.l.b16 %v7701
    %v7757 = vunpack.c.l.b16 %v7702
    %v7758 = vunpack.c.l.b16 %v7703
    %v7759 = vunpack.c.l.b16 %v7704
    %v7760 = vunpack.c.l.b16 %v7705
    %v7761 = vunpack.c.l.b16 %v7706
    %v7762 = vunpack.c.l.b16 %v7707
    %v7763 = vunpack.c.l.b16 %v7708
    %v7764 = vunpack.c.l.b16 %v7709
    %v7765 = vunpack.c.l.b16 %v7710
    %v7766 = vunpack.c.l.b16 %v7711
    %v7767 = vunpack.c.l.b16 %v7712
    %v7768 = vunpack.c.l.b16 %v7713
    %v7769 = vunpack.c.l.b16 %v7714
    %v7770 = vpack.c.b16 %v7747, %v7746
    %v7771 = vpack.c.b16 %v7749, %v7748
    %v7772 = vpack.c.b16 %v7751, %v7750
    %v7773 = vpack.c.b16 %v7753, %v7752
    %v7774 = vpack.c.b16 %v7755, %v7754
    %v7775 = vpack.c.b16 %v7757, %v7756
    %v7776 = vpack.c.b16 %v7759, %v7758
    %v7777 = vpack.c.b16 %v7761, %v7760
    %v7778 = vpack.c.b16 %v7763, %v7762
    %v7779 = vpack.c.b16 %v7765, %v7764
    %v7780 = vpack.c.b16 %v7767, %v7766
    %v7781 = vpack.c.b16 %v7769, %v7768
    %v7795 = vsel %vm804, %v7690, 0
    %7797 = vmatprep.subr.bf16.mxu0 0
    %7798 = vmatpush1.bf16.msra.mxu0 %v7770
    %7799 = vmatprep.subr.bf16.mxu0 0
    %7800 = vmatpush1.bf16.msra.mxu0 %v7771
    %7801 = vmatprep.subr.bf16.mxu0 0
    %7802 = vmatpush1.bf16.msra.mxu0 %v7772
    %7803 = vmatprep.subr.bf16.mxu0 0
    %7804 = vmatpush1.bf16.msra.mxu0 %v7773
    %7805 = vmatprep.subr.bf16.mxu0 0
    %7806 = vmatpush1.bf16.msra.mxu0 %v7774
    %7807 = vmatprep.subr.bf16.mxu0 0
    %7808 = vmatpush1.bf16.msra.mxu0 %v7775
    %7809 = vmatprep.subr.bf16.mxu0 0
    %7810 = vmatpush1.bf16.msra.mxu0 %v7776
    %7811 = vmatprep.subr.bf16.mxu0 0
    %7812 = vmatpush1.bf16.msra.mxu0 %v7777
    %7813 = vmatprep.subr.bf16.mxu0 0
    %7814 = vmatpush1.bf16.msra.mxu0 %v7778
    %7815 = vmatprep.subr.bf16.mxu0 0
    %7816 = vmatpush1.bf16.msra.mxu0 %v7779
    %7817 = vmatprep.subr.bf16.mxu0 0
    %7818 = vmatpush1.bf16.msra.mxu0 %v7780
    %7819 = vmatprep.subr.bf16.mxu0 0
    %7820 = vmatpush1.bf16.msra.mxu0 %v7781
    %7821 = vmatprep.subr.bf16.mxu0 0
    %7822 = vmatpush1.bf16.msra.mxu0 0
    %7823 = vmatprep.subr.bf16.mxu0 0
    %7824 = vmatpush1.bf16.msra.mxu0 0
    %7825 = vmatprep.subr.bf16.mxu0 0
    %7826 = vmatpush1.bf16.msra.mxu0 0
    %7827 = vmatprep.subr.bf16.mxu0 0
    %7828 = vmatpush1.bf16.msra.mxu0 0
    %7829 = vmatprep.mubr.bf16.mxu0 %v7795
    %7830 = vmatmul.mubr.bf16.gmra.mrb[0].mxu0 %v7689
    %v7831 = vpop.f32.mrb[0].mxu0
    %v7832 = vadd.f32 %v7720, %v7831
    %v7833 = vpop.f32.mrb[0].mxu0
    %v7834 = vpop.f32.mrb[0].mxu0
    %v7835 = vadd.f32 %v7720, %v7834
    %v7836 = vpop.f32.mrb[0].mxu0
    %7837 = vdwg.mxu0
    %7838 = vst [vmem:[#allocation21] sm:$0xff] %v7832
    %7839 = vst [vmem:[#allocation21 + $0x8] sm:$0xff] %v7835
    // Predicated region
    $region90: #{connect4_forward.1} parent=1 // pred_check
      _
    $region91: #{connect4_forward.1} parent=1 // pred_check_branch
      %7841 = sbr.rel (0) target = $region93
    $region92: #{connect4_forward.1} parent=1 // pred_region
      %s7843 = ssub.s32 256, 256
      %7844 = vsyncadd [#allocation5], %s7843
      %s7845 = sshll.u32 [#allocation21], 4
      %s7846 = int_to_ptr.vmem [resolvable:$true] %s7845
      %7851 = dma.vmem_to_hbm [thread:$0]  %s7846, 256, %s11, [#allocation5], 128, 128, 8
    $region93: #{connect4_forward.1} parent=1 // pred_fallthru
      _
    // Predicated region
    $region94: #{connect4_forward.1} parent=1 // pred_check
      _
    $region95: #{connect4_forward.1} parent=1 // pred_check_branch
      %7853 = sbr.rel (0) target = $region97
    $region96: #{connect4_forward.1} parent=1 // pred_region
      %7854 = dma.done [#allocation5], 256
    $region97: #{connect4_forward.1} parent=1 // pred_fallthru
      _
    %7855 = vsyncpa [#allocation4], 1
    %7856 = vsyncpa [#allocation7], 1
    %7857 = vsyncpa [#allocation10], 1
    %7858 = vsyncpa [#allocation13], 1
    %7859 = vsyncpa [#allocation16], 1
    %7860 = vsyncpa [#allocation19], 1
    %7861 = vsyncpa [#allocation5], 1

</llo_original>
